<compile_context>
chip_gen: v7x
topology: tpu7x:2x2x1
jax: 0.10.0
libtpu: 0.0.40
codegen_flags: <defaults>
</compile_context>

<pallas_src>
import jax
import jax.numpy as jnp
from jax.experimental import pallas as pl
from jax.experimental.pallas import tpu as pltpu

LANE = 128
VMEM_LIMIT = 32 * 1024 * 1024


def _round_up(x, m):
    return (x + m - 1) // m * m


# ---------------- fused conv3x3 + bias + ReLU + maxpool(2) kernel ----------------

def _conv_relu_pool_kernel(x_ref, w_ref, b_ref, o_ref):
    # x_ref: (1, Hp, Wp/2, 2*Cin)   bf16  spatially padded NHWC image, width-paired
    # w_ref: (3, 2, 2*Cin, 2*Cpad)  bf16  [even|odd]-pixel filter taps (see prep)
    # b_ref: (1, Cpad)              f32
    # o_ref: (1, Ho, Wo, Cpad)      bf16  pooled output, lane-dense channels
    _, n_ho, wo, cpad = o_ref.shape
    bias = jnp.broadcast_to(b_ref[...], (wo, cpad))       # hoisted out of the row loop
    for ho in range(n_ho):                                # static unroll (small)
        m = None
        for dr in range(2):                               # the two conv rows pooled into ho
            r = 2 * ho + dr
            acc = None
            for kh in range(3):
                p0 = x_ref[0, r + kh, 0:wo, :]            # column pairs j     -> (Wo, 2Cin)
                p1 = x_ref[0, r + kh, 1:wo + 1, :]        # column pairs j + 1 -> (Wo, 2Cin)
                t = (jnp.dot(p0, w_ref[kh, 0], preferred_element_type=jnp.float32)
                     + jnp.dot(p1, w_ref[kh, 1], preferred_element_type=jnp.float32))
                acc = t if acc is None else acc + t       # (Wo, 2*Cpad) f32
            # lanes [:Cpad] = even output pixels, [Cpad:] = odd -> horizontal pool
            pair_max = jnp.maximum(acc[:, :cpad], acc[:, cpad:])
            m = pair_max if m is None else jnp.maximum(m, pair_max)   # vertical pool
        # max(relu(x+b)) == relu(max(x)+b): bias+ReLU once, on the pooled accumulator
        o_ref[0, ho] = jnp.maximum(m + bias, 0.0).astype(o_ref.dtype)


def conv_relu_pool(xpair, wk, bias, ho, wo, cpad):
    n, hp, wp2, cin2 = xpair.shape
    return pl.pallas_call(
        _conv_relu_pool_kernel,
        out_shape=jax.ShapeDtypeStruct((n, ho, wo, cpad), jnp.bfloat16),
        grid=(n,),
        in_specs=[
            pl.BlockSpec((1, hp, wp2, cin2), lambda i: (i, 0, 0, 0)),
            pl.BlockSpec(wk.shape, lambda i: (0, 0, 0, 0)),     # resident weights
            pl.BlockSpec(bias.shape, lambda i: (0, 0)),         # resident bias
        ],
        out_specs=pl.BlockSpec((1, ho, wo, cpad), lambda i: (i, 0, 0, 0)),
        compiler_params=pltpu.CompilerParams(
            dimension_semantics=("parallel",),
            vmem_limit_bytes=VMEM_LIMIT,
        ),
    )(xpair, wk, bias)


# ---------------- fused classifier kernel: Linear->ReLU->Linear->ReLU->Linear ----

def _mlp_kernel(x_ref, w1_ref, b1_ref, w2_ref, b2_ref, w3_ref, b3_ref, o_ref):
    h = jnp.dot(x_ref[...], w1_ref[...], preferred_element_type=jnp.float32) + b1_ref[...]
    h = jnp.maximum(h, 0.0).astype(jnp.bfloat16)
    h = jnp.dot(h, w2_ref[...], preferred_element_type=jnp.float32) + b2_ref[...]
    h = jnp.maximum(h, 0.0).astype(jnp.bfloat16)
    out = jnp.dot(h, w3_ref[...], preferred_element_type=jnp.float32) + b3_ref[...]
    o_ref[...] = out.astype(o_ref.dtype)


def mlp(x, w1, b1, w2, b2, w3, b3, tile_m):
    m, k = x.shape
    h1, h2, npad = w1.shape[1], w2.shape[1], w3.shape[1]
    return pl.pallas_call(
        _mlp_kernel,
        out_shape=jax.ShapeDtypeStruct((m, npad), jnp.float32),
        grid=(m // tile_m,),
        in_specs=[
            pl.BlockSpec((tile_m, k), lambda i: (i, 0)),
            pl.BlockSpec((k, h1), lambda i: (0, 0)),
            pl.BlockSpec((1, h1), lambda i: (0, 0)),
            pl.BlockSpec((h1, h2), lambda i: (0, 0)),
            pl.BlockSpec((1, h2), lambda i: (0, 0)),
            pl.BlockSpec((h2, npad), lambda i: (0, 0)),
            pl.BlockSpec((1, npad), lambda i: (0, 0)),
        ],
        out_specs=pl.BlockSpec((tile_m, npad), lambda i: (i, 0)),
        compiler_params=pltpu.CompilerParams(
            dimension_semantics=("parallel",),
            vmem_limit_bytes=VMEM_LIMIT,
        ),
    )(x, w1, b1, w2, b2, w3, b3)


# ---------------- parameter prep (JAX glue, runs once per layer) ----------------

def _prep_conv_weights(wt, bt, cpad):
    # wt: (Cout, Cin, 3, 3) PyTorch layout ; bt: (Cout,)
    cout = wt.shape[0]
    wm = jnp.transpose(wt, (2, 3, 1, 0))                              # (3, 3, Cin, Cout)
    wm = jnp.pad(wm, ((0, 0), (0, 0), (0, 0), (0, cpad - cout)))      # pad Cout -> 128 lanes
    zero = jnp.zeros_like(wm[:, 0])                                   # (3, Cin, Cpad)
    # even output pixel w=2j uses cols (2j,2j+1) of pair j and (2j+2) of pair j+1
    even0 = jnp.concatenate([wm[:, 0], wm[:, 1]], axis=1)             # (3, 2Cin, Cpad)
    even1 = jnp.concatenate([wm[:, 2], zero], axis=1)
    # odd output pixel w=2j+1 uses col (2j+1) of pair j and (2j+2,2j+3) of pair j+1
    odd0 = jnp.concatenate([zero, wm[:, 0]], axis=1)
    odd1 = jnp.concatenate([wm[:, 1], wm[:, 2]], axis=1)
    wcat0 = jnp.concatenate([even0, odd0], axis=2)                    # (3, 2Cin, 2Cpad)
    wcat1 = jnp.concatenate([even1, odd1], axis=2)
    wk = jnp.stack([wcat0, wcat1], axis=1).astype(jnp.bfloat16)       # (3, 2, 2Cin, 2Cpad)
    bias = jnp.pad(bt, (0, cpad - cout)).reshape(1, cpad).astype(jnp.float32)
    return wk, bias


def build_params(key, input_channels, input_size, num_classes=10):
    """Mirror the PyTorch constructor's layer-shape logic, deterministic init."""
    conv_params = []
    c = input_channels
    cw, ch = input_size
    final_dim = (8, 8)
    keys = iter(jax.random.split(key, 64))

    def uniform(shape, bound):
        return jax.random.uniform(next(keys), shape, jnp.float32, -bound, bound)

    while cw > final_dim[0] and ch > final_dim[1]:
        cout = c * 2
        bound = 1.0 / ((c * 9) ** 0.5)
        w = uniform((cout, c, 3, 3), bound)    # PyTorch [Cout, Cin, Kh, Kw]
        b = uniform((cout,), bound)
        conv_params.append((w, b))
        c = cout
        cw = (cw + 2 - 3) // 1 + 1
        ch = (ch + 2 - 3) // 1 + 1
        cw //= 2
        ch //= 2

    fc_size = c * cw * ch

    def linear(n_in, n_out):
        bound = 1.0 / (n_in ** 0.5)
        # stored transposed ([in, out]) so kernels do x @ W
        return uniform((n_in, n_out), bound), uniform((1, n_out), bound)

    w1, b1 = linear(fc_size, fc_size // 2)
    w2, b2 = linear(fc_size // 2, 512)
    w3, b3 = linear(512, num_classes)
    return conv_params, (w1, b1, w2, b2, w3, b3)


# ---------------- forward ----------------

def forward(x, conv_params, fc_params, num_classes):
    n = x.shape[0]
    w1, b1, w2, b2, w3, b3 = fc_params

    if conv_params:
        y = jnp.transpose(x, (0, 2, 3, 1))                 # single boundary permute NCHW->NHWC
        for wt, bt in conv_params:
            _, hh, ww, cin = y.shape
            assert hh % 2 == 0 and ww % 2 == 0
            cout = wt.shape[0]
            cpad = _round_up(cout, LANE)
            yp = jnp.pad(y, ((0, 0), (1, 1), (1, 1), (0, 0)))          # spatial pad = 1
            hp, wp = hh + 2, ww + 2
            xpair = yp.reshape(n, hp, wp // 2, 2 * cin).astype(jnp.bfloat16)  # pair width cols
            wk, bias = _prep_conv_weights(wt, bt, cpad)
            ho, wo = hh // 2, ww // 2
            y = conv_relu_pool(xpair, wk, bias, ho, wo, cpad)[..., :cout]     # NHWC bf16

        # Flatten activations in their native (h, w, c) order (no transpose);
        # fold nn.Flatten's CHW ordering into a prep-time row permutation of w1.
        n_, ho_, wo_, c_ = y.shape
        flat = y.reshape(n_, ho_ * wo_ * c_)
        h1 = w1.shape[1]
        w1 = jnp.transpose(w1.reshape(c_, ho_, wo_, h1), (1, 2, 0, 3)).reshape(-1, h1)
    else:
        flat = x.reshape(n, -1)                            # no conv layers: CHW flatten directly

    # Zero-pad hidden / class dims to 128-lane multiples so every matmul is lane-dense.
    h1, h2 = w1.shape[1], w2.shape[1]
    h1p, h2p = _round_up(h1, LANE), _round_up(h2, LANE)
    out_pad = _round_up(num_classes, LANE)
    w1p = jnp.pad(w1, ((0, 0), (0, h1p - h1)))
    b1p = jnp.pad(b1, ((0, 0), (0, h1p - h1)))
    w2p = jnp.pad(w2, ((0, h1p - h1), (0, h2p - h2)))
    b2p = jnp.pad(b2, ((0, 0), (0, h2p - h2)))
    w3p = jnp.pad(w3, ((0, h2p - h2), (0, out_pad - num_classes)))
    b3p = jnp.pad(b3, ((0, 0), (0, out_pad - num_classes)))

    tile_m = min(128, _round_up(n, 8))
    m_pad = _round_up(n, tile_m)
    xf = jnp.pad(flat, ((0, m_pad - n), (0, 0))).astype(jnp.bfloat16)
    logits = mlp(xf,
                 w1p.astype(jnp.bfloat16), b1p.astype(jnp.float32),
                 w2p.astype(jnp.bfloat16), b2p.astype(jnp.float32),
                 w3p.astype(jnp.bfloat16), b3p.astype(jnp.float32),
                 tile_m)
    return logits[:n, :num_classes]


# ---------------- pure-JAX reference (f32) for a correctness self-check ----------

def reference_forward(x, conv_params, fc_params):
    y = x
    for wt, bt in conv_params:
        y = jax.lax.conv_general_dilated(
            y, wt, window_strides=(1, 1), padding=((1, 1), (1, 1)),
            dimension_numbers=("NCHW", "OIHW", "NCHW"),
            precision=jax.lax.Precision.HIGHEST)
        y = jnp.maximum(y + bt.reshape(1, -1, 1, 1), 0.0)
        n_, c_, hh, ww = y.shape
        y = y.reshape(n_, c_, hh // 2, 2, ww // 2, 2).max(axis=(3, 5))
    flat = y.reshape(y.shape[0], -1)
    w1, b1, w2, b2, w3, b3 = fc_params
    hi = jax.lax.Precision.HIGHEST
    h = jnp.maximum(jnp.dot(flat, w1, precision=hi) + b1, 0.0)
    h = jnp.maximum(jnp.dot(h, w2, precision=hi) + b2, 0.0)
    return jnp.dot(h, w3, precision=hi) + b3


if __name__ == "__main__":
    key = jax.random.PRNGKey(0)
    k_param, k_x = jax.random.split(key)

    input_channels, input_size, num_classes = 4, (16, 16), 10
    conv_params, fc_params = build_params(k_param, input_channels, input_size, num_classes)
    # One conv block (4->8 ch, 16x16 -> 8x8), fc_size = 8*8*8 = 512.

    x = jax.random.normal(k_x, (2, input_channels, *input_size), jnp.float32)
    out = jax.block_until_ready(forward(x, conv_params, fc_params, num_classes))
    assert out.shape == (2, num_classes), out.shape

    ref = reference_forward(x, conv_params, fc_params)
    max_err = float(jnp.max(jnp.abs(out - ref)))
    assert max_err < 5e-2, f"max abs error vs reference: {max_err}"
    print("KERNEL_OK")
</pallas_src>

<mosaic_0001>
module attributes {stable_mosaic.version = 11 : i64} {
  func.func @_conv_relu_pool_kernel(%arg0: i32, %arg1: memref<1x18x9x8xbf16, #tpu.memory_space<vmem>>, %arg2: memref<3x2x8x256xbf16, #tpu.memory_space<vmem>>, %arg3: memref<1x128xf32, #tpu.memory_space<vmem>>, %arg4: memref<1x8x8x128xbf16, #tpu.memory_space<vmem>>) attributes {dimension_semantics = [#tpu.dimension_semantics<parallel>], iteration_bounds = array<i64: 2>, scalar_prefetch = 0 : i64, scratch_operands = 0 : i64, tpu.core_type = #tpu.core_type<tc>, window_params = [{transform_indices = @transform_0, window_bounds = array<i64: 1, 18, 9, 8>}, {pipeline_mode = #tpu.pipeline_mode<synchronous>, transform_indices = @transform_1, window_bounds = array<i64: 3, 2, 8, 256>}, {pipeline_mode = #tpu.pipeline_mode<synchronous>, transform_indices = @transform_2, window_bounds = array<i64: 1, 128>}, {transform_indices = @transform_3, window_bounds = array<i64: 1, 8, 8, 128>}]} {
    %c0 = arith.constant 0 : index
    %c0_0 = arith.constant 0 : index
    %0 = vector.load %arg3[%c0, %c0_0] : memref<1x128xf32, #tpu.memory_space<vmem>>, vector<1x128xf32>
    %1 = vector.shape_cast %0 : vector<1x128xf32> to vector<1x128xf32>
    %2 = vector.broadcast %1 : vector<1x128xf32> to vector<8x128xf32>
    %c0_1 = arith.constant 0 : index
    %c0_2 = arith.constant 0 : index
    %c0_3 = arith.constant 0 : index
    %c0_4 = arith.constant 0 : index
    %3 = vector.load %arg1[%c0_1, %c0_2, %c0_3, %c0_4] : memref<1x18x9x8xbf16, #tpu.memory_space<vmem>>, vector<1x1x8x8xbf16>
    %4 = vector.shape_cast %3 : vector<1x1x8x8xbf16> to vector<8x8xbf16>
    %c0_5 = arith.constant 0 : index
    %c0_6 = arith.constant 0 : index
    %c1 = arith.constant 1 : index
    %c0_7 = arith.constant 0 : index
    %5 = vector.load %arg1[%c0_5, %c0_6, %c1, %c0_7] : memref<1x18x9x8xbf16, #tpu.memory_space<vmem>>, vector<1x1x8x8xbf16>
    %6 = vector.shape_cast %5 : vector<1x1x8x8xbf16> to vector<8x8xbf16>
    %c0_8 = arith.constant 0 : index
    %c0_9 = arith.constant 0 : index
    %c0_10 = arith.constant 0 : index
    %c0_11 = arith.constant 0 : index
    %7 = vector.load %arg2[%c0_8, %c0_9, %c0_10, %c0_11] : memref<3x2x8x256xbf16, #tpu.memory_space<vmem>>, vector<1x1x8x256xbf16>
    %8 = vector.shape_cast %7 : vector<1x1x8x256xbf16> to vector<8x256xbf16>
    %cst = arith.constant dense<0.000000e+00> : vector<8x256xf32>
    %9 = tpu.matmul %4, %8, %cst {dimension_numbers = #tpu.dot_dimension_numbers<[1], [0], [0], [1], [0, 0, 1, 1], [], []>} : vector<8x8xbf16>, vector<8x256xbf16>, vector<8x256xf32> -> vector<8x256xf32>
    %c0_12 = arith.constant 0 : index
    %c1_13 = arith.constant 1 : index
    %c0_14 = arith.constant 0 : index
    %c0_15 = arith.constant 0 : index
    %10 = vector.load %arg2[%c0_12, %c1_13, %c0_14, %c0_15] : memref<3x2x8x256xbf16, #tpu.memory_space<vmem>>, vector<1x1x8x256xbf16>
    %11 = vector.shape_cast %10 : vector<1x1x8x256xbf16> to vector<8x256xbf16>
    %cst_16 = arith.constant dense<0.000000e+00> : vector<8x256xf32>
    %12 = tpu.matmul %6, %11, %cst_16 {dimension_numbers = #tpu.dot_dimension_numbers<[1], [0], [0], [1], [0, 0, 1, 1], [], []>} : vector<8x8xbf16>, vector<8x256xbf16>, vector<8x256xf32> -> vector<8x256xf32>
    %13 = arith.addf %9, %12 : vector<8x256xf32>
    %c0_17 = arith.constant 0 : index
    %c1_18 = arith.constant 1 : index
    %c0_19 = arith.constant 0 : index
    %c0_20 = arith.constant 0 : index
    %14 = vector.load %arg1[%c0_17, %c1_18, %c0_19, %c0_20] : memref<1x18x9x8xbf16, #tpu.memory_space<vmem>>, vector<1x1x8x8xbf16>
    %15 = vector.shape_cast %14 : vector<1x1x8x8xbf16> to vector<8x8xbf16>
    %c0_21 = arith.constant 0 : index
    %c1_22 = arith.constant 1 : index
    %c1_23 = arith.constant 1 : index
    %c0_24 = arith.constant 0 : index
    %16 = vector.load %arg1[%c0_21, %c1_22, %c1_23, %c0_24] : memref<1x18x9x8xbf16, #tpu.memory_space<vmem>>, vector<1x1x8x8xbf16>
    %17 = vector.shape_cast %16 : vector<1x1x8x8xbf16> to vector<8x8xbf16>
    %c1_25 = arith.constant 1 : index
    %c0_26 = arith.constant 0 : index
    %c0_27 = arith.constant 0 : index
    %c0_28 = arith.constant 0 : index
    %18 = vector.load %arg2[%c1_25, %c0_26, %c0_27, %c0_28] : memref<3x2x8x256xbf16, #tpu.memory_space<vmem>>, vector<1x1x8x256xbf16>
    %19 = vector.shape_cast %18 : vector<1x1x8x256xbf16> to vector<8x256xbf16>
    %cst_29 = arith.constant dense<0.000000e+00> : vector<8x256xf32>
    %20 = tpu.matmul %15, %19, %cst_29 {dimension_numbers = #tpu.dot_dimension_numbers<[1], [0], [0], [1], [0, 0, 1, 1], [], []>} : vector<8x8xbf16>, vector<8x256xbf16>, vector<8x256xf32> -> vector<8x256xf32>
    %c1_30 = arith.constant 1 : index
    %c1_31 = arith.constant 1 : index
    %c0_32 = arith.constant 0 : index
    %c0_33 = arith.constant 0 : index
    %21 = vector.load %arg2[%c1_30, %c1_31, %c0_32, %c0_33] : memref<3x2x8x256xbf16, #tpu.memory_space<vmem>>, vector<1x1x8x256xbf16>
    %22 = vector.shape_cast %21 : vector<1x1x8x256xbf16> to vector<8x256xbf16>
    %cst_34 = arith.constant dense<0.000000e+00> : vector<8x256xf32>
    %23 = tpu.matmul %17, %22, %cst_34 {dimension_numbers = #tpu.dot_dimension_numbers<[1], [0], [0], [1], [0, 0, 1, 1], [], []>} : vector<8x8xbf16>, vector<8x256xbf16>, vector<8x256xf32> -> vector<8x256xf32>
    %24 = arith.addf %20, %23 : vector<8x256xf32>
    %25 = arith.addf %13, %24 : vector<8x256xf32>
    %c0_35 = arith.constant 0 : index
    %c2 = arith.constant 2 : index
    %c0_36 = arith.constant 0 : index
    %c0_37 = arith.constant 0 : index
    %26 = vector.load %arg1[%c0_35, %c2, %c0_36, %c0_37] : memref<1x18x9x8xbf16, #tpu.memory_space<vmem>>, vector<1x1x8x8xbf16>
    %27 = vector.shape_cast %26 : vector<1x1x8x8xbf16> to vector<8x8xbf16>
    %c0_38 = arith.constant 0 : index
    %c2_39 = arith.constant 2 : index
    %c1_40 = arith.constant 1 : index
    %c0_41 = arith.constant 0 : index
    %28 = vector.load %arg1[%c0_38, %c2_39, %c1_40, %c0_41] : memref<1x18x9x8xbf16, #tpu.memory_space<vmem>>, vector<1x1x8x8xbf16>
    %29 = vector.shape_cast %28 : vector<1x1x8x8xbf16> to vector<8x8xbf16>
    %c2_42 = arith.constant 2 : index
    %c0_43 = arith.constant 0 : index
    %c0_44 = arith.constant 0 : index
    %c0_45 = arith.constant 0 : index
    %30 = vector.load %arg2[%c2_42, %c0_43, %c0_44, %c0_45] : memref<3x2x8x256xbf16, #tpu.memory_space<vmem>>, vector<1x1x8x256xbf16>
    %31 = vector.shape_cast %30 : vector<1x1x8x256xbf16> to vector<8x256xbf16>
    %cst_46 = arith.constant dense<0.000000e+00> : vector<8x256xf32>
    %32 = tpu.matmul %27, %31, %cst_46 {dimension_numbers = #tpu.dot_dimension_numbers<[1], [0], [0], [1], [0, 0, 1, 1], [], []>} : vector<8x8xbf16>, vector<8x256xbf16>, vector<8x256xf32> -> vector<8x256xf32>
    %c2_47 = arith.constant 2 : index
    %c1_48 = arith.constant 1 : index
    %c0_49 = arith.constant 0 : index
    %c0_50 = arith.constant 0 : index
    %33 = vector.load %arg2[%c2_47, %c1_48, %c0_49, %c0_50] : memref<3x2x8x256xbf16, #tpu.memory_space<vmem>>, vector<1x1x8x256xbf16>
    %34 = vector.shape_cast %33 : vector<1x1x8x256xbf16> to vector<8x256xbf16>
    %cst_51 = arith.constant dense<0.000000e+00> : vector<8x256xf32>
    %35 = tpu.matmul %29, %34, %cst_51 {dimension_numbers = #tpu.dot_dimension_numbers<[1], [0], [0], [1], [0, 0, 1, 1], [], []>} : vector<8x8xbf16>, vector<8x256xbf16>, vector<8x256xf32> -> vector<8x256xf32>
    %36 = arith.addf %32, %35 : vector<8x256xf32>
    %37 = arith.addf %25, %36 : vector<8x256xf32>
    %38 = vector.extract_strided_slice %37 {offsets = [0, 0], sizes = [8, 128], strides = [1, 1]} : vector<8x256xf32> to vector<8x128xf32>
    %39 = vector.extract_strided_slice %37 {offsets = [0, 128], sizes = [8, 128], strides = [1, 1]} : vector<8x256xf32> to vector<8x128xf32>
    %40 = arith.maximumf %38, %39 : vector<8x128xf32>
    %c0_52 = arith.constant 0 : index
    %c1_53 = arith.constant 1 : index
    %c0_54 = arith.constant 0 : index
    %c0_55 = arith.constant 0 : index
    %41 = vector.load %arg1[%c0_52, %c1_53, %c0_54, %c0_55] : memref<1x18x9x8xbf16, #tpu.memory_space<vmem>>, vector<1x1x8x8xbf16>
    %42 = vector.shape_cast %41 : vector<1x1x8x8xbf16> to vector<8x8xbf16>
    %c0_56 = arith.constant 0 : index
    %c1_57 = arith.constant 1 : index
    %c1_58 = arith.constant 1 : index
    %c0_59 = arith.constant 0 : index
    %43 = vector.load %arg1[%c0_56, %c1_57, %c1_58, %c0_59] : memref<1x18x9x8xbf16, #tpu.memory_space<vmem>>, vector<1x1x8x8xbf16>
    %44 = vector.shape_cast %43 : vector<1x1x8x8xbf16> to vector<8x8xbf16>
    %c0_60 = arith.constant 0 : index
    %c0_61 = arith.constant 0 : index
    %c0_62 = arith.constant 0 : index
    %c0_63 = arith.constant 0 : index
    %45 = vector.load %arg2[%c0_60, %c0_61, %c0_62, %c0_63] : memref<3x2x8x256xbf16, #tpu.memory_space<vmem>>, vector<1x1x8x256xbf16>
    %46 = vector.shape_cast %45 : vector<1x1x8x256xbf16> to vector<8x256xbf16>
    %cst_64 = arith.constant dense<0.000000e+00> : vector<8x256xf32>
    %47 = tpu.matmul %42, %46, %cst_64 {dimension_numbers = #tpu.dot_dimension_numbers<[1], [0], [0], [1], [0, 0, 1, 1], [], []>} : vector<8x8xbf16>, vector<8x256xbf16>, vector<8x256xf32> -> vector<8x256xf32>
    %c0_65 = arith.constant 0 : index
    %c1_66 = arith.constant 1 : index
    %c0_67 = arith.constant 0 : index
    %c0_68 = arith.constant 0 : index
    %48 = vector.load %arg2[%c0_65, %c1_66, %c0_67, %c0_68] : memref<3x2x8x256xbf16, #tpu.memory_space<vmem>>, vector<1x1x8x256xbf16>
    %49 = vector.shape_cast %48 : vector<1x1x8x256xbf16> to vector<8x256xbf16>
    %cst_69 = arith.constant dense<0.000000e+00> : vector<8x256xf32>
    %50 = tpu.matmul %44, %49, %cst_69 {dimension_numbers = #tpu.dot_dimension_numbers<[1], [0], [0], [1], [0, 0, 1, 1], [], []>} : vector<8x8xbf16>, vector<8x256xbf16>, vector<8x256xf32> -> vector<8x256xf32>
    %51 = arith.addf %47, %50 : vector<8x256xf32>
    %c0_70 = arith.constant 0 : index
    %c2_71 = arith.constant 2 : index
    %c0_72 = arith.constant 0 : index
    %c0_73 = arith.constant 0 : index
    %52 = vector.load %arg1[%c0_70, %c2_71, %c0_72, %c0_73] : memref<1x18x9x8xbf16, #tpu.memory_space<vmem>>, vector<1x1x8x8xbf16>
    %53 = vector.shape_cast %52 : vector<1x1x8x8xbf16> to vector<8x8xbf16>
    %c0_74 = arith.constant 0 : index
    %c2_75 = arith.constant 2 : index
    %c1_76 = arith.constant 1 : index
    %c0_77 = arith.constant 0 : index
    %54 = vector.load %arg1[%c0_74, %c2_75, %c1_76, %c0_77] : memref<1x18x9x8xbf16, #tpu.memory_space<vmem>>, vector<1x1x8x8xbf16>
    %55 = vector.shape_cast %54 : vector<1x1x8x8xbf16> to vector<8x8xbf16>
    %c1_78 = arith.constant 1 : index
    %c0_79 = arith.constant 0 : index
    %c0_80 = arith.constant 0 : index
    %c0_81 = arith.constant 0 : index
    %56 = vector.load %arg2[%c1_78, %c0_79, %c0_80, %c0_81] : memref<3x2x8x256xbf16, #tpu.memory_space<vmem>>, vector<1x1x8x256xbf16>
    %57 = vector.shape_cast %56 : vector<1x1x8x256xbf16> to vector<8x256xbf16>
    %cst_82 = arith.constant dense<0.000000e+00> : vector<8x256xf32>
    %58 = tpu.matmul %53, %57, %cst_82 {dimension_numbers = #tpu.dot_dimension_numbers<[1], [0], [0], [1], [0, 0, 1, 1], [], []>} : vector<8x8xbf16>, vector<8x256xbf16>, vector<8x256xf32> -> vector<8x256xf32>
    %c1_83 = arith.constant 1 : index
    %c1_84 = arith.constant 1 : index
    %c0_85 = arith.constant 0 : index
    %c0_86 = arith.constant 0 : index
    %59 = vector.load %arg2[%c1_83, %c1_84, %c0_85, %c0_86] : memref<3x2x8x256xbf16, #tpu.memory_space<vmem>>, vector<1x1x8x256xbf16>
    %60 = vector.shape_cast %59 : vector<1x1x8x256xbf16> to vector<8x256xbf16>
    %cst_87 = arith.constant dense<0.000000e+00> : vector<8x256xf32>
    %61 = tpu.matmul %55, %60, %cst_87 {dimension_numbers = #tpu.dot_dimension_numbers<[1], [0], [0], [1], [0, 0, 1, 1], [], []>} : vector<8x8xbf16>, vector<8x256xbf16>, vector<8x256xf32> -> vector<8x256xf32>
    %62 = arith.addf %58, %61 : vector<8x256xf32>
    %63 = arith.addf %51, %62 : vector<8x256xf32>
    %c0_88 = arith.constant 0 : index
    %c3 = arith.constant 3 : index
    %c0_89 = arith.constant 0 : index
    %c0_90 = arith.constant 0 : index
    %64 = vector.load %arg1[%c0_88, %c3, %c0_89, %c0_90] : memref<1x18x9x8xbf16, #tpu.memory_space<vmem>>, vector<1x1x8x8xbf16>
    %65 = vector.shape_cast %64 : vector<1x1x8x8xbf16> to vector<8x8xbf16>
    %c0_91 = arith.constant 0 : index
    %c3_92 = arith.constant 3 : index
    %c1_93 = arith.constant 1 : index
    %c0_94 = arith.constant 0 : index
    %66 = vector.load %arg1[%c0_91, %c3_92, %c1_93, %c0_94] : memref<1x18x9x8xbf16, #tpu.memory_space<vmem>>, vector<1x1x8x8xbf16>
    %67 = vector.shape_cast %66 : vector<1x1x8x8xbf16> to vector<8x8xbf16>
    %c2_95 = arith.constant 2 : index
    %c0_96 = arith.constant 0 : index
    %c0_97 = arith.constant 0 : index
    %c0_98 = arith.constant 0 : index
    %68 = vector.load %arg2[%c2_95, %c0_96, %c0_97, %c0_98] : memref<3x2x8x256xbf16, #tpu.memory_space<vmem>>, vector<1x1x8x256xbf16>
    %69 = vector.shape_cast %68 : vector<1x1x8x256xbf16> to vector<8x256xbf16>
    %cst_99 = arith.constant dense<0.000000e+00> : vector<8x256xf32>
    %70 = tpu.matmul %65, %69, %cst_99 {dimension_numbers = #tpu.dot_dimension_numbers<[1], [0], [0], [1], [0, 0, 1, 1], [], []>} : vector<8x8xbf16>, vector<8x256xbf16>, vector<8x256xf32> -> vector<8x256xf32>
    %c2_100 = arith.constant 2 : index
    %c1_101 = arith.constant 1 : index
    %c0_102 = arith.constant 0 : index
    %c0_103 = arith.constant 0 : index
    %71 = vector.load %arg2[%c2_100, %c1_101, %c0_102, %c0_103] : memref<3x2x8x256xbf16, #tpu.memory_space<vmem>>, vector<1x1x8x256xbf16>
    %72 = vector.shape_cast %71 : vector<1x1x8x256xbf16> to vector<8x256xbf16>
    %cst_104 = arith.constant dense<0.000000e+00> : vector<8x256xf32>
    %73 = tpu.matmul %67, %72, %cst_104 {dimension_numbers = #tpu.dot_dimension_numbers<[1], [0], [0], [1], [0, 0, 1, 1], [], []>} : vector<8x8xbf16>, vector<8x256xbf16>, vector<8x256xf32> -> vector<8x256xf32>
    %74 = arith.addf %70, %73 : vector<8x256xf32>
    %75 = arith.addf %63, %74 : vector<8x256xf32>
    %76 = vector.extract_strided_slice %75 {offsets = [0, 0], sizes = [8, 128], strides = [1, 1]} : vector<8x256xf32> to vector<8x128xf32>
    %77 = vector.extract_strided_slice %75 {offsets = [0, 128], sizes = [8, 128], strides = [1, 1]} : vector<8x256xf32> to vector<8x128xf32>
    %78 = arith.maximumf %76, %77 : vector<8x128xf32>
    %79 = arith.maximumf %40, %78 : vector<8x128xf32>
    %80 = arith.addf %79, %2 : vector<8x128xf32>
    %cst_105 = arith.constant 0.000000e+00 : f32
    %81 = vector.broadcast %cst_105 : f32 to vector<8x128xf32>
    %82 = arith.maximumf %80, %81 : vector<8x128xf32>
    %83 = arith.truncf %82 : vector<8x128xf32> to vector<8x128xbf16>
    %c0_106 = arith.constant 0 : index
    %c0_107 = arith.constant 0 : index
    %c0_108 = arith.constant 0 : index
    %c0_109 = arith.constant 0 : index
    %84 = vector.load %arg4[%c0_106, %c0_107, %c0_108, %c0_109] : memref<1x8x8x128xbf16, #tpu.memory_space<vmem>>, vector<1x1x8x128xbf16>
    %85 = vector.shape_cast %84 : vector<1x1x8x128xbf16> to vector<8x128xbf16>
    %86 = vector.shape_cast %83 : vector<8x128xbf16> to vector<1x1x8x128xbf16>
    tpu.vector_store %arg4[%c0_106, %c0_107, %c0_108, %c0_109], %86 {strides = array<i32>} : memref<1x8x8x128xbf16, #tpu.memory_space<vmem>>, vector<1x1x8x128xbf16>,
    %c0_110 = arith.constant 0 : index
    %c2_111 = arith.constant 2 : index
    %c0_112 = arith.constant 0 : index
    %c0_113 = arith.constant 0 : index
    %87 = vector.load %arg1[%c0_110, %c2_111, %c0_112, %c0_113] : memref<1x18x9x8xbf16, #tpu.memory_space<vmem>>, vector<1x1x8x8xbf16>
    %88 = vector.shape_cast %87 : vector<1x1x8x8xbf16> to vector<8x8xbf16>
    %c0_114 = arith.constant 0 : index
    %c2_115 = arith.constant 2 : index
    %c1_116 = arith.constant 1 : index
    %c0_117 = arith.constant 0 : index
    %89 = vector.load %arg1[%c0_114, %c2_115, %c1_116, %c0_117] : memref<1x18x9x8xbf16, #tpu.memory_space<vmem>>, vector<1x1x8x8xbf16>
    %90 = vector.shape_cast %89 : vector<1x1x8x8xbf16> to vector<8x8xbf16>
    %c0_118 = arith.constant 0 : index
    %c0_119 = arith.constant 0 : index
    %c0_120 = arith.constant 0 : index
    %c0_121 = arith.constant 0 : index
    %91 = vector.load %arg2[%c0_118, %c0_119, %c0_120, %c0_121] : memref<3x2x8x256xbf16, #tpu.memory_space<vmem>>, vector<1x1x8x256xbf16>
    %92 = vector.shape_cast %91 : vector<1x1x8x256xbf16> to vector<8x256xbf16>
    %cst_122 = arith.constant dense<0.000000e+00> : vector<8x256xf32>
    %93 = tpu.matmul %88, %92, %cst_122 {dimension_numbers = #tpu.dot_dimension_numbers<[1], [0], [0], [1], [0, 0, 1, 1], [], []>} : vector<8x8xbf16>, vector<8x256xbf16>, vector<8x256xf32> -> vector<8x256xf32>
    %c0_123 = arith.constant 0 : index
    %c1_124 = arith.constant 1 : index
    %c0_125 = arith.constant 0 : index
    %c0_126 = arith.constant 0 : index
    %94 = vector.load %arg2[%c0_123, %c1_124, %c0_125, %c0_126] : memref<3x2x8x256xbf16, #tpu.memory_space<vmem>>, vector<1x1x8x256xbf16>
    %95 = vector.shape_cast %94 : vector<1x1x8x256xbf16> to vector<8x256xbf16>
    %cst_127 = arith.constant dense<0.000000e+00> : vector<8x256xf32>
    %96 = tpu.matmul %90, %95, %cst_127 {dimension_numbers = #tpu.dot_dimension_numbers<[1], [0], [0], [1], [0, 0, 1, 1], [], []>} : vector<8x8xbf16>, vector<8x256xbf16>, vector<8x256xf32> -> vector<8x256xf32>
    %97 = arith.addf %93, %96 : vector<8x256xf32>
    %c0_128 = arith.constant 0 : index
    %c3_129 = arith.constant 3 : index
    %c0_130 = arith.constant 0 : index
    %c0_131 = arith.constant 0 : index
    %98 = vector.load %arg1[%c0_128, %c3_129, %c0_130, %c0_131] : memref<1x18x9x8xbf16, #tpu.memory_space<vmem>>, vector<1x1x8x8xbf16>
    %99 = vector.shape_cast %98 : vector<1x1x8x8xbf16> to vector<8x8xbf16>
    %c0_132 = arith.constant 0 : index
    %c3_133 = arith.constant 3 : index
    %c1_134 = arith.constant 1 : index
    %c0_135 = arith.constant 0 : index
    %100 = vector.load %arg1[%c0_132, %c3_133, %c1_134, %c0_135] : memref<1x18x9x8xbf16, #tpu.memory_space<vmem>>, vector<1x1x8x8xbf16>
    %101 = vector.shape_cast %100 : vector<1x1x8x8xbf16> to vector<8x8xbf16>
    %c1_136 = arith.constant 1 : index
    %c0_137 = arith.constant 0 : index
    %c0_138 = arith.constant 0 : index
    %c0_139 = arith.constant 0 : index
    %102 = vector.load %arg2[%c1_136, %c0_137, %c0_138, %c0_139] : memref<3x2x8x256xbf16, #tpu.memory_space<vmem>>, vector<1x1x8x256xbf16>
    %103 = vector.shape_cast %102 : vector<1x1x8x256xbf16> to vector<8x256xbf16>
    %cst_140 = arith.constant dense<0.000000e+00> : vector<8x256xf32>
    %104 = tpu.matmul %99, %103, %cst_140 {dimension_numbers = #tpu.dot_dimension_numbers<[1], [0], [0], [1], [0, 0, 1, 1], [], []>} : vector<8x8xbf16>, vector<8x256xbf16>, vector<8x256xf32> -> vector<8x256xf32>
    %c1_141 = arith.constant 1 : index
    %c1_142 = arith.constant 1 : index
    %c0_143 = arith.constant 0 : index
    %c0_144 = arith.constant 0 : index
    %105 = vector.load %arg2[%c1_141, %c1_142, %c0_143, %c0_144] : memref<3x2x8x256xbf16, #tpu.memory_space<vmem>>, vector<1x1x8x256xbf16>
    %106 = vector.shape_cast %105 : vector<1x1x8x256xbf16> to vector<8x256xbf16>
    %cst_145 = arith.constant dense<0.000000e+00> : vector<8x256xf32>
    %107 = tpu.matmul %101, %106, %cst_145 {dimension_numbers = #tpu.dot_dimension_numbers<[1], [0], [0], [1], [0, 0, 1, 1], [], []>} : vector<8x8xbf16>, vector<8x256xbf16>, vector<8x256xf32> -> vector<8x256xf32>
    %108 = arith.addf %104, %107 : vector<8x256xf32>
    %109 = arith.addf %97, %108 : vector<8x256xf32>
    %c0_146 = arith.constant 0 : index
    %c4 = arith.constant 4 : index
    %c0_147 = arith.constant 0 : index
    %c0_148 = arith.constant 0 : index
    %110 = vector.load %arg1[%c0_146, %c4, %c0_147, %c0_148] : memref<1x18x9x8xbf16, #tpu.memory_space<vmem>>, vector<1x1x8x8xbf16>
    %111 = vector.shape_cast %110 : vector<1x1x8x8xbf16> to vector<8x8xbf16>
    %c0_149 = arith.constant 0 : index
    %c4_150 = arith.constant 4 : index
    %c1_151 = arith.constant 1 : index
    %c0_152 = arith.constant 0 : index
    %112 = vector.load %arg1[%c0_149, %c4_150, %c1_151, %c0_152] : memref<1x18x9x8xbf16, #tpu.memory_space<vmem>>, vector<1x1x8x8xbf16>
    %113 = vector.shape_cast %112 : vector<1x1x8x8xbf16> to vector<8x8xbf16>
    %c2_153 = arith.constant 2 : index
    %c0_154 = arith.constant 0 : index
    %c0_155 = arith.constant 0 : index
    %c0_156 = arith.constant 0 : index
    %114 = vector.load %arg2[%c2_153, %c0_154, %c0_155, %c0_156] : memref<3x2x8x256xbf16, #tpu.memory_space<vmem>>, vector<1x1x8x256xbf16>
    %115 = vector.shape_cast %114 : vector<1x1x8x256xbf16> to vector<8x256xbf16>
    %cst_157 = arith.constant dense<0.000000e+00> : vector<8x256xf32>
    %116 = tpu.matmul %111, %115, %cst_157 {dimension_numbers = #tpu.dot_dimension_numbers<[1], [0], [0], [1], [0, 0, 1, 1], [], []>} : vector<8x8xbf16>, vector<8x256xbf16>, vector<8x256xf32> -> vector<8x256xf32>
    %c2_158 = arith.constant 2 : index
    %c1_159 = arith.constant 1 : index
    %c0_160 = arith.constant 0 : index
    %c0_161 = arith.constant 0 : index
    %117 = vector.load %arg2[%c2_158, %c1_159, %c0_160, %c0_161] : memref<3x2x8x256xbf16, #tpu.memory_space<vmem>>, vector<1x1x8x256xbf16>
    %118 = vector.shape_cast %117 : vector<1x1x8x256xbf16> to vector<8x256xbf16>
    %cst_162 = arith.constant dense<0.000000e+00> : vector<8x256xf32>
    %119 = tpu.matmul %113, %118, %cst_162 {dimension_numbers = #tpu.dot_dimension_numbers<[1], [0], [0], [1], [0, 0, 1, 1], [], []>} : vector<8x8xbf16>, vector<8x256xbf16>, vector<8x256xf32> -> vector<8x256xf32>
    %120 = arith.addf %116, %119 : vector<8x256xf32>
    %121 = arith.addf %109, %120 : vector<8x256xf32>
    %122 = vector.extract_strided_slice %121 {offsets = [0, 0], sizes = [8, 128], strides = [1, 1]} : vector<8x256xf32> to vector<8x128xf32>
    %123 = vector.extract_strided_slice %121 {offsets = [0, 128], sizes = [8, 128], strides = [1, 1]} : vector<8x256xf32> to vector<8x128xf32>
    %124 = arith.maximumf %122, %123 : vector<8x128xf32>
    %c0_163 = arith.constant 0 : index
    %c3_164 = arith.constant 3 : index
    %c0_165 = arith.constant 0 : index
    %c0_166 = arith.constant 0 : index
    %125 = vector.load %arg1[%c0_163, %c3_164, %c0_165, %c0_166] : memref<1x18x9x8xbf16, #tpu.memory_space<vmem>>, vector<1x1x8x8xbf16>
    %126 = vector.shape_cast %125 : vector<1x1x8x8xbf16> to vector<8x8xbf16>
    %c0_167 = arith.constant 0 : index
    %c3_168 = arith.constant 3 : index
    %c1_169 = arith.constant 1 : index
    %c0_170 = arith.constant 0 : index
    %127 = vector.load %arg1[%c0_167, %c3_168, %c1_169, %c0_170] : memref<1x18x9x8xbf16, #tpu.memory_space<vmem>>, vector<1x1x8x8xbf16>
    %128 = vector.shape_cast %127 : vector<1x1x8x8xbf16> to vector<8x8xbf16>
    %c0_171 = arith.constant 0 : index
    %c0_172 = arith.constant 0 : index
    %c0_173 = arith.constant 0 : index
    %c0_174 = arith.constant 0 : index
    %129 = vector.load %arg2[%c0_171, %c0_172, %c0_173, %c0_174] : memref<3x2x8x256xbf16, #tpu.memory_space<vmem>>, vector<1x1x8x256xbf16>
    %130 = vector.shape_cast %129 : vector<1x1x8x256xbf16> to vector<8x256xbf16>
    %cst_175 = arith.constant dense<0.000000e+00> : vector<8x256xf32>
    %131 = tpu.matmul %126, %130, %cst_175 {dimension_numbers = #tpu.dot_dimension_numbers<[1], [0], [0], [1], [0, 0, 1, 1], [], []>} : vector<8x8xbf16>, vector<8x256xbf16>, vector<8x256xf32> -> vector<8x256xf32>
    %c0_176 = arith.constant 0 : index
    %c1_177 = arith.constant 1 : index
    %c0_178 = arith.constant 0 : index
    %c0_179 = arith.constant 0 : index
    %132 = vector.load %arg2[%c0_176, %c1_177, %c0_178, %c0_179] : memref<3x2x8x256xbf16, #tpu.memory_space<vmem>>, vector<1x1x8x256xbf16>
    %133 = vector.shape_cast %132 : vector<1x1x8x256xbf16> to vector<8x256xbf16>
    %cst_180 = arith.constant dense<0.000000e+00> : vector<8x256xf32>
    %134 = tpu.matmul %128, %133, %cst_180 {dimension_numbers = #tpu.dot_dimension_numbers<[1], [0], [0], [1], [0, 0, 1, 1], [], []>} : vector<8x8xbf16>, vector<8x256xbf16>, vector<8x256xf32> -> vector<8x256xf32>
    %135 = arith.addf %131, %134 : vector<8x256xf32>
    %c0_181 = arith.constant 0 : index
    %c4_182 = arith.constant 4 : index
    %c0_183 = arith.constant 0 : index
    %c0_184 = arith.constant 0 : index
    %136 = vector.load %arg1[%c0_181, %c4_182, %c0_183, %c0_184] : memref<1x18x9x8xbf16, #tpu.memory_space<vmem>>, vector<1x1x8x8xbf16>
    %137 = vector.shape_cast %136 : vector<1x1x8x8xbf16> to vector<8x8xbf16>
    %c0_185 = arith.constant 0 : index
    %c4_186 = arith.constant 4 : index
    %c1_187 = arith.constant 1 : index
    %c0_188 = arith.constant 0 : index
    %138 = vector.load %arg1[%c0_185, %c4_186, %c1_187, %c0_188] : memref<1x18x9x8xbf16, #tpu.memory_space<vmem>>, vector<1x1x8x8xbf16>
    %139 = vector.shape_cast %138 : vector<1x1x8x8xbf16> to vector<8x8xbf16>
    %c1_189 = arith.constant 1 : index
    %c0_190 = arith.constant 0 : index
    %c0_191 = arith.constant 0 : index
    %c0_192 = arith.constant 0 : index
    %140 = vector.load %arg2[%c1_189, %c0_190, %c0_191, %c0_192] : memref<3x2x8x256xbf16, #tpu.memory_space<vmem>>, vector<1x1x8x256xbf16>
    %141 = vector.shape_cast %140 : vector<1x1x8x256xbf16> to vector<8x256xbf16>
    %cst_193 = arith.constant dense<0.000000e+00> : vector<8x256xf32>
    %142 = tpu.matmul %137, %141, %cst_193 {dimension_numbers = #tpu.dot_dimension_numbers<[1], [0], [0], [1], [0, 0, 1, 1], [], []>} : vector<8x8xbf16>, vector<8x256xbf16>, vector<8x256xf32> -> vector<8x256xf32>
    %c1_194 = arith.constant 1 : index
    %c1_195 = arith.constant 1 : index
    %c0_196 = arith.constant 0 : index
    %c0_197 = arith.constant 0 : index
    %143 = vector.load %arg2[%c1_194, %c1_195, %c0_196, %c0_197] : memref<3x2x8x256xbf16, #tpu.memory_space<vmem>>, vector<1x1x8x256xbf16>
    %144 = vector.shape_cast %143 : vector<1x1x8x256xbf16> to vector<8x256xbf16>
    %cst_198 = arith.constant dense<0.000000e+00> : vector<8x256xf32>
    %145 = tpu.matmul %139, %144, %cst_198 {dimension_numbers = #tpu.dot_dimension_numbers<[1], [0], [0], [1], [0, 0, 1, 1], [], []>} : vector<8x8xbf16>, vector<8x256xbf16>, vector<8x256xf32> -> vector<8x256xf32>
    %146 = arith.addf %142, %145 : vector<8x256xf32>
    %147 = arith.addf %135, %146 : vector<8x256xf32>
    %c0_199 = arith.constant 0 : index
    %c5 = arith.constant 5 : index
    %c0_200 = arith.constant 0 : index
    %c0_201 = arith.constant 0 : index
    %148 = vector.load %arg1[%c0_199, %c5, %c0_200, %c0_201] : memref<1x18x9x8xbf16, #tpu.memory_space<vmem>>, vector<1x1x8x8xbf16>
    %149 = vector.shape_cast %148 : vector<1x1x8x8xbf16> to vector<8x8xbf16>
    %c0_202 = arith.constant 0 : index
    %c5_203 = arith.constant 5 : index
    %c1_204 = arith.constant 1 : index
    %c0_205 = arith.constant 0 : index
    %150 = vector.load %arg1[%c0_202, %c5_203, %c1_204, %c0_205] : memref<1x18x9x8xbf16, #tpu.memory_space<vmem>>, vector<1x1x8x8xbf16>
    %151 = vector.shape_cast %150 : vector<1x1x8x8xbf16> to vector<8x8xbf16>
    %c2_206 = arith.constant 2 : index
    %c0_207 = arith.constant 0 : index
    %c0_208 = arith.constant 0 : index
    %c0_209 = arith.constant 0 : index
    %152 = vector.load %arg2[%c2_206, %c0_207, %c0_208, %c0_209] : memref<3x2x8x256xbf16, #tpu.memory_space<vmem>>, vector<1x1x8x256xbf16>
    %153 = vector.shape_cast %152 : vector<1x1x8x256xbf16> to vector<8x256xbf16>
    %cst_210 = arith.constant dense<0.000000e+00> : vector<8x256xf32>
    %154 = tpu.matmul %149, %153, %cst_210 {dimension_numbers = #tpu.dot_dimension_numbers<[1], [0], [0], [1], [0, 0, 1, 1], [], []>} : vector<8x8xbf16>, vector<8x256xbf16>, vector<8x256xf32> -> vector<8x256xf32>
    %c2_211 = arith.constant 2 : index
    %c1_212 = arith.constant 1 : index
    %c0_213 = arith.constant 0 : index
    %c0_214 = arith.constant 0 : index
    %155 = vector.load %arg2[%c2_211, %c1_212, %c0_213, %c0_214] : memref<3x2x8x256xbf16, #tpu.memory_space<vmem>>, vector<1x1x8x256xbf16>
    %156 = vector.shape_cast %155 : vector<1x1x8x256xbf16> to vector<8x256xbf16>
    %cst_215 = arith.constant dense<0.000000e+00> : vector<8x256xf32>
    %157 = tpu.matmul %151, %156, %cst_215 {dimension_numbers = #tpu.dot_dimension_numbers<[1], [0], [0], [1], [0, 0, 1, 1], [], []>} : vector<8x8xbf16>, vector<8x256xbf16>, vector<8x256xf32> -> vector<8x256xf32>
    %158 = arith.addf %154, %157 : vector<8x256xf32>
    %159 = arith.addf %147, %158 : vector<8x256xf32>
    %160 = vector.extract_strided_slice %159 {offsets = [0, 0], sizes = [8, 128], strides = [1, 1]} : vector<8x256xf32> to vector<8x128xf32>
    %161 = vector.extract_strided_slice %159 {offsets = [0, 128], sizes = [8, 128], strides = [1, 1]} : vector<8x256xf32> to vector<8x128xf32>
    %162 = arith.maximumf %160, %161 : vector<8x128xf32>
    %163 = arith.maximumf %124, %162 : vector<8x128xf32>
    %164 = arith.addf %163, %2 : vector<8x128xf32>
    %cst_216 = arith.constant 0.000000e+00 : f32
    %165 = vector.broadcast %cst_216 : f32 to vector<8x128xf32>
    %166 = arith.maximumf %164, %165 : vector<8x128xf32>
    %167 = arith.truncf %166 : vector<8x128xf32> to vector<8x128xbf16>
    %c0_217 = arith.constant 0 : index
    %c1_218 = arith.constant 1 : index
    %c0_219 = arith.constant 0 : index
    %c0_220 = arith.constant 0 : index
    %168 = vector.load %arg4[%c0_217, %c1_218, %c0_219, %c0_220] : memref<1x8x8x128xbf16, #tpu.memory_space<vmem>>, vector<1x1x8x128xbf16>
    %169 = vector.shape_cast %168 : vector<1x1x8x128xbf16> to vector<8x128xbf16>
    %170 = vector.shape_cast %167 : vector<8x128xbf16> to vector<1x1x8x128xbf16>
    tpu.vector_store %arg4[%c0_217, %c1_218, %c0_219, %c0_220], %170 {strides = array<i32>} : memref<1x8x8x128xbf16, #tpu.memory_space<vmem>>, vector<1x1x8x128xbf16>,
    %c0_221 = arith.constant 0 : index
    %c4_222 = arith.constant 4 : index
    %c0_223 = arith.constant 0 : index
    %c0_224 = arith.constant 0 : index
    %171 = vector.load %arg1[%c0_221, %c4_222, %c0_223, %c0_224] : memref<1x18x9x8xbf16, #tpu.memory_space<vmem>>, vector<1x1x8x8xbf16>
    %172 = vector.shape_cast %171 : vector<1x1x8x8xbf16> to vector<8x8xbf16>
    %c0_225 = arith.constant 0 : index
    %c4_226 = arith.constant 4 : index
    %c1_227 = arith.constant 1 : index
    %c0_228 = arith.constant 0 : index
    %173 = vector.load %arg1[%c0_225, %c4_226, %c1_227, %c0_228] : memref<1x18x9x8xbf16, #tpu.memory_space<vmem>>, vector<1x1x8x8xbf16>
    %174 = vector.shape_cast %173 : vector<1x1x8x8xbf16> to vector<8x8xbf16>
    %c0_229 = arith.constant 0 : index
    %c0_230 = arith.constant 0 : index
    %c0_231 = arith.constant 0 : index
    %c0_232 = arith.constant 0 : index
    %175 = vector.load %arg2[%c0_229, %c0_230, %c0_231, %c0_232] : memref<3x2x8x256xbf16, #tpu.memory_space<vmem>>, vector<1x1x8x256xbf16>
    %176 = vector.shape_cast %175 : vector<1x1x8x256xbf16> to vector<8x256xbf16>
    %cst_233 = arith.constant dense<0.000000e+00> : vector<8x256xf32>
    %177 = tpu.matmul %172, %176, %cst_233 {dimension_numbers = #tpu.dot_dimension_numbers<[1], [0], [0], [1], [0, 0, 1, 1], [], []>} : vector<8x8xbf16>, vector<8x256xbf16>, vector<8x256xf32> -> vector<8x256xf32>
    %c0_234 = arith.constant 0 : index
    %c1_235 = arith.constant 1 : index
    %c0_236 = arith.constant 0 : index
    %c0_237 = arith.constant 0 : index
    %178 = vector.load %arg2[%c0_234, %c1_235, %c0_236, %c0_237] : memref<3x2x8x256xbf16, #tpu.memory_space<vmem>>, vector<1x1x8x256xbf16>
    %179 = vector.shape_cast %178 : vector<1x1x8x256xbf16> to vector<8x256xbf16>
    %cst_238 = arith.constant dense<0.000000e+00> : vector<8x256xf32>
    %180 = tpu.matmul %174, %179, %cst_238 {dimension_numbers = #tpu.dot_dimension_numbers<[1], [0], [0], [1], [0, 0, 1, 1], [], []>} : vector<8x8xbf16>, vector<8x256xbf16>, vector<8x256xf32> -> vector<8x256xf32>
    %181 = arith.addf %177, %180 : vector<8x256xf32>
    %c0_239 = arith.constant 0 : index
    %c5_240 = arith.constant 5 : index
    %c0_241 = arith.constant 0 : index
    %c0_242 = arith.constant 0 : index
    %182 = vector.load %arg1[%c0_239, %c5_240, %c0_241, %c0_242] : memref<1x18x9x8xbf16, #tpu.memory_space<vmem>>, vector<1x1x8x8xbf16>
    %183 = vector.shape_cast %182 : vector<1x1x8x8xbf16> to vector<8x8xbf16>
    %c0_243 = arith.constant 0 : index
    %c5_244 = arith.constant 5 : index
    %c1_245 = arith.constant 1 : index
    %c0_246 = arith.constant 0 : index
    %184 = vector.load %arg1[%c0_243, %c5_244, %c1_245, %c0_246] : memref<1x18x9x8xbf16, #tpu.memory_space<vmem>>, vector<1x1x8x8xbf16>
    %185 = vector.shape_cast %184 : vector<1x1x8x8xbf16> to vector<8x8xbf16>
    %c1_247 = arith.constant 1 : index
    %c0_248 = arith.constant 0 : index
    %c0_249 = arith.constant 0 : index
    %c0_250 = arith.constant 0 : index
    %186 = vector.load %arg2[%c1_247, %c0_248, %c0_249, %c0_250] : memref<3x2x8x256xbf16, #tpu.memory_space<vmem>>, vector<1x1x8x256xbf16>
    %187 = vector.shape_cast %186 : vector<1x1x8x256xbf16> to vector<8x256xbf16>
    %cst_251 = arith.constant dense<0.000000e+00> : vector<8x256xf32>
    %188 = tpu.matmul %183, %187, %cst_251 {dimension_numbers = #tpu.dot_dimension_numbers<[1], [0], [0], [1], [0, 0, 1, 1], [], []>} : vector<8x8xbf16>, vector<8x256xbf16>, vector<8x256xf32> -> vector<8x256xf32>
    %c1_252 = arith.constant 1 : index
    %c1_253 = arith.constant 1 : index
    %c0_254 = arith.constant 0 : index
    %c0_255 = arith.constant 0 : index
    %189 = vector.load %arg2[%c1_252, %c1_253, %c0_254, %c0_255] : memref<3x2x8x256xbf16, #tpu.memory_space<vmem>>, vector<1x1x8x256xbf16>
    %190 = vector.shape_cast %189 : vector<1x1x8x256xbf16> to vector<8x256xbf16>
    %cst_256 = arith.constant dense<0.000000e+00> : vector<8x256xf32>
    %191 = tpu.matmul %185, %190, %cst_256 {dimension_numbers = #tpu.dot_dimension_numbers<[1], [0], [0], [1], [0, 0, 1, 1], [], []>} : vector<8x8xbf16>, vector<8x256xbf16>, vector<8x256xf32> -> vector<8x256xf32>
    %192 = arith.addf %188, %191 : vector<8x256xf32>
    %193 = arith.addf %181, %192 : vector<8x256xf32>
    %c0_257 = arith.constant 0 : index
    %c6 = arith.constant 6 : index
    %c0_258 = arith.constant 0 : index
    %c0_259 = arith.constant 0 : index
    %194 = vector.load %arg1[%c0_257, %c6, %c0_258, %c0_259] : memref<1x18x9x8xbf16, #tpu.memory_space<vmem>>, vector<1x1x8x8xbf16>
    %195 = vector.shape_cast %194 : vector<1x1x8x8xbf16> to vector<8x8xbf16>
    %c0_260 = arith.constant 0 : index
    %c6_261 = arith.constant 6 : index
    %c1_262 = arith.constant 1 : index
    %c0_263 = arith.constant 0 : index
    %196 = vector.load %arg1[%c0_260, %c6_261, %c1_262, %c0_263] : memref<1x18x9x8xbf16, #tpu.memory_space<vmem>>, vector<1x1x8x8xbf16>
    %197 = vector.shape_cast %196 : vector<1x1x8x8xbf16> to vector<8x8xbf16>
    %c2_264 = arith.constant 2 : index
    %c0_265 = arith.constant 0 : index
    %c0_266 = arith.constant 0 : index
    %c0_267 = arith.constant 0 : index
    %198 = vector.load %arg2[%c2_264, %c0_265, %c0_266, %c0_267] : memref<3x2x8x256xbf16, #tpu.memory_space<vmem>>, vector<1x1x8x256xbf16>
    %199 = vector.shape_cast %198 : vector<1x1x8x256xbf16> to vector<8x256xbf16>
    %cst_268 = arith.constant dense<0.000000e+00> : vector<8x256xf32>
    %200 = tpu.matmul %195, %199, %cst_268 {dimension_numbers = #tpu.dot_dimension_numbers<[1], [0], [0], [1], [0, 0, 1, 1], [], []>} : vector<8x8xbf16>, vector<8x256xbf16>, vector<8x256xf32> -> vector<8x256xf32>
    %c2_269 = arith.constant 2 : index
    %c1_270 = arith.constant 1 : index
    %c0_271 = arith.constant 0 : index
    %c0_272 = arith.constant 0 : index
    %201 = vector.load %arg2[%c2_269, %c1_270, %c0_271, %c0_272] : memref<3x2x8x256xbf16, #tpu.memory_space<vmem>>, vector<1x1x8x256xbf16>
    %202 = vector.shape_cast %201 : vector<1x1x8x256xbf16> to vector<8x256xbf16>
    %cst_273 = arith.constant dense<0.000000e+00> : vector<8x256xf32>
    %203 = tpu.matmul %197, %202, %cst_273 {dimension_numbers = #tpu.dot_dimension_numbers<[1], [0], [0], [1], [0, 0, 1, 1], [], []>} : vector<8x8xbf16>, vector<8x256xbf16>, vector<8x256xf32> -> vector<8x256xf32>
    %204 = arith.addf %200, %203 : vector<8x256xf32>
    %205 = arith.addf %193, %204 : vector<8x256xf32>
    %206 = vector.extract_strided_slice %205 {offsets = [0, 0], sizes = [8, 128], strides = [1, 1]} : vector<8x256xf32> to vector<8x128xf32>
    %207 = vector.extract_strided_slice %205 {offsets = [0, 128], sizes = [8, 128], strides = [1, 1]} : vector<8x256xf32> to vector<8x128xf32>
    %208 = arith.maximumf %206, %207 : vector<8x128xf32>
    %c0_274 = arith.constant 0 : index
    %c5_275 = arith.constant 5 : index
    %c0_276 = arith.constant 0 : index
    %c0_277 = arith.constant 0 : index
    %209 = vector.load %arg1[%c0_274, %c5_275, %c0_276, %c0_277] : memref<1x18x9x8xbf16, #tpu.memory_space<vmem>>, vector<1x1x8x8xbf16>
    %210 = vector.shape_cast %209 : vector<1x1x8x8xbf16> to vector<8x8xbf16>
    %c0_278 = arith.constant 0 : index
    %c5_279 = arith.constant 5 : index
    %c1_280 = arith.constant 1 : index
    %c0_281 = arith.constant 0 : index
    %211 = vector.load %arg1[%c0_278, %c5_279, %c1_280, %c0_281] : memref<1x18x9x8xbf16, #tpu.memory_space<vmem>>, vector<1x1x8x8xbf16>
    %212 = vector.shape_cast %211 : vector<1x1x8x8xbf16> to vector<8x8xbf16>
    %c0_282 = arith.constant 0 : index
    %c0_283 = arith.constant 0 : index
    %c0_284 = arith.constant 0 : index
    %c0_285 = arith.constant 0 : index
    %213 = vector.load %arg2[%c0_282, %c0_283, %c0_284, %c0_285] : memref<3x2x8x256xbf16, #tpu.memory_space<vmem>>, vector<1x1x8x256xbf16>
    %214 = vector.shape_cast %213 : vector<1x1x8x256xbf16> to vector<8x256xbf16>
    %cst_286 = arith.constant dense<0.000000e+00> : vector<8x256xf32>
    %215 = tpu.matmul %210, %214, %cst_286 {dimension_numbers = #tpu.dot_dimension_numbers<[1], [0], [0], [1], [0, 0, 1, 1], [], []>} : vector<8x8xbf16>, vector<8x256xbf16>, vector<8x256xf32> -> vector<8x256xf32>
    %c0_287 = arith.constant 0 : index
    %c1_288 = arith.constant 1 : index
    %c0_289 = arith.constant 0 : index
    %c0_290 = arith.constant 0 : index
    %216 = vector.load %arg2[%c0_287, %c1_288, %c0_289, %c0_290] : memref<3x2x8x256xbf16, #tpu.memory_space<vmem>>, vector<1x1x8x256xbf16>
    %217 = vector.shape_cast %216 : vector<1x1x8x256xbf16> to vector<8x256xbf16>
    %cst_291 = arith.constant dense<0.000000e+00> : vector<8x256xf32>
    %218 = tpu.matmul %212, %217, %cst_291 {dimension_numbers = #tpu.dot_dimension_numbers<[1], [0], [0], [1], [0, 0, 1, 1], [], []>} : vector<8x8xbf16>, vector<8x256xbf16>, vector<8x256xf32> -> vector<8x256xf32>
    %219 = arith.addf %215, %218 : vector<8x256xf32>
    %c0_292 = arith.constant 0 : index
    %c6_293 = arith.constant 6 : index
    %c0_294 = arith.constant 0 : index
    %c0_295 = arith.constant 0 : index
    %220 = vector.load %arg1[%c0_292, %c6_293, %c0_294, %c0_295] : memref<1x18x9x8xbf16, #tpu.memory_space<vmem>>, vector<1x1x8x8xbf16>
    %221 = vector.shape_cast %220 : vector<1x1x8x8xbf16> to vector<8x8xbf16>
    %c0_296 = arith.constant 0 : index
    %c6_297 = arith.constant 6 : index
    %c1_298 = arith.constant 1 : index
    %c0_299 = arith.constant 0 : index
    %222 = vector.load %arg1[%c0_296, %c6_297, %c1_298, %c0_299] : memref<1x18x9x8xbf16, #tpu.memory_space<vmem>>, vector<1x1x8x8xbf16>
    %223 = vector.shape_cast %222 : vector<1x1x8x8xbf16> to vector<8x8xbf16>
    %c1_300 = arith.constant 1 : index
    %c0_301 = arith.constant 0 : index
    %c0_302 = arith.constant 0 : index
    %c0_303 = arith.constant 0 : index
    %224 = vector.load %arg2[%c1_300, %c0_301, %c0_302, %c0_303] : memref<3x2x8x256xbf16, #tpu.memory_space<vmem>>, vector<1x1x8x256xbf16>
    %225 = vector.shape_cast %224 : vector<1x1x8x256xbf16> to vector<8x256xbf16>
    %cst_304 = arith.constant dense<0.000000e+00> : vector<8x256xf32>
    %226 = tpu.matmul %221, %225, %cst_304 {dimension_numbers = #tpu.dot_dimension_numbers<[1], [0], [0], [1], [0, 0, 1, 1], [], []>} : vector<8x8xbf16>, vector<8x256xbf16>, vector<8x256xf32> -> vector<8x256xf32>
    %c1_305 = arith.constant 1 : index
    %c1_306 = arith.constant 1 : index
    %c0_307 = arith.constant 0 : index
    %c0_308 = arith.constant 0 : index
    %227 = vector.load %arg2[%c1_305, %c1_306, %c0_307, %c0_308] : memref<3x2x8x256xbf16, #tpu.memory_space<vmem>>, vector<1x1x8x256xbf16>
    %228 = vector.shape_cast %227 : vector<1x1x8x256xbf16> to vector<8x256xbf16>
    %cst_309 = arith.constant dense<0.000000e+00> : vector<8x256xf32>
    %229 = tpu.matmul %223, %228, %cst_309 {dimension_numbers = #tpu.dot_dimension_numbers<[1], [0], [0], [1], [0, 0, 1, 1], [], []>} : vector<8x8xbf16>, vector<8x256xbf16>, vector<8x256xf32> -> vector<8x256xf32>
    %230 = arith.addf %226, %229 : vector<8x256xf32>
    %231 = arith.addf %219, %230 : vector<8x256xf32>
    %c0_310 = arith.constant 0 : index
    %c7 = arith.constant 7 : index
    %c0_311 = arith.constant 0 : index
    %c0_312 = arith.constant 0 : index
    %232 = vector.load %arg1[%c0_310, %c7, %c0_311, %c0_312] : memref<1x18x9x8xbf16, #tpu.memory_space<vmem>>, vector<1x1x8x8xbf16>
    %233 = vector.shape_cast %232 : vector<1x1x8x8xbf16> to vector<8x8xbf16>
    %c0_313 = arith.constant 0 : index
    %c7_314 = arith.constant 7 : index
    %c1_315 = arith.constant 1 : index
    %c0_316 = arith.constant 0 : index
    %234 = vector.load %arg1[%c0_313, %c7_314, %c1_315, %c0_316] : memref<1x18x9x8xbf16, #tpu.memory_space<vmem>>, vector<1x1x8x8xbf16>
    %235 = vector.shape_cast %234 : vector<1x1x8x8xbf16> to vector<8x8xbf16>
    %c2_317 = arith.constant 2 : index
    %c0_318 = arith.constant 0 : index
    %c0_319 = arith.constant 0 : index
    %c0_320 = arith.constant 0 : index
    %236 = vector.load %arg2[%c2_317, %c0_318, %c0_319, %c0_320] : memref<3x2x8x256xbf16, #tpu.memory_space<vmem>>, vector<1x1x8x256xbf16>
    %237 = vector.shape_cast %236 : vector<1x1x8x256xbf16> to vector<8x256xbf16>
    %cst_321 = arith.constant dense<0.000000e+00> : vector<8x256xf32>
    %238 = tpu.matmul %233, %237, %cst_321 {dimension_numbers = #tpu.dot_dimension_numbers<[1], [0], [0], [1], [0, 0, 1, 1], [], []>} : vector<8x8xbf16>, vector<8x256xbf16>, vector<8x256xf32> -> vector<8x256xf32>
    %c2_322 = arith.constant 2 : index
    %c1_323 = arith.constant 1 : index
    %c0_324 = arith.constant 0 : index
    %c0_325 = arith.constant 0 : index
    %239 = vector.load %arg2[%c2_322, %c1_323, %c0_324, %c0_325] : memref<3x2x8x256xbf16, #tpu.memory_space<vmem>>, vector<1x1x8x256xbf16>
    %240 = vector.shape_cast %239 : vector<1x1x8x256xbf16> to vector<8x256xbf16>
    %cst_326 = arith.constant dense<0.000000e+00> : vector<8x256xf32>
    %241 = tpu.matmul %235, %240, %cst_326 {dimension_numbers = #tpu.dot_dimension_numbers<[1], [0], [0], [1], [0, 0, 1, 1], [], []>} : vector<8x8xbf16>, vector<8x256xbf16>, vector<8x256xf32> -> vector<8x256xf32>
    %242 = arith.addf %238, %241 : vector<8x256xf32>
    %243 = arith.addf %231, %242 : vector<8x256xf32>
    %244 = vector.extract_strided_slice %243 {offsets = [0, 0], sizes = [8, 128], strides = [1, 1]} : vector<8x256xf32> to vector<8x128xf32>
    %245 = vector.extract_strided_slice %243 {offsets = [0, 128], sizes = [8, 128], strides = [1, 1]} : vector<8x256xf32> to vector<8x128xf32>
    %246 = arith.maximumf %244, %245 : vector<8x128xf32>
    %247 = arith.maximumf %208, %246 : vector<8x128xf32>
    %248 = arith.addf %247, %2 : vector<8x128xf32>
    %cst_327 = arith.constant 0.000000e+00 : f32
    %249 = vector.broadcast %cst_327 : f32 to vector<8x128xf32>
    %250 = arith.maximumf %248, %249 : vector<8x128xf32>
    %251 = arith.truncf %250 : vector<8x128xf32> to vector<8x128xbf16>
    %c0_328 = arith.constant 0 : index
    %c2_329 = arith.constant 2 : index
    %c0_330 = arith.constant 0 : index
    %c0_331 = arith.constant 0 : index
    %252 = vector.load %arg4[%c0_328, %c2_329, %c0_330, %c0_331] : memref<1x8x8x128xbf16, #tpu.memory_space<vmem>>, vector<1x1x8x128xbf16>
    %253 = vector.shape_cast %252 : vector<1x1x8x128xbf16> to vector<8x128xbf16>
    %254 = vector.shape_cast %251 : vector<8x128xbf16> to vector<1x1x8x128xbf16>
    tpu.vector_store %arg4[%c0_328, %c2_329, %c0_330, %c0_331], %254 {strides = array<i32>} : memref<1x8x8x128xbf16, #tpu.memory_space<vmem>>, vector<1x1x8x128xbf16>,
    %c0_332 = arith.constant 0 : index
    %c6_333 = arith.constant 6 : index
    %c0_334 = arith.constant 0 : index
    %c0_335 = arith.constant 0 : index
    %255 = vector.load %arg1[%c0_332, %c6_333, %c0_334, %c0_335] : memref<1x18x9x8xbf16, #tpu.memory_space<vmem>>, vector<1x1x8x8xbf16>
    %256 = vector.shape_cast %255 : vector<1x1x8x8xbf16> to vector<8x8xbf16>
    %c0_336 = arith.constant 0 : index
    %c6_337 = arith.constant 6 : index
    %c1_338 = arith.constant 1 : index
    %c0_339 = arith.constant 0 : index
    %257 = vector.load %arg1[%c0_336, %c6_337, %c1_338, %c0_339] : memref<1x18x9x8xbf16, #tpu.memory_space<vmem>>, vector<1x1x8x8xbf16>
    %258 = vector.shape_cast %257 : vector<1x1x8x8xbf16> to vector<8x8xbf16>
    %c0_340 = arith.constant 0 : index
    %c0_341 = arith.constant 0 : index
    %c0_342 = arith.constant 0 : index
    %c0_343 = arith.constant 0 : index
    %259 = vector.load %arg2[%c0_340, %c0_341, %c0_342, %c0_343] : memref<3x2x8x256xbf16, #tpu.memory_space<vmem>>, vector<1x1x8x256xbf16>
    %260 = vector.shape_cast %259 : vector<1x1x8x256xbf16> to vector<8x256xbf16>
    %cst_344 = arith.constant dense<0.000000e+00> : vector<8x256xf32>
    %261 = tpu.matmul %256, %260, %cst_344 {dimension_numbers = #tpu.dot_dimension_numbers<[1], [0], [0], [1], [0, 0, 1, 1], [], []>} : vector<8x8xbf16>, vector<8x256xbf16>, vector<8x256xf32> -> vector<8x256xf32>
    %c0_345 = arith.constant 0 : index
    %c1_346 = arith.constant 1 : index
    %c0_347 = arith.constant 0 : index
    %c0_348 = arith.constant 0 : index
    %262 = vector.load %arg2[%c0_345, %c1_346, %c0_347, %c0_348] : memref<3x2x8x256xbf16, #tpu.memory_space<vmem>>, vector<1x1x8x256xbf16>
    %263 = vector.shape_cast %262 : vector<1x1x8x256xbf16> to vector<8x256xbf16>
    %cst_349 = arith.constant dense<0.000000e+00> : vector<8x256xf32>
    %264 = tpu.matmul %258, %263, %cst_349 {dimension_numbers = #tpu.dot_dimension_numbers<[1], [0], [0], [1], [0, 0, 1, 1], [], []>} : vector<8x8xbf16>, vector<8x256xbf16>, vector<8x256xf32> -> vector<8x256xf32>
    %265 = arith.addf %261, %264 : vector<8x256xf32>
    %c0_350 = arith.constant 0 : index
    %c7_351 = arith.constant 7 : index
    %c0_352 = arith.constant 0 : index
    %c0_353 = arith.constant 0 : index
    %266 = vector.load %arg1[%c0_350, %c7_351, %c0_352, %c0_353] : memref<1x18x9x8xbf16, #tpu.memory_space<vmem>>, vector<1x1x8x8xbf16>
    %267 = vector.shape_cast %266 : vector<1x1x8x8xbf16> to vector<8x8xbf16>
    %c0_354 = arith.constant 0 : index
    %c7_355 = arith.constant 7 : index
    %c1_356 = arith.constant 1 : index
    %c0_357 = arith.constant 0 : index
    %268 = vector.load %arg1[%c0_354, %c7_355, %c1_356, %c0_357] : memref<1x18x9x8xbf16, #tpu.memory_space<vmem>>, vector<1x1x8x8xbf16>
    %269 = vector.shape_cast %268 : vector<1x1x8x8xbf16> to vector<8x8xbf16>
    %c1_358 = arith.constant 1 : index
    %c0_359 = arith.constant 0 : index
    %c0_360 = arith.constant 0 : index
    %c0_361 = arith.constant 0 : index
    %270 = vector.load %arg2[%c1_358, %c0_359, %c0_360, %c0_361] : memref<3x2x8x256xbf16, #tpu.memory_space<vmem>>, vector<1x1x8x256xbf16>
    %271 = vector.shape_cast %270 : vector<1x1x8x256xbf16> to vector<8x256xbf16>
    %cst_362 = arith.constant dense<0.000000e+00> : vector<8x256xf32>
    %272 = tpu.matmul %267, %271, %cst_362 {dimension_numbers = #tpu.dot_dimension_numbers<[1], [0], [0], [1], [0, 0, 1, 1], [], []>} : vector<8x8xbf16>, vector<8x256xbf16>, vector<8x256xf32> -> vector<8x256xf32>
    %c1_363 = arith.constant 1 : index
    %c1_364 = arith.constant 1 : index
    %c0_365 = arith.constant 0 : index
    %c0_366 = arith.constant 0 : index
    %273 = vector.load %arg2[%c1_363, %c1_364, %c0_365, %c0_366] : memref<3x2x8x256xbf16, #tpu.memory_space<vmem>>, vector<1x1x8x256xbf16>
    %274 = vector.shape_cast %273 : vector<1x1x8x256xbf16> to vector<8x256xbf16>
    %cst_367 = arith.constant dense<0.000000e+00> : vector<8x256xf32>
    %275 = tpu.matmul %269, %274, %cst_367 {dimension_numbers = #tpu.dot_dimension_numbers<[1], [0], [0], [1], [0, 0, 1, 1], [], []>} : vector<8x8xbf16>, vector<8x256xbf16>, vector<8x256xf32> -> vector<8x256xf32>
    %276 = arith.addf %272, %275 : vector<8x256xf32>
    %277 = arith.addf %265, %276 : vector<8x256xf32>
    %c0_368 = arith.constant 0 : index
    %c8 = arith.constant 8 : index
    %c0_369 = arith.constant 0 : index
    %c0_370 = arith.constant 0 : index
    %278 = vector.load %arg1[%c0_368, %c8, %c0_369, %c0_370] : memref<1x18x9x8xbf16, #tpu.memory_space<vmem>>, vector<1x1x8x8xbf16>
    %279 = vector.shape_cast %278 : vector<1x1x8x8xbf16> to vector<8x8xbf16>
    %c0_371 = arith.constant 0 : index
    %c8_372 = arith.constant 8 : index
    %c1_373 = arith.constant 1 : index
    %c0_374 = arith.constant 0 : index
    %280 = vector.load %arg1[%c0_371, %c8_372, %c1_373, %c0_374] : memref<1x18x9x8xbf16, #tpu.memory_space<vmem>>, vector<1x1x8x8xbf16>
    %281 = vector.shape_cast %280 : vector<1x1x8x8xbf16> to vector<8x8xbf16>
    %c2_375 = arith.constant 2 : index
    %c0_376 = arith.constant 0 : index
    %c0_377 = arith.constant 0 : index
    %c0_378 = arith.constant 0 : index
    %282 = vector.load %arg2[%c2_375, %c0_376, %c0_377, %c0_378] : memref<3x2x8x256xbf16, #tpu.memory_space<vmem>>, vector<1x1x8x256xbf16>
    %283 = vector.shape_cast %282 : vector<1x1x8x256xbf16> to vector<8x256xbf16>
    %cst_379 = arith.constant dense<0.000000e+00> : vector<8x256xf32>
    %284 = tpu.matmul %279, %283, %cst_379 {dimension_numbers = #tpu.dot_dimension_numbers<[1], [0], [0], [1], [0, 0, 1, 1], [], []>} : vector<8x8xbf16>, vector<8x256xbf16>, vector<8x256xf32> -> vector<8x256xf32>
    %c2_380 = arith.constant 2 : index
    %c1_381 = arith.constant 1 : index
    %c0_382 = arith.constant 0 : index
    %c0_383 = arith.constant 0 : index
    %285 = vector.load %arg2[%c2_380, %c1_381, %c0_382, %c0_383] : memref<3x2x8x256xbf16, #tpu.memory_space<vmem>>, vector<1x1x8x256xbf16>
    %286 = vector.shape_cast %285 : vector<1x1x8x256xbf16> to vector<8x256xbf16>
    %cst_384 = arith.constant dense<0.000000e+00> : vector<8x256xf32>
    %287 = tpu.matmul %281, %286, %cst_384 {dimension_numbers = #tpu.dot_dimension_numbers<[1], [0], [0], [1], [0, 0, 1, 1], [], []>} : vector<8x8xbf16>, vector<8x256xbf16>, vector<8x256xf32> -> vector<8x256xf32>
    %288 = arith.addf %284, %287 : vector<8x256xf32>
    %289 = arith.addf %277, %288 : vector<8x256xf32>
    %290 = vector.extract_strided_slice %289 {offsets = [0, 0], sizes = [8, 128], strides = [1, 1]} : vector<8x256xf32> to vector<8x128xf32>
    %291 = vector.extract_strided_slice %289 {offsets = [0, 128], sizes = [8, 128], strides = [1, 1]} : vector<8x256xf32> to vector<8x128xf32>
    %292 = arith.maximumf %290, %291 : vector<8x128xf32>
    %c0_385 = arith.constant 0 : index
    %c7_386 = arith.constant 7 : index
    %c0_387 = arith.constant 0 : index
    %c0_388 = arith.constant 0 : index
    %293 = vector.load %arg1[%c0_385, %c7_386, %c0_387, %c0_388] : memref<1x18x9x8xbf16, #tpu.memory_space<vmem>>, vector<1x1x8x8xbf16>
    %294 = vector.shape_cast %293 : vector<1x1x8x8xbf16> to vector<8x8xbf16>
    %c0_389 = arith.constant 0 : index
    %c7_390 = arith.constant 7 : index
    %c1_391 = arith.constant 1 : index
    %c0_392 = arith.constant 0 : index
    %295 = vector.load %arg1[%c0_389, %c7_390, %c1_391, %c0_392] : memref<1x18x9x8xbf16, #tpu.memory_space<vmem>>, vector<1x1x8x8xbf16>
    %296 = vector.shape_cast %295 : vector<1x1x8x8xbf16> to vector<8x8xbf16>
    %c0_393 = arith.constant 0 : index
    %c0_394 = arith.constant 0 : index
    %c0_395 = arith.constant 0 : index
    %c0_396 = arith.constant 0 : index
    %297 = vector.load %arg2[%c0_393, %c0_394, %c0_395, %c0_396] : memref<3x2x8x256xbf16, #tpu.memory_space<vmem>>, vector<1x1x8x256xbf16>
    %298 = vector.shape_cast %297 : vector<1x1x8x256xbf16> to vector<8x256xbf16>
    %cst_397 = arith.constant dense<0.000000e+00> : vector<8x256xf32>
    %299 = tpu.matmul %294, %298, %cst_397 {dimension_numbers = #tpu.dot_dimension_numbers<[1], [0], [0], [1], [0, 0, 1, 1], [], []>} : vector<8x8xbf16>, vector<8x256xbf16>, vector<8x256xf32> -> vector<8x256xf32>
    %c0_398 = arith.constant 0 : index
    %c1_399 = arith.constant 1 : index
    %c0_400 = arith.constant 0 : index
    %c0_401 = arith.constant 0 : index
    %300 = vector.load %arg2[%c0_398, %c1_399, %c0_400, %c0_401] : memref<3x2x8x256xbf16, #tpu.memory_space<vmem>>, vector<1x1x8x256xbf16>
    %301 = vector.shape_cast %300 : vector<1x1x8x256xbf16> to vector<8x256xbf16>
    %cst_402 = arith.constant dense<0.000000e+00> : vector<8x256xf32>
    %302 = tpu.matmul %296, %301, %cst_402 {dimension_numbers = #tpu.dot_dimension_numbers<[1], [0], [0], [1], [0, 0, 1, 1], [], []>} : vector<8x8xbf16>, vector<8x256xbf16>, vector<8x256xf32> -> vector<8x256xf32>
    %303 = arith.addf %299, %302 : vector<8x256xf32>
    %c0_403 = arith.constant 0 : index
    %c8_404 = arith.constant 8 : index
    %c0_405 = arith.constant 0 : index
    %c0_406 = arith.constant 0 : index
    %304 = vector.load %arg1[%c0_403, %c8_404, %c0_405, %c0_406] : memref<1x18x9x8xbf16, #tpu.memory_space<vmem>>, vector<1x1x8x8xbf16>
    %305 = vector.shape_cast %304 : vector<1x1x8x8xbf16> to vector<8x8xbf16>
    %c0_407 = arith.constant 0 : index
    %c8_408 = arith.constant 8 : index
    %c1_409 = arith.constant 1 : index
    %c0_410 = arith.constant 0 : index
    %306 = vector.load %arg1[%c0_407, %c8_408, %c1_409, %c0_410] : memref<1x18x9x8xbf16, #tpu.memory_space<vmem>>, vector<1x1x8x8xbf16>
    %307 = vector.shape_cast %306 : vector<1x1x8x8xbf16> to vector<8x8xbf16>
    %c1_411 = arith.constant 1 : index
    %c0_412 = arith.constant 0 : index
    %c0_413 = arith.constant 0 : index
    %c0_414 = arith.constant 0 : index
    %308 = vector.load %arg2[%c1_411, %c0_412, %c0_413, %c0_414] : memref<3x2x8x256xbf16, #tpu.memory_space<vmem>>, vector<1x1x8x256xbf16>
    %309 = vector.shape_cast %308 : vector<1x1x8x256xbf16> to vector<8x256xbf16>
    %cst_415 = arith.constant dense<0.000000e+00> : vector<8x256xf32>
    %310 = tpu.matmul %305, %309, %cst_415 {dimension_numbers = #tpu.dot_dimension_numbers<[1], [0], [0], [1], [0, 0, 1, 1], [], []>} : vector<8x8xbf16>, vector<8x256xbf16>, vector<8x256xf32> -> vector<8x256xf32>
    %c1_416 = arith.constant 1 : index
    %c1_417 = arith.constant 1 : index
    %c0_418 = arith.constant 0 : index
    %c0_419 = arith.constant 0 : index
    %311 = vector.load %arg2[%c1_416, %c1_417, %c0_418, %c0_419] : memref<3x2x8x256xbf16, #tpu.memory_space<vmem>>, vector<1x1x8x256xbf16>
    %312 = vector.shape_cast %311 : vector<1x1x8x256xbf16> to vector<8x256xbf16>
    %cst_420 = arith.constant dense<0.000000e+00> : vector<8x256xf32>
    %313 = tpu.matmul %307, %312, %cst_420 {dimension_numbers = #tpu.dot_dimension_numbers<[1], [0], [0], [1], [0, 0, 1, 1], [], []>} : vector<8x8xbf16>, vector<8x256xbf16>, vector<8x256xf32> -> vector<8x256xf32>
    %314 = arith.addf %310, %313 : vector<8x256xf32>
    %315 = arith.addf %303, %314 : vector<8x256xf32>
    %c0_421 = arith.constant 0 : index
    %c9 = arith.constant 9 : index
    %c0_422 = arith.constant 0 : index
    %c0_423 = arith.constant 0 : index
    %316 = vector.load %arg1[%c0_421, %c9, %c0_422, %c0_423] : memref<1x18x9x8xbf16, #tpu.memory_space<vmem>>, vector<1x1x8x8xbf16>
    %317 = vector.shape_cast %316 : vector<1x1x8x8xbf16> to vector<8x8xbf16>
    %c0_424 = arith.constant 0 : index
    %c9_425 = arith.constant 9 : index
    %c1_426 = arith.constant 1 : index
    %c0_427 = arith.constant 0 : index
    %318 = vector.load %arg1[%c0_424, %c9_425, %c1_426, %c0_427] : memref<1x18x9x8xbf16, #tpu.memory_space<vmem>>, vector<1x1x8x8xbf16>
    %319 = vector.shape_cast %318 : vector<1x1x8x8xbf16> to vector<8x8xbf16>
    %c2_428 = arith.constant 2 : index
    %c0_429 = arith.constant 0 : index
    %c0_430 = arith.constant 0 : index
    %c0_431 = arith.constant 0 : index
    %320 = vector.load %arg2[%c2_428, %c0_429, %c0_430, %c0_431] : memref<3x2x8x256xbf16, #tpu.memory_space<vmem>>, vector<1x1x8x256xbf16>
    %321 = vector.shape_cast %320 : vector<1x1x8x256xbf16> to vector<8x256xbf16>
    %cst_432 = arith.constant dense<0.000000e+00> : vector<8x256xf32>
    %322 = tpu.matmul %317, %321, %cst_432 {dimension_numbers = #tpu.dot_dimension_numbers<[1], [0], [0], [1], [0, 0, 1, 1], [], []>} : vector<8x8xbf16>, vector<8x256xbf16>, vector<8x256xf32> -> vector<8x256xf32>
    %c2_433 = arith.constant 2 : index
    %c1_434 = arith.constant 1 : index
    %c0_435 = arith.constant 0 : index
    %c0_436 = arith.constant 0 : index
    %323 = vector.load %arg2[%c2_433, %c1_434, %c0_435, %c0_436] : memref<3x2x8x256xbf16, #tpu.memory_space<vmem>>, vector<1x1x8x256xbf16>
    %324 = vector.shape_cast %323 : vector<1x1x8x256xbf16> to vector<8x256xbf16>
    %cst_437 = arith.constant dense<0.000000e+00> : vector<8x256xf32>
    %325 = tpu.matmul %319, %324, %cst_437 {dimension_numbers = #tpu.dot_dimension_numbers<[1], [0], [0], [1], [0, 0, 1, 1], [], []>} : vector<8x8xbf16>, vector<8x256xbf16>, vector<8x256xf32> -> vector<8x256xf32>
    %326 = arith.addf %322, %325 : vector<8x256xf32>
    %327 = arith.addf %315, %326 : vector<8x256xf32>
    %328 = vector.extract_strided_slice %327 {offsets = [0, 0], sizes = [8, 128], strides = [1, 1]} : vector<8x256xf32> to vector<8x128xf32>
    %329 = vector.extract_strided_slice %327 {offsets = [0, 128], sizes = [8, 128], strides = [1, 1]} : vector<8x256xf32> to vector<8x128xf32>
    %330 = arith.maximumf %328, %329 : vector<8x128xf32>
    %331 = arith.maximumf %292, %330 : vector<8x128xf32>
    %332 = arith.addf %331, %2 : vector<8x128xf32>
    %cst_438 = arith.constant 0.000000e+00 : f32
    %333 = vector.broadcast %cst_438 : f32 to vector<8x128xf32>
    %334 = arith.maximumf %332, %333 : vector<8x128xf32>
    %335 = arith.truncf %334 : vector<8x128xf32> to vector<8x128xbf16>
    %c0_439 = arith.constant 0 : index
    %c3_440 = arith.constant 3 : index
    %c0_441 = arith.constant 0 : index
    %c0_442 = arith.constant 0 : index
    %336 = vector.load %arg4[%c0_439, %c3_440, %c0_441, %c0_442] : memref<1x8x8x128xbf16, #tpu.memory_space<vmem>>, vector<1x1x8x128xbf16>
    %337 = vector.shape_cast %336 : vector<1x1x8x128xbf16> to vector<8x128xbf16>
    %338 = vector.shape_cast %335 : vector<8x128xbf16> to vector<1x1x8x128xbf16>
    tpu.vector_store %arg4[%c0_439, %c3_440, %c0_441, %c0_442], %338 {strides = array<i32>} : memref<1x8x8x128xbf16, #tpu.memory_space<vmem>>, vector<1x1x8x128xbf16>,
    %c0_443 = arith.constant 0 : index
    %c8_444 = arith.constant 8 : index
    %c0_445 = arith.constant 0 : index
    %c0_446 = arith.constant 0 : index
    %339 = vector.load %arg1[%c0_443, %c8_444, %c0_445, %c0_446] : memref<1x18x9x8xbf16, #tpu.memory_space<vmem>>, vector<1x1x8x8xbf16>
    %340 = vector.shape_cast %339 : vector<1x1x8x8xbf16> to vector<8x8xbf16>
    %c0_447 = arith.constant 0 : index
    %c8_448 = arith.constant 8 : index
    %c1_449 = arith.constant 1 : index
    %c0_450 = arith.constant 0 : index
    %341 = vector.load %arg1[%c0_447, %c8_448, %c1_449, %c0_450] : memref<1x18x9x8xbf16, #tpu.memory_space<vmem>>, vector<1x1x8x8xbf16>
    %342 = vector.shape_cast %341 : vector<1x1x8x8xbf16> to vector<8x8xbf16>
    %c0_451 = arith.constant 0 : index
    %c0_452 = arith.constant 0 : index
    %c0_453 = arith.constant 0 : index
    %c0_454 = arith.constant 0 : index
    %343 = vector.load %arg2[%c0_451, %c0_452, %c0_453, %c0_454] : memref<3x2x8x256xbf16, #tpu.memory_space<vmem>>, vector<1x1x8x256xbf16>
    %344 = vector.shape_cast %343 : vector<1x1x8x256xbf16> to vector<8x256xbf16>
    %cst_455 = arith.constant dense<0.000000e+00> : vector<8x256xf32>
    %345 = tpu.matmul %340, %344, %cst_455 {dimension_numbers = #tpu.dot_dimension_numbers<[1], [0], [0], [1], [0, 0, 1, 1], [], []>} : vector<8x8xbf16>, vector<8x256xbf16>, vector<8x256xf32> -> vector<8x256xf32>
    %c0_456 = arith.constant 0 : index
    %c1_457 = arith.constant 1 : index
    %c0_458 = arith.constant 0 : index
    %c0_459 = arith.constant 0 : index
    %346 = vector.load %arg2[%c0_456, %c1_457, %c0_458, %c0_459] : memref<3x2x8x256xbf16, #tpu.memory_space<vmem>>, vector<1x1x8x256xbf16>
    %347 = vector.shape_cast %346 : vector<1x1x8x256xbf16> to vector<8x256xbf16>
    %cst_460 = arith.constant dense<0.000000e+00> : vector<8x256xf32>
    %348 = tpu.matmul %342, %347, %cst_460 {dimension_numbers = #tpu.dot_dimension_numbers<[1], [0], [0], [1], [0, 0, 1, 1], [], []>} : vector<8x8xbf16>, vector<8x256xbf16>, vector<8x256xf32> -> vector<8x256xf32>
    %349 = arith.addf %345, %348 : vector<8x256xf32>
    %c0_461 = arith.constant 0 : index
    %c9_462 = arith.constant 9 : index
    %c0_463 = arith.constant 0 : index
    %c0_464 = arith.constant 0 : index
    %350 = vector.load %arg1[%c0_461, %c9_462, %c0_463, %c0_464] : memref<1x18x9x8xbf16, #tpu.memory_space<vmem>>, vector<1x1x8x8xbf16>
    %351 = vector.shape_cast %350 : vector<1x1x8x8xbf16> to vector<8x8xbf16>
    %c0_465 = arith.constant 0 : index
    %c9_466 = arith.constant 9 : index
    %c1_467 = arith.constant 1 : index
    %c0_468 = arith.constant 0 : index
    %352 = vector.load %arg1[%c0_465, %c9_466, %c1_467, %c0_468] : memref<1x18x9x8xbf16, #tpu.memory_space<vmem>>, vector<1x1x8x8xbf16>
    %353 = vector.shape_cast %352 : vector<1x1x8x8xbf16> to vector<8x8xbf16>
    %c1_469 = arith.constant 1 : index
    %c0_470 = arith.constant 0 : index
    %c0_471 = arith.constant 0 : index
    %c0_472 = arith.constant 0 : index
    %354 = vector.load %arg2[%c1_469, %c0_470, %c0_471, %c0_472] : memref<3x2x8x256xbf16, #tpu.memory_space<vmem>>, vector<1x1x8x256xbf16>
    %355 = vector.shape_cast %354 : vector<1x1x8x256xbf16> to vector<8x256xbf16>
    %cst_473 = arith.constant dense<0.000000e+00> : vector<8x256xf32>
    %356 = tpu.matmul %351, %355, %cst_473 {dimension_numbers = #tpu.dot_dimension_numbers<[1], [0], [0], [1], [0, 0, 1, 1], [], []>} : vector<8x8xbf16>, vector<8x256xbf16>, vector<8x256xf32> -> vector<8x256xf32>
    %c1_474 = arith.constant 1 : index
    %c1_475 = arith.constant 1 : index
    %c0_476 = arith.constant 0 : index
    %c0_477 = arith.constant 0 : index
    %357 = vector.load %arg2[%c1_474, %c1_475, %c0_476, %c0_477] : memref<3x2x8x256xbf16, #tpu.memory_space<vmem>>, vector<1x1x8x256xbf16>
    %358 = vector.shape_cast %357 : vector<1x1x8x256xbf16> to vector<8x256xbf16>
    %cst_478 = arith.constant dense<0.000000e+00> : vector<8x256xf32>
    %359 = tpu.matmul %353, %358, %cst_478 {dimension_numbers = #tpu.dot_dimension_numbers<[1], [0], [0], [1], [0, 0, 1, 1], [], []>} : vector<8x8xbf16>, vector<8x256xbf16>, vector<8x256xf32> -> vector<8x256xf32>
    %360 = arith.addf %356, %359 : vector<8x256xf32>
    %361 = arith.addf %349, %360 : vector<8x256xf32>
    %c0_479 = arith.constant 0 : index
    %c10 = arith.constant 10 : index
    %c0_480 = arith.constant 0 : index
    %c0_481 = arith.constant 0 : index
    %362 = vector.load %arg1[%c0_479, %c10, %c0_480, %c0_481] : memref<1x18x9x8xbf16, #tpu.memory_space<vmem>>, vector<1x1x8x8xbf16>
    %363 = vector.shape_cast %362 : vector<1x1x8x8xbf16> to vector<8x8xbf16>
    %c0_482 = arith.constant 0 : index
    %c10_483 = arith.constant 10 : index
    %c1_484 = arith.constant 1 : index
    %c0_485 = arith.constant 0 : index
    %364 = vector.load %arg1[%c0_482, %c10_483, %c1_484, %c0_485] : memref<1x18x9x8xbf16, #tpu.memory_space<vmem>>, vector<1x1x8x8xbf16>
    %365 = vector.shape_cast %364 : vector<1x1x8x8xbf16> to vector<8x8xbf16>
    %c2_486 = arith.constant 2 : index
    %c0_487 = arith.constant 0 : index
    %c0_488 = arith.constant 0 : index
    %c0_489 = arith.constant 0 : index
    %366 = vector.load %arg2[%c2_486, %c0_487, %c0_488, %c0_489] : memref<3x2x8x256xbf16, #tpu.memory_space<vmem>>, vector<1x1x8x256xbf16>
    %367 = vector.shape_cast %366 : vector<1x1x8x256xbf16> to vector<8x256xbf16>
    %cst_490 = arith.constant dense<0.000000e+00> : vector<8x256xf32>
    %368 = tpu.matmul %363, %367, %cst_490 {dimension_numbers = #tpu.dot_dimension_numbers<[1], [0], [0], [1], [0, 0, 1, 1], [], []>} : vector<8x8xbf16>, vector<8x256xbf16>, vector<8x256xf32> -> vector<8x256xf32>
    %c2_491 = arith.constant 2 : index
    %c1_492 = arith.constant 1 : index
    %c0_493 = arith.constant 0 : index
    %c0_494 = arith.constant 0 : index
    %369 = vector.load %arg2[%c2_491, %c1_492, %c0_493, %c0_494] : memref<3x2x8x256xbf16, #tpu.memory_space<vmem>>, vector<1x1x8x256xbf16>
    %370 = vector.shape_cast %369 : vector<1x1x8x256xbf16> to vector<8x256xbf16>
    %cst_495 = arith.constant dense<0.000000e+00> : vector<8x256xf32>
    %371 = tpu.matmul %365, %370, %cst_495 {dimension_numbers = #tpu.dot_dimension_numbers<[1], [0], [0], [1], [0, 0, 1, 1], [], []>} : vector<8x8xbf16>, vector<8x256xbf16>, vector<8x256xf32> -> vector<8x256xf32>
    %372 = arith.addf %368, %371 : vector<8x256xf32>
    %373 = arith.addf %361, %372 : vector<8x256xf32>
    %374 = vector.extract_strided_slice %373 {offsets = [0, 0], sizes = [8, 128], strides = [1, 1]} : vector<8x256xf32> to vector<8x128xf32>
    %375 = vector.extract_strided_slice %373 {offsets = [0, 128], sizes = [8, 128], strides = [1, 1]} : vector<8x256xf32> to vector<8x128xf32>
    %376 = arith.maximumf %374, %375 : vector<8x128xf32>
    %c0_496 = arith.constant 0 : index
    %c9_497 = arith.constant 9 : index
    %c0_498 = arith.constant 0 : index
    %c0_499 = arith.constant 0 : index
    %377 = vector.load %arg1[%c0_496, %c9_497, %c0_498, %c0_499] : memref<1x18x9x8xbf16, #tpu.memory_space<vmem>>, vector<1x1x8x8xbf16>
    %378 = vector.shape_cast %377 : vector<1x1x8x8xbf16> to vector<8x8xbf16>
    %c0_500 = arith.constant 0 : index
    %c9_501 = arith.constant 9 : index
    %c1_502 = arith.constant 1 : index
    %c0_503 = arith.constant 0 : index
    %379 = vector.load %arg1[%c0_500, %c9_501, %c1_502, %c0_503] : memref<1x18x9x8xbf16, #tpu.memory_space<vmem>>, vector<1x1x8x8xbf16>
    %380 = vector.shape_cast %379 : vector<1x1x8x8xbf16> to vector<8x8xbf16>
    %c0_504 = arith.constant 0 : index
    %c0_505 = arith.constant 0 : index
    %c0_506 = arith.constant 0 : index
    %c0_507 = arith.constant 0 : index
    %381 = vector.load %arg2[%c0_504, %c0_505, %c0_506, %c0_507] : memref<3x2x8x256xbf16, #tpu.memory_space<vmem>>, vector<1x1x8x256xbf16>
    %382 = vector.shape_cast %381 : vector<1x1x8x256xbf16> to vector<8x256xbf16>
    %cst_508 = arith.constant dense<0.000000e+00> : vector<8x256xf32>
    %383 = tpu.matmul %378, %382, %cst_508 {dimension_numbers = #tpu.dot_dimension_numbers<[1], [0], [0], [1], [0, 0, 1, 1], [], []>} : vector<8x8xbf16>, vector<8x256xbf16>, vector<8x256xf32> -> vector<8x256xf32>
    %c0_509 = arith.constant 0 : index
    %c1_510 = arith.constant 1 : index
    %c0_511 = arith.constant 0 : index
    %c0_512 = arith.constant 0 : index
    %384 = vector.load %arg2[%c0_509, %c1_510, %c0_511, %c0_512] : memref<3x2x8x256xbf16, #tpu.memory_space<vmem>>, vector<1x1x8x256xbf16>
    %385 = vector.shape_cast %384 : vector<1x1x8x256xbf16> to vector<8x256xbf16>
    %cst_513 = arith.constant dense<0.000000e+00> : vector<8x256xf32>
    %386 = tpu.matmul %380, %385, %cst_513 {dimension_numbers = #tpu.dot_dimension_numbers<[1], [0], [0], [1], [0, 0, 1, 1], [], []>} : vector<8x8xbf16>, vector<8x256xbf16>, vector<8x256xf32> -> vector<8x256xf32>
    %387 = arith.addf %383, %386 : vector<8x256xf32>
    %c0_514 = arith.constant 0 : index
    %c10_515 = arith.constant 10 : index
    %c0_516 = arith.constant 0 : index
    %c0_517 = arith.constant 0 : index
    %388 = vector.load %arg1[%c0_514, %c10_515, %c0_516, %c0_517] : memref<1x18x9x8xbf16, #tpu.memory_space<vmem>>, vector<1x1x8x8xbf16>
    %389 = vector.shape_cast %388 : vector<1x1x8x8xbf16> to vector<8x8xbf16>
    %c0_518 = arith.constant 0 : index
    %c10_519 = arith.constant 10 : index
    %c1_520 = arith.constant 1 : index
    %c0_521 = arith.constant 0 : index
    %390 = vector.load %arg1[%c0_518, %c10_519, %c1_520, %c0_521] : memref<1x18x9x8xbf16, #tpu.memory_space<vmem>>, vector<1x1x8x8xbf16>
    %391 = vector.shape_cast %390 : vector<1x1x8x8xbf16> to vector<8x8xbf16>
    %c1_522 = arith.constant 1 : index
    %c0_523 = arith.constant 0 : index
    %c0_524 = arith.constant 0 : index
    %c0_525 = arith.constant 0 : index
    %392 = vector.load %arg2[%c1_522, %c0_523, %c0_524, %c0_525] : memref<3x2x8x256xbf16, #tpu.memory_space<vmem>>, vector<1x1x8x256xbf16>
    %393 = vector.shape_cast %392 : vector<1x1x8x256xbf16> to vector<8x256xbf16>
    %cst_526 = arith.constant dense<0.000000e+00> : vector<8x256xf32>
    %394 = tpu.matmul %389, %393, %cst_526 {dimension_numbers = #tpu.dot_dimension_numbers<[1], [0], [0], [1], [0, 0, 1, 1], [], []>} : vector<8x8xbf16>, vector<8x256xbf16>, vector<8x256xf32> -> vector<8x256xf32>
    %c1_527 = arith.constant 1 : index
    %c1_528 = arith.constant 1 : index
    %c0_529 = arith.constant 0 : index
    %c0_530 = arith.constant 0 : index
    %395 = vector.load %arg2[%c1_527, %c1_528, %c0_529, %c0_530] : memref<3x2x8x256xbf16, #tpu.memory_space<vmem>>, vector<1x1x8x256xbf16>
    %396 = vector.shape_cast %395 : vector<1x1x8x256xbf16> to vector<8x256xbf16>
    %cst_531 = arith.constant dense<0.000000e+00> : vector<8x256xf32>
    %397 = tpu.matmul %391, %396, %cst_531 {dimension_numbers = #tpu.dot_dimension_numbers<[1], [0], [0], [1], [0, 0, 1, 1], [], []>} : vector<8x8xbf16>, vector<8x256xbf16>, vector<8x256xf32> -> vector<8x256xf32>
    %398 = arith.addf %394, %397 : vector<8x256xf32>
    %399 = arith.addf %387, %398 : vector<8x256xf32>
    %c0_532 = arith.constant 0 : index
    %c11 = arith.constant 11 : index
    %c0_533 = arith.constant 0 : index
    %c0_534 = arith.constant 0 : index
    %400 = vector.load %arg1[%c0_532, %c11, %c0_533, %c0_534] : memref<1x18x9x8xbf16, #tpu.memory_space<vmem>>, vector<1x1x8x8xbf16>
    %401 = vector.shape_cast %400 : vector<1x1x8x8xbf16> to vector<8x8xbf16>
    %c0_535 = arith.constant 0 : index
    %c11_536 = arith.constant 11 : index
    %c1_537 = arith.constant 1 : index
    %c0_538 = arith.constant 0 : index
    %402 = vector.load %arg1[%c0_535, %c11_536, %c1_537, %c0_538] : memref<1x18x9x8xbf16, #tpu.memory_space<vmem>>, vector<1x1x8x8xbf16>
    %403 = vector.shape_cast %402 : vector<1x1x8x8xbf16> to vector<8x8xbf16>
    %c2_539 = arith.constant 2 : index
    %c0_540 = arith.constant 0 : index
    %c0_541 = arith.constant 0 : index
    %c0_542 = arith.constant 0 : index
    %404 = vector.load %arg2[%c2_539, %c0_540, %c0_541, %c0_542] : memref<3x2x8x256xbf16, #tpu.memory_space<vmem>>, vector<1x1x8x256xbf16>
    %405 = vector.shape_cast %404 : vector<1x1x8x256xbf16> to vector<8x256xbf16>
    %cst_543 = arith.constant dense<0.000000e+00> : vector<8x256xf32>
    %406 = tpu.matmul %401, %405, %cst_543 {dimension_numbers = #tpu.dot_dimension_numbers<[1], [0], [0], [1], [0, 0, 1, 1], [], []>} : vector<8x8xbf16>, vector<8x256xbf16>, vector<8x256xf32> -> vector<8x256xf32>
    %c2_544 = arith.constant 2 : index
    %c1_545 = arith.constant 1 : index
    %c0_546 = arith.constant 0 : index
    %c0_547 = arith.constant 0 : index
    %407 = vector.load %arg2[%c2_544, %c1_545, %c0_546, %c0_547] : memref<3x2x8x256xbf16, #tpu.memory_space<vmem>>, vector<1x1x8x256xbf16>
    %408 = vector.shape_cast %407 : vector<1x1x8x256xbf16> to vector<8x256xbf16>
    %cst_548 = arith.constant dense<0.000000e+00> : vector<8x256xf32>
    %409 = tpu.matmul %403, %408, %cst_548 {dimension_numbers = #tpu.dot_dimension_numbers<[1], [0], [0], [1], [0, 0, 1, 1], [], []>} : vector<8x8xbf16>, vector<8x256xbf16>, vector<8x256xf32> -> vector<8x256xf32>
    %410 = arith.addf %406, %409 : vector<8x256xf32>
    %411 = arith.addf %399, %410 : vector<8x256xf32>
    %412 = vector.extract_strided_slice %411 {offsets = [0, 0], sizes = [8, 128], strides = [1, 1]} : vector<8x256xf32> to vector<8x128xf32>
    %413 = vector.extract_strided_slice %411 {offsets = [0, 128], sizes = [8, 128], strides = [1, 1]} : vector<8x256xf32> to vector<8x128xf32>
    %414 = arith.maximumf %412, %413 : vector<8x128xf32>
    %415 = arith.maximumf %376, %414 : vector<8x128xf32>
    %416 = arith.addf %415, %2 : vector<8x128xf32>
    %cst_549 = arith.constant 0.000000e+00 : f32
    %417 = vector.broadcast %cst_549 : f32 to vector<8x128xf32>
    %418 = arith.maximumf %416, %417 : vector<8x128xf32>
    %419 = arith.truncf %418 : vector<8x128xf32> to vector<8x128xbf16>
    %c0_550 = arith.constant 0 : index
    %c4_551 = arith.constant 4 : index
    %c0_552 = arith.constant 0 : index
    %c0_553 = arith.constant 0 : index
    %420 = vector.load %arg4[%c0_550, %c4_551, %c0_552, %c0_553] : memref<1x8x8x128xbf16, #tpu.memory_space<vmem>>, vector<1x1x8x128xbf16>
    %421 = vector.shape_cast %420 : vector<1x1x8x128xbf16> to vector<8x128xbf16>
    %422 = vector.shape_cast %419 : vector<8x128xbf16> to vector<1x1x8x128xbf16>
    tpu.vector_store %arg4[%c0_550, %c4_551, %c0_552, %c0_553], %422 {strides = array<i32>} : memref<1x8x8x128xbf16, #tpu.memory_space<vmem>>, vector<1x1x8x128xbf16>,
    %c0_554 = arith.constant 0 : index
    %c10_555 = arith.constant 10 : index
    %c0_556 = arith.constant 0 : index
    %c0_557 = arith.constant 0 : index
    %423 = vector.load %arg1[%c0_554, %c10_555, %c0_556, %c0_557] : memref<1x18x9x8xbf16, #tpu.memory_space<vmem>>, vector<1x1x8x8xbf16>
    %424 = vector.shape_cast %423 : vector<1x1x8x8xbf16> to vector<8x8xbf16>
    %c0_558 = arith.constant 0 : index
    %c10_559 = arith.constant 10 : index
    %c1_560 = arith.constant 1 : index
    %c0_561 = arith.constant 0 : index
    %425 = vector.load %arg1[%c0_558, %c10_559, %c1_560, %c0_561] : memref<1x18x9x8xbf16, #tpu.memory_space<vmem>>, vector<1x1x8x8xbf16>
    %426 = vector.shape_cast %425 : vector<1x1x8x8xbf16> to vector<8x8xbf16>
    %c0_562 = arith.constant 0 : index
    %c0_563 = arith.constant 0 : index
    %c0_564 = arith.constant 0 : index
    %c0_565 = arith.constant 0 : index
    %427 = vector.load %arg2[%c0_562, %c0_563, %c0_564, %c0_565] : memref<3x2x8x256xbf16, #tpu.memory_space<vmem>>, vector<1x1x8x256xbf16>
    %428 = vector.shape_cast %427 : vector<1x1x8x256xbf16> to vector<8x256xbf16>
    %cst_566 = arith.constant dense<0.000000e+00> : vector<8x256xf32>
    %429 = tpu.matmul %424, %428, %cst_566 {dimension_numbers = #tpu.dot_dimension_numbers<[1], [0], [0], [1], [0, 0, 1, 1], [], []>} : vector<8x8xbf16>, vector<8x256xbf16>, vector<8x256xf32> -> vector<8x256xf32>
    %c0_567 = arith.constant 0 : index
    %c1_568 = arith.constant 1 : index
    %c0_569 = arith.constant 0 : index
    %c0_570 = arith.constant 0 : index
    %430 = vector.load %arg2[%c0_567, %c1_568, %c0_569, %c0_570] : memref<3x2x8x256xbf16, #tpu.memory_space<vmem>>, vector<1x1x8x256xbf16>
    %431 = vector.shape_cast %430 : vector<1x1x8x256xbf16> to vector<8x256xbf16>
    %cst_571 = arith.constant dense<0.000000e+00> : vector<8x256xf32>
    %432 = tpu.matmul %426, %431, %cst_571 {dimension_numbers = #tpu.dot_dimension_numbers<[1], [0], [0], [1], [0, 0, 1, 1], [], []>} : vector<8x8xbf16>, vector<8x256xbf16>, vector<8x256xf32> -> vector<8x256xf32>
    %433 = arith.addf %429, %432 : vector<8x256xf32>
    %c0_572 = arith.constant 0 : index
    %c11_573 = arith.constant 11 : index
    %c0_574 = arith.constant 0 : index
    %c0_575 = arith.constant 0 : index
    %434 = vector.load %arg1[%c0_572, %c11_573, %c0_574, %c0_575] : memref<1x18x9x8xbf16, #tpu.memory_space<vmem>>, vector<1x1x8x8xbf16>
    %435 = vector.shape_cast %434 : vector<1x1x8x8xbf16> to vector<8x8xbf16>
    %c0_576 = arith.constant 0 : index
    %c11_577 = arith.constant 11 : index
    %c1_578 = arith.constant 1 : index
    %c0_579 = arith.constant 0 : index
    %436 = vector.load %arg1[%c0_576, %c11_577, %c1_578, %c0_579] : memref<1x18x9x8xbf16, #tpu.memory_space<vmem>>, vector<1x1x8x8xbf16>
    %437 = vector.shape_cast %436 : vector<1x1x8x8xbf16> to vector<8x8xbf16>
    %c1_580 = arith.constant 1 : index
    %c0_581 = arith.constant 0 : index
    %c0_582 = arith.constant 0 : index
    %c0_583 = arith.constant 0 : index
    %438 = vector.load %arg2[%c1_580, %c0_581, %c0_582, %c0_583] : memref<3x2x8x256xbf16, #tpu.memory_space<vmem>>, vector<1x1x8x256xbf16>
    %439 = vector.shape_cast %438 : vector<1x1x8x256xbf16> to vector<8x256xbf16>
    %cst_584 = arith.constant dense<0.000000e+00> : vector<8x256xf32>
    %440 = tpu.matmul %435, %439, %cst_584 {dimension_numbers = #tpu.dot_dimension_numbers<[1], [0], [0], [1], [0, 0, 1, 1], [], []>} : vector<8x8xbf16>, vector<8x256xbf16>, vector<8x256xf32> -> vector<8x256xf32>
    %c1_585 = arith.constant 1 : index
    %c1_586 = arith.constant 1 : index
    %c0_587 = arith.constant 0 : index
    %c0_588 = arith.constant 0 : index
    %441 = vector.load %arg2[%c1_585, %c1_586, %c0_587, %c0_588] : memref<3x2x8x256xbf16, #tpu.memory_space<vmem>>, vector<1x1x8x256xbf16>
    %442 = vector.shape_cast %441 : vector<1x1x8x256xbf16> to vector<8x256xbf16>
    %cst_589 = arith.constant dense<0.000000e+00> : vector<8x256xf32>
    %443 = tpu.matmul %437, %442, %cst_589 {dimension_numbers = #tpu.dot_dimension_numbers<[1], [0], [0], [1], [0, 0, 1, 1], [], []>} : vector<8x8xbf16>, vector<8x256xbf16>, vector<8x256xf32> -> vector<8x256xf32>
    %444 = arith.addf %440, %443 : vector<8x256xf32>
    %445 = arith.addf %433, %444 : vector<8x256xf32>
    %c0_590 = arith.constant 0 : index
    %c12 = arith.constant 12 : index
    %c0_591 = arith.constant 0 : index
    %c0_592 = arith.constant 0 : index
    %446 = vector.load %arg1[%c0_590, %c12, %c0_591, %c0_592] : memref<1x18x9x8xbf16, #tpu.memory_space<vmem>>, vector<1x1x8x8xbf16>
    %447 = vector.shape_cast %446 : vector<1x1x8x8xbf16> to vector<8x8xbf16>
    %c0_593 = arith.constant 0 : index
    %c12_594 = arith.constant 12 : index
    %c1_595 = arith.constant 1 : index
    %c0_596 = arith.constant 0 : index
    %448 = vector.load %arg1[%c0_593, %c12_594, %c1_595, %c0_596] : memref<1x18x9x8xbf16, #tpu.memory_space<vmem>>, vector<1x1x8x8xbf16>
    %449 = vector.shape_cast %448 : vector<1x1x8x8xbf16> to vector<8x8xbf16>
    %c2_597 = arith.constant 2 : index
    %c0_598 = arith.constant 0 : index
    %c0_599 = arith.constant 0 : index
    %c0_600 = arith.constant 0 : index
    %450 = vector.load %arg2[%c2_597, %c0_598, %c0_599, %c0_600] : memref<3x2x8x256xbf16, #tpu.memory_space<vmem>>, vector<1x1x8x256xbf16>
    %451 = vector.shape_cast %450 : vector<1x1x8x256xbf16> to vector<8x256xbf16>
    %cst_601 = arith.constant dense<0.000000e+00> : vector<8x256xf32>
    %452 = tpu.matmul %447, %451, %cst_601 {dimension_numbers = #tpu.dot_dimension_numbers<[1], [0], [0], [1], [0, 0, 1, 1], [], []>} : vector<8x8xbf16>, vector<8x256xbf16>, vector<8x256xf32> -> vector<8x256xf32>
    %c2_602 = arith.constant 2 : index
    %c1_603 = arith.constant 1 : index
    %c0_604 = arith.constant 0 : index
    %c0_605 = arith.constant 0 : index
    %453 = vector.load %arg2[%c2_602, %c1_603, %c0_604, %c0_605] : memref<3x2x8x256xbf16, #tpu.memory_space<vmem>>, vector<1x1x8x256xbf16>
    %454 = vector.shape_cast %453 : vector<1x1x8x256xbf16> to vector<8x256xbf16>
    %cst_606 = arith.constant dense<0.000000e+00> : vector<8x256xf32>
    %455 = tpu.matmul %449, %454, %cst_606 {dimension_numbers = #tpu.dot_dimension_numbers<[1], [0], [0], [1], [0, 0, 1, 1], [], []>} : vector<8x8xbf16>, vector<8x256xbf16>, vector<8x256xf32> -> vector<8x256xf32>
    %456 = arith.addf %452, %455 : vector<8x256xf32>
    %457 = arith.addf %445, %456 : vector<8x256xf32>
    %458 = vector.extract_strided_slice %457 {offsets = [0, 0], sizes = [8, 128], strides = [1, 1]} : vector<8x256xf32> to vector<8x128xf32>
    %459 = vector.extract_strided_slice %457 {offsets = [0, 128], sizes = [8, 128], strides = [1, 1]} : vector<8x256xf32> to vector<8x128xf32>
    %460 = arith.maximumf %458, %459 : vector<8x128xf32>
    %c0_607 = arith.constant 0 : index
    %c11_608 = arith.constant 11 : index
    %c0_609 = arith.constant 0 : index
    %c0_610 = arith.constant 0 : index
    %461 = vector.load %arg1[%c0_607, %c11_608, %c0_609, %c0_610] : memref<1x18x9x8xbf16, #tpu.memory_space<vmem>>, vector<1x1x8x8xbf16>
    %462 = vector.shape_cast %461 : vector<1x1x8x8xbf16> to vector<8x8xbf16>
    %c0_611 = arith.constant 0 : index
    %c11_612 = arith.constant 11 : index
    %c1_613 = arith.constant 1 : index
    %c0_614 = arith.constant 0 : index
    %463 = vector.load %arg1[%c0_611, %c11_612, %c1_613, %c0_614] : memref<1x18x9x8xbf16, #tpu.memory_space<vmem>>, vector<1x1x8x8xbf16>
    %464 = vector.shape_cast %463 : vector<1x1x8x8xbf16> to vector<8x8xbf16>
    %c0_615 = arith.constant 0 : index
    %c0_616 = arith.constant 0 : index
    %c0_617 = arith.constant 0 : index
    %c0_618 = arith.constant 0 : index
    %465 = vector.load %arg2[%c0_615, %c0_616, %c0_617, %c0_618] : memref<3x2x8x256xbf16, #tpu.memory_space<vmem>>, vector<1x1x8x256xbf16>
    %466 = vector.shape_cast %465 : vector<1x1x8x256xbf16> to vector<8x256xbf16>
    %cst_619 = arith.constant dense<0.000000e+00> : vector<8x256xf32>
    %467 = tpu.matmul %462, %466, %cst_619 {dimension_numbers = #tpu.dot_dimension_numbers<[1], [0], [0], [1], [0, 0, 1, 1], [], []>} : vector<8x8xbf16>, vector<8x256xbf16>, vector<8x256xf32> -> vector<8x256xf32>
    %c0_620 = arith.constant 0 : index
    %c1_621 = arith.constant 1 : index
    %c0_622 = arith.constant 0 : index
    %c0_623 = arith.constant 0 : index
    %468 = vector.load %arg2[%c0_620, %c1_621, %c0_622, %c0_623] : memref<3x2x8x256xbf16, #tpu.memory_space<vmem>>, vector<1x1x8x256xbf16>
    %469 = vector.shape_cast %468 : vector<1x1x8x256xbf16> to vector<8x256xbf16>
    %cst_624 = arith.constant dense<0.000000e+00> : vector<8x256xf32>
    %470 = tpu.matmul %464, %469, %cst_624 {dimension_numbers = #tpu.dot_dimension_numbers<[1], [0], [0], [1], [0, 0, 1, 1], [], []>} : vector<8x8xbf16>, vector<8x256xbf16>, vector<8x256xf32> -> vector<8x256xf32>
    %471 = arith.addf %467, %470 : vector<8x256xf32>
    %c0_625 = arith.constant 0 : index
    %c12_626 = arith.constant 12 : index
    %c0_627 = arith.constant 0 : index
    %c0_628 = arith.constant 0 : index
    %472 = vector.load %arg1[%c0_625, %c12_626, %c0_627, %c0_628] : memref<1x18x9x8xbf16, #tpu.memory_space<vmem>>, vector<1x1x8x8xbf16>
    %473 = vector.shape_cast %472 : vector<1x1x8x8xbf16> to vector<8x8xbf16>
    %c0_629 = arith.constant 0 : index
    %c12_630 = arith.constant 12 : index
    %c1_631 = arith.constant 1 : index
    %c0_632 = arith.constant 0 : index
    %474 = vector.load %arg1[%c0_629, %c12_630, %c1_631, %c0_632] : memref<1x18x9x8xbf16, #tpu.memory_space<vmem>>, vector<1x1x8x8xbf16>
    %475 = vector.shape_cast %474 : vector<1x1x8x8xbf16> to vector<8x8xbf16>
    %c1_633 = arith.constant 1 : index
    %c0_634 = arith.constant 0 : index
    %c0_635 = arith.constant 0 : index
    %c0_636 = arith.constant 0 : index
    %476 = vector.load %arg2[%c1_633, %c0_634, %c0_635, %c0_636] : memref<3x2x8x256xbf16, #tpu.memory_space<vmem>>, vector<1x1x8x256xbf16>
    %477 = vector.shape_cast %476 : vector<1x1x8x256xbf16> to vector<8x256xbf16>
    %cst_637 = arith.constant dense<0.000000e+00> : vector<8x256xf32>
    %478 = tpu.matmul %473, %477, %cst_637 {dimension_numbers = #tpu.dot_dimension_numbers<[1], [0], [0], [1], [0, 0, 1, 1], [], []>} : vector<8x8xbf16>, vector<8x256xbf16>, vector<8x256xf32> -> vector<8x256xf32>
    %c1_638 = arith.constant 1 : index
    %c1_639 = arith.constant 1 : index
    %c0_640 = arith.constant 0 : index
    %c0_641 = arith.constant 0 : index
    %479 = vector.load %arg2[%c1_638, %c1_639, %c0_640, %c0_641] : memref<3x2x8x256xbf16, #tpu.memory_space<vmem>>, vector<1x1x8x256xbf16>
    %480 = vector.shape_cast %479 : vector<1x1x8x256xbf16> to vector<8x256xbf16>
    %cst_642 = arith.constant dense<0.000000e+00> : vector<8x256xf32>
    %481 = tpu.matmul %475, %480, %cst_642 {dimension_numbers = #tpu.dot_dimension_numbers<[1], [0], [0], [1], [0, 0, 1, 1], [], []>} : vector<8x8xbf16>, vector<8x256xbf16>, vector<8x256xf32> -> vector<8x256xf32>
    %482 = arith.addf %478, %481 : vector<8x256xf32>
    %483 = arith.addf %471, %482 : vector<8x256xf32>
    %c0_643 = arith.constant 0 : index
    %c13 = arith.constant 13 : index
    %c0_644 = arith.constant 0 : index
    %c0_645 = arith.constant 0 : index
    %484 = vector.load %arg1[%c0_643, %c13, %c0_644, %c0_645] : memref<1x18x9x8xbf16, #tpu.memory_space<vmem>>, vector<1x1x8x8xbf16>
    %485 = vector.shape_cast %484 : vector<1x1x8x8xbf16> to vector<8x8xbf16>
    %c0_646 = arith.constant 0 : index
    %c13_647 = arith.constant 13 : index
    %c1_648 = arith.constant 1 : index
    %c0_649 = arith.constant 0 : index
    %486 = vector.load %arg1[%c0_646, %c13_647, %c1_648, %c0_649] : memref<1x18x9x8xbf16, #tpu.memory_space<vmem>>, vector<1x1x8x8xbf16>
    %487 = vector.shape_cast %486 : vector<1x1x8x8xbf16> to vector<8x8xbf16>
    %c2_650 = arith.constant 2 : index
    %c0_651 = arith.constant 0 : index
    %c0_652 = arith.constant 0 : index
    %c0_653 = arith.constant 0 : index
    %488 = vector.load %arg2[%c2_650, %c0_651, %c0_652, %c0_653] : memref<3x2x8x256xbf16, #tpu.memory_space<vmem>>, vector<1x1x8x256xbf16>
    %489 = vector.shape_cast %488 : vector<1x1x8x256xbf16> to vector<8x256xbf16>
    %cst_654 = arith.constant dense<0.000000e+00> : vector<8x256xf32>
    %490 = tpu.matmul %485, %489, %cst_654 {dimension_numbers = #tpu.dot_dimension_numbers<[1], [0], [0], [1], [0, 0, 1, 1], [], []>} : vector<8x8xbf16>, vector<8x256xbf16>, vector<8x256xf32> -> vector<8x256xf32>
    %c2_655 = arith.constant 2 : index
    %c1_656 = arith.constant 1 : index
    %c0_657 = arith.constant 0 : index
    %c0_658 = arith.constant 0 : index
    %491 = vector.load %arg2[%c2_655, %c1_656, %c0_657, %c0_658] : memref<3x2x8x256xbf16, #tpu.memory_space<vmem>>, vector<1x1x8x256xbf16>
    %492 = vector.shape_cast %491 : vector<1x1x8x256xbf16> to vector<8x256xbf16>
    %cst_659 = arith.constant dense<0.000000e+00> : vector<8x256xf32>
    %493 = tpu.matmul %487, %492, %cst_659 {dimension_numbers = #tpu.dot_dimension_numbers<[1], [0], [0], [1], [0, 0, 1, 1], [], []>} : vector<8x8xbf16>, vector<8x256xbf16>, vector<8x256xf32> -> vector<8x256xf32>
    %494 = arith.addf %490, %493 : vector<8x256xf32>
    %495 = arith.addf %483, %494 : vector<8x256xf32>
    %496 = vector.extract_strided_slice %495 {offsets = [0, 0], sizes = [8, 128], strides = [1, 1]} : vector<8x256xf32> to vector<8x128xf32>
    %497 = vector.extract_strided_slice %495 {offsets = [0, 128], sizes = [8, 128], strides = [1, 1]} : vector<8x256xf32> to vector<8x128xf32>
    %498 = arith.maximumf %496, %497 : vector<8x128xf32>
    %499 = arith.maximumf %460, %498 : vector<8x128xf32>
    %500 = arith.addf %499, %2 : vector<8x128xf32>
    %cst_660 = arith.constant 0.000000e+00 : f32
    %501 = vector.broadcast %cst_660 : f32 to vector<8x128xf32>
    %502 = arith.maximumf %500, %501 : vector<8x128xf32>
    %503 = arith.truncf %502 : vector<8x128xf32> to vector<8x128xbf16>
    %c0_661 = arith.constant 0 : index
    %c5_662 = arith.constant 5 : index
    %c0_663 = arith.constant 0 : index
    %c0_664 = arith.constant 0 : index
    %504 = vector.load %arg4[%c0_661, %c5_662, %c0_663, %c0_664] : memref<1x8x8x128xbf16, #tpu.memory_space<vmem>>, vector<1x1x8x128xbf16>
    %505 = vector.shape_cast %504 : vector<1x1x8x128xbf16> to vector<8x128xbf16>
    %506 = vector.shape_cast %503 : vector<8x128xbf16> to vector<1x1x8x128xbf16>
    tpu.vector_store %arg4[%c0_661, %c5_662, %c0_663, %c0_664], %506 {strides = array<i32>} : memref<1x8x8x128xbf16, #tpu.memory_space<vmem>>, vector<1x1x8x128xbf16>,
    %c0_665 = arith.constant 0 : index
    %c12_666 = arith.constant 12 : index
    %c0_667 = arith.constant 0 : index
    %c0_668 = arith.constant 0 : index
    %507 = vector.load %arg1[%c0_665, %c12_666, %c0_667, %c0_668] : memref<1x18x9x8xbf16, #tpu.memory_space<vmem>>, vector<1x1x8x8xbf16>
    %508 = vector.shape_cast %507 : vector<1x1x8x8xbf16> to vector<8x8xbf16>
    %c0_669 = arith.constant 0 : index
    %c12_670 = arith.constant 12 : index
    %c1_671 = arith.constant 1 : index
    %c0_672 = arith.constant 0 : index
    %509 = vector.load %arg1[%c0_669, %c12_670, %c1_671, %c0_672] : memref<1x18x9x8xbf16, #tpu.memory_space<vmem>>, vector<1x1x8x8xbf16>
    %510 = vector.shape_cast %509 : vector<1x1x8x8xbf16> to vector<8x8xbf16>
    %c0_673 = arith.constant 0 : index
    %c0_674 = arith.constant 0 : index
    %c0_675 = arith.constant 0 : index
    %c0_676 = arith.constant 0 : index
    %511 = vector.load %arg2[%c0_673, %c0_674, %c0_675, %c0_676] : memref<3x2x8x256xbf16, #tpu.memory_space<vmem>>, vector<1x1x8x256xbf16>
    %512 = vector.shape_cast %511 : vector<1x1x8x256xbf16> to vector<8x256xbf16>
    %cst_677 = arith.constant dense<0.000000e+00> : vector<8x256xf32>
    %513 = tpu.matmul %508, %512, %cst_677 {dimension_numbers = #tpu.dot_dimension_numbers<[1], [0], [0], [1], [0, 0, 1, 1], [], []>} : vector<8x8xbf16>, vector<8x256xbf16>, vector<8x256xf32> -> vector<8x256xf32>
    %c0_678 = arith.constant 0 : index
    %c1_679 = arith.constant 1 : index
    %c0_680 = arith.constant 0 : index
    %c0_681 = arith.constant 0 : index
    %514 = vector.load %arg2[%c0_678, %c1_679, %c0_680, %c0_681] : memref<3x2x8x256xbf16, #tpu.memory_space<vmem>>, vector<1x1x8x256xbf16>
    %515 = vector.shape_cast %514 : vector<1x1x8x256xbf16> to vector<8x256xbf16>
    %cst_682 = arith.constant dense<0.000000e+00> : vector<8x256xf32>
    %516 = tpu.matmul %510, %515, %cst_682 {dimension_numbers = #tpu.dot_dimension_numbers<[1], [0], [0], [1], [0, 0, 1, 1], [], []>} : vector<8x8xbf16>, vector<8x256xbf16>, vector<8x256xf32> -> vector<8x256xf32>
    %517 = arith.addf %513, %516 : vector<8x256xf32>
    %c0_683 = arith.constant 0 : index
    %c13_684 = arith.constant 13 : index
    %c0_685 = arith.constant 0 : index
    %c0_686 = arith.constant 0 : index
    %518 = vector.load %arg1[%c0_683, %c13_684, %c0_685, %c0_686] : memref<1x18x9x8xbf16, #tpu.memory_space<vmem>>, vector<1x1x8x8xbf16>
    %519 = vector.shape_cast %518 : vector<1x1x8x8xbf16> to vector<8x8xbf16>
    %c0_687 = arith.constant 0 : index
    %c13_688 = arith.constant 13 : index
    %c1_689 = arith.constant 1 : index
    %c0_690 = arith.constant 0 : index
    %520 = vector.load %arg1[%c0_687, %c13_688, %c1_689, %c0_690] : memref<1x18x9x8xbf16, #tpu.memory_space<vmem>>, vector<1x1x8x8xbf16>
    %521 = vector.shape_cast %520 : vector<1x1x8x8xbf16> to vector<8x8xbf16>
    %c1_691 = arith.constant 1 : index
    %c0_692 = arith.constant 0 : index
    %c0_693 = arith.constant 0 : index
    %c0_694 = arith.constant 0 : index
    %522 = vector.load %arg2[%c1_691, %c0_692, %c0_693, %c0_694] : memref<3x2x8x256xbf16, #tpu.memory_space<vmem>>, vector<1x1x8x256xbf16>
    %523 = vector.shape_cast %522 : vector<1x1x8x256xbf16> to vector<8x256xbf16>
    %cst_695 = arith.constant dense<0.000000e+00> : vector<8x256xf32>
    %524 = tpu.matmul %519, %523, %cst_695 {dimension_numbers = #tpu.dot_dimension_numbers<[1], [0], [0], [1], [0, 0, 1, 1], [], []>} : vector<8x8xbf16>, vector<8x256xbf16>, vector<8x256xf32> -> vector<8x256xf32>
    %c1_696 = arith.constant 1 : index
    %c1_697 = arith.constant 1 : index
    %c0_698 = arith.constant 0 : index
    %c0_699 = arith.constant 0 : index
    %525 = vector.load %arg2[%c1_696, %c1_697, %c0_698, %c0_699] : memref<3x2x8x256xbf16, #tpu.memory_space<vmem>>, vector<1x1x8x256xbf16>
    %526 = vector.shape_cast %525 : vector<1x1x8x256xbf16> to vector<8x256xbf16>
    %cst_700 = arith.constant dense<0.000000e+00> : vector<8x256xf32>
    %527 = tpu.matmul %521, %526, %cst_700 {dimension_numbers = #tpu.dot_dimension_numbers<[1], [0], [0], [1], [0, 0, 1, 1], [], []>} : vector<8x8xbf16>, vector<8x256xbf16>, vector<8x256xf32> -> vector<8x256xf32>
    %528 = arith.addf %524, %527 : vector<8x256xf32>
    %529 = arith.addf %517, %528 : vector<8x256xf32>
    %c0_701 = arith.constant 0 : index
    %c14 = arith.constant 14 : index
    %c0_702 = arith.constant 0 : index
    %c0_703 = arith.constant 0 : index
    %530 = vector.load %arg1[%c0_701, %c14, %c0_702, %c0_703] : memref<1x18x9x8xbf16, #tpu.memory_space<vmem>>, vector<1x1x8x8xbf16>
    %531 = vector.shape_cast %530 : vector<1x1x8x8xbf16> to vector<8x8xbf16>
    %c0_704 = arith.constant 0 : index
    %c14_705 = arith.constant 14 : index
    %c1_706 = arith.constant 1 : index
    %c0_707 = arith.constant 0 : index
    %532 = vector.load %arg1[%c0_704, %c14_705, %c1_706, %c0_707] : memref<1x18x9x8xbf16, #tpu.memory_space<vmem>>, vector<1x1x8x8xbf16>
    %533 = vector.shape_cast %532 : vector<1x1x8x8xbf16> to vector<8x8xbf16>
    %c2_708 = arith.constant 2 : index
    %c0_709 = arith.constant 0 : index
    %c0_710 = arith.constant 0 : index
    %c0_711 = arith.constant 0 : index
    %534 = vector.load %arg2[%c2_708, %c0_709, %c0_710, %c0_711] : memref<3x2x8x256xbf16, #tpu.memory_space<vmem>>, vector<1x1x8x256xbf16>
    %535 = vector.shape_cast %534 : vector<1x1x8x256xbf16> to vector<8x256xbf16>
    %cst_712 = arith.constant dense<0.000000e+00> : vector<8x256xf32>
    %536 = tpu.matmul %531, %535, %cst_712 {dimension_numbers = #tpu.dot_dimension_numbers<[1], [0], [0], [1], [0, 0, 1, 1], [], []>} : vector<8x8xbf16>, vector<8x256xbf16>, vector<8x256xf32> -> vector<8x256xf32>
    %c2_713 = arith.constant 2 : index
    %c1_714 = arith.constant 1 : index
    %c0_715 = arith.constant 0 : index
    %c0_716 = arith.constant 0 : index
    %537 = vector.load %arg2[%c2_713, %c1_714, %c0_715, %c0_716] : memref<3x2x8x256xbf16, #tpu.memory_space<vmem>>, vector<1x1x8x256xbf16>
    %538 = vector.shape_cast %537 : vector<1x1x8x256xbf16> to vector<8x256xbf16>
    %cst_717 = arith.constant dense<0.000000e+00> : vector<8x256xf32>
    %539 = tpu.matmul %533, %538, %cst_717 {dimension_numbers = #tpu.dot_dimension_numbers<[1], [0], [0], [1], [0, 0, 1, 1], [], []>} : vector<8x8xbf16>, vector<8x256xbf16>, vector<8x256xf32> -> vector<8x256xf32>
    %540 = arith.addf %536, %539 : vector<8x256xf32>
    %541 = arith.addf %529, %540 : vector<8x256xf32>
    %542 = vector.extract_strided_slice %541 {offsets = [0, 0], sizes = [8, 128], strides = [1, 1]} : vector<8x256xf32> to vector<8x128xf32>
    %543 = vector.extract_strided_slice %541 {offsets = [0, 128], sizes = [8, 128], strides = [1, 1]} : vector<8x256xf32> to vector<8x128xf32>
    %544 = arith.maximumf %542, %543 : vector<8x128xf32>
    %c0_718 = arith.constant 0 : index
    %c13_719 = arith.constant 13 : index
    %c0_720 = arith.constant 0 : index
    %c0_721 = arith.constant 0 : index
    %545 = vector.load %arg1[%c0_718, %c13_719, %c0_720, %c0_721] : memref<1x18x9x8xbf16, #tpu.memory_space<vmem>>, vector<1x1x8x8xbf16>
    %546 = vector.shape_cast %545 : vector<1x1x8x8xbf16> to vector<8x8xbf16>
    %c0_722 = arith.constant 0 : index
    %c13_723 = arith.constant 13 : index
    %c1_724 = arith.constant 1 : index
    %c0_725 = arith.constant 0 : index
    %547 = vector.load %arg1[%c0_722, %c13_723, %c1_724, %c0_725] : memref<1x18x9x8xbf16, #tpu.memory_space<vmem>>, vector<1x1x8x8xbf16>
    %548 = vector.shape_cast %547 : vector<1x1x8x8xbf16> to vector<8x8xbf16>
    %c0_726 = arith.constant 0 : index
    %c0_727 = arith.constant 0 : index
    %c0_728 = arith.constant 0 : index
    %c0_729 = arith.constant 0 : index
    %549 = vector.load %arg2[%c0_726, %c0_727, %c0_728, %c0_729] : memref<3x2x8x256xbf16, #tpu.memory_space<vmem>>, vector<1x1x8x256xbf16>
    %550 = vector.shape_cast %549 : vector<1x1x8x256xbf16> to vector<8x256xbf16>
    %cst_730 = arith.constant dense<0.000000e+00> : vector<8x256xf32>
    %551 = tpu.matmul %546, %550, %cst_730 {dimension_numbers = #tpu.dot_dimension_numbers<[1], [0], [0], [1], [0, 0, 1, 1], [], []>} : vector<8x8xbf16>, vector<8x256xbf16>, vector<8x256xf32> -> vector<8x256xf32>
    %c0_731 = arith.constant 0 : index
    %c1_732 = arith.constant 1 : index
    %c0_733 = arith.constant 0 : index
    %c0_734 = arith.constant 0 : index
    %552 = vector.load %arg2[%c0_731, %c1_732, %c0_733, %c0_734] : memref<3x2x8x256xbf16, #tpu.memory_space<vmem>>, vector<1x1x8x256xbf16>
    %553 = vector.shape_cast %552 : vector<1x1x8x256xbf16> to vector<8x256xbf16>
    %cst_735 = arith.constant dense<0.000000e+00> : vector<8x256xf32>
    %554 = tpu.matmul %548, %553, %cst_735 {dimension_numbers = #tpu.dot_dimension_numbers<[1], [0], [0], [1], [0, 0, 1, 1], [], []>} : vector<8x8xbf16>, vector<8x256xbf16>, vector<8x256xf32> -> vector<8x256xf32>
    %555 = arith.addf %551, %554 : vector<8x256xf32>
    %c0_736 = arith.constant 0 : index
    %c14_737 = arith.constant 14 : index
    %c0_738 = arith.constant 0 : index
    %c0_739 = arith.constant 0 : index
    %556 = vector.load %arg1[%c0_736, %c14_737, %c0_738, %c0_739] : memref<1x18x9x8xbf16, #tpu.memory_space<vmem>>, vector<1x1x8x8xbf16>
    %557 = vector.shape_cast %556 : vector<1x1x8x8xbf16> to vector<8x8xbf16>
    %c0_740 = arith.constant 0 : index
    %c14_741 = arith.constant 14 : index
    %c1_742 = arith.constant 1 : index
    %c0_743 = arith.constant 0 : index
    %558 = vector.load %arg1[%c0_740, %c14_741, %c1_742, %c0_743] : memref<1x18x9x8xbf16, #tpu.memory_space<vmem>>, vector<1x1x8x8xbf16>
    %559 = vector.shape_cast %558 : vector<1x1x8x8xbf16> to vector<8x8xbf16>
    %c1_744 = arith.constant 1 : index
    %c0_745 = arith.constant 0 : index
    %c0_746 = arith.constant 0 : index
    %c0_747 = arith.constant 0 : index
    %560 = vector.load %arg2[%c1_744, %c0_745, %c0_746, %c0_747] : memref<3x2x8x256xbf16, #tpu.memory_space<vmem>>, vector<1x1x8x256xbf16>
    %561 = vector.shape_cast %560 : vector<1x1x8x256xbf16> to vector<8x256xbf16>
    %cst_748 = arith.constant dense<0.000000e+00> : vector<8x256xf32>
    %562 = tpu.matmul %557, %561, %cst_748 {dimension_numbers = #tpu.dot_dimension_numbers<[1], [0], [0], [1], [0, 0, 1, 1], [], []>} : vector<8x8xbf16>, vector<8x256xbf16>, vector<8x256xf32> -> vector<8x256xf32>
    %c1_749 = arith.constant 1 : index
    %c1_750 = arith.constant 1 : index
    %c0_751 = arith.constant 0 : index
    %c0_752 = arith.constant 0 : index
    %563 = vector.load %arg2[%c1_749, %c1_750, %c0_751, %c0_752] : memref<3x2x8x256xbf16, #tpu.memory_space<vmem>>, vector<1x1x8x256xbf16>
    %564 = vector.shape_cast %563 : vector<1x1x8x256xbf16> to vector<8x256xbf16>
    %cst_753 = arith.constant dense<0.000000e+00> : vector<8x256xf32>
    %565 = tpu.matmul %559, %564, %cst_753 {dimension_numbers = #tpu.dot_dimension_numbers<[1], [0], [0], [1], [0, 0, 1, 1], [], []>} : vector<8x8xbf16>, vector<8x256xbf16>, vector<8x256xf32> -> vector<8x256xf32>
    %566 = arith.addf %562, %565 : vector<8x256xf32>
    %567 = arith.addf %555, %566 : vector<8x256xf32>
    %c0_754 = arith.constant 0 : index
    %c15 = arith.constant 15 : index
    %c0_755 = arith.constant 0 : index
    %c0_756 = arith.constant 0 : index
    %568 = vector.load %arg1[%c0_754, %c15, %c0_755, %c0_756] : memref<1x18x9x8xbf16, #tpu.memory_space<vmem>>, vector<1x1x8x8xbf16>
    %569 = vector.shape_cast %568 : vector<1x1x8x8xbf16> to vector<8x8xbf16>
    %c0_757 = arith.constant 0 : index
    %c15_758 = arith.constant 15 : index
    %c1_759 = arith.constant 1 : index
    %c0_760 = arith.constant 0 : index
    %570 = vector.load %arg1[%c0_757, %c15_758, %c1_759, %c0_760] : memref<1x18x9x8xbf16, #tpu.memory_space<vmem>>, vector<1x1x8x8xbf16>
    %571 = vector.shape_cast %570 : vector<1x1x8x8xbf16> to vector<8x8xbf16>
    %c2_761 = arith.constant 2 : index
    %c0_762 = arith.constant 0 : index
    %c0_763 = arith.constant 0 : index
    %c0_764 = arith.constant 0 : index
    %572 = vector.load %arg2[%c2_761, %c0_762, %c0_763, %c0_764] : memref<3x2x8x256xbf16, #tpu.memory_space<vmem>>, vector<1x1x8x256xbf16>
    %573 = vector.shape_cast %572 : vector<1x1x8x256xbf16> to vector<8x256xbf16>
    %cst_765 = arith.constant dense<0.000000e+00> : vector<8x256xf32>
    %574 = tpu.matmul %569, %573, %cst_765 {dimension_numbers = #tpu.dot_dimension_numbers<[1], [0], [0], [1], [0, 0, 1, 1], [], []>} : vector<8x8xbf16>, vector<8x256xbf16>, vector<8x256xf32> -> vector<8x256xf32>
    %c2_766 = arith.constant 2 : index
    %c1_767 = arith.constant 1 : index
    %c0_768 = arith.constant 0 : index
    %c0_769 = arith.constant 0 : index
    %575 = vector.load %arg2[%c2_766, %c1_767, %c0_768, %c0_769] : memref<3x2x8x256xbf16, #tpu.memory_space<vmem>>, vector<1x1x8x256xbf16>
    %576 = vector.shape_cast %575 : vector<1x1x8x256xbf16> to vector<8x256xbf16>
    %cst_770 = arith.constant dense<0.000000e+00> : vector<8x256xf32>
    %577 = tpu.matmul %571, %576, %cst_770 {dimension_numbers = #tpu.dot_dimension_numbers<[1], [0], [0], [1], [0, 0, 1, 1], [], []>} : vector<8x8xbf16>, vector<8x256xbf16>, vector<8x256xf32> -> vector<8x256xf32>
    %578 = arith.addf %574, %577 : vector<8x256xf32>
    %579 = arith.addf %567, %578 : vector<8x256xf32>
    %580 = vector.extract_strided_slice %579 {offsets = [0, 0], sizes = [8, 128], strides = [1, 1]} : vector<8x256xf32> to vector<8x128xf32>
    %581 = vector.extract_strided_slice %579 {offsets = [0, 128], sizes = [8, 128], strides = [1, 1]} : vector<8x256xf32> to vector<8x128xf32>
    %582 = arith.maximumf %580, %581 : vector<8x128xf32>
    %583 = arith.maximumf %544, %582 : vector<8x128xf32>
    %584 = arith.addf %583, %2 : vector<8x128xf32>
    %cst_771 = arith.constant 0.000000e+00 : f32
    %585 = vector.broadcast %cst_771 : f32 to vector<8x128xf32>
    %586 = arith.maximumf %584, %585 : vector<8x128xf32>
    %587 = arith.truncf %586 : vector<8x128xf32> to vector<8x128xbf16>
    %c0_772 = arith.constant 0 : index
    %c6_773 = arith.constant 6 : index
    %c0_774 = arith.constant 0 : index
    %c0_775 = arith.constant 0 : index
    %588 = vector.load %arg4[%c0_772, %c6_773, %c0_774, %c0_775] : memref<1x8x8x128xbf16, #tpu.memory_space<vmem>>, vector<1x1x8x128xbf16>
    %589 = vector.shape_cast %588 : vector<1x1x8x128xbf16> to vector<8x128xbf16>
    %590 = vector.shape_cast %587 : vector<8x128xbf16> to vector<1x1x8x128xbf16>
    tpu.vector_store %arg4[%c0_772, %c6_773, %c0_774, %c0_775], %590 {strides = array<i32>} : memref<1x8x8x128xbf16, #tpu.memory_space<vmem>>, vector<1x1x8x128xbf16>,
    %c0_776 = arith.constant 0 : index
    %c14_777 = arith.constant 14 : index
    %c0_778 = arith.constant 0 : index
    %c0_779 = arith.constant 0 : index
    %591 = vector.load %arg1[%c0_776, %c14_777, %c0_778, %c0_779] : memref<1x18x9x8xbf16, #tpu.memory_space<vmem>>, vector<1x1x8x8xbf16>
    %592 = vector.shape_cast %591 : vector<1x1x8x8xbf16> to vector<8x8xbf16>
    %c0_780 = arith.constant 0 : index
    %c14_781 = arith.constant 14 : index
    %c1_782 = arith.constant 1 : index
    %c0_783 = arith.constant 0 : index
    %593 = vector.load %arg1[%c0_780, %c14_781, %c1_782, %c0_783] : memref<1x18x9x8xbf16, #tpu.memory_space<vmem>>, vector<1x1x8x8xbf16>
    %594 = vector.shape_cast %593 : vector<1x1x8x8xbf16> to vector<8x8xbf16>
    %c0_784 = arith.constant 0 : index
    %c0_785 = arith.constant 0 : index
    %c0_786 = arith.constant 0 : index
    %c0_787 = arith.constant 0 : index
    %595 = vector.load %arg2[%c0_784, %c0_785, %c0_786, %c0_787] : memref<3x2x8x256xbf16, #tpu.memory_space<vmem>>, vector<1x1x8x256xbf16>
    %596 = vector.shape_cast %595 : vector<1x1x8x256xbf16> to vector<8x256xbf16>
    %cst_788 = arith.constant dense<0.000000e+00> : vector<8x256xf32>
    %597 = tpu.matmul %592, %596, %cst_788 {dimension_numbers = #tpu.dot_dimension_numbers<[1], [0], [0], [1], [0, 0, 1, 1], [], []>} : vector<8x8xbf16>, vector<8x256xbf16>, vector<8x256xf32> -> vector<8x256xf32>
    %c0_789 = arith.constant 0 : index
    %c1_790 = arith.constant 1 : index
    %c0_791 = arith.constant 0 : index
    %c0_792 = arith.constant 0 : index
    %598 = vector.load %arg2[%c0_789, %c1_790, %c0_791, %c0_792] : memref<3x2x8x256xbf16, #tpu.memory_space<vmem>>, vector<1x1x8x256xbf16>
    %599 = vector.shape_cast %598 : vector<1x1x8x256xbf16> to vector<8x256xbf16>
    %cst_793 = arith.constant dense<0.000000e+00> : vector<8x256xf32>
    %600 = tpu.matmul %594, %599, %cst_793 {dimension_numbers = #tpu.dot_dimension_numbers<[1], [0], [0], [1], [0, 0, 1, 1], [], []>} : vector<8x8xbf16>, vector<8x256xbf16>, vector<8x256xf32> -> vector<8x256xf32>
    %601 = arith.addf %597, %600 : vector<8x256xf32>
    %c0_794 = arith.constant 0 : index
    %c15_795 = arith.constant 15 : index
    %c0_796 = arith.constant 0 : index
    %c0_797 = arith.constant 0 : index
    %602 = vector.load %arg1[%c0_794, %c15_795, %c0_796, %c0_797] : memref<1x18x9x8xbf16, #tpu.memory_space<vmem>>, vector<1x1x8x8xbf16>
    %603 = vector.shape_cast %602 : vector<1x1x8x8xbf16> to vector<8x8xbf16>
    %c0_798 = arith.constant 0 : index
    %c15_799 = arith.constant 15 : index
    %c1_800 = arith.constant 1 : index
    %c0_801 = arith.constant 0 : index
    %604 = vector.load %arg1[%c0_798, %c15_799, %c1_800, %c0_801] : memref<1x18x9x8xbf16, #tpu.memory_space<vmem>>, vector<1x1x8x8xbf16>
    %605 = vector.shape_cast %604 : vector<1x1x8x8xbf16> to vector<8x8xbf16>
    %c1_802 = arith.constant 1 : index
    %c0_803 = arith.constant 0 : index
    %c0_804 = arith.constant 0 : index
    %c0_805 = arith.constant 0 : index
    %606 = vector.load %arg2[%c1_802, %c0_803, %c0_804, %c0_805] : memref<3x2x8x256xbf16, #tpu.memory_space<vmem>>, vector<1x1x8x256xbf16>
    %607 = vector.shape_cast %606 : vector<1x1x8x256xbf16> to vector<8x256xbf16>
    %cst_806 = arith.constant dense<0.000000e+00> : vector<8x256xf32>
    %608 = tpu.matmul %603, %607, %cst_806 {dimension_numbers = #tpu.dot_dimension_numbers<[1], [0], [0], [1], [0, 0, 1, 1], [], []>} : vector<8x8xbf16>, vector<8x256xbf16>, vector<8x256xf32> -> vector<8x256xf32>
    %c1_807 = arith.constant 1 : index
    %c1_808 = arith.constant 1 : index
    %c0_809 = arith.constant 0 : index
    %c0_810 = arith.constant 0 : index
    %609 = vector.load %arg2[%c1_807, %c1_808, %c0_809, %c0_810] : memref<3x2x8x256xbf16, #tpu.memory_space<vmem>>, vector<1x1x8x256xbf16>
    %610 = vector.shape_cast %609 : vector<1x1x8x256xbf16> to vector<8x256xbf16>
    %cst_811 = arith.constant dense<0.000000e+00> : vector<8x256xf32>
    %611 = tpu.matmul %605, %610, %cst_811 {dimension_numbers = #tpu.dot_dimension_numbers<[1], [0], [0], [1], [0, 0, 1, 1], [], []>} : vector<8x8xbf16>, vector<8x256xbf16>, vector<8x256xf32> -> vector<8x256xf32>
    %612 = arith.addf %608, %611 : vector<8x256xf32>
    %613 = arith.addf %601, %612 : vector<8x256xf32>
    %c0_812 = arith.constant 0 : index
    %c16 = arith.constant 16 : index
    %c0_813 = arith.constant 0 : index
    %c0_814 = arith.constant 0 : index
    %614 = vector.load %arg1[%c0_812, %c16, %c0_813, %c0_814] : memref<1x18x9x8xbf16, #tpu.memory_space<vmem>>, vector<1x1x8x8xbf16>
    %615 = vector.shape_cast %614 : vector<1x1x8x8xbf16> to vector<8x8xbf16>
    %c0_815 = arith.constant 0 : index
    %c16_816 = arith.constant 16 : index
    %c1_817 = arith.constant 1 : index
    %c0_818 = arith.constant 0 : index
    %616 = vector.load %arg1[%c0_815, %c16_816, %c1_817, %c0_818] : memref<1x18x9x8xbf16, #tpu.memory_space<vmem>>, vector<1x1x8x8xbf16>
    %617 = vector.shape_cast %616 : vector<1x1x8x8xbf16> to vector<8x8xbf16>
    %c2_819 = arith.constant 2 : index
    %c0_820 = arith.constant 0 : index
    %c0_821 = arith.constant 0 : index
    %c0_822 = arith.constant 0 : index
    %618 = vector.load %arg2[%c2_819, %c0_820, %c0_821, %c0_822] : memref<3x2x8x256xbf16, #tpu.memory_space<vmem>>, vector<1x1x8x256xbf16>
    %619 = vector.shape_cast %618 : vector<1x1x8x256xbf16> to vector<8x256xbf16>
    %cst_823 = arith.constant dense<0.000000e+00> : vector<8x256xf32>
    %620 = tpu.matmul %615, %619, %cst_823 {dimension_numbers = #tpu.dot_dimension_numbers<[1], [0], [0], [1], [0, 0, 1, 1], [], []>} : vector<8x8xbf16>, vector<8x256xbf16>, vector<8x256xf32> -> vector<8x256xf32>
    %c2_824 = arith.constant 2 : index
    %c1_825 = arith.constant 1 : index
    %c0_826 = arith.constant 0 : index
    %c0_827 = arith.constant 0 : index
    %621 = vector.load %arg2[%c2_824, %c1_825, %c0_826, %c0_827] : memref<3x2x8x256xbf16, #tpu.memory_space<vmem>>, vector<1x1x8x256xbf16>
    %622 = vector.shape_cast %621 : vector<1x1x8x256xbf16> to vector<8x256xbf16>
    %cst_828 = arith.constant dense<0.000000e+00> : vector<8x256xf32>
    %623 = tpu.matmul %617, %622, %cst_828 {dimension_numbers = #tpu.dot_dimension_numbers<[1], [0], [0], [1], [0, 0, 1, 1], [], []>} : vector<8x8xbf16>, vector<8x256xbf16>, vector<8x256xf32> -> vector<8x256xf32>
    %624 = arith.addf %620, %623 : vector<8x256xf32>
    %625 = arith.addf %613, %624 : vector<8x256xf32>
    %626 = vector.extract_strided_slice %625 {offsets = [0, 0], sizes = [8, 128], strides = [1, 1]} : vector<8x256xf32> to vector<8x128xf32>
    %627 = vector.extract_strided_slice %625 {offsets = [0, 128], sizes = [8, 128], strides = [1, 1]} : vector<8x256xf32> to vector<8x128xf32>
    %628 = arith.maximumf %626, %627 : vector<8x128xf32>
    %c0_829 = arith.constant 0 : index
    %c15_830 = arith.constant 15 : index
    %c0_831 = arith.constant 0 : index
    %c0_832 = arith.constant 0 : index
    %629 = vector.load %arg1[%c0_829, %c15_830, %c0_831, %c0_832] : memref<1x18x9x8xbf16, #tpu.memory_space<vmem>>, vector<1x1x8x8xbf16>
    %630 = vector.shape_cast %629 : vector<1x1x8x8xbf16> to vector<8x8xbf16>
    %c0_833 = arith.constant 0 : index
    %c15_834 = arith.constant 15 : index
    %c1_835 = arith.constant 1 : index
    %c0_836 = arith.constant 0 : index
    %631 = vector.load %arg1[%c0_833, %c15_834, %c1_835, %c0_836] : memref<1x18x9x8xbf16, #tpu.memory_space<vmem>>, vector<1x1x8x8xbf16>
    %632 = vector.shape_cast %631 : vector<1x1x8x8xbf16> to vector<8x8xbf16>
    %c0_837 = arith.constant 0 : index
    %c0_838 = arith.constant 0 : index
    %c0_839 = arith.constant 0 : index
    %c0_840 = arith.constant 0 : index
    %633 = vector.load %arg2[%c0_837, %c0_838, %c0_839, %c0_840] : memref<3x2x8x256xbf16, #tpu.memory_space<vmem>>, vector<1x1x8x256xbf16>
    %634 = vector.shape_cast %633 : vector<1x1x8x256xbf16> to vector<8x256xbf16>
    %cst_841 = arith.constant dense<0.000000e+00> : vector<8x256xf32>
    %635 = tpu.matmul %630, %634, %cst_841 {dimension_numbers = #tpu.dot_dimension_numbers<[1], [0], [0], [1], [0, 0, 1, 1], [], []>} : vector<8x8xbf16>, vector<8x256xbf16>, vector<8x256xf32> -> vector<8x256xf32>
    %c0_842 = arith.constant 0 : index
    %c1_843 = arith.constant 1 : index
    %c0_844 = arith.constant 0 : index
    %c0_845 = arith.constant 0 : index
    %636 = vector.load %arg2[%c0_842, %c1_843, %c0_844, %c0_845] : memref<3x2x8x256xbf16, #tpu.memory_space<vmem>>, vector<1x1x8x256xbf16>
    %637 = vector.shape_cast %636 : vector<1x1x8x256xbf16> to vector<8x256xbf16>
    %cst_846 = arith.constant dense<0.000000e+00> : vector<8x256xf32>
    %638 = tpu.matmul %632, %637, %cst_846 {dimension_numbers = #tpu.dot_dimension_numbers<[1], [0], [0], [1], [0, 0, 1, 1], [], []>} : vector<8x8xbf16>, vector<8x256xbf16>, vector<8x256xf32> -> vector<8x256xf32>
    %639 = arith.addf %635, %638 : vector<8x256xf32>
    %c0_847 = arith.constant 0 : index
    %c16_848 = arith.constant 16 : index
    %c0_849 = arith.constant 0 : index
    %c0_850 = arith.constant 0 : index
    %640 = vector.load %arg1[%c0_847, %c16_848, %c0_849, %c0_850] : memref<1x18x9x8xbf16, #tpu.memory_space<vmem>>, vector<1x1x8x8xbf16>
    %641 = vector.shape_cast %640 : vector<1x1x8x8xbf16> to vector<8x8xbf16>
    %c0_851 = arith.constant 0 : index
    %c16_852 = arith.constant 16 : index
    %c1_853 = arith.constant 1 : index
    %c0_854 = arith.constant 0 : index
    %642 = vector.load %arg1[%c0_851, %c16_852, %c1_853, %c0_854] : memref<1x18x9x8xbf16, #tpu.memory_space<vmem>>, vector<1x1x8x8xbf16>
    %643 = vector.shape_cast %642 : vector<1x1x8x8xbf16> to vector<8x8xbf16>
    %c1_855 = arith.constant 1 : index
    %c0_856 = arith.constant 0 : index
    %c0_857 = arith.constant 0 : index
    %c0_858 = arith.constant 0 : index
    %644 = vector.load %arg2[%c1_855, %c0_856, %c0_857, %c0_858] : memref<3x2x8x256xbf16, #tpu.memory_space<vmem>>, vector<1x1x8x256xbf16>
    %645 = vector.shape_cast %644 : vector<1x1x8x256xbf16> to vector<8x256xbf16>
    %cst_859 = arith.constant dense<0.000000e+00> : vector<8x256xf32>
    %646 = tpu.matmul %641, %645, %cst_859 {dimension_numbers = #tpu.dot_dimension_numbers<[1], [0], [0], [1], [0, 0, 1, 1], [], []>} : vector<8x8xbf16>, vector<8x256xbf16>, vector<8x256xf32> -> vector<8x256xf32>
    %c1_860 = arith.constant 1 : index
    %c1_861 = arith.constant 1 : index
    %c0_862 = arith.constant 0 : index
    %c0_863 = arith.constant 0 : index
    %647 = vector.load %arg2[%c1_860, %c1_861, %c0_862, %c0_863] : memref<3x2x8x256xbf16, #tpu.memory_space<vmem>>, vector<1x1x8x256xbf16>
    %648 = vector.shape_cast %647 : vector<1x1x8x256xbf16> to vector<8x256xbf16>
    %cst_864 = arith.constant dense<0.000000e+00> : vector<8x256xf32>
    %649 = tpu.matmul %643, %648, %cst_864 {dimension_numbers = #tpu.dot_dimension_numbers<[1], [0], [0], [1], [0, 0, 1, 1], [], []>} : vector<8x8xbf16>, vector<8x256xbf16>, vector<8x256xf32> -> vector<8x256xf32>
    %650 = arith.addf %646, %649 : vector<8x256xf32>
    %651 = arith.addf %639, %650 : vector<8x256xf32>
    %c0_865 = arith.constant 0 : index
    %c17 = arith.constant 17 : index
    %c0_866 = arith.constant 0 : index
    %c0_867 = arith.constant 0 : index
    %652 = vector.load %arg1[%c0_865, %c17, %c0_866, %c0_867] : memref<1x18x9x8xbf16, #tpu.memory_space<vmem>>, vector<1x1x8x8xbf16>
    %653 = vector.shape_cast %652 : vector<1x1x8x8xbf16> to vector<8x8xbf16>
    %c0_868 = arith.constant 0 : index
    %c17_869 = arith.constant 17 : index
    %c1_870 = arith.constant 1 : index
    %c0_871 = arith.constant 0 : index
    %654 = vector.load %arg1[%c0_868, %c17_869, %c1_870, %c0_871] : memref<1x18x9x8xbf16, #tpu.memory_space<vmem>>, vector<1x1x8x8xbf16>
    %655 = vector.shape_cast %654 : vector<1x1x8x8xbf16> to vector<8x8xbf16>
    %c2_872 = arith.constant 2 : index
    %c0_873 = arith.constant 0 : index
    %c0_874 = arith.constant 0 : index
    %c0_875 = arith.constant 0 : index
    %656 = vector.load %arg2[%c2_872, %c0_873, %c0_874, %c0_875] : memref<3x2x8x256xbf16, #tpu.memory_space<vmem>>, vector<1x1x8x256xbf16>
    %657 = vector.shape_cast %656 : vector<1x1x8x256xbf16> to vector<8x256xbf16>
    %cst_876 = arith.constant dense<0.000000e+00> : vector<8x256xf32>
    %658 = tpu.matmul %653, %657, %cst_876 {dimension_numbers = #tpu.dot_dimension_numbers<[1], [0], [0], [1], [0, 0, 1, 1], [], []>} : vector<8x8xbf16>, vector<8x256xbf16>, vector<8x256xf32> -> vector<8x256xf32>
    %c2_877 = arith.constant 2 : index
    %c1_878 = arith.constant 1 : index
    %c0_879 = arith.constant 0 : index
    %c0_880 = arith.constant 0 : index
    %659 = vector.load %arg2[%c2_877, %c1_878, %c0_879, %c0_880] : memref<3x2x8x256xbf16, #tpu.memory_space<vmem>>, vector<1x1x8x256xbf16>
    %660 = vector.shape_cast %659 : vector<1x1x8x256xbf16> to vector<8x256xbf16>
    %cst_881 = arith.constant dense<0.000000e+00> : vector<8x256xf32>
    %661 = tpu.matmul %655, %660, %cst_881 {dimension_numbers = #tpu.dot_dimension_numbers<[1], [0], [0], [1], [0, 0, 1, 1], [], []>} : vector<8x8xbf16>, vector<8x256xbf16>, vector<8x256xf32> -> vector<8x256xf32>
    %662 = arith.addf %658, %661 : vector<8x256xf32>
    %663 = arith.addf %651, %662 : vector<8x256xf32>
    %664 = vector.extract_strided_slice %663 {offsets = [0, 0], sizes = [8, 128], strides = [1, 1]} : vector<8x256xf32> to vector<8x128xf32>
    %665 = vector.extract_strided_slice %663 {offsets = [0, 128], sizes = [8, 128], strides = [1, 1]} : vector<8x256xf32> to vector<8x128xf32>
    %666 = arith.maximumf %664, %665 : vector<8x128xf32>
    %667 = arith.maximumf %628, %666 : vector<8x128xf32>
    %668 = arith.addf %667, %2 : vector<8x128xf32>
    %cst_882 = arith.constant 0.000000e+00 : f32
    %669 = vector.broadcast %cst_882 : f32 to vector<8x128xf32>
    %670 = arith.maximumf %668, %669 : vector<8x128xf32>
    %671 = arith.truncf %670 : vector<8x128xf32> to vector<8x128xbf16>
    %c0_883 = arith.constant 0 : index
    %c7_884 = arith.constant 7 : index
    %c0_885 = arith.constant 0 : index
    %c0_886 = arith.constant 0 : index
    %672 = vector.load %arg4[%c0_883, %c7_884, %c0_885, %c0_886] : memref<1x8x8x128xbf16, #tpu.memory_space<vmem>>, vector<1x1x8x128xbf16>
    %673 = vector.shape_cast %672 : vector<1x1x8x128xbf16> to vector<8x128xbf16>
    %674 = vector.shape_cast %671 : vector<8x128xbf16> to vector<1x1x8x128xbf16>
    tpu.vector_store %arg4[%c0_883, %c7_884, %c0_885, %c0_886], %674 {strides = array<i32>} : memref<1x8x8x128xbf16, #tpu.memory_space<vmem>>, vector<1x1x8x128xbf16>,
    return
  }
  func.func @transform_0(%arg0: i32) -> (i32, i32, i32, i32) {
    %c0_i32 = arith.constant 0 : i32
    %c0_i32_0 = arith.constant 0 : i32
    %c0_i32_1 = arith.constant 0 : i32
    %c0_i32_2 = arith.constant 0 : i32
    return %arg0, %c0_i32, %c0_i32_0, %c0_i32_1 : i32, i32, i32, i32
  }
  func.func @transform_1(%arg0: i32) -> (i32, i32, i32, i32) {
    %c0_i32 = arith.constant 0 : i32
    %c0_i32_0 = arith.constant 0 : i32
    %c0_i32_1 = arith.constant 0 : i32
    %c0_i32_2 = arith.constant 0 : i32
    %c0_i32_3 = arith.constant 0 : i32
    return %c0_i32, %c0_i32_0, %c0_i32_1, %c0_i32_2 : i32, i32, i32, i32
  }
  func.func @transform_2(%arg0: i32) -> (i32, i32) {
    %c0_i32 = arith.constant 0 : i32
    %c0_i32_0 = arith.constant 0 : i32
    %c0_i32_1 = arith.constant 0 : i32
    return %c0_i32, %c0_i32_0 : i32, i32
  }
  func.func @transform_3(%arg0: i32) -> (i32, i32, i32, i32) {
    %c0_i32 = arith.constant 0 : i32
    %c0_i32_0 = arith.constant 0 : i32
    %c0_i32_1 = arith.constant 0 : i32
    %c0_i32_2 = arith.constant 0 : i32
    return %arg0, %c0_i32, %c0_i32_0, %c0_i32_1 : i32, i32, i32, i32
  }
}

</mosaic_0001>

<llo_original>
// kernel: tpu_custom_call.1
$region0: #{tpu_custom_call.1}
  #allocation0 [shape = 'u32[]', space=smem, size = 0x4, offset = 0x4, fixed_abs, tag = 'smem constant byte address 0x4 - core index']
  #allocation1 [shape = 'u32[144,128]{1,0:T(1,128)}', space=vmem, size = 0x12000, scoped, tag = 'internal scratch']
  %s0 = inlined_call_operand.vmem [shape: bf16[2,18,9,8], index: 0, kind: input, shape index: {}]
  %s1 = inlined_call_operand.vmem [shape: bf16[3,2,8,256], index: 1, kind: input, shape index: {}]
  %s2 = inlined_call_operand.vmem [shape: f32[1,128], index: 2, kind: input, shape index: {}]
  %s3 = inlined_call_operand.hbm [shape: bf16[2,8,8,128], index: 3, kind: output, shape index: {}]
  %s4 = sld [smem:[#allocation0]]
  $region45: #{tpu_custom_call.1} parent=0
    _
  %s6 = ssub.s32 1, %s4
  %s7 = scalar_select 0, %s6, %s4
  $region1: #{tpu_custom_call.1} parent=0
    #allocation2 [shape = 'u8[32768]{0}', space=vmem, size = 0x8000, scoped, tag = 'output window, operand 0']
    #allocation3 [shape = 's32[2]{0}', space=sflag, size = 0x8, scoped, tag = 'scoped memory for tpu_custom_call.1']
    %8 = vsyncpa [#allocation3], 0
    %s9 = scalar_lea.sflag [#allocation3], 1
    %10 = vsyncpa %s9, 0
    loop: start=0, step=1, limit=4
    $region2: #{tpu_custom_call.1} parent=1 // loop_pre_header
      _
    $region3: #{tpu_custom_call.1} parent=1 // loop_header
      %s12 = sphi 0, %s16
      %p13 = scmp.ge.s32.totalorder %s12, 4
      %s22 = sphi 0, %s24
      %s25 = sphi 0, %s22
      %s26 = sphi 0, %s25
      %s42 = sphi 0, %s26
      %s46 = sphi 0, %s46
      %s48 = sphi 0, %s46
      %s49 = sphi 0, %s48
      %s63 = sphi 0, %s49
      %s67 = sphi 0, %s67
      %s69 = sphi 0, %s67
      %s70 = sphi 0, %s69
      %s84 = sphi 0, %s70
      %s90 = sphi 0, %s92
      %s93 = sphi 0, %s90
      %s94 = sphi 0, %s93
      %s110 = sphi 0, %s94
    $region4: #{tpu_custom_call.1} parent=1 // loop_header_branch
      %15 = sbr.rel (%p13) target = $region8
    $region5: #{tpu_custom_call.1} parent=1 // loop_body
      %s17 = ssub.s32 %s12, 1
      %s18 = ssub.s32 %s12, 2
      %s19 = sadd.s32 %s12, 1
      %s20 = ssub.s32 %s12, %s19
      %p21 = scmp.eq.s32.totalorder %s20, 0
      %s23 = sadd.s32 %s22, 1
      %s24 = scalar_select %p21, %s22, %s23
      %p27 = pneg %p21
      %p28 = scmp.eq.s32.totalorder %s12, 1
      %p29 = por %p27, %p28
      %p30 = scmp.ne.s32.totalorder %s22, %s25
      %p31 = scmp.eq.s32.totalorder %s12, 0
      %p32 = por %p30, %p31
      %p33 = scmp.ne.s32.totalorder %s22, %s25
      %p34 = scmp.eq.s32.totalorder %s17, 1
      %p35 = por %p33, %p34
      %p36 = scmp.ne.s32.totalorder %s25, %s26
      %p37 = scmp.eq.s32.totalorder %s17, 0
      %p38 = por %p36, %p37
      %p39 = scmp.ne.s32.totalorder %s25, %s26
      %p40 = scmp.eq.s32.totalorder %s18, 1
      %p41 = por %p39, %p40
      %p43 = scmp.ne.s32.totalorder %s26, %s42
      %p44 = scmp.eq.s32.totalorder %s18, 0
      %p45 = por %p43, %p44
      %s47 = sadd.s32 %s46, 1
      %p50 = scmp.eq.s32.totalorder %s12, 1
      %p51 = scmp.ne.s32.totalorder %s46, %s48
      %p52 = scmp.eq.s32.totalorder %s12, 0
      %p53 = por %p51, %p52
      %p54 = scmp.ne.s32.totalorder %s46, %s48
      %p55 = scmp.eq.s32.totalorder %s17, 1
      %p56 = por %p54, %p55
      %p57 = scmp.ne.s32.totalorder %s48, %s49
      %p58 = scmp.eq.s32.totalorder %s17, 0
      %p59 = por %p57, %p58
      %p60 = scmp.ne.s32.totalorder %s48, %s49
      %p61 = scmp.eq.s32.totalorder %s18, 1
      %p62 = por %p60, %p61
      %p64 = scmp.ne.s32.totalorder %s49, %s63
      %p65 = scmp.eq.s32.totalorder %s18, 0
      %p66 = por %p64, %p65
      %s68 = sadd.s32 %s67, 1
      %p71 = scmp.eq.s32.totalorder %s12, 1
      %p72 = scmp.ne.s32.totalorder %s67, %s69
      %p73 = scmp.eq.s32.totalorder %s12, 0
      %p74 = por %p72, %p73
      %p75 = scmp.ne.s32.totalorder %s67, %s69
      %p76 = scmp.eq.s32.totalorder %s17, 1
      %p77 = por %p75, %p76
      %p78 = scmp.ne.s32.totalorder %s69, %s70
      %p79 = scmp.eq.s32.totalorder %s17, 0
      %p80 = por %p78, %p79
      %p81 = scmp.ne.s32.totalorder %s69, %s70
      %p82 = scmp.eq.s32.totalorder %s18, 1
      %p83 = por %p81, %p82
      %p85 = scmp.ne.s32.totalorder %s70, %s84
      %p86 = scmp.eq.s32.totalorder %s18, 0
      %p87 = por %p85, %p86
      %s88 = ssub.s32 %s12, %s19
      %p89 = scmp.eq.s32.totalorder %s88, 0
      %s91 = sadd.s32 %s90, 1
      %s92 = scalar_select %p89, %s90, %s91
      %p95 = pneg %p89
      %p96 = scmp.eq.s32.totalorder %s12, 1
      %p97 = por %p95, %p96
      %p98 = scmp.ne.s32.totalorder %s90, %s93
      %p99 = scmp.eq.s32.totalorder %s12, 0
      %p100 = por %p98, %p99
      %p101 = scmp.ne.s32.totalorder %s90, %s93
      %p102 = scmp.eq.s32.totalorder %s17, 1
      %p103 = por %p101, %p102
      %p104 = scmp.ne.s32.totalorder %s93, %s94
      %p105 = scmp.eq.s32.totalorder %s17, 0
      %p106 = por %p104, %p105
      %p107 = scmp.ne.s32.totalorder %s93, %s94
      %p108 = scmp.eq.s32.totalorder %s18, 1
      %p109 = por %p107, %p108
      %p111 = scmp.ne.s32.totalorder %s94, %s110
      %p112 = scmp.eq.s32.totalorder %s18, 0
      %p113 = por %p111, %p112
      %p114 = scmp.le.s32.totalorder 1, %s12
      %p115 = scmp.lt.s32.totalorder %s12, 3
      %p116 = pnand %p114, %p115
      %p117 = pneg %p116
      // Predicated region
      $region9: #{tpu_custom_call.1} parent=5 // pred_check
        _
      $region10: #{tpu_custom_call.1} parent=5 // pred_check_branch
        %119 = sbr.rel (%p116) target = $region12
      $region11: #{tpu_custom_call.1} parent=5 // pred_region
        %s120 = ssub.s32 %s12, 1
        // Predicated region
        $region13: #{tpu_custom_call.1} parent=11 // pred_check
          %p121 = pneg %p59
        $region14: #{tpu_custom_call.1} parent=11 // pred_check_branch
          %123 = sbr.rel (%p121) target = $region16
        $region15: #{tpu_custom_call.1} parent=11 // pred_region
          _
        $region16: #{tpu_custom_call.1} parent=11 // pred_fallthru
          _
        // Predicated region
        $region17: #{tpu_custom_call.1} parent=11 // pred_check
          %p124 = pneg %p80
        $region18: #{tpu_custom_call.1} parent=11 // pred_check_branch
          %126 = sbr.rel (%p124) target = $region20
        $region19: #{tpu_custom_call.1} parent=11 // pred_region
          _
        $region20: #{tpu_custom_call.1} parent=11 // pred_fallthru
          _
      $region12: #{tpu_custom_call.1} parent=5 // pred_fallthru
        _
      %p127 = scmp.lt.s32.totalorder %s12, 2
      // Predicated region
      $region21: #{tpu_custom_call.1} parent=5 // pred_check
        %p128 = pneg %p127
      $region22: #{tpu_custom_call.1} parent=5 // pred_check_branch
        %130 = sbr.rel (%p128) target = $region24
      $region23: #{tpu_custom_call.1} parent=5 // pred_region
        // Predicated region
        $region25: #{tpu_custom_call.1} parent=23 // pred_check
          %p131 = pneg %p32
        $region26: #{tpu_custom_call.1} parent=23 // pred_check_branch
          %133 = sbr.rel (%p131) target = $region28
        $region27: #{tpu_custom_call.1} parent=23 // pred_region
          %p134 = scmp.lt.s32.totalorder %s12, 1
          %s135 = scalar_select %p134, %s12, 1
          %s136 = smul.addr %s135, 36
          %s137 = smul.addr %s136, 4
          %s138 = scalar_lea.vmem %s0, %s137
        $region28: #{tpu_custom_call.1} parent=23 // pred_fallthru
          _
      $region24: #{tpu_custom_call.1} parent=5 // pred_fallthru
        _
      %p139 = scmp.le.s32.totalorder 1, %s12
      %p140 = scmp.lt.s32.totalorder %s12, 3
      %p141 = pnand %p139, %p140
      %p142 = pneg %p141
      // Predicated region
      $region29: #{tpu_custom_call.1} parent=5 // pred_check
        _
      $region30: #{tpu_custom_call.1} parent=5 // pred_check_branch
        %144 = sbr.rel (%p141) target = $region32
      $region31: #{tpu_custom_call.1} parent=5 // pred_region
        %s145 = ssub.s32 %s12, 1
        %p146 = scmp.lt.s32.totalorder %s17, 1
        %s147 = scalar_select %p146, %s17, 1
        %s148 = smul.addr %s147, 36
        %s149 = smul.addr %s148, 4
        %s150 = scalar_lea.vmem %s0, %s149
        %p151 = pneg %p38
        %p152 = pneg %p35
        %p153 = pneg %p59
        %p154 = pneg %p56
        %p155 = pneg %p80
        %p156 = pneg %p77
        %p157 = pneg %p106
        %p158 = pneg %p103
        %s159 = sand.u32 %s93, 1
        %s160 = scalar_lea.sflag [#allocation3], %s159
        %s161 = sand.u32 %s93, 1
        %s162 = smul.addr %s161, 32
        %s163 = scalar_lea.vmem [#allocation2], %s162
        %p164 = scmp.lt.s32.totalorder %s17, 1
        %s165 = scalar_select %p164, %s17, 1
        %s166 = smul.addr %s165, 36
        %s167 = smul.addr %s166, 4
        %s168 = scalar_lea.vmem %s0, %s167
        %v170 = vld [vmem:[%s2] sm:$0x1]
        %v172 = vlaneseq
        %v173 = vshrl.u32 %v172, 7
        %v174 = vsub.s32 0, %v173
        %v175 = vrot.slane %v170, %v174
        %v177 = vld [vmem:[%s168] sm:$0xf]
        %v178 = vld [vmem:[%s168 + $0x4] sm:$0x1]
        %v179 = vld [vmem:[%s1] sm:$0xff]
        %s180 = scalar_lea.vmem %s1, 8
        %v181 = vld [vmem:[%s180] sm:$0xff]
        %v184 = vunpack.c.l.b16 %v177
        %v185 = vunpack.c.l.b16 %v178
        %v186 = vpack.c.b16 %v185, %v184
        %v188 = vshrl.u32 %v186, 16
        %v190 = vshll.u32 %v186, 16
        %v192 = vrot.slane %v190, 1
        %v193 = vor.u32 %v188, %v192
        %v195 = vunpack.c.l.b16 %v181
        %v196 = vunpack.c.h.b16 %v181
        %v197 = vpack.c.b16 %v195, %v195
        %v198 = vpack.c.b16 %v196, %v196
        %vm199 = vcmask 64512
        %v201 = vsel %vm199, %v193, 0
        %vm203 = vcmask 1043456
        %v205 = vsel %vm203, %v197, 0
        %v208 = vsel %vm203, %v198, 0
        %210 = vmatprep.subr.bf16.mxu0 %v208
        %211 = vmatpush1.bf16.msra.mxu0 %v205
        %212 = vmatprep.subr.bf16.mxu0 0
        %213 = vmatpush1.bf16.msra.mxu0 0
        %214 = vmatprep.subr.bf16.mxu0 0
        %215 = vmatpush1.bf16.msra.mxu0 0
        %216 = vmatprep.subr.bf16.mxu0 0
        %217 = vmatpush1.bf16.msra.mxu0 0
        %218 = vmatprep.subr.bf16.mxu0 0
        %219 = vmatpush1.bf16.msra.mxu0 0
        %220 = vmatprep.subr.bf16.mxu0 0
        %221 = vmatpush1.bf16.msra.mxu0 0
        %222 = vmatprep.subr.bf16.mxu0 0
        %223 = vmatpush1.bf16.msra.mxu0 0
        %224 = vmatprep.subr.bf16.mxu0 0
        %225 = vmatpush1.bf16.msra.mxu0 0
        %226 = vmatprep.subr.bf16.mxu0 0
        %227 = vmatpush1.bf16.msra.mxu0 0
        %228 = vmatprep.subr.bf16.mxu0 0
        %229 = vmatpush1.bf16.msra.mxu0 0
        %230 = vmatprep.subr.bf16.mxu0 0
        %231 = vmatpush1.bf16.msra.mxu0 0
        %232 = vmatprep.subr.bf16.mxu0 0
        %233 = vmatpush1.bf16.msra.mxu0 0
        %234 = vmatprep.subr.bf16.mxu0 0
        %235 = vmatpush1.bf16.msra.mxu0 0
        %236 = vmatprep.subr.bf16.mxu0 0
        %237 = vmatpush1.bf16.msra.mxu0 0
        %238 = vmatprep.subr.bf16.mxu0 0
        %239 = vmatpush1.bf16.msra.mxu0 0
        %240 = vmatprep.subr.bf16.mxu0 0
        %241 = vmatpush1.bf16.msra.mxu0 0
        %242 = vmatprep.mubr.bf16.mxu0 0
        %243 = vmatmul.mubr.bf16.gmra.mrb[0].mxu0 %v201
        %v244 = vpop.f32.mrb[0].mxu0
        %v245 = vadd.f32 0.0, %v244
        %v246 = vpop.f32.mrb[0].mxu0
        %v247 = vadd.f32 0.0, %v246
        %v248 = vpop.f32.mrb[0].mxu0
        %v249 = vpop.f32.mrb[0].mxu0
        %250 = vdwg.mxu0
        %v252 = vunpack.c.l.b16 %v179
        %v253 = vunpack.c.h.b16 %v179
        %v254 = vpack.c.b16 %v252, %v252
        %v255 = vpack.c.b16 %v253, %v253
        %v257 = vsel %vm199, %v177, 0
        %v260 = vsel %vm203, %v254, 0
        %v263 = vsel %vm203, %v255, 0
        %265 = vmatprep.subr.bf16.mxu0 %v263
        %266 = vmatpush1.bf16.msra.mxu0 %v260
        %267 = vmatprep.subr.bf16.mxu0 0
        %268 = vmatpush1.bf16.msra.mxu0 0
        %269 = vmatprep.subr.bf16.mxu0 0
        %270 = vmatpush1.bf16.msra.mxu0 0
        %271 = vmatprep.subr.bf16.mxu0 0
        %272 = vmatpush1.bf16.msra.mxu0 0
        %273 = vmatprep.subr.bf16.mxu0 0
        %274 = vmatpush1.bf16.msra.mxu0 0
        %275 = vmatprep.subr.bf16.mxu0 0
        %276 = vmatpush1.bf16.msra.mxu0 0
        %277 = vmatprep.subr.bf16.mxu0 0
        %278 = vmatpush1.bf16.msra.mxu0 0
        %279 = vmatprep.subr.bf16.mxu0 0
        %280 = vmatpush1.bf16.msra.mxu0 0
        %281 = vmatprep.subr.bf16.mxu0 0
        %282 = vmatpush1.bf16.msra.mxu0 0
        %283 = vmatprep.subr.bf16.mxu0 0
        %284 = vmatpush1.bf16.msra.mxu0 0
        %285 = vmatprep.subr.bf16.mxu0 0
        %286 = vmatpush1.bf16.msra.mxu0 0
        %287 = vmatprep.subr.bf16.mxu0 0
        %288 = vmatpush1.bf16.msra.mxu0 0
        %289 = vmatprep.subr.bf16.mxu0 0
        %290 = vmatpush1.bf16.msra.mxu0 0
        %291 = vmatprep.subr.bf16.mxu0 0
        %292 = vmatpush1.bf16.msra.mxu0 0
        %293 = vmatprep.subr.bf16.mxu0 0
        %294 = vmatpush1.bf16.msra.mxu0 0
        %295 = vmatprep.subr.bf16.mxu0 0
        %296 = vmatpush1.bf16.msra.mxu0 0
        %297 = vmatprep.mubr.bf16.mxu0 0
        %298 = vmatmul.mubr.bf16.gmra.mrb[0].mxu0 %v257
        %v299 = vpop.f32.mrb[0].mxu0
        %v300 = vadd.f32 %v245, %v299
        %v301 = vpop.f32.mrb[0].mxu0
        %v302 = vadd.f32 %v247, %v301
        %v303 = vpop.f32.mrb[0].mxu0
        %v304 = vpop.f32.mrb[0].mxu0
        %305 = vdwg.mxu0
        %s306 = scalar_lea.vmem %s168, 8
        %v307 = vld [vmem:[%s306] sm:$0xf]
        %v308 = vld [vmem:[%s306 + $0x4] sm:$0x1]
        %s309 = scalar_lea.vmem %s1, 16
        %v310 = vld [vmem:[%s309] sm:$0xff]
        %s311 = scalar_lea.vmem %s1, 24
        %v312 = vld [vmem:[%s311] sm:$0xff]
        %v315 = vunpack.c.l.b16 %v307
        %v316 = vunpack.c.l.b16 %v308
        %v317 = vpack.c.b16 %v316, %v315
        %v319 = vshrl.u32 %v317, 16
        %v321 = vshll.u32 %v317, 16
        %v323 = vrot.slane %v321, 1
        %v324 = vor.u32 %v319, %v323
        %v326 = vunpack.c.l.b16 %v312
        %v327 = vunpack.c.h.b16 %v312
        %v328 = vpack.c.b16 %v326, %v326
        %v329 = vpack.c.b16 %v327, %v327
        %v331 = vsel %vm199, %v324, 0
        %v334 = vsel %vm203, %v328, 0
        %v337 = vsel %vm203, %v329, 0
        %339 = vmatprep.subr.bf16.mxu0 %v337
        %340 = vmatpush1.bf16.msra.mxu0 %v334
        %341 = vmatprep.subr.bf16.mxu0 0
        %342 = vmatpush1.bf16.msra.mxu0 0
        %343 = vmatprep.subr.bf16.mxu0 0
        %344 = vmatpush1.bf16.msra.mxu0 0
        %345 = vmatprep.subr.bf16.mxu0 0
        %346 = vmatpush1.bf16.msra.mxu0 0
        %347 = vmatprep.subr.bf16.mxu0 0
        %348 = vmatpush1.bf16.msra.mxu0 0
        %349 = vmatprep.subr.bf16.mxu0 0
        %350 = vmatpush1.bf16.msra.mxu0 0
        %351 = vmatprep.subr.bf16.mxu0 0
        %352 = vmatpush1.bf16.msra.mxu0 0
        %353 = vmatprep.subr.bf16.mxu0 0
        %354 = vmatpush1.bf16.msra.mxu0 0
        %355 = vmatprep.subr.bf16.mxu0 0
        %356 = vmatpush1.bf16.msra.mxu0 0
        %357 = vmatprep.subr.bf16.mxu0 0
        %358 = vmatpush1.bf16.msra.mxu0 0
        %359 = vmatprep.subr.bf16.mxu0 0
        %360 = vmatpush1.bf16.msra.mxu0 0
        %361 = vmatprep.subr.bf16.mxu0 0
        %362 = vmatpush1.bf16.msra.mxu0 0
        %363 = vmatprep.subr.bf16.mxu0 0
        %364 = vmatpush1.bf16.msra.mxu0 0
        %365 = vmatprep.subr.bf16.mxu0 0
        %366 = vmatpush1.bf16.msra.mxu0 0
        %367 = vmatprep.subr.bf16.mxu0 0
        %368 = vmatpush1.bf16.msra.mxu0 0
        %369 = vmatprep.subr.bf16.mxu0 0
        %370 = vmatpush1.bf16.msra.mxu0 0
        %371 = vmatprep.mubr.bf16.mxu0 0
        %372 = vmatmul.mubr.bf16.gmra.mrb[0].mxu0 %v331
        %v373 = vpop.f32.mrb[0].mxu0
        %v374 = vadd.f32 0.0, %v373
        %v375 = vpop.f32.mrb[0].mxu0
        %v376 = vadd.f32 0.0, %v375
        %v377 = vpop.f32.mrb[0].mxu0
        %v378 = vpop.f32.mrb[0].mxu0
        %379 = vdwg.mxu0
        %v381 = vunpack.c.l.b16 %v310
        %v382 = vunpack.c.h.b16 %v310
        %v383 = vpack.c.b16 %v381, %v381
        %v384 = vpack.c.b16 %v382, %v382
        %v386 = vsel %vm199, %v307, 0
        %v389 = vsel %vm203, %v383, 0
        %v392 = vsel %vm203, %v384, 0
        %394 = vmatprep.subr.bf16.mxu0 %v392
        %395 = vmatpush1.bf16.msra.mxu0 %v389
        %396 = vmatprep.subr.bf16.mxu0 0
        %397 = vmatpush1.bf16.msra.mxu0 0
        %398 = vmatprep.subr.bf16.mxu0 0
        %399 = vmatpush1.bf16.msra.mxu0 0
        %400 = vmatprep.subr.bf16.mxu0 0
        %401 = vmatpush1.bf16.msra.mxu0 0
        %402 = vmatprep.subr.bf16.mxu0 0
        %403 = vmatpush1.bf16.msra.mxu0 0
        %404 = vmatprep.subr.bf16.mxu0 0
        %405 = vmatpush1.bf16.msra.mxu0 0
        %406 = vmatprep.subr.bf16.mxu0 0
        %407 = vmatpush1.bf16.msra.mxu0 0
        %408 = vmatprep.subr.bf16.mxu0 0
        %409 = vmatpush1.bf16.msra.mxu0 0
        %410 = vmatprep.subr.bf16.mxu0 0
        %411 = vmatpush1.bf16.msra.mxu0 0
        %412 = vmatprep.subr.bf16.mxu0 0
        %413 = vmatpush1.bf16.msra.mxu0 0
        %414 = vmatprep.subr.bf16.mxu0 0
        %415 = vmatpush1.bf16.msra.mxu0 0
        %416 = vmatprep.subr.bf16.mxu0 0
        %417 = vmatpush1.bf16.msra.mxu0 0
        %418 = vmatprep.subr.bf16.mxu0 0
        %419 = vmatpush1.bf16.msra.mxu0 0
        %420 = vmatprep.subr.bf16.mxu0 0
        %421 = vmatpush1.bf16.msra.mxu0 0
        %422 = vmatprep.subr.bf16.mxu0 0
        %423 = vmatpush1.bf16.msra.mxu0 0
        %424 = vmatprep.subr.bf16.mxu0 0
        %425 = vmatpush1.bf16.msra.mxu0 0
        %426 = vmatprep.mubr.bf16.mxu0 0
        %427 = vmatmul.mubr.bf16.gmra.mrb[0].mxu0 %v386
        %v428 = vpop.f32.mrb[0].mxu0
        %v429 = vadd.f32 %v374, %v428
        %v430 = vpop.f32.mrb[0].mxu0
        %v431 = vadd.f32 %v376, %v430
        %v432 = vpop.f32.mrb[0].mxu0
        %v433 = vpop.f32.mrb[0].mxu0
        %434 = vdwg.mxu0
        %v435 = vadd.f32 %v300, %v429
        %v436 = vadd.f32 %v302, %v431
        %s437 = scalar_lea.vmem %s168, 16
        %v438 = vld [vmem:[%s437] sm:$0xf]
        %v439 = vld [vmem:[%s437 + $0x4] sm:$0x1]
        %s440 = scalar_lea.vmem %s1, 32
        %v441 = vld [vmem:[%s440] sm:$0xff]
        %s442 = scalar_lea.vmem %s1, 40
        %v443 = vld [vmem:[%s442] sm:$0xff]
        %v446 = vunpack.c.l.b16 %v438
        %v447 = vunpack.c.l.b16 %v439
        %v448 = vpack.c.b16 %v447, %v446
        %v450 = vshrl.u32 %v448, 16
        %v452 = vshll.u32 %v448, 16
        %v454 = vrot.slane %v452, 1
        %v455 = vor.u32 %v450, %v454
        %v457 = vunpack.c.l.b16 %v443
        %v458 = vunpack.c.h.b16 %v443
        %v459 = vpack.c.b16 %v457, %v457
        %v460 = vpack.c.b16 %v458, %v458
        %v462 = vsel %vm199, %v455, 0
        %v465 = vsel %vm203, %v459, 0
        %v468 = vsel %vm203, %v460, 0
        %470 = vmatprep.subr.bf16.mxu0 %v468
        %471 = vmatpush1.bf16.msra.mxu0 %v465
        %472 = vmatprep.subr.bf16.mxu0 0
        %473 = vmatpush1.bf16.msra.mxu0 0
        %474 = vmatprep.subr.bf16.mxu0 0
        %475 = vmatpush1.bf16.msra.mxu0 0
        %476 = vmatprep.subr.bf16.mxu0 0
        %477 = vmatpush1.bf16.msra.mxu0 0
        %478 = vmatprep.subr.bf16.mxu0 0
        %479 = vmatpush1.bf16.msra.mxu0 0
        %480 = vmatprep.subr.bf16.mxu0 0
        %481 = vmatpush1.bf16.msra.mxu0 0
        %482 = vmatprep.subr.bf16.mxu0 0
        %483 = vmatpush1.bf16.msra.mxu0 0
        %484 = vmatprep.subr.bf16.mxu0 0
        %485 = vmatpush1.bf16.msra.mxu0 0
        %486 = vmatprep.subr.bf16.mxu0 0
        %487 = vmatpush1.bf16.msra.mxu0 0
        %488 = vmatprep.subr.bf16.mxu0 0
        %489 = vmatpush1.bf16.msra.mxu0 0
        %490 = vmatprep.subr.bf16.mxu0 0
        %491 = vmatpush1.bf16.msra.mxu0 0
        %492 = vmatprep.subr.bf16.mxu0 0
        %493 = vmatpush1.bf16.msra.mxu0 0
        %494 = vmatprep.subr.bf16.mxu0 0
        %495 = vmatpush1.bf16.msra.mxu0 0
        %496 = vmatprep.subr.bf16.mxu0 0
        %497 = vmatpush1.bf16.msra.mxu0 0
        %498 = vmatprep.subr.bf16.mxu0 0
        %499 = vmatpush1.bf16.msra.mxu0 0
        %500 = vmatprep.subr.bf16.mxu0 0
        %501 = vmatpush1.bf16.msra.mxu0 0
        %502 = vmatprep.mubr.bf16.mxu0 0
        %503 = vmatmul.mubr.bf16.gmra.mrb[0].mxu0 %v462
        %v504 = vpop.f32.mrb[0].mxu0
        %v505 = vadd.f32 0.0, %v504
        %v506 = vpop.f32.mrb[0].mxu0
        %v507 = vadd.f32 0.0, %v506
        %v508 = vpop.f32.mrb[0].mxu0
        %v509 = vpop.f32.mrb[0].mxu0
        %510 = vdwg.mxu0
        %v512 = vunpack.c.l.b16 %v441
        %v513 = vunpack.c.h.b16 %v441
        %v514 = vpack.c.b16 %v512, %v512
        %v515 = vpack.c.b16 %v513, %v513
        %v517 = vsel %vm199, %v438, 0
        %v520 = vsel %vm203, %v514, 0
        %v523 = vsel %vm203, %v515, 0
        %525 = vmatprep.subr.bf16.mxu0 %v523
        %526 = vmatpush1.bf16.msra.mxu0 %v520
        %527 = vmatprep.subr.bf16.mxu0 0
        %528 = vmatpush1.bf16.msra.mxu0 0
        %529 = vmatprep.subr.bf16.mxu0 0
        %530 = vmatpush1.bf16.msra.mxu0 0
        %531 = vmatprep.subr.bf16.mxu0 0
        %532 = vmatpush1.bf16.msra.mxu0 0
        %533 = vmatprep.subr.bf16.mxu0 0
        %534 = vmatpush1.bf16.msra.mxu0 0
        %535 = vmatprep.subr.bf16.mxu0 0
        %536 = vmatpush1.bf16.msra.mxu0 0
        %537 = vmatprep.subr.bf16.mxu0 0
        %538 = vmatpush1.bf16.msra.mxu0 0
        %539 = vmatprep.subr.bf16.mxu0 0
        %540 = vmatpush1.bf16.msra.mxu0 0
        %541 = vmatprep.subr.bf16.mxu0 0
        %542 = vmatpush1.bf16.msra.mxu0 0
        %543 = vmatprep.subr.bf16.mxu0 0
        %544 = vmatpush1.bf16.msra.mxu0 0
        %545 = vmatprep.subr.bf16.mxu0 0
        %546 = vmatpush1.bf16.msra.mxu0 0
        %547 = vmatprep.subr.bf16.mxu0 0
        %548 = vmatpush1.bf16.msra.mxu0 0
        %549 = vmatprep.subr.bf16.mxu0 0
        %550 = vmatpush1.bf16.msra.mxu0 0
        %551 = vmatprep.subr.bf16.mxu0 0
        %552 = vmatpush1.bf16.msra.mxu0 0
        %553 = vmatprep.subr.bf16.mxu0 0
        %554 = vmatpush1.bf16.msra.mxu0 0
        %555 = vmatprep.subr.bf16.mxu0 0
        %556 = vmatpush1.bf16.msra.mxu0 0
        %557 = vmatprep.mubr.bf16.mxu0 0
        %558 = vmatmul.mubr.bf16.gmra.mrb[0].mxu0 %v517
        %v559 = vpop.f32.mrb[0].mxu0
        %v560 = vadd.f32 %v505, %v559
        %v561 = vpop.f32.mrb[0].mxu0
        %v562 = vadd.f32 %v507, %v561
        %v563 = vpop.f32.mrb[0].mxu0
        %v564 = vpop.f32.mrb[0].mxu0
        %565 = vdwg.mxu0
        %v566 = vadd.f32 %v435, %v560
        %v567 = vadd.f32 %v436, %v562
        %v568 = vmax.f32 %v566, %v567
        %569 = vmatprep.subr.bf16.mxu0 %v208
        %570 = vmatpush1.bf16.msra.mxu0 %v205
        %571 = vmatprep.subr.bf16.mxu0 0
        %572 = vmatpush1.bf16.msra.mxu0 0
        %573 = vmatprep.subr.bf16.mxu0 0
        %574 = vmatpush1.bf16.msra.mxu0 0
        %575 = vmatprep.subr.bf16.mxu0 0
        %576 = vmatpush1.bf16.msra.mxu0 0
        %577 = vmatprep.subr.bf16.mxu0 0
        %578 = vmatpush1.bf16.msra.mxu0 0
        %579 = vmatprep.subr.bf16.mxu0 0
        %580 = vmatpush1.bf16.msra.mxu0 0
        %581 = vmatprep.subr.bf16.mxu0 0
        %582 = vmatpush1.bf16.msra.mxu0 0
        %583 = vmatprep.subr.bf16.mxu0 0
        %584 = vmatpush1.bf16.msra.mxu0 0
        %585 = vmatprep.subr.bf16.mxu0 0
        %586 = vmatpush1.bf16.msra.mxu0 0
        %587 = vmatprep.subr.bf16.mxu0 0
        %588 = vmatpush1.bf16.msra.mxu0 0
        %589 = vmatprep.subr.bf16.mxu0 0
        %590 = vmatpush1.bf16.msra.mxu0 0
        %591 = vmatprep.subr.bf16.mxu0 0
        %592 = vmatpush1.bf16.msra.mxu0 0
        %593 = vmatprep.subr.bf16.mxu0 0
        %594 = vmatpush1.bf16.msra.mxu0 0
        %595 = vmatprep.subr.bf16.mxu0 0
        %596 = vmatpush1.bf16.msra.mxu0 0
        %597 = vmatprep.subr.bf16.mxu0 0
        %598 = vmatpush1.bf16.msra.mxu0 0
        %599 = vmatprep.subr.bf16.mxu0 0
        %600 = vmatpush1.bf16.msra.mxu0 0
        %601 = vmatprep.mubr.bf16.mxu0 0
        %602 = vmatmul.mubr.bf16.gmra.mrb[0].mxu0 %v331
        %v603 = vpop.f32.mrb[0].mxu0
        %v604 = vadd.f32 0.0, %v603
        %v605 = vpop.f32.mrb[0].mxu0
        %v606 = vadd.f32 0.0, %v605
        %v607 = vpop.f32.mrb[0].mxu0
        %v608 = vpop.f32.mrb[0].mxu0
        %609 = vdwg.mxu0
        %610 = vmatprep.subr.bf16.mxu0 %v263
        %611 = vmatpush1.bf16.msra.mxu0 %v260
        %612 = vmatprep.subr.bf16.mxu0 0
        %613 = vmatpush1.bf16.msra.mxu0 0
        %614 = vmatprep.subr.bf16.mxu0 0
        %615 = vmatpush1.bf16.msra.mxu0 0
        %616 = vmatprep.subr.bf16.mxu0 0
        %617 = vmatpush1.bf16.msra.mxu0 0
        %618 = vmatprep.subr.bf16.mxu0 0
        %619 = vmatpush1.bf16.msra.mxu0 0
        %620 = vmatprep.subr.bf16.mxu0 0
        %621 = vmatpush1.bf16.msra.mxu0 0
        %622 = vmatprep.subr.bf16.mxu0 0
        %623 = vmatpush1.bf16.msra.mxu0 0
        %624 = vmatprep.subr.bf16.mxu0 0
        %625 = vmatpush1.bf16.msra.mxu0 0
        %626 = vmatprep.subr.bf16.mxu0 0
        %627 = vmatpush1.bf16.msra.mxu0 0
        %628 = vmatprep.subr.bf16.mxu0 0
        %629 = vmatpush1.bf16.msra.mxu0 0
        %630 = vmatprep.subr.bf16.mxu0 0
        %631 = vmatpush1.bf16.msra.mxu0 0
        %632 = vmatprep.subr.bf16.mxu0 0
        %633 = vmatpush1.bf16.msra.mxu0 0
        %634 = vmatprep.subr.bf16.mxu0 0
        %635 = vmatpush1.bf16.msra.mxu0 0
        %636 = vmatprep.subr.bf16.mxu0 0
        %637 = vmatpush1.bf16.msra.mxu0 0
        %638 = vmatprep.subr.bf16.mxu0 0
        %639 = vmatpush1.bf16.msra.mxu0 0
        %640 = vmatprep.subr.bf16.mxu0 0
        %641 = vmatpush1.bf16.msra.mxu0 0
        %642 = vmatprep.mubr.bf16.mxu0 0
        %643 = vmatmul.mubr.bf16.gmra.mrb[0].mxu0 %v386
        %v644 = vpop.f32.mrb[0].mxu0
        %v645 = vadd.f32 %v604, %v644
        %v646 = vpop.f32.mrb[0].mxu0
        %v647 = vadd.f32 %v606, %v646
        %v648 = vpop.f32.mrb[0].mxu0
        %v649 = vpop.f32.mrb[0].mxu0
        %650 = vdwg.mxu0
        %651 = vmatprep.subr.bf16.mxu0 %v337
        %652 = vmatpush1.bf16.msra.mxu0 %v334
        %653 = vmatprep.subr.bf16.mxu0 0
        %654 = vmatpush1.bf16.msra.mxu0 0
        %655 = vmatprep.subr.bf16.mxu0 0
        %656 = vmatpush1.bf16.msra.mxu0 0
        %657 = vmatprep.subr.bf16.mxu0 0
        %658 = vmatpush1.bf16.msra.mxu0 0
        %659 = vmatprep.subr.bf16.mxu0 0
        %660 = vmatpush1.bf16.msra.mxu0 0
        %661 = vmatprep.subr.bf16.mxu0 0
        %662 = vmatpush1.bf16.msra.mxu0 0
        %663 = vmatprep.subr.bf16.mxu0 0
        %664 = vmatpush1.bf16.msra.mxu0 0
        %665 = vmatprep.subr.bf16.mxu0 0
        %666 = vmatpush1.bf16.msra.mxu0 0
        %667 = vmatprep.subr.bf16.mxu0 0
        %668 = vmatpush1.bf16.msra.mxu0 0
        %669 = vmatprep.subr.bf16.mxu0 0
        %670 = vmatpush1.bf16.msra.mxu0 0
        %671 = vmatprep.subr.bf16.mxu0 0
        %672 = vmatpush1.bf16.msra.mxu0 0
        %673 = vmatprep.subr.bf16.mxu0 0
        %674 = vmatpush1.bf16.msra.mxu0 0
        %675 = vmatprep.subr.bf16.mxu0 0
        %676 = vmatpush1.bf16.msra.mxu0 0
        %677 = vmatprep.subr.bf16.mxu0 0
        %678 = vmatpush1.bf16.msra.mxu0 0
        %679 = vmatprep.subr.bf16.mxu0 0
        %680 = vmatpush1.bf16.msra.mxu0 0
        %681 = vmatprep.subr.bf16.mxu0 0
        %682 = vmatpush1.bf16.msra.mxu0 0
        %683 = vmatprep.mubr.bf16.mxu0 0
        %684 = vmatmul.mubr.bf16.gmra.mrb[0].mxu0 %v462
        %v685 = vpop.f32.mrb[0].mxu0
        %v686 = vadd.f32 0.0, %v685
        %v687 = vpop.f32.mrb[0].mxu0
        %v688 = vadd.f32 0.0, %v687
        %v689 = vpop.f32.mrb[0].mxu0
        %v690 = vpop.f32.mrb[0].mxu0
        %691 = vdwg.mxu0
        %692 = vmatprep.subr.bf16.mxu0 %v392
        %693 = vmatpush1.bf16.msra.mxu0 %v389
        %694 = vmatprep.subr.bf16.mxu0 0
        %695 = vmatpush1.bf16.msra.mxu0 0
        %696 = vmatprep.subr.bf16.mxu0 0
        %697 = vmatpush1.bf16.msra.mxu0 0
        %698 = vmatprep.subr.bf16.mxu0 0
        %699 = vmatpush1.bf16.msra.mxu0 0
        %700 = vmatprep.subr.bf16.mxu0 0
        %701 = vmatpush1.bf16.msra.mxu0 0
        %702 = vmatprep.subr.bf16.mxu0 0
        %703 = vmatpush1.bf16.msra.mxu0 0
        %704 = vmatprep.subr.bf16.mxu0 0
        %705 = vmatpush1.bf16.msra.mxu0 0
        %706 = vmatprep.subr.bf16.mxu0 0
        %707 = vmatpush1.bf16.msra.mxu0 0
        %708 = vmatprep.subr.bf16.mxu0 0
        %709 = vmatpush1.bf16.msra.mxu0 0
        %710 = vmatprep.subr.bf16.mxu0 0
        %711 = vmatpush1.bf16.msra.mxu0 0
        %712 = vmatprep.subr.bf16.mxu0 0
        %713 = vmatpush1.bf16.msra.mxu0 0
        %714 = vmatprep.subr.bf16.mxu0 0
        %715 = vmatpush1.bf16.msra.mxu0 0
        %716 = vmatprep.subr.bf16.mxu0 0
        %717 = vmatpush1.bf16.msra.mxu0 0
        %718 = vmatprep.subr.bf16.mxu0 0
        %719 = vmatpush1.bf16.msra.mxu0 0
        %720 = vmatprep.subr.bf16.mxu0 0
        %721 = vmatpush1.bf16.msra.mxu0 0
        %722 = vmatprep.subr.bf16.mxu0 0
        %723 = vmatpush1.bf16.msra.mxu0 0
        %724 = vmatprep.mubr.bf16.mxu0 0
        %725 = vmatmul.mubr.bf16.gmra.mrb[0].mxu0 %v517
        %v726 = vpop.f32.mrb[0].mxu0
        %v727 = vadd.f32 %v686, %v726
        %v728 = vpop.f32.mrb[0].mxu0
        %v729 = vadd.f32 %v688, %v728
        %v730 = vpop.f32.mrb[0].mxu0
        %v731 = vpop.f32.mrb[0].mxu0
        %732 = vdwg.mxu0
        %v733 = vadd.f32 %v645, %v727
        %v734 = vadd.f32 %v647, %v729
        %s735 = scalar_lea.vmem %s168, 24
        %v736 = vld [vmem:[%s735] sm:$0xf]
        %v737 = vld [vmem:[%s735 + $0x4] sm:$0x1]
        %v740 = vunpack.c.l.b16 %v736
        %v741 = vunpack.c.l.b16 %v737
        %v742 = vpack.c.b16 %v741, %v740
        %v744 = vshrl.u32 %v742, 16
        %v746 = vshll.u32 %v742, 16
        %v748 = vrot.slane %v746, 1
        %v749 = vor.u32 %v744, %v748
        %v751 = vsel %vm199, %v749, 0
        %753 = vmatprep.subr.bf16.mxu0 %v468
        %754 = vmatpush1.bf16.msra.mxu0 %v465
        %755 = vmatprep.subr.bf16.mxu0 0
        %756 = vmatpush1.bf16.msra.mxu0 0
        %757 = vmatprep.subr.bf16.mxu0 0
        %758 = vmatpush1.bf16.msra.mxu0 0
        %759 = vmatprep.subr.bf16.mxu0 0
        %760 = vmatpush1.bf16.msra.mxu0 0
        %761 = vmatprep.subr.bf16.mxu0 0
        %762 = vmatpush1.bf16.msra.mxu0 0
        %763 = vmatprep.subr.bf16.mxu0 0
        %764 = vmatpush1.bf16.msra.mxu0 0
        %765 = vmatprep.subr.bf16.mxu0 0
        %766 = vmatpush1.bf16.msra.mxu0 0
        %767 = vmatprep.subr.bf16.mxu0 0
        %768 = vmatpush1.bf16.msra.mxu0 0
        %769 = vmatprep.subr.bf16.mxu0 0
        %770 = vmatpush1.bf16.msra.mxu0 0
        %771 = vmatprep.subr.bf16.mxu0 0
        %772 = vmatpush1.bf16.msra.mxu0 0
        %773 = vmatprep.subr.bf16.mxu0 0
        %774 = vmatpush1.bf16.msra.mxu0 0
        %775 = vmatprep.subr.bf16.mxu0 0
        %776 = vmatpush1.bf16.msra.mxu0 0
        %777 = vmatprep.subr.bf16.mxu0 0
        %778 = vmatpush1.bf16.msra.mxu0 0
        %779 = vmatprep.subr.bf16.mxu0 0
        %780 = vmatpush1.bf16.msra.mxu0 0
        %781 = vmatprep.subr.bf16.mxu0 0
        %782 = vmatpush1.bf16.msra.mxu0 0
        %783 = vmatprep.subr.bf16.mxu0 0
        %784 = vmatpush1.bf16.msra.mxu0 0
        %785 = vmatprep.mubr.bf16.mxu0 0
        %786 = vmatmul.mubr.bf16.gmra.mrb[0].mxu0 %v751
        %v787 = vpop.f32.mrb[0].mxu0
        %v788 = vadd.f32 0.0, %v787
        %v789 = vpop.f32.mrb[0].mxu0
        %v790 = vadd.f32 0.0, %v789
        %v791 = vpop.f32.mrb[0].mxu0
        %v792 = vpop.f32.mrb[0].mxu0
        %793 = vdwg.mxu0
        %v795 = vsel %vm199, %v736, 0
        %797 = vmatprep.subr.bf16.mxu0 %v523
        %798 = vmatpush1.bf16.msra.mxu0 %v520
        %799 = vmatprep.subr.bf16.mxu0 0
        %800 = vmatpush1.bf16.msra.mxu0 0
        %801 = vmatprep.subr.bf16.mxu0 0
        %802 = vmatpush1.bf16.msra.mxu0 0
        %803 = vmatprep.subr.bf16.mxu0 0
        %804 = vmatpush1.bf16.msra.mxu0 0
        %805 = vmatprep.subr.bf16.mxu0 0
        %806 = vmatpush1.bf16.msra.mxu0 0
        %807 = vmatprep.subr.bf16.mxu0 0
        %808 = vmatpush1.bf16.msra.mxu0 0
        %809 = vmatprep.subr.bf16.mxu0 0
        %810 = vmatpush1.bf16.msra.mxu0 0
        %811 = vmatprep.subr.bf16.mxu0 0
        %812 = vmatpush1.bf16.msra.mxu0 0
        %813 = vmatprep.subr.bf16.mxu0 0
        %814 = vmatpush1.bf16.msra.mxu0 0
        %815 = vmatprep.subr.bf16.mxu0 0
        %816 = vmatpush1.bf16.msra.mxu0 0
        %817 = vmatprep.subr.bf16.mxu0 0
        %818 = vmatpush1.bf16.msra.mxu0 0
        %819 = vmatprep.subr.bf16.mxu0 0
        %820 = vmatpush1.bf16.msra.mxu0 0
        %821 = vmatprep.subr.bf16.mxu0 0
        %822 = vmatpush1.bf16.msra.mxu0 0
        %823 = vmatprep.subr.bf16.mxu0 0
        %824 = vmatpush1.bf16.msra.mxu0 0
        %825 = vmatprep.subr.bf16.mxu0 0
        %826 = vmatpush1.bf16.msra.mxu0 0
        %827 = vmatprep.subr.bf16.mxu0 0
        %828 = vmatpush1.bf16.msra.mxu0 0
        %829 = vmatprep.mubr.bf16.mxu0 0
        %830 = vmatmul.mubr.bf16.gmra.mrb[0].mxu0 %v795
        %v831 = vpop.f32.mrb[0].mxu0
        %v832 = vadd.f32 %v788, %v831
        %v833 = vpop.f32.mrb[0].mxu0
        %v834 = vadd.f32 %v790, %v833
        %v835 = vpop.f32.mrb[0].mxu0
        %v836 = vpop.f32.mrb[0].mxu0
        %837 = vdwg.mxu0
        %v838 = vadd.f32 %v733, %v832
        %v839 = vadd.f32 %v734, %v834
        %v840 = vmax.f32 %v838, %v839
        %v841 = vmax.f32 %v568, %v840
        %v842 = vadd.f32 %v841, %v175
        %v843 = vmax.f32 %v842, 0.0
        %v844 = vpack.c.bf16 %v843, %v843
        %845 = vst [vmem:[%s163] sm:$0xf] %v844
        %v846 = vld [vmem:[%s437] sm:$0xf]
        %v847 = vld [vmem:[%s437 + $0x4] sm:$0x1]
        %v848 = vld [vmem:[%s1] sm:$0xff]
        %v849 = vld [vmem:[%s180] sm:$0xff]
        %v852 = vunpack.c.l.b16 %v846
        %v853 = vunpack.c.l.b16 %v847
        %v854 = vpack.c.b16 %v853, %v852
        %v856 = vshrl.u32 %v854, 16
        %v858 = vshll.u32 %v854, 16
        %v860 = vrot.slane %v858, 1
        %v861 = vor.u32 %v856, %v860
        %v863 = vunpack.c.l.b16 %v849
        %v864 = vunpack.c.h.b16 %v849
        %v865 = vpack.c.b16 %v863, %v863
        %v866 = vpack.c.b16 %v864, %v864
        %v868 = vsel %vm199, %v861, 0
        %v871 = vsel %vm203, %v865, 0
        %v874 = vsel %vm203, %v866, 0
        %876 = vmatprep.subr.bf16.mxu0 %v874
        %877 = vmatpush1.bf16.msra.mxu0 %v871
        %878 = vmatprep.subr.bf16.mxu0 0
        %879 = vmatpush1.bf16.msra.mxu0 0
        %880 = vmatprep.subr.bf16.mxu0 0
        %881 = vmatpush1.bf16.msra.mxu0 0
        %882 = vmatprep.subr.bf16.mxu0 0
        %883 = vmatpush1.bf16.msra.mxu0 0
        %884 = vmatprep.subr.bf16.mxu0 0
        %885 = vmatpush1.bf16.msra.mxu0 0
        %886 = vmatprep.subr.bf16.mxu0 0
        %887 = vmatpush1.bf16.msra.mxu0 0
        %888 = vmatprep.subr.bf16.mxu0 0
        %889 = vmatpush1.bf16.msra.mxu0 0
        %890 = vmatprep.subr.bf16.mxu0 0
        %891 = vmatpush1.bf16.msra.mxu0 0
        %892 = vmatprep.subr.bf16.mxu0 0
        %893 = vmatpush1.bf16.msra.mxu0 0
        %894 = vmatprep.subr.bf16.mxu0 0
        %895 = vmatpush1.bf16.msra.mxu0 0
        %896 = vmatprep.subr.bf16.mxu0 0
        %897 = vmatpush1.bf16.msra.mxu0 0
        %898 = vmatprep.subr.bf16.mxu0 0
        %899 = vmatpush1.bf16.msra.mxu0 0
        %900 = vmatprep.subr.bf16.mxu0 0
        %901 = vmatpush1.bf16.msra.mxu0 0
        %902 = vmatprep.subr.bf16.mxu0 0
        %903 = vmatpush1.bf16.msra.mxu0 0
        %904 = vmatprep.subr.bf16.mxu0 0
        %905 = vmatpush1.bf16.msra.mxu0 0
        %906 = vmatprep.subr.bf16.mxu0 0
        %907 = vmatpush1.bf16.msra.mxu0 0
        %908 = vmatprep.mubr.bf16.mxu0 0
        %909 = vmatmul.mubr.bf16.gmra.mrb[0].mxu0 %v868
        %v910 = vpop.f32.mrb[0].mxu0
        %v911 = vadd.f32 0.0, %v910
        %v912 = vpop.f32.mrb[0].mxu0
        %v913 = vadd.f32 0.0, %v912
        %v914 = vpop.f32.mrb[0].mxu0
        %v915 = vpop.f32.mrb[0].mxu0
        %916 = vdwg.mxu0
        %v918 = vunpack.c.l.b16 %v848
        %v919 = vunpack.c.h.b16 %v848
        %v920 = vpack.c.b16 %v918, %v918
        %v921 = vpack.c.b16 %v919, %v919
        %v923 = vsel %vm199, %v846, 0
        %v926 = vsel %vm203, %v920, 0
        %v929 = vsel %vm203, %v921, 0
        %931 = vmatprep.subr.bf16.mxu0 %v929
        %932 = vmatpush1.bf16.msra.mxu0 %v926
        %933 = vmatprep.subr.bf16.mxu0 0
        %934 = vmatpush1.bf16.msra.mxu0 0
        %935 = vmatprep.subr.bf16.mxu0 0
        %936 = vmatpush1.bf16.msra.mxu0 0
        %937 = vmatprep.subr.bf16.mxu0 0
        %938 = vmatpush1.bf16.msra.mxu0 0
        %939 = vmatprep.subr.bf16.mxu0 0
        %940 = vmatpush1.bf16.msra.mxu0 0
        %941 = vmatprep.subr.bf16.mxu0 0
        %942 = vmatpush1.bf16.msra.mxu0 0
        %943 = vmatprep.subr.bf16.mxu0 0
        %944 = vmatpush1.bf16.msra.mxu0 0
        %945 = vmatprep.subr.bf16.mxu0 0
        %946 = vmatpush1.bf16.msra.mxu0 0
        %947 = vmatprep.subr.bf16.mxu0 0
        %948 = vmatpush1.bf16.msra.mxu0 0
        %949 = vmatprep.subr.bf16.mxu0 0
        %950 = vmatpush1.bf16.msra.mxu0 0
        %951 = vmatprep.subr.bf16.mxu0 0
        %952 = vmatpush1.bf16.msra.mxu0 0
        %953 = vmatprep.subr.bf16.mxu0 0
        %954 = vmatpush1.bf16.msra.mxu0 0
        %955 = vmatprep.subr.bf16.mxu0 0
        %956 = vmatpush1.bf16.msra.mxu0 0
        %957 = vmatprep.subr.bf16.mxu0 0
        %958 = vmatpush1.bf16.msra.mxu0 0
        %959 = vmatprep.subr.bf16.mxu0 0
        %960 = vmatpush1.bf16.msra.mxu0 0
        %961 = vmatprep.subr.bf16.mxu0 0
        %962 = vmatpush1.bf16.msra.mxu0 0
        %963 = vmatprep.mubr.bf16.mxu0 0
        %964 = vmatmul.mubr.bf16.gmra.mrb[0].mxu0 %v923
        %v965 = vpop.f32.mrb[0].mxu0
        %v966 = vadd.f32 %v911, %v965
        %v967 = vpop.f32.mrb[0].mxu0
        %v968 = vadd.f32 %v913, %v967
        %v969 = vpop.f32.mrb[0].mxu0
        %v970 = vpop.f32.mrb[0].mxu0
        %971 = vdwg.mxu0
        %v972 = vld [vmem:[%s735] sm:$0xf]
        %v973 = vld [vmem:[%s735 + $0x4] sm:$0x1]
        %v974 = vld [vmem:[%s309] sm:$0xff]
        %v975 = vld [vmem:[%s311] sm:$0xff]
        %v978 = vunpack.c.l.b16 %v972
        %v979 = vunpack.c.l.b16 %v973
        %v980 = vpack.c.b16 %v979, %v978
        %v982 = vshrl.u32 %v980, 16
        %v984 = vshll.u32 %v980, 16
        %v986 = vrot.slane %v984, 1
        %v987 = vor.u32 %v982, %v986
        %v989 = vunpack.c.l.b16 %v975
        %v990 = vunpack.c.h.b16 %v975
        %v991 = vpack.c.b16 %v989, %v989
        %v992 = vpack.c.b16 %v990, %v990
        %v994 = vsel %vm199, %v987, 0
        %v997 = vsel %vm203, %v991, 0
        %v1000 = vsel %vm203, %v992, 0
        %1002 = vmatprep.subr.bf16.mxu0 %v1000
        %1003 = vmatpush1.bf16.msra.mxu0 %v997
        %1004 = vmatprep.subr.bf16.mxu0 0
        %1005 = vmatpush1.bf16.msra.mxu0 0
        %1006 = vmatprep.subr.bf16.mxu0 0
        %1007 = vmatpush1.bf16.msra.mxu0 0
        %1008 = vmatprep.subr.bf16.mxu0 0
        %1009 = vmatpush1.bf16.msra.mxu0 0
        %1010 = vmatprep.subr.bf16.mxu0 0
        %1011 = vmatpush1.bf16.msra.mxu0 0
        %1012 = vmatprep.subr.bf16.mxu0 0
        %1013 = vmatpush1.bf16.msra.mxu0 0
        %1014 = vmatprep.subr.bf16.mxu0 0
        %1015 = vmatpush1.bf16.msra.mxu0 0
        %1016 = vmatprep.subr.bf16.mxu0 0
        %1017 = vmatpush1.bf16.msra.mxu0 0
        %1018 = vmatprep.subr.bf16.mxu0 0
        %1019 = vmatpush1.bf16.msra.mxu0 0
        %1020 = vmatprep.subr.bf16.mxu0 0
        %1021 = vmatpush1.bf16.msra.mxu0 0
        %1022 = vmatprep.subr.bf16.mxu0 0
        %1023 = vmatpush1.bf16.msra.mxu0 0
        %1024 = vmatprep.subr.bf16.mxu0 0
        %1025 = vmatpush1.bf16.msra.mxu0 0
        %1026 = vmatprep.subr.bf16.mxu0 0
        %1027 = vmatpush1.bf16.msra.mxu0 0
        %1028 = vmatprep.subr.bf16.mxu0 0
        %1029 = vmatpush1.bf16.msra.mxu0 0
        %1030 = vmatprep.subr.bf16.mxu0 0
        %1031 = vmatpush1.bf16.msra.mxu0 0
        %1032 = vmatprep.subr.bf16.mxu0 0
        %1033 = vmatpush1.bf16.msra.mxu0 0
        %1034 = vmatprep.mubr.bf16.mxu0 0
        %1035 = vmatmul.mubr.bf16.gmra.mrb[0].mxu0 %v994
        %v1036 = vpop.f32.mrb[0].mxu0
        %v1037 = vadd.f32 0.0, %v1036
        %v1038 = vpop.f32.mrb[0].mxu0
        %v1039 = vadd.f32 0.0, %v1038
        %v1040 = vpop.f32.mrb[0].mxu0
        %v1041 = vpop.f32.mrb[0].mxu0
        %1042 = vdwg.mxu0
        %v1044 = vunpack.c.l.b16 %v974
        %v1045 = vunpack.c.h.b16 %v974
        %v1046 = vpack.c.b16 %v1044, %v1044
        %v1047 = vpack.c.b16 %v1045, %v1045
        %v1049 = vsel %vm199, %v972, 0
        %v1052 = vsel %vm203, %v1046, 0
        %v1055 = vsel %vm203, %v1047, 0
        %1057 = vmatprep.subr.bf16.mxu0 %v1055
        %1058 = vmatpush1.bf16.msra.mxu0 %v1052
        %1059 = vmatprep.subr.bf16.mxu0 0
        %1060 = vmatpush1.bf16.msra.mxu0 0
        %1061 = vmatprep.subr.bf16.mxu0 0
        %1062 = vmatpush1.bf16.msra.mxu0 0
        %1063 = vmatprep.subr.bf16.mxu0 0
        %1064 = vmatpush1.bf16.msra.mxu0 0
        %1065 = vmatprep.subr.bf16.mxu0 0
        %1066 = vmatpush1.bf16.msra.mxu0 0
        %1067 = vmatprep.subr.bf16.mxu0 0
        %1068 = vmatpush1.bf16.msra.mxu0 0
        %1069 = vmatprep.subr.bf16.mxu0 0
        %1070 = vmatpush1.bf16.msra.mxu0 0
        %1071 = vmatprep.subr.bf16.mxu0 0
        %1072 = vmatpush1.bf16.msra.mxu0 0
        %1073 = vmatprep.subr.bf16.mxu0 0
        %1074 = vmatpush1.bf16.msra.mxu0 0
        %1075 = vmatprep.subr.bf16.mxu0 0
        %1076 = vmatpush1.bf16.msra.mxu0 0
        %1077 = vmatprep.subr.bf16.mxu0 0
        %1078 = vmatpush1.bf16.msra.mxu0 0
        %1079 = vmatprep.subr.bf16.mxu0 0
        %1080 = vmatpush1.bf16.msra.mxu0 0
        %1081 = vmatprep.subr.bf16.mxu0 0
        %1082 = vmatpush1.bf16.msra.mxu0 0
        %1083 = vmatprep.subr.bf16.mxu0 0
        %1084 = vmatpush1.bf16.msra.mxu0 0
        %1085 = vmatprep.subr.bf16.mxu0 0
        %1086 = vmatpush1.bf16.msra.mxu0 0
        %1087 = vmatprep.subr.bf16.mxu0 0
        %1088 = vmatpush1.bf16.msra.mxu0 0
        %1089 = vmatprep.mubr.bf16.mxu0 0
        %1090 = vmatmul.mubr.bf16.gmra.mrb[0].mxu0 %v1049
        %v1091 = vpop.f32.mrb[0].mxu0
        %v1092 = vadd.f32 %v1037, %v1091
        %v1093 = vpop.f32.mrb[0].mxu0
        %v1094 = vadd.f32 %v1039, %v1093
        %v1095 = vpop.f32.mrb[0].mxu0
        %v1096 = vpop.f32.mrb[0].mxu0
        %1097 = vdwg.mxu0
        %v1098 = vadd.f32 %v966, %v1092
        %v1099 = vadd.f32 %v968, %v1094
        %s1100 = scalar_lea.vmem %s168, 32
        %v1101 = vld [vmem:[%s1100] sm:$0xf]
        %v1102 = vld [vmem:[%s1100 + $0x4] sm:$0x1]
        %v1103 = vld [vmem:[%s440] sm:$0xff]
        %v1104 = vld [vmem:[%s442] sm:$0xff]
        %v1107 = vunpack.c.l.b16 %v1101
        %v1108 = vunpack.c.l.b16 %v1102
        %v1109 = vpack.c.b16 %v1108, %v1107
        %v1111 = vshrl.u32 %v1109, 16
        %v1113 = vshll.u32 %v1109, 16
        %v1115 = vrot.slane %v1113, 1
        %v1116 = vor.u32 %v1111, %v1115
        %v1118 = vunpack.c.l.b16 %v1104
        %v1119 = vunpack.c.h.b16 %v1104
        %v1120 = vpack.c.b16 %v1118, %v1118
        %v1121 = vpack.c.b16 %v1119, %v1119
        %v1123 = vsel %vm199, %v1116, 0
        %v1126 = vsel %vm203, %v1120, 0
        %v1129 = vsel %vm203, %v1121, 0
        %1131 = vmatprep.subr.bf16.mxu0 %v1129
        %1132 = vmatpush1.bf16.msra.mxu0 %v1126
        %1133 = vmatprep.subr.bf16.mxu0 0
        %1134 = vmatpush1.bf16.msra.mxu0 0
        %1135 = vmatprep.subr.bf16.mxu0 0
        %1136 = vmatpush1.bf16.msra.mxu0 0
        %1137 = vmatprep.subr.bf16.mxu0 0
        %1138 = vmatpush1.bf16.msra.mxu0 0
        %1139 = vmatprep.subr.bf16.mxu0 0
        %1140 = vmatpush1.bf16.msra.mxu0 0
        %1141 = vmatprep.subr.bf16.mxu0 0
        %1142 = vmatpush1.bf16.msra.mxu0 0
        %1143 = vmatprep.subr.bf16.mxu0 0
        %1144 = vmatpush1.bf16.msra.mxu0 0
        %1145 = vmatprep.subr.bf16.mxu0 0
        %1146 = vmatpush1.bf16.msra.mxu0 0
        %1147 = vmatprep.subr.bf16.mxu0 0
        %1148 = vmatpush1.bf16.msra.mxu0 0
        %1149 = vmatprep.subr.bf16.mxu0 0
        %1150 = vmatpush1.bf16.msra.mxu0 0
        %1151 = vmatprep.subr.bf16.mxu0 0
        %1152 = vmatpush1.bf16.msra.mxu0 0
        %1153 = vmatprep.subr.bf16.mxu0 0
        %1154 = vmatpush1.bf16.msra.mxu0 0
        %1155 = vmatprep.subr.bf16.mxu0 0
        %1156 = vmatpush1.bf16.msra.mxu0 0
        %1157 = vmatprep.subr.bf16.mxu0 0
        %1158 = vmatpush1.bf16.msra.mxu0 0
        %1159 = vmatprep.subr.bf16.mxu0 0
        %1160 = vmatpush1.bf16.msra.mxu0 0
        %1161 = vmatprep.subr.bf16.mxu0 0
        %1162 = vmatpush1.bf16.msra.mxu0 0
        %1163 = vmatprep.mubr.bf16.mxu0 0
        %1164 = vmatmul.mubr.bf16.gmra.mrb[0].mxu0 %v1123
        %v1165 = vpop.f32.mrb[0].mxu0
        %v1166 = vadd.f32 0.0, %v1165
        %v1167 = vpop.f32.mrb[0].mxu0
        %v1168 = vadd.f32 0.0, %v1167
        %v1169 = vpop.f32.mrb[0].mxu0
        %v1170 = vpop.f32.mrb[0].mxu0
        %1171 = vdwg.mxu0
        %v1173 = vunpack.c.l.b16 %v1103
        %v1174 = vunpack.c.h.b16 %v1103
        %v1175 = vpack.c.b16 %v1173, %v1173
        %v1176 = vpack.c.b16 %v1174, %v1174
        %v1178 = vsel %vm199, %v1101, 0
        %v1181 = vsel %vm203, %v1175, 0
        %v1184 = vsel %vm203, %v1176, 0
        %1186 = vmatprep.subr.bf16.mxu0 %v1184
        %1187 = vmatpush1.bf16.msra.mxu0 %v1181
        %1188 = vmatprep.subr.bf16.mxu0 0
        %1189 = vmatpush1.bf16.msra.mxu0 0
        %1190 = vmatprep.subr.bf16.mxu0 0
        %1191 = vmatpush1.bf16.msra.mxu0 0
        %1192 = vmatprep.subr.bf16.mxu0 0
        %1193 = vmatpush1.bf16.msra.mxu0 0
        %1194 = vmatprep.subr.bf16.mxu0 0
        %1195 = vmatpush1.bf16.msra.mxu0 0
        %1196 = vmatprep.subr.bf16.mxu0 0
        %1197 = vmatpush1.bf16.msra.mxu0 0
        %1198 = vmatprep.subr.bf16.mxu0 0
        %1199 = vmatpush1.bf16.msra.mxu0 0
        %1200 = vmatprep.subr.bf16.mxu0 0
        %1201 = vmatpush1.bf16.msra.mxu0 0
        %1202 = vmatprep.subr.bf16.mxu0 0
        %1203 = vmatpush1.bf16.msra.mxu0 0
        %1204 = vmatprep.subr.bf16.mxu0 0
        %1205 = vmatpush1.bf16.msra.mxu0 0
        %1206 = vmatprep.subr.bf16.mxu0 0
        %1207 = vmatpush1.bf16.msra.mxu0 0
        %1208 = vmatprep.subr.bf16.mxu0 0
        %1209 = vmatpush1.bf16.msra.mxu0 0
        %1210 = vmatprep.subr.bf16.mxu0 0
        %1211 = vmatpush1.bf16.msra.mxu0 0
        %1212 = vmatprep.subr.bf16.mxu0 0
        %1213 = vmatpush1.bf16.msra.mxu0 0
        %1214 = vmatprep.subr.bf16.mxu0 0
        %1215 = vmatpush1.bf16.msra.mxu0 0
        %1216 = vmatprep.subr.bf16.mxu0 0
        %1217 = vmatpush1.bf16.msra.mxu0 0
        %1218 = vmatprep.mubr.bf16.mxu0 0
        %1219 = vmatmul.mubr.bf16.gmra.mrb[0].mxu0 %v1178
        %v1220 = vpop.f32.mrb[0].mxu0
        %v1221 = vadd.f32 %v1166, %v1220
        %v1222 = vpop.f32.mrb[0].mxu0
        %v1223 = vadd.f32 %v1168, %v1222
        %v1224 = vpop.f32.mrb[0].mxu0
        %v1225 = vpop.f32.mrb[0].mxu0
        %1226 = vdwg.mxu0
        %v1227 = vadd.f32 %v1098, %v1221
        %v1228 = vadd.f32 %v1099, %v1223
        %v1229 = vmax.f32 %v1227, %v1228
        %1230 = vmatprep.subr.bf16.mxu0 %v874
        %1231 = vmatpush1.bf16.msra.mxu0 %v871
        %1232 = vmatprep.subr.bf16.mxu0 0
        %1233 = vmatpush1.bf16.msra.mxu0 0
        %1234 = vmatprep.subr.bf16.mxu0 0
        %1235 = vmatpush1.bf16.msra.mxu0 0
        %1236 = vmatprep.subr.bf16.mxu0 0
        %1237 = vmatpush1.bf16.msra.mxu0 0
        %1238 = vmatprep.subr.bf16.mxu0 0
        %1239 = vmatpush1.bf16.msra.mxu0 0
        %1240 = vmatprep.subr.bf16.mxu0 0
        %1241 = vmatpush1.bf16.msra.mxu0 0
        %1242 = vmatprep.subr.bf16.mxu0 0
        %1243 = vmatpush1.bf16.msra.mxu0 0
        %1244 = vmatprep.subr.bf16.mxu0 0
        %1245 = vmatpush1.bf16.msra.mxu0 0
        %1246 = vmatprep.subr.bf16.mxu0 0
        %1247 = vmatpush1.bf16.msra.mxu0 0
        %1248 = vmatprep.subr.bf16.mxu0 0
        %1249 = vmatpush1.bf16.msra.mxu0 0
        %1250 = vmatprep.subr.bf16.mxu0 0
        %1251 = vmatpush1.bf16.msra.mxu0 0
        %1252 = vmatprep.subr.bf16.mxu0 0
        %1253 = vmatpush1.bf16.msra.mxu0 0
        %1254 = vmatprep.subr.bf16.mxu0 0
        %1255 = vmatpush1.bf16.msra.mxu0 0
        %1256 = vmatprep.subr.bf16.mxu0 0
        %1257 = vmatpush1.bf16.msra.mxu0 0
        %1258 = vmatprep.subr.bf16.mxu0 0
        %1259 = vmatpush1.bf16.msra.mxu0 0
        %1260 = vmatprep.subr.bf16.mxu0 0
        %1261 = vmatpush1.bf16.msra.mxu0 0
        %1262 = vmatprep.mubr.bf16.mxu0 0
        %1263 = vmatmul.mubr.bf16.gmra.mrb[0].mxu0 %v994
        %v1264 = vpop.f32.mrb[0].mxu0
        %v1265 = vadd.f32 0.0, %v1264
        %v1266 = vpop.f32.mrb[0].mxu0
        %v1267 = vadd.f32 0.0, %v1266
        %v1268 = vpop.f32.mrb[0].mxu0
        %v1269 = vpop.f32.mrb[0].mxu0
        %1270 = vdwg.mxu0
        %1271 = vmatprep.subr.bf16.mxu0 %v929
        %1272 = vmatpush1.bf16.msra.mxu0 %v926
        %1273 = vmatprep.subr.bf16.mxu0 0
        %1274 = vmatpush1.bf16.msra.mxu0 0
        %1275 = vmatprep.subr.bf16.mxu0 0
        %1276 = vmatpush1.bf16.msra.mxu0 0
        %1277 = vmatprep.subr.bf16.mxu0 0
        %1278 = vmatpush1.bf16.msra.mxu0 0
        %1279 = vmatprep.subr.bf16.mxu0 0
        %1280 = vmatpush1.bf16.msra.mxu0 0
        %1281 = vmatprep.subr.bf16.mxu0 0
        %1282 = vmatpush1.bf16.msra.mxu0 0
        %1283 = vmatprep.subr.bf16.mxu0 0
        %1284 = vmatpush1.bf16.msra.mxu0 0
        %1285 = vmatprep.subr.bf16.mxu0 0
        %1286 = vmatpush1.bf16.msra.mxu0 0
        %1287 = vmatprep.subr.bf16.mxu0 0
        %1288 = vmatpush1.bf16.msra.mxu0 0
        %1289 = vmatprep.subr.bf16.mxu0 0
        %1290 = vmatpush1.bf16.msra.mxu0 0
        %1291 = vmatprep.subr.bf16.mxu0 0
        %1292 = vmatpush1.bf16.msra.mxu0 0
        %1293 = vmatprep.subr.bf16.mxu0 0
        %1294 = vmatpush1.bf16.msra.mxu0 0
        %1295 = vmatprep.subr.bf16.mxu0 0
        %1296 = vmatpush1.bf16.msra.mxu0 0
        %1297 = vmatprep.subr.bf16.mxu0 0
        %1298 = vmatpush1.bf16.msra.mxu0 0
        %1299 = vmatprep.subr.bf16.mxu0 0
        %1300 = vmatpush1.bf16.msra.mxu0 0
        %1301 = vmatprep.subr.bf16.mxu0 0
        %1302 = vmatpush1.bf16.msra.mxu0 0
        %1303 = vmatprep.mubr.bf16.mxu0 0
        %1304 = vmatmul.mubr.bf16.gmra.mrb[0].mxu0 %v1049
        %v1305 = vpop.f32.mrb[0].mxu0
        %v1306 = vadd.f32 %v1265, %v1305
        %v1307 = vpop.f32.mrb[0].mxu0
        %v1308 = vadd.f32 %v1267, %v1307
        %v1309 = vpop.f32.mrb[0].mxu0
        %v1310 = vpop.f32.mrb[0].mxu0
        %1311 = vdwg.mxu0
        %1312 = vmatprep.subr.bf16.mxu0 %v1000
        %1313 = vmatpush1.bf16.msra.mxu0 %v997
        %1314 = vmatprep.subr.bf16.mxu0 0
        %1315 = vmatpush1.bf16.msra.mxu0 0
        %1316 = vmatprep.subr.bf16.mxu0 0
        %1317 = vmatpush1.bf16.msra.mxu0 0
        %1318 = vmatprep.subr.bf16.mxu0 0
        %1319 = vmatpush1.bf16.msra.mxu0 0
        %1320 = vmatprep.subr.bf16.mxu0 0
        %1321 = vmatpush1.bf16.msra.mxu0 0
        %1322 = vmatprep.subr.bf16.mxu0 0
        %1323 = vmatpush1.bf16.msra.mxu0 0
        %1324 = vmatprep.subr.bf16.mxu0 0
        %1325 = vmatpush1.bf16.msra.mxu0 0
        %1326 = vmatprep.subr.bf16.mxu0 0
        %1327 = vmatpush1.bf16.msra.mxu0 0
        %1328 = vmatprep.subr.bf16.mxu0 0
        %1329 = vmatpush1.bf16.msra.mxu0 0
        %1330 = vmatprep.subr.bf16.mxu0 0
        %1331 = vmatpush1.bf16.msra.mxu0 0
        %1332 = vmatprep.subr.bf16.mxu0 0
        %1333 = vmatpush1.bf16.msra.mxu0 0
        %1334 = vmatprep.subr.bf16.mxu0 0
        %1335 = vmatpush1.bf16.msra.mxu0 0
        %1336 = vmatprep.subr.bf16.mxu0 0
        %1337 = vmatpush1.bf16.msra.mxu0 0
        %1338 = vmatprep.subr.bf16.mxu0 0
        %1339 = vmatpush1.bf16.msra.mxu0 0
        %1340 = vmatprep.subr.bf16.mxu0 0
        %1341 = vmatpush1.bf16.msra.mxu0 0
        %1342 = vmatprep.subr.bf16.mxu0 0
        %1343 = vmatpush1.bf16.msra.mxu0 0
        %1344 = vmatprep.mubr.bf16.mxu0 0
        %1345 = vmatmul.mubr.bf16.gmra.mrb[0].mxu0 %v1123
        %v1346 = vpop.f32.mrb[0].mxu0
        %v1347 = vadd.f32 0.0, %v1346
        %v1348 = vpop.f32.mrb[0].mxu0
        %v1349 = vadd.f32 0.0, %v1348
        %v1350 = vpop.f32.mrb[0].mxu0
        %v1351 = vpop.f32.mrb[0].mxu0
        %1352 = vdwg.mxu0
        %1353 = vmatprep.subr.bf16.mxu0 %v1055
        %1354 = vmatpush1.bf16.msra.mxu0 %v1052
        %1355 = vmatprep.subr.bf16.mxu0 0
        %1356 = vmatpush1.bf16.msra.mxu0 0
        %1357 = vmatprep.subr.bf16.mxu0 0
        %1358 = vmatpush1.bf16.msra.mxu0 0
        %1359 = vmatprep.subr.bf16.mxu0 0
        %1360 = vmatpush1.bf16.msra.mxu0 0
        %1361 = vmatprep.subr.bf16.mxu0 0
        %1362 = vmatpush1.bf16.msra.mxu0 0
        %1363 = vmatprep.subr.bf16.mxu0 0
        %1364 = vmatpush1.bf16.msra.mxu0 0
        %1365 = vmatprep.subr.bf16.mxu0 0
        %1366 = vmatpush1.bf16.msra.mxu0 0
        %1367 = vmatprep.subr.bf16.mxu0 0
        %1368 = vmatpush1.bf16.msra.mxu0 0
        %1369 = vmatprep.subr.bf16.mxu0 0
        %1370 = vmatpush1.bf16.msra.mxu0 0
        %1371 = vmatprep.subr.bf16.mxu0 0
        %1372 = vmatpush1.bf16.msra.mxu0 0
        %1373 = vmatprep.subr.bf16.mxu0 0
        %1374 = vmatpush1.bf16.msra.mxu0 0
        %1375 = vmatprep.subr.bf16.mxu0 0
        %1376 = vmatpush1.bf16.msra.mxu0 0
        %1377 = vmatprep.subr.bf16.mxu0 0
        %1378 = vmatpush1.bf16.msra.mxu0 0
        %1379 = vmatprep.subr.bf16.mxu0 0
        %1380 = vmatpush1.bf16.msra.mxu0 0
        %1381 = vmatprep.subr.bf16.mxu0 0
        %1382 = vmatpush1.bf16.msra.mxu0 0
        %1383 = vmatprep.subr.bf16.mxu0 0
        %1384 = vmatpush1.bf16.msra.mxu0 0
        %1385 = vmatprep.mubr.bf16.mxu0 0
        %1386 = vmatmul.mubr.bf16.gmra.mrb[0].mxu0 %v1178
        %v1387 = vpop.f32.mrb[0].mxu0
        %v1388 = vadd.f32 %v1347, %v1387
        %v1389 = vpop.f32.mrb[0].mxu0
        %v1390 = vadd.f32 %v1349, %v1389
        %v1391 = vpop.f32.mrb[0].mxu0
        %v1392 = vpop.f32.mrb[0].mxu0
        %1393 = vdwg.mxu0
        %v1394 = vadd.f32 %v1306, %v1388
        %v1395 = vadd.f32 %v1308, %v1390
        %s1396 = scalar_lea.vmem %s168, 40
        %v1397 = vld [vmem:[%s1396] sm:$0xf]
        %v1398 = vld [vmem:[%s1396 + $0x4] sm:$0x1]
        %v1401 = vunpack.c.l.b16 %v1397
        %v1402 = vunpack.c.l.b16 %v1398
        %v1403 = vpack.c.b16 %v1402, %v1401
        %v1405 = vshrl.u32 %v1403, 16
        %v1407 = vshll.u32 %v1403, 16
        %v1409 = vrot.slane %v1407, 1
        %v1410 = vor.u32 %v1405, %v1409
        %v1412 = vsel %vm199, %v1410, 0
        %1414 = vmatprep.subr.bf16.mxu0 %v1129
        %1415 = vmatpush1.bf16.msra.mxu0 %v1126
        %1416 = vmatprep.subr.bf16.mxu0 0
        %1417 = vmatpush1.bf16.msra.mxu0 0
        %1418 = vmatprep.subr.bf16.mxu0 0
        %1419 = vmatpush1.bf16.msra.mxu0 0
        %1420 = vmatprep.subr.bf16.mxu0 0
        %1421 = vmatpush1.bf16.msra.mxu0 0
        %1422 = vmatprep.subr.bf16.mxu0 0
        %1423 = vmatpush1.bf16.msra.mxu0 0
        %1424 = vmatprep.subr.bf16.mxu0 0
        %1425 = vmatpush1.bf16.msra.mxu0 0
        %1426 = vmatprep.subr.bf16.mxu0 0
        %1427 = vmatpush1.bf16.msra.mxu0 0
        %1428 = vmatprep.subr.bf16.mxu0 0
        %1429 = vmatpush1.bf16.msra.mxu0 0
        %1430 = vmatprep.subr.bf16.mxu0 0
        %1431 = vmatpush1.bf16.msra.mxu0 0
        %1432 = vmatprep.subr.bf16.mxu0 0
        %1433 = vmatpush1.bf16.msra.mxu0 0
        %1434 = vmatprep.subr.bf16.mxu0 0
        %1435 = vmatpush1.bf16.msra.mxu0 0
        %1436 = vmatprep.subr.bf16.mxu0 0
        %1437 = vmatpush1.bf16.msra.mxu0 0
        %1438 = vmatprep.subr.bf16.mxu0 0
        %1439 = vmatpush1.bf16.msra.mxu0 0
        %1440 = vmatprep.subr.bf16.mxu0 0
        %1441 = vmatpush1.bf16.msra.mxu0 0
        %1442 = vmatprep.subr.bf16.mxu0 0
        %1443 = vmatpush1.bf16.msra.mxu0 0
        %1444 = vmatprep.subr.bf16.mxu0 0
        %1445 = vmatpush1.bf16.msra.mxu0 0
        %1446 = vmatprep.mubr.bf16.mxu0 0
        %1447 = vmatmul.mubr.bf16.gmra.mrb[0].mxu0 %v1412
        %v1448 = vpop.f32.mrb[0].mxu0
        %v1449 = vadd.f32 0.0, %v1448
        %v1450 = vpop.f32.mrb[0].mxu0
        %v1451 = vadd.f32 0.0, %v1450
        %v1452 = vpop.f32.mrb[0].mxu0
        %v1453 = vpop.f32.mrb[0].mxu0
        %1454 = vdwg.mxu0
        %v1456 = vsel %vm199, %v1397, 0
        %1458 = vmatprep.subr.bf16.mxu0 %v1184
        %1459 = vmatpush1.bf16.msra.mxu0 %v1181
        %1460 = vmatprep.subr.bf16.mxu0 0
        %1461 = vmatpush1.bf16.msra.mxu0 0
        %1462 = vmatprep.subr.bf16.mxu0 0
        %1463 = vmatpush1.bf16.msra.mxu0 0
        %1464 = vmatprep.subr.bf16.mxu0 0
        %1465 = vmatpush1.bf16.msra.mxu0 0
        %1466 = vmatprep.subr.bf16.mxu0 0
        %1467 = vmatpush1.bf16.msra.mxu0 0
        %1468 = vmatprep.subr.bf16.mxu0 0
        %1469 = vmatpush1.bf16.msra.mxu0 0
        %1470 = vmatprep.subr.bf16.mxu0 0
        %1471 = vmatpush1.bf16.msra.mxu0 0
        %1472 = vmatprep.subr.bf16.mxu0 0
        %1473 = vmatpush1.bf16.msra.mxu0 0
        %1474 = vmatprep.subr.bf16.mxu0 0
        %1475 = vmatpush1.bf16.msra.mxu0 0
        %1476 = vmatprep.subr.bf16.mxu0 0
        %1477 = vmatpush1.bf16.msra.mxu0 0
        %1478 = vmatprep.subr.bf16.mxu0 0
        %1479 = vmatpush1.bf16.msra.mxu0 0
        %1480 = vmatprep.subr.bf16.mxu0 0
        %1481 = vmatpush1.bf16.msra.mxu0 0
        %1482 = vmatprep.subr.bf16.mxu0 0
        %1483 = vmatpush1.bf16.msra.mxu0 0
        %1484 = vmatprep.subr.bf16.mxu0 0
        %1485 = vmatpush1.bf16.msra.mxu0 0
        %1486 = vmatprep.subr.bf16.mxu0 0
        %1487 = vmatpush1.bf16.msra.mxu0 0
        %1488 = vmatprep.subr.bf16.mxu0 0
        %1489 = vmatpush1.bf16.msra.mxu0 0
        %1490 = vmatprep.mubr.bf16.mxu0 0
        %1491 = vmatmul.mubr.bf16.gmra.mrb[0].mxu0 %v1456
        %v1492 = vpop.f32.mrb[0].mxu0
        %v1493 = vadd.f32 %v1449, %v1492
        %v1494 = vpop.f32.mrb[0].mxu0
        %v1495 = vadd.f32 %v1451, %v1494
        %v1496 = vpop.f32.mrb[0].mxu0
        %v1497 = vpop.f32.mrb[0].mxu0
        %1498 = vdwg.mxu0
        %v1499 = vadd.f32 %v1394, %v1493
        %v1500 = vadd.f32 %v1395, %v1495
        %v1501 = vmax.f32 %v1499, %v1500
        %v1502 = vmax.f32 %v1229, %v1501
        %v1503 = vadd.f32 %v1502, %v175
        %v1504 = vmax.f32 %v1503, 0.0
        %v1505 = vpack.c.bf16 %v1504, %v1504
        %s1506 = scalar_lea.vmem %s163, 4 [#allocation2]
        %1507 = vst [vmem:[%s1506] sm:$0xf] %v1505
        %v1508 = vld [vmem:[%s1100] sm:$0xf]
        %v1509 = vld [vmem:[%s1100 + $0x4] sm:$0x1]
        %v1510 = vld [vmem:[%s1] sm:$0xff]
        %v1511 = vld [vmem:[%s180] sm:$0xff]
        %v1514 = vunpack.c.l.b16 %v1508
        %v1515 = vunpack.c.l.b16 %v1509
        %v1516 = vpack.c.b16 %v1515, %v1514
        %v1518 = vshrl.u32 %v1516, 16
        %v1520 = vshll.u32 %v1516, 16
        %v1522 = vrot.slane %v1520, 1
        %v1523 = vor.u32 %v1518, %v1522
        %v1525 = vunpack.c.l.b16 %v1511
        %v1526 = vunpack.c.h.b16 %v1511
        %v1527 = vpack.c.b16 %v1525, %v1525
        %v1528 = vpack.c.b16 %v1526, %v1526
        %v1530 = vsel %vm199, %v1523, 0
        %v1533 = vsel %vm203, %v1527, 0
        %v1536 = vsel %vm203, %v1528, 0
        %1538 = vmatprep.subr.bf16.mxu0 %v1536
        %1539 = vmatpush1.bf16.msra.mxu0 %v1533
        %1540 = vmatprep.subr.bf16.mxu0 0
        %1541 = vmatpush1.bf16.msra.mxu0 0
        %1542 = vmatprep.subr.bf16.mxu0 0
        %1543 = vmatpush1.bf16.msra.mxu0 0
        %1544 = vmatprep.subr.bf16.mxu0 0
        %1545 = vmatpush1.bf16.msra.mxu0 0
        %1546 = vmatprep.subr.bf16.mxu0 0
        %1547 = vmatpush1.bf16.msra.mxu0 0
        %1548 = vmatprep.subr.bf16.mxu0 0
        %1549 = vmatpush1.bf16.msra.mxu0 0
        %1550 = vmatprep.subr.bf16.mxu0 0
        %1551 = vmatpush1.bf16.msra.mxu0 0
        %1552 = vmatprep.subr.bf16.mxu0 0
        %1553 = vmatpush1.bf16.msra.mxu0 0
        %1554 = vmatprep.subr.bf16.mxu0 0
        %1555 = vmatpush1.bf16.msra.mxu0 0
        %1556 = vmatprep.subr.bf16.mxu0 0
        %1557 = vmatpush1.bf16.msra.mxu0 0
        %1558 = vmatprep.subr.bf16.mxu0 0
        %1559 = vmatpush1.bf16.msra.mxu0 0
        %1560 = vmatprep.subr.bf16.mxu0 0
        %1561 = vmatpush1.bf16.msra.mxu0 0
        %1562 = vmatprep.subr.bf16.mxu0 0
        %1563 = vmatpush1.bf16.msra.mxu0 0
        %1564 = vmatprep.subr.bf16.mxu0 0
        %1565 = vmatpush1.bf16.msra.mxu0 0
        %1566 = vmatprep.subr.bf16.mxu0 0
        %1567 = vmatpush1.bf16.msra.mxu0 0
        %1568 = vmatprep.subr.bf16.mxu0 0
        %1569 = vmatpush1.bf16.msra.mxu0 0
        %1570 = vmatprep.mubr.bf16.mxu0 0
        %1571 = vmatmul.mubr.bf16.gmra.mrb[0].mxu0 %v1530
        %v1572 = vpop.f32.mrb[0].mxu0
        %v1573 = vadd.f32 0.0, %v1572
        %v1574 = vpop.f32.mrb[0].mxu0
        %v1575 = vadd.f32 0.0, %v1574
        %v1576 = vpop.f32.mrb[0].mxu0
        %v1577 = vpop.f32.mrb[0].mxu0
        %1578 = vdwg.mxu0
        %v1580 = vunpack.c.l.b16 %v1510
        %v1581 = vunpack.c.h.b16 %v1510
        %v1582 = vpack.c.b16 %v1580, %v1580
        %v1583 = vpack.c.b16 %v1581, %v1581
        %v1585 = vsel %vm199, %v1508, 0
        %v1588 = vsel %vm203, %v1582, 0
        %v1591 = vsel %vm203, %v1583, 0
        %1593 = vmatprep.subr.bf16.mxu0 %v1591
        %1594 = vmatpush1.bf16.msra.mxu0 %v1588
        %1595 = vmatprep.subr.bf16.mxu0 0
        %1596 = vmatpush1.bf16.msra.mxu0 0
        %1597 = vmatprep.subr.bf16.mxu0 0
        %1598 = vmatpush1.bf16.msra.mxu0 0
        %1599 = vmatprep.subr.bf16.mxu0 0
        %1600 = vmatpush1.bf16.msra.mxu0 0
        %1601 = vmatprep.subr.bf16.mxu0 0
        %1602 = vmatpush1.bf16.msra.mxu0 0
        %1603 = vmatprep.subr.bf16.mxu0 0
        %1604 = vmatpush1.bf16.msra.mxu0 0
        %1605 = vmatprep.subr.bf16.mxu0 0
        %1606 = vmatpush1.bf16.msra.mxu0 0
        %1607 = vmatprep.subr.bf16.mxu0 0
        %1608 = vmatpush1.bf16.msra.mxu0 0
        %1609 = vmatprep.subr.bf16.mxu0 0
        %1610 = vmatpush1.bf16.msra.mxu0 0
        %1611 = vmatprep.subr.bf16.mxu0 0
        %1612 = vmatpush1.bf16.msra.mxu0 0
        %1613 = vmatprep.subr.bf16.mxu0 0
        %1614 = vmatpush1.bf16.msra.mxu0 0
        %1615 = vmatprep.subr.bf16.mxu0 0
        %1616 = vmatpush1.bf16.msra.mxu0 0
        %1617 = vmatprep.subr.bf16.mxu0 0
        %1618 = vmatpush1.bf16.msra.mxu0 0
        %1619 = vmatprep.subr.bf16.mxu0 0
        %1620 = vmatpush1.bf16.msra.mxu0 0
        %1621 = vmatprep.subr.bf16.mxu0 0
        %1622 = vmatpush1.bf16.msra.mxu0 0
        %1623 = vmatprep.subr.bf16.mxu0 0
        %1624 = vmatpush1.bf16.msra.mxu0 0
        %1625 = vmatprep.mubr.bf16.mxu0 0
        %1626 = vmatmul.mubr.bf16.gmra.mrb[0].mxu0 %v1585
        %v1627 = vpop.f32.mrb[0].mxu0
        %v1628 = vadd.f32 %v1573, %v1627
        %v1629 = vpop.f32.mrb[0].mxu0
        %v1630 = vadd.f32 %v1575, %v1629
        %v1631 = vpop.f32.mrb[0].mxu0
        %v1632 = vpop.f32.mrb[0].mxu0
        %1633 = vdwg.mxu0
        %v1634 = vld [vmem:[%s1396] sm:$0xf]
        %v1635 = vld [vmem:[%s1396 + $0x4] sm:$0x1]
        %v1636 = vld [vmem:[%s309] sm:$0xff]
        %v1637 = vld [vmem:[%s311] sm:$0xff]
        %v1640 = vunpack.c.l.b16 %v1634
        %v1641 = vunpack.c.l.b16 %v1635
        %v1642 = vpack.c.b16 %v1641, %v1640
        %v1644 = vshrl.u32 %v1642, 16
        %v1646 = vshll.u32 %v1642, 16
        %v1648 = vrot.slane %v1646, 1
        %v1649 = vor.u32 %v1644, %v1648
        %v1651 = vunpack.c.l.b16 %v1637
        %v1652 = vunpack.c.h.b16 %v1637
        %v1653 = vpack.c.b16 %v1651, %v1651
        %v1654 = vpack.c.b16 %v1652, %v1652
        %v1656 = vsel %vm199, %v1649, 0
        %v1659 = vsel %vm203, %v1653, 0
        %v1662 = vsel %vm203, %v1654, 0
        %1664 = vmatprep.subr.bf16.mxu0 %v1662
        %1665 = vmatpush1.bf16.msra.mxu0 %v1659
        %1666 = vmatprep.subr.bf16.mxu0 0
        %1667 = vmatpush1.bf16.msra.mxu0 0
        %1668 = vmatprep.subr.bf16.mxu0 0
        %1669 = vmatpush1.bf16.msra.mxu0 0
        %1670 = vmatprep.subr.bf16.mxu0 0
        %1671 = vmatpush1.bf16.msra.mxu0 0
        %1672 = vmatprep.subr.bf16.mxu0 0
        %1673 = vmatpush1.bf16.msra.mxu0 0
        %1674 = vmatprep.subr.bf16.mxu0 0
        %1675 = vmatpush1.bf16.msra.mxu0 0
        %1676 = vmatprep.subr.bf16.mxu0 0
        %1677 = vmatpush1.bf16.msra.mxu0 0
        %1678 = vmatprep.subr.bf16.mxu0 0
        %1679 = vmatpush1.bf16.msra.mxu0 0
        %1680 = vmatprep.subr.bf16.mxu0 0
        %1681 = vmatpush1.bf16.msra.mxu0 0
        %1682 = vmatprep.subr.bf16.mxu0 0
        %1683 = vmatpush1.bf16.msra.mxu0 0
        %1684 = vmatprep.subr.bf16.mxu0 0
        %1685 = vmatpush1.bf16.msra.mxu0 0
        %1686 = vmatprep.subr.bf16.mxu0 0
        %1687 = vmatpush1.bf16.msra.mxu0 0
        %1688 = vmatprep.subr.bf16.mxu0 0
        %1689 = vmatpush1.bf16.msra.mxu0 0
        %1690 = vmatprep.subr.bf16.mxu0 0
        %1691 = vmatpush1.bf16.msra.mxu0 0
        %1692 = vmatprep.subr.bf16.mxu0 0
        %1693 = vmatpush1.bf16.msra.mxu0 0
        %1694 = vmatprep.subr.bf16.mxu0 0
        %1695 = vmatpush1.bf16.msra.mxu0 0
        %1696 = vmatprep.mubr.bf16.mxu0 0
        %1697 = vmatmul.mubr.bf16.gmra.mrb[0].mxu0 %v1656
        %v1698 = vpop.f32.mrb[0].mxu0
        %v1699 = vadd.f32 0.0, %v1698
        %v1700 = vpop.f32.mrb[0].mxu0
        %v1701 = vadd.f32 0.0, %v1700
        %v1702 = vpop.f32.mrb[0].mxu0
        %v1703 = vpop.f32.mrb[0].mxu0
        %1704 = vdwg.mxu0
        %v1706 = vunpack.c.l.b16 %v1636
        %v1707 = vunpack.c.h.b16 %v1636
        %v1708 = vpack.c.b16 %v1706, %v1706
        %v1709 = vpack.c.b16 %v1707, %v1707
        %v1711 = vsel %vm199, %v1634, 0
        %v1714 = vsel %vm203, %v1708, 0
        %v1717 = vsel %vm203, %v1709, 0
        %1719 = vmatprep.subr.bf16.mxu0 %v1717
        %1720 = vmatpush1.bf16.msra.mxu0 %v1714
        %1721 = vmatprep.subr.bf16.mxu0 0
        %1722 = vmatpush1.bf16.msra.mxu0 0
        %1723 = vmatprep.subr.bf16.mxu0 0
        %1724 = vmatpush1.bf16.msra.mxu0 0
        %1725 = vmatprep.subr.bf16.mxu0 0
        %1726 = vmatpush1.bf16.msra.mxu0 0
        %1727 = vmatprep.subr.bf16.mxu0 0
        %1728 = vmatpush1.bf16.msra.mxu0 0
        %1729 = vmatprep.subr.bf16.mxu0 0
        %1730 = vmatpush1.bf16.msra.mxu0 0
        %1731 = vmatprep.subr.bf16.mxu0 0
        %1732 = vmatpush1.bf16.msra.mxu0 0
        %1733 = vmatprep.subr.bf16.mxu0 0
        %1734 = vmatpush1.bf16.msra.mxu0 0
        %1735 = vmatprep.subr.bf16.mxu0 0
        %1736 = vmatpush1.bf16.msra.mxu0 0
        %1737 = vmatprep.subr.bf16.mxu0 0
        %1738 = vmatpush1.bf16.msra.mxu0 0
        %1739 = vmatprep.subr.bf16.mxu0 0
        %1740 = vmatpush1.bf16.msra.mxu0 0
        %1741 = vmatprep.subr.bf16.mxu0 0
        %1742 = vmatpush1.bf16.msra.mxu0 0
        %1743 = vmatprep.subr.bf16.mxu0 0
        %1744 = vmatpush1.bf16.msra.mxu0 0
        %1745 = vmatprep.subr.bf16.mxu0 0
        %1746 = vmatpush1.bf16.msra.mxu0 0
        %1747 = vmatprep.subr.bf16.mxu0 0
        %1748 = vmatpush1.bf16.msra.mxu0 0
        %1749 = vmatprep.subr.bf16.mxu0 0
        %1750 = vmatpush1.bf16.msra.mxu0 0
        %1751 = vmatprep.mubr.bf16.mxu0 0
        %1752 = vmatmul.mubr.bf16.gmra.mrb[0].mxu0 %v1711
        %v1753 = vpop.f32.mrb[0].mxu0
        %v1754 = vadd.f32 %v1699, %v1753
        %v1755 = vpop.f32.mrb[0].mxu0
        %v1756 = vadd.f32 %v1701, %v1755
        %v1757 = vpop.f32.mrb[0].mxu0
        %v1758 = vpop.f32.mrb[0].mxu0
        %1759 = vdwg.mxu0
        %v1760 = vadd.f32 %v1628, %v1754
        %v1761 = vadd.f32 %v1630, %v1756
        %s1762 = scalar_lea.vmem %s168, 48
        %v1763 = vld [vmem:[%s1762] sm:$0xf]
        %v1764 = vld [vmem:[%s1762 + $0x4] sm:$0x1]
        %v1765 = vld [vmem:[%s440] sm:$0xff]
        %v1766 = vld [vmem:[%s442] sm:$0xff]
        %v1769 = vunpack.c.l.b16 %v1763
        %v1770 = vunpack.c.l.b16 %v1764
        %v1771 = vpack.c.b16 %v1770, %v1769
        %v1773 = vshrl.u32 %v1771, 16
        %v1775 = vshll.u32 %v1771, 16
        %v1777 = vrot.slane %v1775, 1
        %v1778 = vor.u32 %v1773, %v1777
        %v1780 = vunpack.c.l.b16 %v1766
        %v1781 = vunpack.c.h.b16 %v1766
        %v1782 = vpack.c.b16 %v1780, %v1780
        %v1783 = vpack.c.b16 %v1781, %v1781
        %v1785 = vsel %vm199, %v1778, 0
        %v1788 = vsel %vm203, %v1782, 0
        %v1791 = vsel %vm203, %v1783, 0
        %1793 = vmatprep.subr.bf16.mxu0 %v1791
        %1794 = vmatpush1.bf16.msra.mxu0 %v1788
        %1795 = vmatprep.subr.bf16.mxu0 0
        %1796 = vmatpush1.bf16.msra.mxu0 0
        %1797 = vmatprep.subr.bf16.mxu0 0
        %1798 = vmatpush1.bf16.msra.mxu0 0
        %1799 = vmatprep.subr.bf16.mxu0 0
        %1800 = vmatpush1.bf16.msra.mxu0 0
        %1801 = vmatprep.subr.bf16.mxu0 0
        %1802 = vmatpush1.bf16.msra.mxu0 0
        %1803 = vmatprep.subr.bf16.mxu0 0
        %1804 = vmatpush1.bf16.msra.mxu0 0
        %1805 = vmatprep.subr.bf16.mxu0 0
        %1806 = vmatpush1.bf16.msra.mxu0 0
        %1807 = vmatprep.subr.bf16.mxu0 0
        %1808 = vmatpush1.bf16.msra.mxu0 0
        %1809 = vmatprep.subr.bf16.mxu0 0
        %1810 = vmatpush1.bf16.msra.mxu0 0
        %1811 = vmatprep.subr.bf16.mxu0 0
        %1812 = vmatpush1.bf16.msra.mxu0 0
        %1813 = vmatprep.subr.bf16.mxu0 0
        %1814 = vmatpush1.bf16.msra.mxu0 0
        %1815 = vmatprep.subr.bf16.mxu0 0
        %1816 = vmatpush1.bf16.msra.mxu0 0
        %1817 = vmatprep.subr.bf16.mxu0 0
        %1818 = vmatpush1.bf16.msra.mxu0 0
        %1819 = vmatprep.subr.bf16.mxu0 0
        %1820 = vmatpush1.bf16.msra.mxu0 0
        %1821 = vmatprep.subr.bf16.mxu0 0
        %1822 = vmatpush1.bf16.msra.mxu0 0
        %1823 = vmatprep.subr.bf16.mxu0 0
        %1824 = vmatpush1.bf16.msra.mxu0 0
        %1825 = vmatprep.mubr.bf16.mxu0 0
        %1826 = vmatmul.mubr.bf16.gmra.mrb[0].mxu0 %v1785
        %v1827 = vpop.f32.mrb[0].mxu0
        %v1828 = vadd.f32 0.0, %v1827
        %v1829 = vpop.f32.mrb[0].mxu0
        %v1830 = vadd.f32 0.0, %v1829
        %v1831 = vpop.f32.mrb[0].mxu0
        %v1832 = vpop.f32.mrb[0].mxu0
        %1833 = vdwg.mxu0
        %v1835 = vunpack.c.l.b16 %v1765
        %v1836 = vunpack.c.h.b16 %v1765
        %v1837 = vpack.c.b16 %v1835, %v1835
        %v1838 = vpack.c.b16 %v1836, %v1836
        %v1840 = vsel %vm199, %v1763, 0
        %v1843 = vsel %vm203, %v1837, 0
        %v1846 = vsel %vm203, %v1838, 0
        %1848 = vmatprep.subr.bf16.mxu0 %v1846
        %1849 = vmatpush1.bf16.msra.mxu0 %v1843
        %1850 = vmatprep.subr.bf16.mxu0 0
        %1851 = vmatpush1.bf16.msra.mxu0 0
        %1852 = vmatprep.subr.bf16.mxu0 0
        %1853 = vmatpush1.bf16.msra.mxu0 0
        %1854 = vmatprep.subr.bf16.mxu0 0
        %1855 = vmatpush1.bf16.msra.mxu0 0
        %1856 = vmatprep.subr.bf16.mxu0 0
        %1857 = vmatpush1.bf16.msra.mxu0 0
        %1858 = vmatprep.subr.bf16.mxu0 0
        %1859 = vmatpush1.bf16.msra.mxu0 0
        %1860 = vmatprep.subr.bf16.mxu0 0
        %1861 = vmatpush1.bf16.msra.mxu0 0
        %1862 = vmatprep.subr.bf16.mxu0 0
        %1863 = vmatpush1.bf16.msra.mxu0 0
        %1864 = vmatprep.subr.bf16.mxu0 0
        %1865 = vmatpush1.bf16.msra.mxu0 0
        %1866 = vmatprep.subr.bf16.mxu0 0
        %1867 = vmatpush1.bf16.msra.mxu0 0
        %1868 = vmatprep.subr.bf16.mxu0 0
        %1869 = vmatpush1.bf16.msra.mxu0 0
        %1870 = vmatprep.subr.bf16.mxu0 0
        %1871 = vmatpush1.bf16.msra.mxu0 0
        %1872 = vmatprep.subr.bf16.mxu0 0
        %1873 = vmatpush1.bf16.msra.mxu0 0
        %1874 = vmatprep.subr.bf16.mxu0 0
        %1875 = vmatpush1.bf16.msra.mxu0 0
        %1876 = vmatprep.subr.bf16.mxu0 0
        %1877 = vmatpush1.bf16.msra.mxu0 0
        %1878 = vmatprep.subr.bf16.mxu0 0
        %1879 = vmatpush1.bf16.msra.mxu0 0
        %1880 = vmatprep.mubr.bf16.mxu0 0
        %1881 = vmatmul.mubr.bf16.gmra.mrb[0].mxu0 %v1840
        %v1882 = vpop.f32.mrb[0].mxu0
        %v1883 = vadd.f32 %v1828, %v1882
        %v1884 = vpop.f32.mrb[0].mxu0
        %v1885 = vadd.f32 %v1830, %v1884
        %v1886 = vpop.f32.mrb[0].mxu0
        %v1887 = vpop.f32.mrb[0].mxu0
        %1888 = vdwg.mxu0
        %v1889 = vadd.f32 %v1760, %v1883
        %v1890 = vadd.f32 %v1761, %v1885
        %v1891 = vmax.f32 %v1889, %v1890
        %1892 = vmatprep.subr.bf16.mxu0 %v1536
        %1893 = vmatpush1.bf16.msra.mxu0 %v1533
        %1894 = vmatprep.subr.bf16.mxu0 0
        %1895 = vmatpush1.bf16.msra.mxu0 0
        %1896 = vmatprep.subr.bf16.mxu0 0
        %1897 = vmatpush1.bf16.msra.mxu0 0
        %1898 = vmatprep.subr.bf16.mxu0 0
        %1899 = vmatpush1.bf16.msra.mxu0 0
        %1900 = vmatprep.subr.bf16.mxu0 0
        %1901 = vmatpush1.bf16.msra.mxu0 0
        %1902 = vmatprep.subr.bf16.mxu0 0
        %1903 = vmatpush1.bf16.msra.mxu0 0
        %1904 = vmatprep.subr.bf16.mxu0 0
        %1905 = vmatpush1.bf16.msra.mxu0 0
        %1906 = vmatprep.subr.bf16.mxu0 0
        %1907 = vmatpush1.bf16.msra.mxu0 0
        %1908 = vmatprep.subr.bf16.mxu0 0
        %1909 = vmatpush1.bf16.msra.mxu0 0
        %1910 = vmatprep.subr.bf16.mxu0 0
        %1911 = vmatpush1.bf16.msra.mxu0 0
        %1912 = vmatprep.subr.bf16.mxu0 0
        %1913 = vmatpush1.bf16.msra.mxu0 0
        %1914 = vmatprep.subr.bf16.mxu0 0
        %1915 = vmatpush1.bf16.msra.mxu0 0
        %1916 = vmatprep.subr.bf16.mxu0 0
        %1917 = vmatpush1.bf16.msra.mxu0 0
        %1918 = vmatprep.subr.bf16.mxu0 0
        %1919 = vmatpush1.bf16.msra.mxu0 0
        %1920 = vmatprep.subr.bf16.mxu0 0
        %1921 = vmatpush1.bf16.msra.mxu0 0
        %1922 = vmatprep.subr.bf16.mxu0 0
        %1923 = vmatpush1.bf16.msra.mxu0 0
        %1924 = vmatprep.mubr.bf16.mxu0 0
        %1925 = vmatmul.mubr.bf16.gmra.mrb[0].mxu0 %v1656
        %v1926 = vpop.f32.mrb[0].mxu0
        %v1927 = vadd.f32 0.0, %v1926
        %v1928 = vpop.f32.mrb[0].mxu0
        %v1929 = vadd.f32 0.0, %v1928
        %v1930 = vpop.f32.mrb[0].mxu0
        %v1931 = vpop.f32.mrb[0].mxu0
        %1932 = vdwg.mxu0
        %1933 = vmatprep.subr.bf16.mxu0 %v1591
        %1934 = vmatpush1.bf16.msra.mxu0 %v1588
        %1935 = vmatprep.subr.bf16.mxu0 0
        %1936 = vmatpush1.bf16.msra.mxu0 0
        %1937 = vmatprep.subr.bf16.mxu0 0
        %1938 = vmatpush1.bf16.msra.mxu0 0
        %1939 = vmatprep.subr.bf16.mxu0 0
        %1940 = vmatpush1.bf16.msra.mxu0 0
        %1941 = vmatprep.subr.bf16.mxu0 0
        %1942 = vmatpush1.bf16.msra.mxu0 0
        %1943 = vmatprep.subr.bf16.mxu0 0
        %1944 = vmatpush1.bf16.msra.mxu0 0
        %1945 = vmatprep.subr.bf16.mxu0 0
        %1946 = vmatpush1.bf16.msra.mxu0 0
        %1947 = vmatprep.subr.bf16.mxu0 0
        %1948 = vmatpush1.bf16.msra.mxu0 0
        %1949 = vmatprep.subr.bf16.mxu0 0
        %1950 = vmatpush1.bf16.msra.mxu0 0
        %1951 = vmatprep.subr.bf16.mxu0 0
        %1952 = vmatpush1.bf16.msra.mxu0 0
        %1953 = vmatprep.subr.bf16.mxu0 0
        %1954 = vmatpush1.bf16.msra.mxu0 0
        %1955 = vmatprep.subr.bf16.mxu0 0
        %1956 = vmatpush1.bf16.msra.mxu0 0
        %1957 = vmatprep.subr.bf16.mxu0 0
        %1958 = vmatpush1.bf16.msra.mxu0 0
        %1959 = vmatprep.subr.bf16.mxu0 0
        %1960 = vmatpush1.bf16.msra.mxu0 0
        %1961 = vmatprep.subr.bf16.mxu0 0
        %1962 = vmatpush1.bf16.msra.mxu0 0
        %1963 = vmatprep.subr.bf16.mxu0 0
        %1964 = vmatpush1.bf16.msra.mxu0 0
        %1965 = vmatprep.mubr.bf16.mxu0 0
        %1966 = vmatmul.mubr.bf16.gmra.mrb[0].mxu0 %v1711
        %v1967 = vpop.f32.mrb[0].mxu0
        %v1968 = vadd.f32 %v1927, %v1967
        %v1969 = vpop.f32.mrb[0].mxu0
        %v1970 = vadd.f32 %v1929, %v1969
        %v1971 = vpop.f32.mrb[0].mxu0
        %v1972 = vpop.f32.mrb[0].mxu0
        %1973 = vdwg.mxu0
        %1974 = vmatprep.subr.bf16.mxu0 %v1662
        %1975 = vmatpush1.bf16.msra.mxu0 %v1659
        %1976 = vmatprep.subr.bf16.mxu0 0
        %1977 = vmatpush1.bf16.msra.mxu0 0
        %1978 = vmatprep.subr.bf16.mxu0 0
        %1979 = vmatpush1.bf16.msra.mxu0 0
        %1980 = vmatprep.subr.bf16.mxu0 0
        %1981 = vmatpush1.bf16.msra.mxu0 0
        %1982 = vmatprep.subr.bf16.mxu0 0
        %1983 = vmatpush1.bf16.msra.mxu0 0
        %1984 = vmatprep.subr.bf16.mxu0 0
        %1985 = vmatpush1.bf16.msra.mxu0 0
        %1986 = vmatprep.subr.bf16.mxu0 0
        %1987 = vmatpush1.bf16.msra.mxu0 0
        %1988 = vmatprep.subr.bf16.mxu0 0
        %1989 = vmatpush1.bf16.msra.mxu0 0
        %1990 = vmatprep.subr.bf16.mxu0 0
        %1991 = vmatpush1.bf16.msra.mxu0 0
        %1992 = vmatprep.subr.bf16.mxu0 0
        %1993 = vmatpush1.bf16.msra.mxu0 0
        %1994 = vmatprep.subr.bf16.mxu0 0
        %1995 = vmatpush1.bf16.msra.mxu0 0
        %1996 = vmatprep.subr.bf16.mxu0 0
        %1997 = vmatpush1.bf16.msra.mxu0 0
        %1998 = vmatprep.subr.bf16.mxu0 0
        %1999 = vmatpush1.bf16.msra.mxu0 0
        %2000 = vmatprep.subr.bf16.mxu0 0
        %2001 = vmatpush1.bf16.msra.mxu0 0
        %2002 = vmatprep.subr.bf16.mxu0 0
        %2003 = vmatpush1.bf16.msra.mxu0 0
        %2004 = vmatprep.subr.bf16.mxu0 0
        %2005 = vmatpush1.bf16.msra.mxu0 0
        %2006 = vmatprep.mubr.bf16.mxu0 0
        %2007 = vmatmul.mubr.bf16.gmra.mrb[0].mxu0 %v1785
        %v2008 = vpop.f32.mrb[0].mxu0
        %v2009 = vadd.f32 0.0, %v2008
        %v2010 = vpop.f32.mrb[0].mxu0
        %v2011 = vadd.f32 0.0, %v2010
        %v2012 = vpop.f32.mrb[0].mxu0
        %v2013 = vpop.f32.mrb[0].mxu0
        %2014 = vdwg.mxu0
        %2015 = vmatprep.subr.bf16.mxu0 %v1717
        %2016 = vmatpush1.bf16.msra.mxu0 %v1714
        %2017 = vmatprep.subr.bf16.mxu0 0
        %2018 = vmatpush1.bf16.msra.mxu0 0
        %2019 = vmatprep.subr.bf16.mxu0 0
        %2020 = vmatpush1.bf16.msra.mxu0 0
        %2021 = vmatprep.subr.bf16.mxu0 0
        %2022 = vmatpush1.bf16.msra.mxu0 0
        %2023 = vmatprep.subr.bf16.mxu0 0
        %2024 = vmatpush1.bf16.msra.mxu0 0
        %2025 = vmatprep.subr.bf16.mxu0 0
        %2026 = vmatpush1.bf16.msra.mxu0 0
        %2027 = vmatprep.subr.bf16.mxu0 0
        %2028 = vmatpush1.bf16.msra.mxu0 0
        %2029 = vmatprep.subr.bf16.mxu0 0
        %2030 = vmatpush1.bf16.msra.mxu0 0
        %2031 = vmatprep.subr.bf16.mxu0 0
        %2032 = vmatpush1.bf16.msra.mxu0 0
        %2033 = vmatprep.subr.bf16.mxu0 0
        %2034 = vmatpush1.bf16.msra.mxu0 0
        %2035 = vmatprep.subr.bf16.mxu0 0
        %2036 = vmatpush1.bf16.msra.mxu0 0
        %2037 = vmatprep.subr.bf16.mxu0 0
        %2038 = vmatpush1.bf16.msra.mxu0 0
        %2039 = vmatprep.subr.bf16.mxu0 0
        %2040 = vmatpush1.bf16.msra.mxu0 0
        %2041 = vmatprep.subr.bf16.mxu0 0
        %2042 = vmatpush1.bf16.msra.mxu0 0
        %2043 = vmatprep.subr.bf16.mxu0 0
        %2044 = vmatpush1.bf16.msra.mxu0 0
        %2045 = vmatprep.subr.bf16.mxu0 0
        %2046 = vmatpush1.bf16.msra.mxu0 0
        %2047 = vmatprep.mubr.bf16.mxu0 0
        %2048 = vmatmul.mubr.bf16.gmra.mrb[0].mxu0 %v1840
        %v2049 = vpop.f32.mrb[0].mxu0
        %v2050 = vadd.f32 %v2009, %v2049
        %v2051 = vpop.f32.mrb[0].mxu0
        %v2052 = vadd.f32 %v2011, %v2051
        %v2053 = vpop.f32.mrb[0].mxu0
        %v2054 = vpop.f32.mrb[0].mxu0
        %2055 = vdwg.mxu0
        %v2056 = vadd.f32 %v1968, %v2050
        %v2057 = vadd.f32 %v1970, %v2052
        %s2058 = scalar_lea.vmem %s168, 56
        %v2059 = vld [vmem:[%s2058] sm:$0xf]
        %v2060 = vld [vmem:[%s2058 + $0x4] sm:$0x1]
        %v2063 = vunpack.c.l.b16 %v2059
        %v2064 = vunpack.c.l.b16 %v2060
        %v2065 = vpack.c.b16 %v2064, %v2063
        %v2067 = vshrl.u32 %v2065, 16
        %v2069 = vshll.u32 %v2065, 16
        %v2071 = vrot.slane %v2069, 1
        %v2072 = vor.u32 %v2067, %v2071
        %v2074 = vsel %vm199, %v2072, 0
        %2076 = vmatprep.subr.bf16.mxu0 %v1791
        %2077 = vmatpush1.bf16.msra.mxu0 %v1788
        %2078 = vmatprep.subr.bf16.mxu0 0
        %2079 = vmatpush1.bf16.msra.mxu0 0
        %2080 = vmatprep.subr.bf16.mxu0 0
        %2081 = vmatpush1.bf16.msra.mxu0 0
        %2082 = vmatprep.subr.bf16.mxu0 0
        %2083 = vmatpush1.bf16.msra.mxu0 0
        %2084 = vmatprep.subr.bf16.mxu0 0
        %2085 = vmatpush1.bf16.msra.mxu0 0
        %2086 = vmatprep.subr.bf16.mxu0 0
        %2087 = vmatpush1.bf16.msra.mxu0 0
        %2088 = vmatprep.subr.bf16.mxu0 0
        %2089 = vmatpush1.bf16.msra.mxu0 0
        %2090 = vmatprep.subr.bf16.mxu0 0
        %2091 = vmatpush1.bf16.msra.mxu0 0
        %2092 = vmatprep.subr.bf16.mxu0 0
        %2093 = vmatpush1.bf16.msra.mxu0 0
        %2094 = vmatprep.subr.bf16.mxu0 0
        %2095 = vmatpush1.bf16.msra.mxu0 0
        %2096 = vmatprep.subr.bf16.mxu0 0
        %2097 = vmatpush1.bf16.msra.mxu0 0
        %2098 = vmatprep.subr.bf16.mxu0 0
        %2099 = vmatpush1.bf16.msra.mxu0 0
        %2100 = vmatprep.subr.bf16.mxu0 0
        %2101 = vmatpush1.bf16.msra.mxu0 0
        %2102 = vmatprep.subr.bf16.mxu0 0
        %2103 = vmatpush1.bf16.msra.mxu0 0
        %2104 = vmatprep.subr.bf16.mxu0 0
        %2105 = vmatpush1.bf16.msra.mxu0 0
        %2106 = vmatprep.subr.bf16.mxu0 0
        %2107 = vmatpush1.bf16.msra.mxu0 0
        %2108 = vmatprep.mubr.bf16.mxu0 0
        %2109 = vmatmul.mubr.bf16.gmra.mrb[0].mxu0 %v2074
        %v2110 = vpop.f32.mrb[0].mxu0
        %v2111 = vadd.f32 0.0, %v2110
        %v2112 = vpop.f32.mrb[0].mxu0
        %v2113 = vadd.f32 0.0, %v2112
        %v2114 = vpop.f32.mrb[0].mxu0
        %v2115 = vpop.f32.mrb[0].mxu0
        %2116 = vdwg.mxu0
        %v2118 = vsel %vm199, %v2059, 0
        %2120 = vmatprep.subr.bf16.mxu0 %v1846
        %2121 = vmatpush1.bf16.msra.mxu0 %v1843
        %2122 = vmatprep.subr.bf16.mxu0 0
        %2123 = vmatpush1.bf16.msra.mxu0 0
        %2124 = vmatprep.subr.bf16.mxu0 0
        %2125 = vmatpush1.bf16.msra.mxu0 0
        %2126 = vmatprep.subr.bf16.mxu0 0
        %2127 = vmatpush1.bf16.msra.mxu0 0
        %2128 = vmatprep.subr.bf16.mxu0 0
        %2129 = vmatpush1.bf16.msra.mxu0 0
        %2130 = vmatprep.subr.bf16.mxu0 0
        %2131 = vmatpush1.bf16.msra.mxu0 0
        %2132 = vmatprep.subr.bf16.mxu0 0
        %2133 = vmatpush1.bf16.msra.mxu0 0
        %2134 = vmatprep.subr.bf16.mxu0 0
        %2135 = vmatpush1.bf16.msra.mxu0 0
        %2136 = vmatprep.subr.bf16.mxu0 0
        %2137 = vmatpush1.bf16.msra.mxu0 0
        %2138 = vmatprep.subr.bf16.mxu0 0
        %2139 = vmatpush1.bf16.msra.mxu0 0
        %2140 = vmatprep.subr.bf16.mxu0 0
        %2141 = vmatpush1.bf16.msra.mxu0 0
        %2142 = vmatprep.subr.bf16.mxu0 0
        %2143 = vmatpush1.bf16.msra.mxu0 0
        %2144 = vmatprep.subr.bf16.mxu0 0
        %2145 = vmatpush1.bf16.msra.mxu0 0
        %2146 = vmatprep.subr.bf16.mxu0 0
        %2147 = vmatpush1.bf16.msra.mxu0 0
        %2148 = vmatprep.subr.bf16.mxu0 0
        %2149 = vmatpush1.bf16.msra.mxu0 0
        %2150 = vmatprep.subr.bf16.mxu0 0
        %2151 = vmatpush1.bf16.msra.mxu0 0
        %2152 = vmatprep.mubr.bf16.mxu0 0
        %2153 = vmatmul.mubr.bf16.gmra.mrb[0].mxu0 %v2118
        %v2154 = vpop.f32.mrb[0].mxu0
        %v2155 = vadd.f32 %v2111, %v2154
        %v2156 = vpop.f32.mrb[0].mxu0
        %v2157 = vadd.f32 %v2113, %v2156
        %v2158 = vpop.f32.mrb[0].mxu0
        %v2159 = vpop.f32.mrb[0].mxu0
        %2160 = vdwg.mxu0
        %v2161 = vadd.f32 %v2056, %v2155
        %v2162 = vadd.f32 %v2057, %v2157
        %v2163 = vmax.f32 %v2161, %v2162
        %v2164 = vmax.f32 %v1891, %v2163
        %v2165 = vadd.f32 %v2164, %v175
        %v2166 = vmax.f32 %v2165, 0.0
        %v2167 = vpack.c.bf16 %v2166, %v2166
        %s2168 = scalar_lea.vmem %s163, 8 [#allocation2]
        %2169 = vst [vmem:[%s2168] sm:$0xf] %v2167
        %v2170 = vld [vmem:[%s1762] sm:$0xf]
        %v2171 = vld [vmem:[%s1762 + $0x4] sm:$0x1]
        %v2172 = vld [vmem:[%s1] sm:$0xff]
        %v2173 = vld [vmem:[%s180] sm:$0xff]
        %v2176 = vunpack.c.l.b16 %v2170
        %v2177 = vunpack.c.l.b16 %v2171
        %v2178 = vpack.c.b16 %v2177, %v2176
        %v2180 = vshrl.u32 %v2178, 16
        %v2182 = vshll.u32 %v2178, 16
        %v2184 = vrot.slane %v2182, 1
        %v2185 = vor.u32 %v2180, %v2184
        %v2187 = vunpack.c.l.b16 %v2173
        %v2188 = vunpack.c.h.b16 %v2173
        %v2189 = vpack.c.b16 %v2187, %v2187
        %v2190 = vpack.c.b16 %v2188, %v2188
        %v2192 = vsel %vm199, %v2185, 0
        %v2195 = vsel %vm203, %v2189, 0
        %v2198 = vsel %vm203, %v2190, 0
        %2200 = vmatprep.subr.bf16.mxu0 %v2198
        %2201 = vmatpush1.bf16.msra.mxu0 %v2195
        %2202 = vmatprep.subr.bf16.mxu0 0
        %2203 = vmatpush1.bf16.msra.mxu0 0
        %2204 = vmatprep.subr.bf16.mxu0 0
        %2205 = vmatpush1.bf16.msra.mxu0 0
        %2206 = vmatprep.subr.bf16.mxu0 0
        %2207 = vmatpush1.bf16.msra.mxu0 0
        %2208 = vmatprep.subr.bf16.mxu0 0
        %2209 = vmatpush1.bf16.msra.mxu0 0
        %2210 = vmatprep.subr.bf16.mxu0 0
        %2211 = vmatpush1.bf16.msra.mxu0 0
        %2212 = vmatprep.subr.bf16.mxu0 0
        %2213 = vmatpush1.bf16.msra.mxu0 0
        %2214 = vmatprep.subr.bf16.mxu0 0
        %2215 = vmatpush1.bf16.msra.mxu0 0
        %2216 = vmatprep.subr.bf16.mxu0 0
        %2217 = vmatpush1.bf16.msra.mxu0 0
        %2218 = vmatprep.subr.bf16.mxu0 0
        %2219 = vmatpush1.bf16.msra.mxu0 0
        %2220 = vmatprep.subr.bf16.mxu0 0
        %2221 = vmatpush1.bf16.msra.mxu0 0
        %2222 = vmatprep.subr.bf16.mxu0 0
        %2223 = vmatpush1.bf16.msra.mxu0 0
        %2224 = vmatprep.subr.bf16.mxu0 0
        %2225 = vmatpush1.bf16.msra.mxu0 0
        %2226 = vmatprep.subr.bf16.mxu0 0
        %2227 = vmatpush1.bf16.msra.mxu0 0
        %2228 = vmatprep.subr.bf16.mxu0 0
        %2229 = vmatpush1.bf16.msra.mxu0 0
        %2230 = vmatprep.subr.bf16.mxu0 0
        %2231 = vmatpush1.bf16.msra.mxu0 0
        %2232 = vmatprep.mubr.bf16.mxu0 0
        %2233 = vmatmul.mubr.bf16.gmra.mrb[0].mxu0 %v2192
        %v2234 = vpop.f32.mrb[0].mxu0
        %v2235 = vadd.f32 0.0, %v2234
        %v2236 = vpop.f32.mrb[0].mxu0
        %v2237 = vadd.f32 0.0, %v2236
        %v2238 = vpop.f32.mrb[0].mxu0
        %v2239 = vpop.f32.mrb[0].mxu0
        %2240 = vdwg.mxu0
        %v2242 = vunpack.c.l.b16 %v2172
        %v2243 = vunpack.c.h.b16 %v2172
        %v2244 = vpack.c.b16 %v2242, %v2242
        %v2245 = vpack.c.b16 %v2243, %v2243
        %v2247 = vsel %vm199, %v2170, 0
        %v2250 = vsel %vm203, %v2244, 0
        %v2253 = vsel %vm203, %v2245, 0
        %2255 = vmatprep.subr.bf16.mxu0 %v2253
        %2256 = vmatpush1.bf16.msra.mxu0 %v2250
        %2257 = vmatprep.subr.bf16.mxu0 0
        %2258 = vmatpush1.bf16.msra.mxu0 0
        %2259 = vmatprep.subr.bf16.mxu0 0
        %2260 = vmatpush1.bf16.msra.mxu0 0
        %2261 = vmatprep.subr.bf16.mxu0 0
        %2262 = vmatpush1.bf16.msra.mxu0 0
        %2263 = vmatprep.subr.bf16.mxu0 0
        %2264 = vmatpush1.bf16.msra.mxu0 0
        %2265 = vmatprep.subr.bf16.mxu0 0
        %2266 = vmatpush1.bf16.msra.mxu0 0
        %2267 = vmatprep.subr.bf16.mxu0 0
        %2268 = vmatpush1.bf16.msra.mxu0 0
        %2269 = vmatprep.subr.bf16.mxu0 0
        %2270 = vmatpush1.bf16.msra.mxu0 0
        %2271 = vmatprep.subr.bf16.mxu0 0
        %2272 = vmatpush1.bf16.msra.mxu0 0
        %2273 = vmatprep.subr.bf16.mxu0 0
        %2274 = vmatpush1.bf16.msra.mxu0 0
        %2275 = vmatprep.subr.bf16.mxu0 0
        %2276 = vmatpush1.bf16.msra.mxu0 0
        %2277 = vmatprep.subr.bf16.mxu0 0
        %2278 = vmatpush1.bf16.msra.mxu0 0
        %2279 = vmatprep.subr.bf16.mxu0 0
        %2280 = vmatpush1.bf16.msra.mxu0 0
        %2281 = vmatprep.subr.bf16.mxu0 0
        %2282 = vmatpush1.bf16.msra.mxu0 0
        %2283 = vmatprep.subr.bf16.mxu0 0
        %2284 = vmatpush1.bf16.msra.mxu0 0
        %2285 = vmatprep.subr.bf16.mxu0 0
        %2286 = vmatpush1.bf16.msra.mxu0 0
        %2287 = vmatprep.mubr.bf16.mxu0 0
        %2288 = vmatmul.mubr.bf16.gmra.mrb[0].mxu0 %v2247
        %v2289 = vpop.f32.mrb[0].mxu0
        %v2290 = vadd.f32 %v2235, %v2289
        %v2291 = vpop.f32.mrb[0].mxu0
        %v2292 = vadd.f32 %v2237, %v2291
        %v2293 = vpop.f32.mrb[0].mxu0
        %v2294 = vpop.f32.mrb[0].mxu0
        %2295 = vdwg.mxu0
        %v2296 = vld [vmem:[%s2058] sm:$0xf]
        %v2297 = vld [vmem:[%s2058 + $0x4] sm:$0x1]
        %v2298 = vld [vmem:[%s309] sm:$0xff]
        %v2299 = vld [vmem:[%s311] sm:$0xff]
        %v2302 = vunpack.c.l.b16 %v2296
        %v2303 = vunpack.c.l.b16 %v2297
        %v2304 = vpack.c.b16 %v2303, %v2302
        %v2306 = vshrl.u32 %v2304, 16
        %v2308 = vshll.u32 %v2304, 16
        %v2310 = vrot.slane %v2308, 1
        %v2311 = vor.u32 %v2306, %v2310
        %v2313 = vunpack.c.l.b16 %v2299
        %v2314 = vunpack.c.h.b16 %v2299
        %v2315 = vpack.c.b16 %v2313, %v2313
        %v2316 = vpack.c.b16 %v2314, %v2314
        %v2318 = vsel %vm199, %v2311, 0
        %v2321 = vsel %vm203, %v2315, 0
        %v2324 = vsel %vm203, %v2316, 0
        %2326 = vmatprep.subr.bf16.mxu0 %v2324
        %2327 = vmatpush1.bf16.msra.mxu0 %v2321
        %2328 = vmatprep.subr.bf16.mxu0 0
        %2329 = vmatpush1.bf16.msra.mxu0 0
        %2330 = vmatprep.subr.bf16.mxu0 0
        %2331 = vmatpush1.bf16.msra.mxu0 0
        %2332 = vmatprep.subr.bf16.mxu0 0
        %2333 = vmatpush1.bf16.msra.mxu0 0
        %2334 = vmatprep.subr.bf16.mxu0 0
        %2335 = vmatpush1.bf16.msra.mxu0 0
        %2336 = vmatprep.subr.bf16.mxu0 0
        %2337 = vmatpush1.bf16.msra.mxu0 0
        %2338 = vmatprep.subr.bf16.mxu0 0
        %2339 = vmatpush1.bf16.msra.mxu0 0
        %2340 = vmatprep.subr.bf16.mxu0 0
        %2341 = vmatpush1.bf16.msra.mxu0 0
        %2342 = vmatprep.subr.bf16.mxu0 0
        %2343 = vmatpush1.bf16.msra.mxu0 0
        %2344 = vmatprep.subr.bf16.mxu0 0
        %2345 = vmatpush1.bf16.msra.mxu0 0
        %2346 = vmatprep.subr.bf16.mxu0 0
        %2347 = vmatpush1.bf16.msra.mxu0 0
        %2348 = vmatprep.subr.bf16.mxu0 0
        %2349 = vmatpush1.bf16.msra.mxu0 0
        %2350 = vmatprep.subr.bf16.mxu0 0
        %2351 = vmatpush1.bf16.msra.mxu0 0
        %2352 = vmatprep.subr.bf16.mxu0 0
        %2353 = vmatpush1.bf16.msra.mxu0 0
        %2354 = vmatprep.subr.bf16.mxu0 0
        %2355 = vmatpush1.bf16.msra.mxu0 0
        %2356 = vmatprep.subr.bf16.mxu0 0
        %2357 = vmatpush1.bf16.msra.mxu0 0
        %2358 = vmatprep.mubr.bf16.mxu0 0
        %2359 = vmatmul.mubr.bf16.gmra.mrb[0].mxu0 %v2318
        %v2360 = vpop.f32.mrb[0].mxu0
        %v2361 = vadd.f32 0.0, %v2360
        %v2362 = vpop.f32.mrb[0].mxu0
        %v2363 = vadd.f32 0.0, %v2362
        %v2364 = vpop.f32.mrb[0].mxu0
        %v2365 = vpop.f32.mrb[0].mxu0
        %2366 = vdwg.mxu0
        %v2368 = vunpack.c.l.b16 %v2298
        %v2369 = vunpack.c.h.b16 %v2298
        %v2370 = vpack.c.b16 %v2368, %v2368
        %v2371 = vpack.c.b16 %v2369, %v2369
        %v2373 = vsel %vm199, %v2296, 0
        %v2376 = vsel %vm203, %v2370, 0
        %v2379 = vsel %vm203, %v2371, 0
        %2381 = vmatprep.subr.bf16.mxu0 %v2379
        %2382 = vmatpush1.bf16.msra.mxu0 %v2376
        %2383 = vmatprep.subr.bf16.mxu0 0
        %2384 = vmatpush1.bf16.msra.mxu0 0
        %2385 = vmatprep.subr.bf16.mxu0 0
        %2386 = vmatpush1.bf16.msra.mxu0 0
        %2387 = vmatprep.subr.bf16.mxu0 0
        %2388 = vmatpush1.bf16.msra.mxu0 0
        %2389 = vmatprep.subr.bf16.mxu0 0
        %2390 = vmatpush1.bf16.msra.mxu0 0
        %2391 = vmatprep.subr.bf16.mxu0 0
        %2392 = vmatpush1.bf16.msra.mxu0 0
        %2393 = vmatprep.subr.bf16.mxu0 0
        %2394 = vmatpush1.bf16.msra.mxu0 0
        %2395 = vmatprep.subr.bf16.mxu0 0
        %2396 = vmatpush1.bf16.msra.mxu0 0
        %2397 = vmatprep.subr.bf16.mxu0 0
        %2398 = vmatpush1.bf16.msra.mxu0 0
        %2399 = vmatprep.subr.bf16.mxu0 0
        %2400 = vmatpush1.bf16.msra.mxu0 0
        %2401 = vmatprep.subr.bf16.mxu0 0
        %2402 = vmatpush1.bf16.msra.mxu0 0
        %2403 = vmatprep.subr.bf16.mxu0 0
        %2404 = vmatpush1.bf16.msra.mxu0 0
        %2405 = vmatprep.subr.bf16.mxu0 0
        %2406 = vmatpush1.bf16.msra.mxu0 0
        %2407 = vmatprep.subr.bf16.mxu0 0
        %2408 = vmatpush1.bf16.msra.mxu0 0
        %2409 = vmatprep.subr.bf16.mxu0 0
        %2410 = vmatpush1.bf16.msra.mxu0 0
        %2411 = vmatprep.subr.bf16.mxu0 0
        %2412 = vmatpush1.bf16.msra.mxu0 0
        %2413 = vmatprep.mubr.bf16.mxu0 0
        %2414 = vmatmul.mubr.bf16.gmra.mrb[0].mxu0 %v2373
        %v2415 = vpop.f32.mrb[0].mxu0
        %v2416 = vadd.f32 %v2361, %v2415
        %v2417 = vpop.f32.mrb[0].mxu0
        %v2418 = vadd.f32 %v2363, %v2417
        %v2419 = vpop.f32.mrb[0].mxu0
        %v2420 = vpop.f32.mrb[0].mxu0
        %2421 = vdwg.mxu0
        %v2422 = vadd.f32 %v2290, %v2416
        %v2423 = vadd.f32 %v2292, %v2418
        %s2424 = scalar_lea.vmem %s168, 64
        %v2425 = vld [vmem:[%s2424] sm:$0xf]
        %v2426 = vld [vmem:[%s2424 + $0x4] sm:$0x1]
        %v2427 = vld [vmem:[%s440] sm:$0xff]
        %v2428 = vld [vmem:[%s442] sm:$0xff]
        %v2431 = vunpack.c.l.b16 %v2425
        %v2432 = vunpack.c.l.b16 %v2426
        %v2433 = vpack.c.b16 %v2432, %v2431
        %v2435 = vshrl.u32 %v2433, 16
        %v2437 = vshll.u32 %v2433, 16
        %v2439 = vrot.slane %v2437, 1
        %v2440 = vor.u32 %v2435, %v2439
        %v2442 = vunpack.c.l.b16 %v2428
        %v2443 = vunpack.c.h.b16 %v2428
        %v2444 = vpack.c.b16 %v2442, %v2442
        %v2445 = vpack.c.b16 %v2443, %v2443
        %v2447 = vsel %vm199, %v2440, 0
        %v2450 = vsel %vm203, %v2444, 0
        %v2453 = vsel %vm203, %v2445, 0
        %2455 = vmatprep.subr.bf16.mxu0 %v2453
        %2456 = vmatpush1.bf16.msra.mxu0 %v2450
        %2457 = vmatprep.subr.bf16.mxu0 0
        %2458 = vmatpush1.bf16.msra.mxu0 0
        %2459 = vmatprep.subr.bf16.mxu0 0
        %2460 = vmatpush1.bf16.msra.mxu0 0
        %2461 = vmatprep.subr.bf16.mxu0 0
        %2462 = vmatpush1.bf16.msra.mxu0 0
        %2463 = vmatprep.subr.bf16.mxu0 0
        %2464 = vmatpush1.bf16.msra.mxu0 0
        %2465 = vmatprep.subr.bf16.mxu0 0
        %2466 = vmatpush1.bf16.msra.mxu0 0
        %2467 = vmatprep.subr.bf16.mxu0 0
        %2468 = vmatpush1.bf16.msra.mxu0 0
        %2469 = vmatprep.subr.bf16.mxu0 0
        %2470 = vmatpush1.bf16.msra.mxu0 0
        %2471 = vmatprep.subr.bf16.mxu0 0
        %2472 = vmatpush1.bf16.msra.mxu0 0
        %2473 = vmatprep.subr.bf16.mxu0 0
        %2474 = vmatpush1.bf16.msra.mxu0 0
        %2475 = vmatprep.subr.bf16.mxu0 0
        %2476 = vmatpush1.bf16.msra.mxu0 0
        %2477 = vmatprep.subr.bf16.mxu0 0
        %2478 = vmatpush1.bf16.msra.mxu0 0
        %2479 = vmatprep.subr.bf16.mxu0 0
        %2480 = vmatpush1.bf16.msra.mxu0 0
        %2481 = vmatprep.subr.bf16.mxu0 0
        %2482 = vmatpush1.bf16.msra.mxu0 0
        %2483 = vmatprep.subr.bf16.mxu0 0
        %2484 = vmatpush1.bf16.msra.mxu0 0
        %2485 = vmatprep.subr.bf16.mxu0 0
        %2486 = vmatpush1.bf16.msra.mxu0 0
        %2487 = vmatprep.mubr.bf16.mxu0 0
        %2488 = vmatmul.mubr.bf16.gmra.mrb[0].mxu0 %v2447
        %v2489 = vpop.f32.mrb[0].mxu0
        %v2490 = vadd.f32 0.0, %v2489
        %v2491 = vpop.f32.mrb[0].mxu0
        %v2492 = vadd.f32 0.0, %v2491
        %v2493 = vpop.f32.mrb[0].mxu0
        %v2494 = vpop.f32.mrb[0].mxu0
        %2495 = vdwg.mxu0
        %v2497 = vunpack.c.l.b16 %v2427
        %v2498 = vunpack.c.h.b16 %v2427
        %v2499 = vpack.c.b16 %v2497, %v2497
        %v2500 = vpack.c.b16 %v2498, %v2498
        %v2502 = vsel %vm199, %v2425, 0
        %v2505 = vsel %vm203, %v2499, 0
        %v2508 = vsel %vm203, %v2500, 0
        %2510 = vmatprep.subr.bf16.mxu0 %v2508
        %2511 = vmatpush1.bf16.msra.mxu0 %v2505
        %2512 = vmatprep.subr.bf16.mxu0 0
        %2513 = vmatpush1.bf16.msra.mxu0 0
        %2514 = vmatprep.subr.bf16.mxu0 0
        %2515 = vmatpush1.bf16.msra.mxu0 0
        %2516 = vmatprep.subr.bf16.mxu0 0
        %2517 = vmatpush1.bf16.msra.mxu0 0
        %2518 = vmatprep.subr.bf16.mxu0 0
        %2519 = vmatpush1.bf16.msra.mxu0 0
        %2520 = vmatprep.subr.bf16.mxu0 0
        %2521 = vmatpush1.bf16.msra.mxu0 0
        %2522 = vmatprep.subr.bf16.mxu0 0
        %2523 = vmatpush1.bf16.msra.mxu0 0
        %2524 = vmatprep.subr.bf16.mxu0 0
        %2525 = vmatpush1.bf16.msra.mxu0 0
        %2526 = vmatprep.subr.bf16.mxu0 0
        %2527 = vmatpush1.bf16.msra.mxu0 0
        %2528 = vmatprep.subr.bf16.mxu0 0
        %2529 = vmatpush1.bf16.msra.mxu0 0
        %2530 = vmatprep.subr.bf16.mxu0 0
        %2531 = vmatpush1.bf16.msra.mxu0 0
        %2532 = vmatprep.subr.bf16.mxu0 0
        %2533 = vmatpush1.bf16.msra.mxu0 0
        %2534 = vmatprep.subr.bf16.mxu0 0
        %2535 = vmatpush1.bf16.msra.mxu0 0
        %2536 = vmatprep.subr.bf16.mxu0 0
        %2537 = vmatpush1.bf16.msra.mxu0 0
        %2538 = vmatprep.subr.bf16.mxu0 0
        %2539 = vmatpush1.bf16.msra.mxu0 0
        %2540 = vmatprep.subr.bf16.mxu0 0
        %2541 = vmatpush1.bf16.msra.mxu0 0
        %2542 = vmatprep.mubr.bf16.mxu0 0
        %2543 = vmatmul.mubr.bf16.gmra.mrb[0].mxu0 %v2502
        %v2544 = vpop.f32.mrb[0].mxu0
        %v2545 = vadd.f32 %v2490, %v2544
        %v2546 = vpop.f32.mrb[0].mxu0
        %v2547 = vadd.f32 %v2492, %v2546
        %v2548 = vpop.f32.mrb[0].mxu0
        %v2549 = vpop.f32.mrb[0].mxu0
        %2550 = vdwg.mxu0
        %v2551 = vadd.f32 %v2422, %v2545
        %v2552 = vadd.f32 %v2423, %v2547
        %v2553 = vmax.f32 %v2551, %v2552
        %2554 = vmatprep.subr.bf16.mxu0 %v2198
        %2555 = vmatpush1.bf16.msra.mxu0 %v2195
        %2556 = vmatprep.subr.bf16.mxu0 0
        %2557 = vmatpush1.bf16.msra.mxu0 0
        %2558 = vmatprep.subr.bf16.mxu0 0
        %2559 = vmatpush1.bf16.msra.mxu0 0
        %2560 = vmatprep.subr.bf16.mxu0 0
        %2561 = vmatpush1.bf16.msra.mxu0 0
        %2562 = vmatprep.subr.bf16.mxu0 0
        %2563 = vmatpush1.bf16.msra.mxu0 0
        %2564 = vmatprep.subr.bf16.mxu0 0
        %2565 = vmatpush1.bf16.msra.mxu0 0
        %2566 = vmatprep.subr.bf16.mxu0 0
        %2567 = vmatpush1.bf16.msra.mxu0 0
        %2568 = vmatprep.subr.bf16.mxu0 0
        %2569 = vmatpush1.bf16.msra.mxu0 0
        %2570 = vmatprep.subr.bf16.mxu0 0
        %2571 = vmatpush1.bf16.msra.mxu0 0
        %2572 = vmatprep.subr.bf16.mxu0 0
        %2573 = vmatpush1.bf16.msra.mxu0 0
        %2574 = vmatprep.subr.bf16.mxu0 0
        %2575 = vmatpush1.bf16.msra.mxu0 0
        %2576 = vmatprep.subr.bf16.mxu0 0
        %2577 = vmatpush1.bf16.msra.mxu0 0
        %2578 = vmatprep.subr.bf16.mxu0 0
        %2579 = vmatpush1.bf16.msra.mxu0 0
        %2580 = vmatprep.subr.bf16.mxu0 0
        %2581 = vmatpush1.bf16.msra.mxu0 0
        %2582 = vmatprep.subr.bf16.mxu0 0
        %2583 = vmatpush1.bf16.msra.mxu0 0
        %2584 = vmatprep.subr.bf16.mxu0 0
        %2585 = vmatpush1.bf16.msra.mxu0 0
        %2586 = vmatprep.mubr.bf16.mxu0 0
        %2587 = vmatmul.mubr.bf16.gmra.mrb[0].mxu0 %v2318
        %v2588 = vpop.f32.mrb[0].mxu0
        %v2589 = vadd.f32 0.0, %v2588
        %v2590 = vpop.f32.mrb[0].mxu0
        %v2591 = vadd.f32 0.0, %v2590
        %v2592 = vpop.f32.mrb[0].mxu0
        %v2593 = vpop.f32.mrb[0].mxu0
        %2594 = vdwg.mxu0
        %2595 = vmatprep.subr.bf16.mxu0 %v2253
        %2596 = vmatpush1.bf16.msra.mxu0 %v2250
        %2597 = vmatprep.subr.bf16.mxu0 0
        %2598 = vmatpush1.bf16.msra.mxu0 0
        %2599 = vmatprep.subr.bf16.mxu0 0
        %2600 = vmatpush1.bf16.msra.mxu0 0
        %2601 = vmatprep.subr.bf16.mxu0 0
        %2602 = vmatpush1.bf16.msra.mxu0 0
        %2603 = vmatprep.subr.bf16.mxu0 0
        %2604 = vmatpush1.bf16.msra.mxu0 0
        %2605 = vmatprep.subr.bf16.mxu0 0
        %2606 = vmatpush1.bf16.msra.mxu0 0
        %2607 = vmatprep.subr.bf16.mxu0 0
        %2608 = vmatpush1.bf16.msra.mxu0 0
        %2609 = vmatprep.subr.bf16.mxu0 0
        %2610 = vmatpush1.bf16.msra.mxu0 0
        %2611 = vmatprep.subr.bf16.mxu0 0
        %2612 = vmatpush1.bf16.msra.mxu0 0
        %2613 = vmatprep.subr.bf16.mxu0 0
        %2614 = vmatpush1.bf16.msra.mxu0 0
        %2615 = vmatprep.subr.bf16.mxu0 0
        %2616 = vmatpush1.bf16.msra.mxu0 0
        %2617 = vmatprep.subr.bf16.mxu0 0
        %2618 = vmatpush1.bf16.msra.mxu0 0
        %2619 = vmatprep.subr.bf16.mxu0 0
        %2620 = vmatpush1.bf16.msra.mxu0 0
        %2621 = vmatprep.subr.bf16.mxu0 0
        %2622 = vmatpush1.bf16.msra.mxu0 0
        %2623 = vmatprep.subr.bf16.mxu0 0
        %2624 = vmatpush1.bf16.msra.mxu0 0
        %2625 = vmatprep.subr.bf16.mxu0 0
        %2626 = vmatpush1.bf16.msra.mxu0 0
        %2627 = vmatprep.mubr.bf16.mxu0 0
        %2628 = vmatmul.mubr.bf16.gmra.mrb[0].mxu0 %v2373
        %v2629 = vpop.f32.mrb[0].mxu0
        %v2630 = vadd.f32 %v2589, %v2629
        %v2631 = vpop.f32.mrb[0].mxu0
        %v2632 = vadd.f32 %v2591, %v2631
        %v2633 = vpop.f32.mrb[0].mxu0
        %v2634 = vpop.f32.mrb[0].mxu0
        %2635 = vdwg.mxu0
        %2636 = vmatprep.subr.bf16.mxu0 %v2324
        %2637 = vmatpush1.bf16.msra.mxu0 %v2321
        %2638 = vmatprep.subr.bf16.mxu0 0
        %2639 = vmatpush1.bf16.msra.mxu0 0
        %2640 = vmatprep.subr.bf16.mxu0 0
        %2641 = vmatpush1.bf16.msra.mxu0 0
        %2642 = vmatprep.subr.bf16.mxu0 0
        %2643 = vmatpush1.bf16.msra.mxu0 0
        %2644 = vmatprep.subr.bf16.mxu0 0
        %2645 = vmatpush1.bf16.msra.mxu0 0
        %2646 = vmatprep.subr.bf16.mxu0 0
        %2647 = vmatpush1.bf16.msra.mxu0 0
        %2648 = vmatprep.subr.bf16.mxu0 0
        %2649 = vmatpush1.bf16.msra.mxu0 0
        %2650 = vmatprep.subr.bf16.mxu0 0
        %2651 = vmatpush1.bf16.msra.mxu0 0
        %2652 = vmatprep.subr.bf16.mxu0 0
        %2653 = vmatpush1.bf16.msra.mxu0 0
        %2654 = vmatprep.subr.bf16.mxu0 0
        %2655 = vmatpush1.bf16.msra.mxu0 0
        %2656 = vmatprep.subr.bf16.mxu0 0
        %2657 = vmatpush1.bf16.msra.mxu0 0
        %2658 = vmatprep.subr.bf16.mxu0 0
        %2659 = vmatpush1.bf16.msra.mxu0 0
        %2660 = vmatprep.subr.bf16.mxu0 0
        %2661 = vmatpush1.bf16.msra.mxu0 0
        %2662 = vmatprep.subr.bf16.mxu0 0
        %2663 = vmatpush1.bf16.msra.mxu0 0
        %2664 = vmatprep.subr.bf16.mxu0 0
        %2665 = vmatpush1.bf16.msra.mxu0 0
        %2666 = vmatprep.subr.bf16.mxu0 0
        %2667 = vmatpush1.bf16.msra.mxu0 0
        %2668 = vmatprep.mubr.bf16.mxu0 0
        %2669 = vmatmul.mubr.bf16.gmra.mrb[0].mxu0 %v2447
        %v2670 = vpop.f32.mrb[0].mxu0
        %v2671 = vadd.f32 0.0, %v2670
        %v2672 = vpop.f32.mrb[0].mxu0
        %v2673 = vadd.f32 0.0, %v2672
        %v2674 = vpop.f32.mrb[0].mxu0
        %v2675 = vpop.f32.mrb[0].mxu0
        %2676 = vdwg.mxu0
        %2677 = vmatprep.subr.bf16.mxu0 %v2379
        %2678 = vmatpush1.bf16.msra.mxu0 %v2376
        %2679 = vmatprep.subr.bf16.mxu0 0
        %2680 = vmatpush1.bf16.msra.mxu0 0
        %2681 = vmatprep.subr.bf16.mxu0 0
        %2682 = vmatpush1.bf16.msra.mxu0 0
        %2683 = vmatprep.subr.bf16.mxu0 0
        %2684 = vmatpush1.bf16.msra.mxu0 0
        %2685 = vmatprep.subr.bf16.mxu0 0
        %2686 = vmatpush1.bf16.msra.mxu0 0
        %2687 = vmatprep.subr.bf16.mxu0 0
        %2688 = vmatpush1.bf16.msra.mxu0 0
        %2689 = vmatprep.subr.bf16.mxu0 0
        %2690 = vmatpush1.bf16.msra.mxu0 0
        %2691 = vmatprep.subr.bf16.mxu0 0
        %2692 = vmatpush1.bf16.msra.mxu0 0
        %2693 = vmatprep.subr.bf16.mxu0 0
        %2694 = vmatpush1.bf16.msra.mxu0 0
        %2695 = vmatprep.subr.bf16.mxu0 0
        %2696 = vmatpush1.bf16.msra.mxu0 0
        %2697 = vmatprep.subr.bf16.mxu0 0
        %2698 = vmatpush1.bf16.msra.mxu0 0
        %2699 = vmatprep.subr.bf16.mxu0 0
        %2700 = vmatpush1.bf16.msra.mxu0 0
        %2701 = vmatprep.subr.bf16.mxu0 0
        %2702 = vmatpush1.bf16.msra.mxu0 0
        %2703 = vmatprep.subr.bf16.mxu0 0
        %2704 = vmatpush1.bf16.msra.mxu0 0
        %2705 = vmatprep.subr.bf16.mxu0 0
        %2706 = vmatpush1.bf16.msra.mxu0 0
        %2707 = vmatprep.subr.bf16.mxu0 0
        %2708 = vmatpush1.bf16.msra.mxu0 0
        %2709 = vmatprep.mubr.bf16.mxu0 0
        %2710 = vmatmul.mubr.bf16.gmra.mrb[0].mxu0 %v2502
        %v2711 = vpop.f32.mrb[0].mxu0
        %v2712 = vadd.f32 %v2671, %v2711
        %v2713 = vpop.f32.mrb[0].mxu0
        %v2714 = vadd.f32 %v2673, %v2713
        %v2715 = vpop.f32.mrb[0].mxu0
        %v2716 = vpop.f32.mrb[0].mxu0
        %2717 = vdwg.mxu0
        %v2718 = vadd.f32 %v2630, %v2712
        %v2719 = vadd.f32 %v2632, %v2714
        %s2720 = scalar_lea.vmem %s168, 72
        %v2721 = vld [vmem:[%s2720] sm:$0xf]
        %v2722 = vld [vmem:[%s2720 + $0x4] sm:$0x1]
        %v2725 = vunpack.c.l.b16 %v2721
        %v2726 = vunpack.c.l.b16 %v2722
        %v2727 = vpack.c.b16 %v2726, %v2725
        %v2729 = vshrl.u32 %v2727, 16
        %v2731 = vshll.u32 %v2727, 16
        %v2733 = vrot.slane %v2731, 1
        %v2734 = vor.u32 %v2729, %v2733
        %v2736 = vsel %vm199, %v2734, 0
        %2738 = vmatprep.subr.bf16.mxu0 %v2453
        %2739 = vmatpush1.bf16.msra.mxu0 %v2450
        %2740 = vmatprep.subr.bf16.mxu0 0
        %2741 = vmatpush1.bf16.msra.mxu0 0
        %2742 = vmatprep.subr.bf16.mxu0 0
        %2743 = vmatpush1.bf16.msra.mxu0 0
        %2744 = vmatprep.subr.bf16.mxu0 0
        %2745 = vmatpush1.bf16.msra.mxu0 0
        %2746 = vmatprep.subr.bf16.mxu0 0
        %2747 = vmatpush1.bf16.msra.mxu0 0
        %2748 = vmatprep.subr.bf16.mxu0 0
        %2749 = vmatpush1.bf16.msra.mxu0 0
        %2750 = vmatprep.subr.bf16.mxu0 0
        %2751 = vmatpush1.bf16.msra.mxu0 0
        %2752 = vmatprep.subr.bf16.mxu0 0
        %2753 = vmatpush1.bf16.msra.mxu0 0
        %2754 = vmatprep.subr.bf16.mxu0 0
        %2755 = vmatpush1.bf16.msra.mxu0 0
        %2756 = vmatprep.subr.bf16.mxu0 0
        %2757 = vmatpush1.bf16.msra.mxu0 0
        %2758 = vmatprep.subr.bf16.mxu0 0
        %2759 = vmatpush1.bf16.msra.mxu0 0
        %2760 = vmatprep.subr.bf16.mxu0 0
        %2761 = vmatpush1.bf16.msra.mxu0 0
        %2762 = vmatprep.subr.bf16.mxu0 0
        %2763 = vmatpush1.bf16.msra.mxu0 0
        %2764 = vmatprep.subr.bf16.mxu0 0
        %2765 = vmatpush1.bf16.msra.mxu0 0
        %2766 = vmatprep.subr.bf16.mxu0 0
        %2767 = vmatpush1.bf16.msra.mxu0 0
        %2768 = vmatprep.subr.bf16.mxu0 0
        %2769 = vmatpush1.bf16.msra.mxu0 0
        %2770 = vmatprep.mubr.bf16.mxu0 0
        %2771 = vmatmul.mubr.bf16.gmra.mrb[0].mxu0 %v2736
        %v2772 = vpop.f32.mrb[0].mxu0
        %v2773 = vadd.f32 0.0, %v2772
        %v2774 = vpop.f32.mrb[0].mxu0
        %v2775 = vadd.f32 0.0, %v2774
        %v2776 = vpop.f32.mrb[0].mxu0
        %v2777 = vpop.f32.mrb[0].mxu0
        %2778 = vdwg.mxu0
        %v2780 = vsel %vm199, %v2721, 0
        %2782 = vmatprep.subr.bf16.mxu0 %v2508
        %2783 = vmatpush1.bf16.msra.mxu0 %v2505
        %2784 = vmatprep.subr.bf16.mxu0 0
        %2785 = vmatpush1.bf16.msra.mxu0 0
        %2786 = vmatprep.subr.bf16.mxu0 0
        %2787 = vmatpush1.bf16.msra.mxu0 0
        %2788 = vmatprep.subr.bf16.mxu0 0
        %2789 = vmatpush1.bf16.msra.mxu0 0
        %2790 = vmatprep.subr.bf16.mxu0 0
        %2791 = vmatpush1.bf16.msra.mxu0 0
        %2792 = vmatprep.subr.bf16.mxu0 0
        %2793 = vmatpush1.bf16.msra.mxu0 0
        %2794 = vmatprep.subr.bf16.mxu0 0
        %2795 = vmatpush1.bf16.msra.mxu0 0
        %2796 = vmatprep.subr.bf16.mxu0 0
        %2797 = vmatpush1.bf16.msra.mxu0 0
        %2798 = vmatprep.subr.bf16.mxu0 0
        %2799 = vmatpush1.bf16.msra.mxu0 0
        %2800 = vmatprep.subr.bf16.mxu0 0
        %2801 = vmatpush1.bf16.msra.mxu0 0
        %2802 = vmatprep.subr.bf16.mxu0 0
        %2803 = vmatpush1.bf16.msra.mxu0 0
        %2804 = vmatprep.subr.bf16.mxu0 0
        %2805 = vmatpush1.bf16.msra.mxu0 0
        %2806 = vmatprep.subr.bf16.mxu0 0
        %2807 = vmatpush1.bf16.msra.mxu0 0
        %2808 = vmatprep.subr.bf16.mxu0 0
        %2809 = vmatpush1.bf16.msra.mxu0 0
        %2810 = vmatprep.subr.bf16.mxu0 0
        %2811 = vmatpush1.bf16.msra.mxu0 0
        %2812 = vmatprep.subr.bf16.mxu0 0
        %2813 = vmatpush1.bf16.msra.mxu0 0
        %2814 = vmatprep.mubr.bf16.mxu0 0
        %2815 = vmatmul.mubr.bf16.gmra.mrb[0].mxu0 %v2780
        %v2816 = vpop.f32.mrb[0].mxu0
        %v2817 = vadd.f32 %v2773, %v2816
        %v2818 = vpop.f32.mrb[0].mxu0
        %v2819 = vadd.f32 %v2775, %v2818
        %v2820 = vpop.f32.mrb[0].mxu0
        %v2821 = vpop.f32.mrb[0].mxu0
        %2822 = vdwg.mxu0
        %v2823 = vadd.f32 %v2718, %v2817
        %v2824 = vadd.f32 %v2719, %v2819
        %v2825 = vmax.f32 %v2823, %v2824
        %v2826 = vmax.f32 %v2553, %v2825
        %v2827 = vadd.f32 %v2826, %v175
        %v2828 = vmax.f32 %v2827, 0.0
        %v2829 = vpack.c.bf16 %v2828, %v2828
        %s2830 = scalar_lea.vmem %s163, 12 [#allocation2]
        %2831 = vst [vmem:[%s2830] sm:$0xf] %v2829
        %v2832 = vld [vmem:[%s2424] sm:$0xf]
        %v2833 = vld [vmem:[%s2424 + $0x4] sm:$0x1]
        %v2834 = vld [vmem:[%s1] sm:$0xff]
        %v2835 = vld [vmem:[%s180] sm:$0xff]
        %v2838 = vunpack.c.l.b16 %v2832
        %v2839 = vunpack.c.l.b16 %v2833
        %v2840 = vpack.c.b16 %v2839, %v2838
        %v2842 = vshrl.u32 %v2840, 16
        %v2844 = vshll.u32 %v2840, 16
        %v2846 = vrot.slane %v2844, 1
        %v2847 = vor.u32 %v2842, %v2846
        %v2849 = vunpack.c.l.b16 %v2835
        %v2850 = vunpack.c.h.b16 %v2835
        %v2851 = vpack.c.b16 %v2849, %v2849
        %v2852 = vpack.c.b16 %v2850, %v2850
        %v2854 = vsel %vm199, %v2847, 0
        %v2857 = vsel %vm203, %v2851, 0
        %v2860 = vsel %vm203, %v2852, 0
        %2862 = vmatprep.subr.bf16.mxu0 %v2860
        %2863 = vmatpush1.bf16.msra.mxu0 %v2857
        %2864 = vmatprep.subr.bf16.mxu0 0
        %2865 = vmatpush1.bf16.msra.mxu0 0
        %2866 = vmatprep.subr.bf16.mxu0 0
        %2867 = vmatpush1.bf16.msra.mxu0 0
        %2868 = vmatprep.subr.bf16.mxu0 0
        %2869 = vmatpush1.bf16.msra.mxu0 0
        %2870 = vmatprep.subr.bf16.mxu0 0
        %2871 = vmatpush1.bf16.msra.mxu0 0
        %2872 = vmatprep.subr.bf16.mxu0 0
        %2873 = vmatpush1.bf16.msra.mxu0 0
        %2874 = vmatprep.subr.bf16.mxu0 0
        %2875 = vmatpush1.bf16.msra.mxu0 0
        %2876 = vmatprep.subr.bf16.mxu0 0
        %2877 = vmatpush1.bf16.msra.mxu0 0
        %2878 = vmatprep.subr.bf16.mxu0 0
        %2879 = vmatpush1.bf16.msra.mxu0 0
        %2880 = vmatprep.subr.bf16.mxu0 0
        %2881 = vmatpush1.bf16.msra.mxu0 0
        %2882 = vmatprep.subr.bf16.mxu0 0
        %2883 = vmatpush1.bf16.msra.mxu0 0
        %2884 = vmatprep.subr.bf16.mxu0 0
        %2885 = vmatpush1.bf16.msra.mxu0 0
        %2886 = vmatprep.subr.bf16.mxu0 0
        %2887 = vmatpush1.bf16.msra.mxu0 0
        %2888 = vmatprep.subr.bf16.mxu0 0
        %2889 = vmatpush1.bf16.msra.mxu0 0
        %2890 = vmatprep.subr.bf16.mxu0 0
        %2891 = vmatpush1.bf16.msra.mxu0 0
        %2892 = vmatprep.subr.bf16.mxu0 0
        %2893 = vmatpush1.bf16.msra.mxu0 0
        %2894 = vmatprep.mubr.bf16.mxu0 0
        %2895 = vmatmul.mubr.bf16.gmra.mrb[0].mxu0 %v2854
        %v2896 = vpop.f32.mrb[0].mxu0
        %v2897 = vadd.f32 0.0, %v2896
        %v2898 = vpop.f32.mrb[0].mxu0
        %v2899 = vadd.f32 0.0, %v2898
        %v2900 = vpop.f32.mrb[0].mxu0
        %v2901 = vpop.f32.mrb[0].mxu0
        %2902 = vdwg.mxu0
        %v2904 = vunpack.c.l.b16 %v2834
        %v2905 = vunpack.c.h.b16 %v2834
        %v2906 = vpack.c.b16 %v2904, %v2904
        %v2907 = vpack.c.b16 %v2905, %v2905
        %v2909 = vsel %vm199, %v2832, 0
        %v2912 = vsel %vm203, %v2906, 0
        %v2915 = vsel %vm203, %v2907, 0
        %2917 = vmatprep.subr.bf16.mxu0 %v2915
        %2918 = vmatpush1.bf16.msra.mxu0 %v2912
        %2919 = vmatprep.subr.bf16.mxu0 0
        %2920 = vmatpush1.bf16.msra.mxu0 0
        %2921 = vmatprep.subr.bf16.mxu0 0
        %2922 = vmatpush1.bf16.msra.mxu0 0
        %2923 = vmatprep.subr.bf16.mxu0 0
        %2924 = vmatpush1.bf16.msra.mxu0 0
        %2925 = vmatprep.subr.bf16.mxu0 0
        %2926 = vmatpush1.bf16.msra.mxu0 0
        %2927 = vmatprep.subr.bf16.mxu0 0
        %2928 = vmatpush1.bf16.msra.mxu0 0
        %2929 = vmatprep.subr.bf16.mxu0 0
        %2930 = vmatpush1.bf16.msra.mxu0 0
        %2931 = vmatprep.subr.bf16.mxu0 0
        %2932 = vmatpush1.bf16.msra.mxu0 0
        %2933 = vmatprep.subr.bf16.mxu0 0
        %2934 = vmatpush1.bf16.msra.mxu0 0
        %2935 = vmatprep.subr.bf16.mxu0 0
        %2936 = vmatpush1.bf16.msra.mxu0 0
        %2937 = vmatprep.subr.bf16.mxu0 0
        %2938 = vmatpush1.bf16.msra.mxu0 0
        %2939 = vmatprep.subr.bf16.mxu0 0
        %2940 = vmatpush1.bf16.msra.mxu0 0
        %2941 = vmatprep.subr.bf16.mxu0 0
        %2942 = vmatpush1.bf16.msra.mxu0 0
        %2943 = vmatprep.subr.bf16.mxu0 0
        %2944 = vmatpush1.bf16.msra.mxu0 0
        %2945 = vmatprep.subr.bf16.mxu0 0
        %2946 = vmatpush1.bf16.msra.mxu0 0
        %2947 = vmatprep.subr.bf16.mxu0 0
        %2948 = vmatpush1.bf16.msra.mxu0 0
        %2949 = vmatprep.mubr.bf16.mxu0 0
        %2950 = vmatmul.mubr.bf16.gmra.mrb[0].mxu0 %v2909
        %v2951 = vpop.f32.mrb[0].mxu0
        %v2952 = vadd.f32 %v2897, %v2951
        %v2953 = vpop.f32.mrb[0].mxu0
        %v2954 = vadd.f32 %v2899, %v2953
        %v2955 = vpop.f32.mrb[0].mxu0
        %v2956 = vpop.f32.mrb[0].mxu0
        %2957 = vdwg.mxu0
        %v2958 = vld [vmem:[%s2720] sm:$0xf]
        %v2959 = vld [vmem:[%s2720 + $0x4] sm:$0x1]
        %v2960 = vld [vmem:[%s309] sm:$0xff]
        %v2961 = vld [vmem:[%s311] sm:$0xff]
        %v2964 = vunpack.c.l.b16 %v2958
        %v2965 = vunpack.c.l.b16 %v2959
        %v2966 = vpack.c.b16 %v2965, %v2964
        %v2968 = vshrl.u32 %v2966, 16
        %v2970 = vshll.u32 %v2966, 16
        %v2972 = vrot.slane %v2970, 1
        %v2973 = vor.u32 %v2968, %v2972
        %v2975 = vunpack.c.l.b16 %v2961
        %v2976 = vunpack.c.h.b16 %v2961
        %v2977 = vpack.c.b16 %v2975, %v2975
        %v2978 = vpack.c.b16 %v2976, %v2976
        %v2980 = vsel %vm199, %v2973, 0
        %v2983 = vsel %vm203, %v2977, 0
        %v2986 = vsel %vm203, %v2978, 0
        %2988 = vmatprep.subr.bf16.mxu0 %v2986
        %2989 = vmatpush1.bf16.msra.mxu0 %v2983
        %2990 = vmatprep.subr.bf16.mxu0 0
        %2991 = vmatpush1.bf16.msra.mxu0 0
        %2992 = vmatprep.subr.bf16.mxu0 0
        %2993 = vmatpush1.bf16.msra.mxu0 0
        %2994 = vmatprep.subr.bf16.mxu0 0
        %2995 = vmatpush1.bf16.msra.mxu0 0
        %2996 = vmatprep.subr.bf16.mxu0 0
        %2997 = vmatpush1.bf16.msra.mxu0 0
        %2998 = vmatprep.subr.bf16.mxu0 0
        %2999 = vmatpush1.bf16.msra.mxu0 0
        %3000 = vmatprep.subr.bf16.mxu0 0
        %3001 = vmatpush1.bf16.msra.mxu0 0
        %3002 = vmatprep.subr.bf16.mxu0 0
        %3003 = vmatpush1.bf16.msra.mxu0 0
        %3004 = vmatprep.subr.bf16.mxu0 0
        %3005 = vmatpush1.bf16.msra.mxu0 0
        %3006 = vmatprep.subr.bf16.mxu0 0
        %3007 = vmatpush1.bf16.msra.mxu0 0
        %3008 = vmatprep.subr.bf16.mxu0 0
        %3009 = vmatpush1.bf16.msra.mxu0 0
        %3010 = vmatprep.subr.bf16.mxu0 0
        %3011 = vmatpush1.bf16.msra.mxu0 0
        %3012 = vmatprep.subr.bf16.mxu0 0
        %3013 = vmatpush1.bf16.msra.mxu0 0
        %3014 = vmatprep.subr.bf16.mxu0 0
        %3015 = vmatpush1.bf16.msra.mxu0 0
        %3016 = vmatprep.subr.bf16.mxu0 0
        %3017 = vmatpush1.bf16.msra.mxu0 0
        %3018 = vmatprep.subr.bf16.mxu0 0
        %3019 = vmatpush1.bf16.msra.mxu0 0
        %3020 = vmatprep.mubr.bf16.mxu0 0
        %3021 = vmatmul.mubr.bf16.gmra.mrb[0].mxu0 %v2980
        %v3022 = vpop.f32.mrb[0].mxu0
        %v3023 = vadd.f32 0.0, %v3022
        %v3024 = vpop.f32.mrb[0].mxu0
        %v3025 = vadd.f32 0.0, %v3024
        %v3026 = vpop.f32.mrb[0].mxu0
        %v3027 = vpop.f32.mrb[0].mxu0
        %3028 = vdwg.mxu0
        %v3030 = vunpack.c.l.b16 %v2960
        %v3031 = vunpack.c.h.b16 %v2960
        %v3032 = vpack.c.b16 %v3030, %v3030
        %v3033 = vpack.c.b16 %v3031, %v3031
        %v3035 = vsel %vm199, %v2958, 0
        %v3038 = vsel %vm203, %v3032, 0
        %v3041 = vsel %vm203, %v3033, 0
        %3043 = vmatprep.subr.bf16.mxu0 %v3041
        %3044 = vmatpush1.bf16.msra.mxu0 %v3038
        %3045 = vmatprep.subr.bf16.mxu0 0
        %3046 = vmatpush1.bf16.msra.mxu0 0
        %3047 = vmatprep.subr.bf16.mxu0 0
        %3048 = vmatpush1.bf16.msra.mxu0 0
        %3049 = vmatprep.subr.bf16.mxu0 0
        %3050 = vmatpush1.bf16.msra.mxu0 0
        %3051 = vmatprep.subr.bf16.mxu0 0
        %3052 = vmatpush1.bf16.msra.mxu0 0
        %3053 = vmatprep.subr.bf16.mxu0 0
        %3054 = vmatpush1.bf16.msra.mxu0 0
        %3055 = vmatprep.subr.bf16.mxu0 0
        %3056 = vmatpush1.bf16.msra.mxu0 0
        %3057 = vmatprep.subr.bf16.mxu0 0
        %3058 = vmatpush1.bf16.msra.mxu0 0
        %3059 = vmatprep.subr.bf16.mxu0 0
        %3060 = vmatpush1.bf16.msra.mxu0 0
        %3061 = vmatprep.subr.bf16.mxu0 0
        %3062 = vmatpush1.bf16.msra.mxu0 0
        %3063 = vmatprep.subr.bf16.mxu0 0
        %3064 = vmatpush1.bf16.msra.mxu0 0
        %3065 = vmatprep.subr.bf16.mxu0 0
        %3066 = vmatpush1.bf16.msra.mxu0 0
        %3067 = vmatprep.subr.bf16.mxu0 0
        %3068 = vmatpush1.bf16.msra.mxu0 0
        %3069 = vmatprep.subr.bf16.mxu0 0
        %3070 = vmatpush1.bf16.msra.mxu0 0
        %3071 = vmatprep.subr.bf16.mxu0 0
        %3072 = vmatpush1.bf16.msra.mxu0 0
        %3073 = vmatprep.subr.bf16.mxu0 0
        %3074 = vmatpush1.bf16.msra.mxu0 0
        %3075 = vmatprep.mubr.bf16.mxu0 0
        %3076 = vmatmul.mubr.bf16.gmra.mrb[0].mxu0 %v3035
        %v3077 = vpop.f32.mrb[0].mxu0
        %v3078 = vadd.f32 %v3023, %v3077
        %v3079 = vpop.f32.mrb[0].mxu0
        %v3080 = vadd.f32 %v3025, %v3079
        %v3081 = vpop.f32.mrb[0].mxu0
        %v3082 = vpop.f32.mrb[0].mxu0
        %3083 = vdwg.mxu0
        %v3084 = vadd.f32 %v2952, %v3078
        %v3085 = vadd.f32 %v2954, %v3080
        %s3086 = scalar_lea.vmem %s168, 80
        %v3087 = vld [vmem:[%s3086] sm:$0xf]
        %v3088 = vld [vmem:[%s3086 + $0x4] sm:$0x1]
        %v3089 = vld [vmem:[%s440] sm:$0xff]
        %v3090 = vld [vmem:[%s442] sm:$0xff]
        %v3093 = vunpack.c.l.b16 %v3087
        %v3094 = vunpack.c.l.b16 %v3088
        %v3095 = vpack.c.b16 %v3094, %v3093
        %v3097 = vshrl.u32 %v3095, 16
        %v3099 = vshll.u32 %v3095, 16
        %v3101 = vrot.slane %v3099, 1
        %v3102 = vor.u32 %v3097, %v3101
        %v3104 = vunpack.c.l.b16 %v3090
        %v3105 = vunpack.c.h.b16 %v3090
        %v3106 = vpack.c.b16 %v3104, %v3104
        %v3107 = vpack.c.b16 %v3105, %v3105
        %v3109 = vsel %vm199, %v3102, 0
        %v3112 = vsel %vm203, %v3106, 0
        %v3115 = vsel %vm203, %v3107, 0
        %3117 = vmatprep.subr.bf16.mxu0 %v3115
        %3118 = vmatpush1.bf16.msra.mxu0 %v3112
        %3119 = vmatprep.subr.bf16.mxu0 0
        %3120 = vmatpush1.bf16.msra.mxu0 0
        %3121 = vmatprep.subr.bf16.mxu0 0
        %3122 = vmatpush1.bf16.msra.mxu0 0
        %3123 = vmatprep.subr.bf16.mxu0 0
        %3124 = vmatpush1.bf16.msra.mxu0 0
        %3125 = vmatprep.subr.bf16.mxu0 0
        %3126 = vmatpush1.bf16.msra.mxu0 0
        %3127 = vmatprep.subr.bf16.mxu0 0
        %3128 = vmatpush1.bf16.msra.mxu0 0
        %3129 = vmatprep.subr.bf16.mxu0 0
        %3130 = vmatpush1.bf16.msra.mxu0 0
        %3131 = vmatprep.subr.bf16.mxu0 0
        %3132 = vmatpush1.bf16.msra.mxu0 0
        %3133 = vmatprep.subr.bf16.mxu0 0
        %3134 = vmatpush1.bf16.msra.mxu0 0
        %3135 = vmatprep.subr.bf16.mxu0 0
        %3136 = vmatpush1.bf16.msra.mxu0 0
        %3137 = vmatprep.subr.bf16.mxu0 0
        %3138 = vmatpush1.bf16.msra.mxu0 0
        %3139 = vmatprep.subr.bf16.mxu0 0
        %3140 = vmatpush1.bf16.msra.mxu0 0
        %3141 = vmatprep.subr.bf16.mxu0 0
        %3142 = vmatpush1.bf16.msra.mxu0 0
        %3143 = vmatprep.subr.bf16.mxu0 0
        %3144 = vmatpush1.bf16.msra.mxu0 0
        %3145 = vmatprep.subr.bf16.mxu0 0
        %3146 = vmatpush1.bf16.msra.mxu0 0
        %3147 = vmatprep.subr.bf16.mxu0 0
        %3148 = vmatpush1.bf16.msra.mxu0 0
        %3149 = vmatprep.mubr.bf16.mxu0 0
        %3150 = vmatmul.mubr.bf16.gmra.mrb[0].mxu0 %v3109
        %v3151 = vpop.f32.mrb[0].mxu0
        %v3152 = vadd.f32 0.0, %v3151
        %v3153 = vpop.f32.mrb[0].mxu0
        %v3154 = vadd.f32 0.0, %v3153
        %v3155 = vpop.f32.mrb[0].mxu0
        %v3156 = vpop.f32.mrb[0].mxu0
        %3157 = vdwg.mxu0
        %v3159 = vunpack.c.l.b16 %v3089
        %v3160 = vunpack.c.h.b16 %v3089
        %v3161 = vpack.c.b16 %v3159, %v3159
        %v3162 = vpack.c.b16 %v3160, %v3160
        %v3164 = vsel %vm199, %v3087, 0
        %v3167 = vsel %vm203, %v3161, 0
        %v3170 = vsel %vm203, %v3162, 0
        %3172 = vmatprep.subr.bf16.mxu0 %v3170
        %3173 = vmatpush1.bf16.msra.mxu0 %v3167
        %3174 = vmatprep.subr.bf16.mxu0 0
        %3175 = vmatpush1.bf16.msra.mxu0 0
        %3176 = vmatprep.subr.bf16.mxu0 0
        %3177 = vmatpush1.bf16.msra.mxu0 0
        %3178 = vmatprep.subr.bf16.mxu0 0
        %3179 = vmatpush1.bf16.msra.mxu0 0
        %3180 = vmatprep.subr.bf16.mxu0 0
        %3181 = vmatpush1.bf16.msra.mxu0 0
        %3182 = vmatprep.subr.bf16.mxu0 0
        %3183 = vmatpush1.bf16.msra.mxu0 0
        %3184 = vmatprep.subr.bf16.mxu0 0
        %3185 = vmatpush1.bf16.msra.mxu0 0
        %3186 = vmatprep.subr.bf16.mxu0 0
        %3187 = vmatpush1.bf16.msra.mxu0 0
        %3188 = vmatprep.subr.bf16.mxu0 0
        %3189 = vmatpush1.bf16.msra.mxu0 0
        %3190 = vmatprep.subr.bf16.mxu0 0
        %3191 = vmatpush1.bf16.msra.mxu0 0
        %3192 = vmatprep.subr.bf16.mxu0 0
        %3193 = vmatpush1.bf16.msra.mxu0 0
        %3194 = vmatprep.subr.bf16.mxu0 0
        %3195 = vmatpush1.bf16.msra.mxu0 0
        %3196 = vmatprep.subr.bf16.mxu0 0
        %3197 = vmatpush1.bf16.msra.mxu0 0
        %3198 = vmatprep.subr.bf16.mxu0 0
        %3199 = vmatpush1.bf16.msra.mxu0 0
        %3200 = vmatprep.subr.bf16.mxu0 0
        %3201 = vmatpush1.bf16.msra.mxu0 0
        %3202 = vmatprep.subr.bf16.mxu0 0
        %3203 = vmatpush1.bf16.msra.mxu0 0
        %3204 = vmatprep.mubr.bf16.mxu0 0
        %3205 = vmatmul.mubr.bf16.gmra.mrb[0].mxu0 %v3164
        %v3206 = vpop.f32.mrb[0].mxu0
        %v3207 = vadd.f32 %v3152, %v3206
        %v3208 = vpop.f32.mrb[0].mxu0
        %v3209 = vadd.f32 %v3154, %v3208
        %v3210 = vpop.f32.mrb[0].mxu0
        %v3211 = vpop.f32.mrb[0].mxu0
        %3212 = vdwg.mxu0
        %v3213 = vadd.f32 %v3084, %v3207
        %v3214 = vadd.f32 %v3085, %v3209
        %v3215 = vmax.f32 %v3213, %v3214
        %3216 = vmatprep.subr.bf16.mxu0 %v2860
        %3217 = vmatpush1.bf16.msra.mxu0 %v2857
        %3218 = vmatprep.subr.bf16.mxu0 0
        %3219 = vmatpush1.bf16.msra.mxu0 0
        %3220 = vmatprep.subr.bf16.mxu0 0
        %3221 = vmatpush1.bf16.msra.mxu0 0
        %3222 = vmatprep.subr.bf16.mxu0 0
        %3223 = vmatpush1.bf16.msra.mxu0 0
        %3224 = vmatprep.subr.bf16.mxu0 0
        %3225 = vmatpush1.bf16.msra.mxu0 0
        %3226 = vmatprep.subr.bf16.mxu0 0
        %3227 = vmatpush1.bf16.msra.mxu0 0
        %3228 = vmatprep.subr.bf16.mxu0 0
        %3229 = vmatpush1.bf16.msra.mxu0 0
        %3230 = vmatprep.subr.bf16.mxu0 0
        %3231 = vmatpush1.bf16.msra.mxu0 0
        %3232 = vmatprep.subr.bf16.mxu0 0
        %3233 = vmatpush1.bf16.msra.mxu0 0
        %3234 = vmatprep.subr.bf16.mxu0 0
        %3235 = vmatpush1.bf16.msra.mxu0 0
        %3236 = vmatprep.subr.bf16.mxu0 0
        %3237 = vmatpush1.bf16.msra.mxu0 0
        %3238 = vmatprep.subr.bf16.mxu0 0
        %3239 = vmatpush1.bf16.msra.mxu0 0
        %3240 = vmatprep.subr.bf16.mxu0 0
        %3241 = vmatpush1.bf16.msra.mxu0 0
        %3242 = vmatprep.subr.bf16.mxu0 0
        %3243 = vmatpush1.bf16.msra.mxu0 0
        %3244 = vmatprep.subr.bf16.mxu0 0
        %3245 = vmatpush1.bf16.msra.mxu0 0
        %3246 = vmatprep.subr.bf16.mxu0 0
        %3247 = vmatpush1.bf16.msra.mxu0 0
        %3248 = vmatprep.mubr.bf16.mxu0 0
        %3249 = vmatmul.mubr.bf16.gmra.mrb[0].mxu0 %v2980
        %v3250 = vpop.f32.mrb[0].mxu0
        %v3251 = vadd.f32 0.0, %v3250
        %v3252 = vpop.f32.mrb[0].mxu0
        %v3253 = vadd.f32 0.0, %v3252
        %v3254 = vpop.f32.mrb[0].mxu0
        %v3255 = vpop.f32.mrb[0].mxu0
        %3256 = vdwg.mxu0
        %3257 = vmatprep.subr.bf16.mxu0 %v2915
        %3258 = vmatpush1.bf16.msra.mxu0 %v2912
        %3259 = vmatprep.subr.bf16.mxu0 0
        %3260 = vmatpush1.bf16.msra.mxu0 0
        %3261 = vmatprep.subr.bf16.mxu0 0
        %3262 = vmatpush1.bf16.msra.mxu0 0
        %3263 = vmatprep.subr.bf16.mxu0 0
        %3264 = vmatpush1.bf16.msra.mxu0 0
        %3265 = vmatprep.subr.bf16.mxu0 0
        %3266 = vmatpush1.bf16.msra.mxu0 0
        %3267 = vmatprep.subr.bf16.mxu0 0
        %3268 = vmatpush1.bf16.msra.mxu0 0
        %3269 = vmatprep.subr.bf16.mxu0 0
        %3270 = vmatpush1.bf16.msra.mxu0 0
        %3271 = vmatprep.subr.bf16.mxu0 0
        %3272 = vmatpush1.bf16.msra.mxu0 0
        %3273 = vmatprep.subr.bf16.mxu0 0
        %3274 = vmatpush1.bf16.msra.mxu0 0
        %3275 = vmatprep.subr.bf16.mxu0 0
        %3276 = vmatpush1.bf16.msra.mxu0 0
        %3277 = vmatprep.subr.bf16.mxu0 0
        %3278 = vmatpush1.bf16.msra.mxu0 0
        %3279 = vmatprep.subr.bf16.mxu0 0
        %3280 = vmatpush1.bf16.msra.mxu0 0
        %3281 = vmatprep.subr.bf16.mxu0 0
        %3282 = vmatpush1.bf16.msra.mxu0 0
        %3283 = vmatprep.subr.bf16.mxu0 0
        %3284 = vmatpush1.bf16.msra.mxu0 0
        %3285 = vmatprep.subr.bf16.mxu0 0
        %3286 = vmatpush1.bf16.msra.mxu0 0
        %3287 = vmatprep.subr.bf16.mxu0 0
        %3288 = vmatpush1.bf16.msra.mxu0 0
        %3289 = vmatprep.mubr.bf16.mxu0 0
        %3290 = vmatmul.mubr.bf16.gmra.mrb[0].mxu0 %v3035
        %v3291 = vpop.f32.mrb[0].mxu0
        %v3292 = vadd.f32 %v3251, %v3291
        %v3293 = vpop.f32.mrb[0].mxu0
        %v3294 = vadd.f32 %v3253, %v3293
        %v3295 = vpop.f32.mrb[0].mxu0
        %v3296 = vpop.f32.mrb[0].mxu0
        %3297 = vdwg.mxu0
        %3298 = vmatprep.subr.bf16.mxu0 %v2986
        %3299 = vmatpush1.bf16.msra.mxu0 %v2983
        %3300 = vmatprep.subr.bf16.mxu0 0
        %3301 = vmatpush1.bf16.msra.mxu0 0
        %3302 = vmatprep.subr.bf16.mxu0 0
        %3303 = vmatpush1.bf16.msra.mxu0 0
        %3304 = vmatprep.subr.bf16.mxu0 0
        %3305 = vmatpush1.bf16.msra.mxu0 0
        %3306 = vmatprep.subr.bf16.mxu0 0
        %3307 = vmatpush1.bf16.msra.mxu0 0
        %3308 = vmatprep.subr.bf16.mxu0 0
        %3309 = vmatpush1.bf16.msra.mxu0 0
        %3310 = vmatprep.subr.bf16.mxu0 0
        %3311 = vmatpush1.bf16.msra.mxu0 0
        %3312 = vmatprep.subr.bf16.mxu0 0
        %3313 = vmatpush1.bf16.msra.mxu0 0
        %3314 = vmatprep.subr.bf16.mxu0 0
        %3315 = vmatpush1.bf16.msra.mxu0 0
        %3316 = vmatprep.subr.bf16.mxu0 0
        %3317 = vmatpush1.bf16.msra.mxu0 0
        %3318 = vmatprep.subr.bf16.mxu0 0
        %3319 = vmatpush1.bf16.msra.mxu0 0
        %3320 = vmatprep.subr.bf16.mxu0 0
        %3321 = vmatpush1.bf16.msra.mxu0 0
        %3322 = vmatprep.subr.bf16.mxu0 0
        %3323 = vmatpush1.bf16.msra.mxu0 0
        %3324 = vmatprep.subr.bf16.mxu0 0
        %3325 = vmatpush1.bf16.msra.mxu0 0
        %3326 = vmatprep.subr.bf16.mxu0 0
        %3327 = vmatpush1.bf16.msra.mxu0 0
        %3328 = vmatprep.subr.bf16.mxu0 0
        %3329 = vmatpush1.bf16.msra.mxu0 0
        %3330 = vmatprep.mubr.bf16.mxu0 0
        %3331 = vmatmul.mubr.bf16.gmra.mrb[0].mxu0 %v3109
        %v3332 = vpop.f32.mrb[0].mxu0
        %v3333 = vadd.f32 0.0, %v3332
        %v3334 = vpop.f32.mrb[0].mxu0
        %v3335 = vadd.f32 0.0, %v3334
        %v3336 = vpop.f32.mrb[0].mxu0
        %v3337 = vpop.f32.mrb[0].mxu0
        %3338 = vdwg.mxu0
        %3339 = vmatprep.subr.bf16.mxu0 %v3041
        %3340 = vmatpush1.bf16.msra.mxu0 %v3038
        %3341 = vmatprep.subr.bf16.mxu0 0
        %3342 = vmatpush1.bf16.msra.mxu0 0
        %3343 = vmatprep.subr.bf16.mxu0 0
        %3344 = vmatpush1.bf16.msra.mxu0 0
        %3345 = vmatprep.subr.bf16.mxu0 0
        %3346 = vmatpush1.bf16.msra.mxu0 0
        %3347 = vmatprep.subr.bf16.mxu0 0
        %3348 = vmatpush1.bf16.msra.mxu0 0
        %3349 = vmatprep.subr.bf16.mxu0 0
        %3350 = vmatpush1.bf16.msra.mxu0 0
        %3351 = vmatprep.subr.bf16.mxu0 0
        %3352 = vmatpush1.bf16.msra.mxu0 0
        %3353 = vmatprep.subr.bf16.mxu0 0
        %3354 = vmatpush1.bf16.msra.mxu0 0
        %3355 = vmatprep.subr.bf16.mxu0 0
        %3356 = vmatpush1.bf16.msra.mxu0 0
        %3357 = vmatprep.subr.bf16.mxu0 0
        %3358 = vmatpush1.bf16.msra.mxu0 0
        %3359 = vmatprep.subr.bf16.mxu0 0
        %3360 = vmatpush1.bf16.msra.mxu0 0
        %3361 = vmatprep.subr.bf16.mxu0 0
        %3362 = vmatpush1.bf16.msra.mxu0 0
        %3363 = vmatprep.subr.bf16.mxu0 0
        %3364 = vmatpush1.bf16.msra.mxu0 0
        %3365 = vmatprep.subr.bf16.mxu0 0
        %3366 = vmatpush1.bf16.msra.mxu0 0
        %3367 = vmatprep.subr.bf16.mxu0 0
        %3368 = vmatpush1.bf16.msra.mxu0 0
        %3369 = vmatprep.subr.bf16.mxu0 0
        %3370 = vmatpush1.bf16.msra.mxu0 0
        %3371 = vmatprep.mubr.bf16.mxu0 0
        %3372 = vmatmul.mubr.bf16.gmra.mrb[0].mxu0 %v3164
        %v3373 = vpop.f32.mrb[0].mxu0
        %v3374 = vadd.f32 %v3333, %v3373
        %v3375 = vpop.f32.mrb[0].mxu0
        %v3376 = vadd.f32 %v3335, %v3375
        %v3377 = vpop.f32.mrb[0].mxu0
        %v3378 = vpop.f32.mrb[0].mxu0
        %3379 = vdwg.mxu0
        %v3380 = vadd.f32 %v3292, %v3374
        %v3381 = vadd.f32 %v3294, %v3376
        %s3382 = scalar_lea.vmem %s168, 88
        %v3383 = vld [vmem:[%s3382] sm:$0xf]
        %v3384 = vld [vmem:[%s3382 + $0x4] sm:$0x1]
        %v3387 = vunpack.c.l.b16 %v3383
        %v3388 = vunpack.c.l.b16 %v3384
        %v3389 = vpack.c.b16 %v3388, %v3387
        %v3391 = vshrl.u32 %v3389, 16
        %v3393 = vshll.u32 %v3389, 16
        %v3395 = vrot.slane %v3393, 1
        %v3396 = vor.u32 %v3391, %v3395
        %v3398 = vsel %vm199, %v3396, 0
        %3400 = vmatprep.subr.bf16.mxu0 %v3115
        %3401 = vmatpush1.bf16.msra.mxu0 %v3112
        %3402 = vmatprep.subr.bf16.mxu0 0
        %3403 = vmatpush1.bf16.msra.mxu0 0
        %3404 = vmatprep.subr.bf16.mxu0 0
        %3405 = vmatpush1.bf16.msra.mxu0 0
        %3406 = vmatprep.subr.bf16.mxu0 0
        %3407 = vmatpush1.bf16.msra.mxu0 0
        %3408 = vmatprep.subr.bf16.mxu0 0
        %3409 = vmatpush1.bf16.msra.mxu0 0
        %3410 = vmatprep.subr.bf16.mxu0 0
        %3411 = vmatpush1.bf16.msra.mxu0 0
        %3412 = vmatprep.subr.bf16.mxu0 0
        %3413 = vmatpush1.bf16.msra.mxu0 0
        %3414 = vmatprep.subr.bf16.mxu0 0
        %3415 = vmatpush1.bf16.msra.mxu0 0
        %3416 = vmatprep.subr.bf16.mxu0 0
        %3417 = vmatpush1.bf16.msra.mxu0 0
        %3418 = vmatprep.subr.bf16.mxu0 0
        %3419 = vmatpush1.bf16.msra.mxu0 0
        %3420 = vmatprep.subr.bf16.mxu0 0
        %3421 = vmatpush1.bf16.msra.mxu0 0
        %3422 = vmatprep.subr.bf16.mxu0 0
        %3423 = vmatpush1.bf16.msra.mxu0 0
        %3424 = vmatprep.subr.bf16.mxu0 0
        %3425 = vmatpush1.bf16.msra.mxu0 0
        %3426 = vmatprep.subr.bf16.mxu0 0
        %3427 = vmatpush1.bf16.msra.mxu0 0
        %3428 = vmatprep.subr.bf16.mxu0 0
        %3429 = vmatpush1.bf16.msra.mxu0 0
        %3430 = vmatprep.subr.bf16.mxu0 0
        %3431 = vmatpush1.bf16.msra.mxu0 0
        %3432 = vmatprep.mubr.bf16.mxu0 0
        %3433 = vmatmul.mubr.bf16.gmra.mrb[0].mxu0 %v3398
        %v3434 = vpop.f32.mrb[0].mxu0
        %v3435 = vadd.f32 0.0, %v3434
        %v3436 = vpop.f32.mrb[0].mxu0
        %v3437 = vadd.f32 0.0, %v3436
        %v3438 = vpop.f32.mrb[0].mxu0
        %v3439 = vpop.f32.mrb[0].mxu0
        %3440 = vdwg.mxu0
        %v3442 = vsel %vm199, %v3383, 0
        %3444 = vmatprep.subr.bf16.mxu0 %v3170
        %3445 = vmatpush1.bf16.msra.mxu0 %v3167
        %3446 = vmatprep.subr.bf16.mxu0 0
        %3447 = vmatpush1.bf16.msra.mxu0 0
        %3448 = vmatprep.subr.bf16.mxu0 0
        %3449 = vmatpush1.bf16.msra.mxu0 0
        %3450 = vmatprep.subr.bf16.mxu0 0
        %3451 = vmatpush1.bf16.msra.mxu0 0
        %3452 = vmatprep.subr.bf16.mxu0 0
        %3453 = vmatpush1.bf16.msra.mxu0 0
        %3454 = vmatprep.subr.bf16.mxu0 0
        %3455 = vmatpush1.bf16.msra.mxu0 0
        %3456 = vmatprep.subr.bf16.mxu0 0
        %3457 = vmatpush1.bf16.msra.mxu0 0
        %3458 = vmatprep.subr.bf16.mxu0 0
        %3459 = vmatpush1.bf16.msra.mxu0 0
        %3460 = vmatprep.subr.bf16.mxu0 0
        %3461 = vmatpush1.bf16.msra.mxu0 0
        %3462 = vmatprep.subr.bf16.mxu0 0
        %3463 = vmatpush1.bf16.msra.mxu0 0
        %3464 = vmatprep.subr.bf16.mxu0 0
        %3465 = vmatpush1.bf16.msra.mxu0 0
        %3466 = vmatprep.subr.bf16.mxu0 0
        %3467 = vmatpush1.bf16.msra.mxu0 0
        %3468 = vmatprep.subr.bf16.mxu0 0
        %3469 = vmatpush1.bf16.msra.mxu0 0
        %3470 = vmatprep.subr.bf16.mxu0 0
        %3471 = vmatpush1.bf16.msra.mxu0 0
        %3472 = vmatprep.subr.bf16.mxu0 0
        %3473 = vmatpush1.bf16.msra.mxu0 0
        %3474 = vmatprep.subr.bf16.mxu0 0
        %3475 = vmatpush1.bf16.msra.mxu0 0
        %3476 = vmatprep.mubr.bf16.mxu0 0
        %3477 = vmatmul.mubr.bf16.gmra.mrb[0].mxu0 %v3442
        %v3478 = vpop.f32.mrb[0].mxu0
        %v3479 = vadd.f32 %v3435, %v3478
        %v3480 = vpop.f32.mrb[0].mxu0
        %v3481 = vadd.f32 %v3437, %v3480
        %v3482 = vpop.f32.mrb[0].mxu0
        %v3483 = vpop.f32.mrb[0].mxu0
        %3484 = vdwg.mxu0
        %v3485 = vadd.f32 %v3380, %v3479
        %v3486 = vadd.f32 %v3381, %v3481
        %v3487 = vmax.f32 %v3485, %v3486
        %v3488 = vmax.f32 %v3215, %v3487
        %v3489 = vadd.f32 %v3488, %v175
        %v3490 = vmax.f32 %v3489, 0.0
        %v3491 = vpack.c.bf16 %v3490, %v3490
        %s3492 = scalar_lea.vmem %s163, 16 [#allocation2]
        %3493 = vst [vmem:[%s3492] sm:$0xf] %v3491
        %v3494 = vld [vmem:[%s3086] sm:$0xf]
        %v3495 = vld [vmem:[%s3086 + $0x4] sm:$0x1]
        %v3496 = vld [vmem:[%s1] sm:$0xff]
        %v3497 = vld [vmem:[%s180] sm:$0xff]
        %v3500 = vunpack.c.l.b16 %v3494
        %v3501 = vunpack.c.l.b16 %v3495
        %v3502 = vpack.c.b16 %v3501, %v3500
        %v3504 = vshrl.u32 %v3502, 16
        %v3506 = vshll.u32 %v3502, 16
        %v3508 = vrot.slane %v3506, 1
        %v3509 = vor.u32 %v3504, %v3508
        %v3511 = vunpack.c.l.b16 %v3497
        %v3512 = vunpack.c.h.b16 %v3497
        %v3513 = vpack.c.b16 %v3511, %v3511
        %v3514 = vpack.c.b16 %v3512, %v3512
        %v3516 = vsel %vm199, %v3509, 0
        %v3519 = vsel %vm203, %v3513, 0
        %v3522 = vsel %vm203, %v3514, 0
        %3524 = vmatprep.subr.bf16.mxu0 %v3522
        %3525 = vmatpush1.bf16.msra.mxu0 %v3519
        %3526 = vmatprep.subr.bf16.mxu0 0
        %3527 = vmatpush1.bf16.msra.mxu0 0
        %3528 = vmatprep.subr.bf16.mxu0 0
        %3529 = vmatpush1.bf16.msra.mxu0 0
        %3530 = vmatprep.subr.bf16.mxu0 0
        %3531 = vmatpush1.bf16.msra.mxu0 0
        %3532 = vmatprep.subr.bf16.mxu0 0
        %3533 = vmatpush1.bf16.msra.mxu0 0
        %3534 = vmatprep.subr.bf16.mxu0 0
        %3535 = vmatpush1.bf16.msra.mxu0 0
        %3536 = vmatprep.subr.bf16.mxu0 0
        %3537 = vmatpush1.bf16.msra.mxu0 0
        %3538 = vmatprep.subr.bf16.mxu0 0
        %3539 = vmatpush1.bf16.msra.mxu0 0
        %3540 = vmatprep.subr.bf16.mxu0 0
        %3541 = vmatpush1.bf16.msra.mxu0 0
        %3542 = vmatprep.subr.bf16.mxu0 0
        %3543 = vmatpush1.bf16.msra.mxu0 0
        %3544 = vmatprep.subr.bf16.mxu0 0
        %3545 = vmatpush1.bf16.msra.mxu0 0
        %3546 = vmatprep.subr.bf16.mxu0 0
        %3547 = vmatpush1.bf16.msra.mxu0 0
        %3548 = vmatprep.subr.bf16.mxu0 0
        %3549 = vmatpush1.bf16.msra.mxu0 0
        %3550 = vmatprep.subr.bf16.mxu0 0
        %3551 = vmatpush1.bf16.msra.mxu0 0
        %3552 = vmatprep.subr.bf16.mxu0 0
        %3553 = vmatpush1.bf16.msra.mxu0 0
        %3554 = vmatprep.subr.bf16.mxu0 0
        %3555 = vmatpush1.bf16.msra.mxu0 0
        %3556 = vmatprep.mubr.bf16.mxu0 0
        %3557 = vmatmul.mubr.bf16.gmra.mrb[0].mxu0 %v3516
        %v3558 = vpop.f32.mrb[0].mxu0
        %v3559 = vadd.f32 0.0, %v3558
        %v3560 = vpop.f32.mrb[0].mxu0
        %v3561 = vadd.f32 0.0, %v3560
        %v3562 = vpop.f32.mrb[0].mxu0
        %v3563 = vpop.f32.mrb[0].mxu0
        %3564 = vdwg.mxu0
        %v3566 = vunpack.c.l.b16 %v3496
        %v3567 = vunpack.c.h.b16 %v3496
        %v3568 = vpack.c.b16 %v3566, %v3566
        %v3569 = vpack.c.b16 %v3567, %v3567
        %v3571 = vsel %vm199, %v3494, 0
        %v3574 = vsel %vm203, %v3568, 0
        %v3577 = vsel %vm203, %v3569, 0
        %3579 = vmatprep.subr.bf16.mxu0 %v3577
        %3580 = vmatpush1.bf16.msra.mxu0 %v3574
        %3581 = vmatprep.subr.bf16.mxu0 0
        %3582 = vmatpush1.bf16.msra.mxu0 0
        %3583 = vmatprep.subr.bf16.mxu0 0
        %3584 = vmatpush1.bf16.msra.mxu0 0
        %3585 = vmatprep.subr.bf16.mxu0 0
        %3586 = vmatpush1.bf16.msra.mxu0 0
        %3587 = vmatprep.subr.bf16.mxu0 0
        %3588 = vmatpush1.bf16.msra.mxu0 0
        %3589 = vmatprep.subr.bf16.mxu0 0
        %3590 = vmatpush1.bf16.msra.mxu0 0
        %3591 = vmatprep.subr.bf16.mxu0 0
        %3592 = vmatpush1.bf16.msra.mxu0 0
        %3593 = vmatprep.subr.bf16.mxu0 0
        %3594 = vmatpush1.bf16.msra.mxu0 0
        %3595 = vmatprep.subr.bf16.mxu0 0
        %3596 = vmatpush1.bf16.msra.mxu0 0
        %3597 = vmatprep.subr.bf16.mxu0 0
        %3598 = vmatpush1.bf16.msra.mxu0 0
        %3599 = vmatprep.subr.bf16.mxu0 0
        %3600 = vmatpush1.bf16.msra.mxu0 0
        %3601 = vmatprep.subr.bf16.mxu0 0
        %3602 = vmatpush1.bf16.msra.mxu0 0
        %3603 = vmatprep.subr.bf16.mxu0 0
        %3604 = vmatpush1.bf16.msra.mxu0 0
        %3605 = vmatprep.subr.bf16.mxu0 0
        %3606 = vmatpush1.bf16.msra.mxu0 0
        %3607 = vmatprep.subr.bf16.mxu0 0
        %3608 = vmatpush1.bf16.msra.mxu0 0
        %3609 = vmatprep.subr.bf16.mxu0 0
        %3610 = vmatpush1.bf16.msra.mxu0 0
        %3611 = vmatprep.mubr.bf16.mxu0 0
        %3612 = vmatmul.mubr.bf16.gmra.mrb[0].mxu0 %v3571
        %v3613 = vpop.f32.mrb[0].mxu0
        %v3614 = vadd.f32 %v3559, %v3613
        %v3615 = vpop.f32.mrb[0].mxu0
        %v3616 = vadd.f32 %v3561, %v3615
        %v3617 = vpop.f32.mrb[0].mxu0
        %v3618 = vpop.f32.mrb[0].mxu0
        %3619 = vdwg.mxu0
        %v3620 = vld [vmem:[%s3382] sm:$0xf]
        %v3621 = vld [vmem:[%s3382 + $0x4] sm:$0x1]
        %v3622 = vld [vmem:[%s309] sm:$0xff]
        %v3623 = vld [vmem:[%s311] sm:$0xff]
        %v3626 = vunpack.c.l.b16 %v3620
        %v3627 = vunpack.c.l.b16 %v3621
        %v3628 = vpack.c.b16 %v3627, %v3626
        %v3630 = vshrl.u32 %v3628, 16
        %v3632 = vshll.u32 %v3628, 16
        %v3634 = vrot.slane %v3632, 1
        %v3635 = vor.u32 %v3630, %v3634
        %v3637 = vunpack.c.l.b16 %v3623
        %v3638 = vunpack.c.h.b16 %v3623
        %v3639 = vpack.c.b16 %v3637, %v3637
        %v3640 = vpack.c.b16 %v3638, %v3638
        %v3642 = vsel %vm199, %v3635, 0
        %v3645 = vsel %vm203, %v3639, 0
        %v3648 = vsel %vm203, %v3640, 0
        %3650 = vmatprep.subr.bf16.mxu0 %v3648
        %3651 = vmatpush1.bf16.msra.mxu0 %v3645
        %3652 = vmatprep.subr.bf16.mxu0 0
        %3653 = vmatpush1.bf16.msra.mxu0 0
        %3654 = vmatprep.subr.bf16.mxu0 0
        %3655 = vmatpush1.bf16.msra.mxu0 0
        %3656 = vmatprep.subr.bf16.mxu0 0
        %3657 = vmatpush1.bf16.msra.mxu0 0
        %3658 = vmatprep.subr.bf16.mxu0 0
        %3659 = vmatpush1.bf16.msra.mxu0 0
        %3660 = vmatprep.subr.bf16.mxu0 0
        %3661 = vmatpush1.bf16.msra.mxu0 0
        %3662 = vmatprep.subr.bf16.mxu0 0
        %3663 = vmatpush1.bf16.msra.mxu0 0
        %3664 = vmatprep.subr.bf16.mxu0 0
        %3665 = vmatpush1.bf16.msra.mxu0 0
        %3666 = vmatprep.subr.bf16.mxu0 0
        %3667 = vmatpush1.bf16.msra.mxu0 0
        %3668 = vmatprep.subr.bf16.mxu0 0
        %3669 = vmatpush1.bf16.msra.mxu0 0
        %3670 = vmatprep.subr.bf16.mxu0 0
        %3671 = vmatpush1.bf16.msra.mxu0 0
        %3672 = vmatprep.subr.bf16.mxu0 0
        %3673 = vmatpush1.bf16.msra.mxu0 0
        %3674 = vmatprep.subr.bf16.mxu0 0
        %3675 = vmatpush1.bf16.msra.mxu0 0
        %3676 = vmatprep.subr.bf16.mxu0 0
        %3677 = vmatpush1.bf16.msra.mxu0 0
        %3678 = vmatprep.subr.bf16.mxu0 0
        %3679 = vmatpush1.bf16.msra.mxu0 0
        %3680 = vmatprep.subr.bf16.mxu0 0
        %3681 = vmatpush1.bf16.msra.mxu0 0
        %3682 = vmatprep.mubr.bf16.mxu0 0
        %3683 = vmatmul.mubr.bf16.gmra.mrb[0].mxu0 %v3642
        %v3684 = vpop.f32.mrb[0].mxu0
        %v3685 = vadd.f32 0.0, %v3684
        %v3686 = vpop.f32.mrb[0].mxu0
        %v3687 = vadd.f32 0.0, %v3686
        %v3688 = vpop.f32.mrb[0].mxu0
        %v3689 = vpop.f32.mrb[0].mxu0
        %3690 = vdwg.mxu0
        %v3692 = vunpack.c.l.b16 %v3622
        %v3693 = vunpack.c.h.b16 %v3622
        %v3694 = vpack.c.b16 %v3692, %v3692
        %v3695 = vpack.c.b16 %v3693, %v3693
        %v3697 = vsel %vm199, %v3620, 0
        %v3700 = vsel %vm203, %v3694, 0
        %v3703 = vsel %vm203, %v3695, 0
        %3705 = vmatprep.subr.bf16.mxu0 %v3703
        %3706 = vmatpush1.bf16.msra.mxu0 %v3700
        %3707 = vmatprep.subr.bf16.mxu0 0
        %3708 = vmatpush1.bf16.msra.mxu0 0
        %3709 = vmatprep.subr.bf16.mxu0 0
        %3710 = vmatpush1.bf16.msra.mxu0 0
        %3711 = vmatprep.subr.bf16.mxu0 0
        %3712 = vmatpush1.bf16.msra.mxu0 0
        %3713 = vmatprep.subr.bf16.mxu0 0
        %3714 = vmatpush1.bf16.msra.mxu0 0
        %3715 = vmatprep.subr.bf16.mxu0 0
        %3716 = vmatpush1.bf16.msra.mxu0 0
        %3717 = vmatprep.subr.bf16.mxu0 0
        %3718 = vmatpush1.bf16.msra.mxu0 0
        %3719 = vmatprep.subr.bf16.mxu0 0
        %3720 = vmatpush1.bf16.msra.mxu0 0
        %3721 = vmatprep.subr.bf16.mxu0 0
        %3722 = vmatpush1.bf16.msra.mxu0 0
        %3723 = vmatprep.subr.bf16.mxu0 0
        %3724 = vmatpush1.bf16.msra.mxu0 0
        %3725 = vmatprep.subr.bf16.mxu0 0
        %3726 = vmatpush1.bf16.msra.mxu0 0
        %3727 = vmatprep.subr.bf16.mxu0 0
        %3728 = vmatpush1.bf16.msra.mxu0 0
        %3729 = vmatprep.subr.bf16.mxu0 0
        %3730 = vmatpush1.bf16.msra.mxu0 0
        %3731 = vmatprep.subr.bf16.mxu0 0
        %3732 = vmatpush1.bf16.msra.mxu0 0
        %3733 = vmatprep.subr.bf16.mxu0 0
        %3734 = vmatpush1.bf16.msra.mxu0 0
        %3735 = vmatprep.subr.bf16.mxu0 0
        %3736 = vmatpush1.bf16.msra.mxu0 0
        %3737 = vmatprep.mubr.bf16.mxu0 0
        %3738 = vmatmul.mubr.bf16.gmra.mrb[0].mxu0 %v3697
        %v3739 = vpop.f32.mrb[0].mxu0
        %v3740 = vadd.f32 %v3685, %v3739
        %v3741 = vpop.f32.mrb[0].mxu0
        %v3742 = vadd.f32 %v3687, %v3741
        %v3743 = vpop.f32.mrb[0].mxu0
        %v3744 = vpop.f32.mrb[0].mxu0
        %3745 = vdwg.mxu0
        %v3746 = vadd.f32 %v3614, %v3740
        %v3747 = vadd.f32 %v3616, %v3742
        %s3748 = scalar_lea.vmem %s168, 96
        %v3749 = vld [vmem:[%s3748] sm:$0xf]
        %v3750 = vld [vmem:[%s3748 + $0x4] sm:$0x1]
        %v3751 = vld [vmem:[%s440] sm:$0xff]
        %v3752 = vld [vmem:[%s442] sm:$0xff]
        %v3755 = vunpack.c.l.b16 %v3749
        %v3756 = vunpack.c.l.b16 %v3750
        %v3757 = vpack.c.b16 %v3756, %v3755
        %v3759 = vshrl.u32 %v3757, 16
        %v3761 = vshll.u32 %v3757, 16
        %v3763 = vrot.slane %v3761, 1
        %v3764 = vor.u32 %v3759, %v3763
        %v3766 = vunpack.c.l.b16 %v3752
        %v3767 = vunpack.c.h.b16 %v3752
        %v3768 = vpack.c.b16 %v3766, %v3766
        %v3769 = vpack.c.b16 %v3767, %v3767
        %v3771 = vsel %vm199, %v3764, 0
        %v3774 = vsel %vm203, %v3768, 0
        %v3777 = vsel %vm203, %v3769, 0
        %3779 = vmatprep.subr.bf16.mxu0 %v3777
        %3780 = vmatpush1.bf16.msra.mxu0 %v3774
        %3781 = vmatprep.subr.bf16.mxu0 0
        %3782 = vmatpush1.bf16.msra.mxu0 0
        %3783 = vmatprep.subr.bf16.mxu0 0
        %3784 = vmatpush1.bf16.msra.mxu0 0
        %3785 = vmatprep.subr.bf16.mxu0 0
        %3786 = vmatpush1.bf16.msra.mxu0 0
        %3787 = vmatprep.subr.bf16.mxu0 0
        %3788 = vmatpush1.bf16.msra.mxu0 0
        %3789 = vmatprep.subr.bf16.mxu0 0
        %3790 = vmatpush1.bf16.msra.mxu0 0
        %3791 = vmatprep.subr.bf16.mxu0 0
        %3792 = vmatpush1.bf16.msra.mxu0 0
        %3793 = vmatprep.subr.bf16.mxu0 0
        %3794 = vmatpush1.bf16.msra.mxu0 0
        %3795 = vmatprep.subr.bf16.mxu0 0
        %3796 = vmatpush1.bf16.msra.mxu0 0
        %3797 = vmatprep.subr.bf16.mxu0 0
        %3798 = vmatpush1.bf16.msra.mxu0 0
        %3799 = vmatprep.subr.bf16.mxu0 0
        %3800 = vmatpush1.bf16.msra.mxu0 0
        %3801 = vmatprep.subr.bf16.mxu0 0
        %3802 = vmatpush1.bf16.msra.mxu0 0
        %3803 = vmatprep.subr.bf16.mxu0 0
        %3804 = vmatpush1.bf16.msra.mxu0 0
        %3805 = vmatprep.subr.bf16.mxu0 0
        %3806 = vmatpush1.bf16.msra.mxu0 0
        %3807 = vmatprep.subr.bf16.mxu0 0
        %3808 = vmatpush1.bf16.msra.mxu0 0
        %3809 = vmatprep.subr.bf16.mxu0 0
        %3810 = vmatpush1.bf16.msra.mxu0 0
        %3811 = vmatprep.mubr.bf16.mxu0 0
        %3812 = vmatmul.mubr.bf16.gmra.mrb[0].mxu0 %v3771
        %v3813 = vpop.f32.mrb[0].mxu0
        %v3814 = vadd.f32 0.0, %v3813
        %v3815 = vpop.f32.mrb[0].mxu0
        %v3816 = vadd.f32 0.0, %v3815
        %v3817 = vpop.f32.mrb[0].mxu0
        %v3818 = vpop.f32.mrb[0].mxu0
        %3819 = vdwg.mxu0
        %v3821 = vunpack.c.l.b16 %v3751
        %v3822 = vunpack.c.h.b16 %v3751
        %v3823 = vpack.c.b16 %v3821, %v3821
        %v3824 = vpack.c.b16 %v3822, %v3822
        %v3826 = vsel %vm199, %v3749, 0
        %v3829 = vsel %vm203, %v3823, 0
        %v3832 = vsel %vm203, %v3824, 0
        %3834 = vmatprep.subr.bf16.mxu0 %v3832
        %3835 = vmatpush1.bf16.msra.mxu0 %v3829
        %3836 = vmatprep.subr.bf16.mxu0 0
        %3837 = vmatpush1.bf16.msra.mxu0 0
        %3838 = vmatprep.subr.bf16.mxu0 0
        %3839 = vmatpush1.bf16.msra.mxu0 0
        %3840 = vmatprep.subr.bf16.mxu0 0
        %3841 = vmatpush1.bf16.msra.mxu0 0
        %3842 = vmatprep.subr.bf16.mxu0 0
        %3843 = vmatpush1.bf16.msra.mxu0 0
        %3844 = vmatprep.subr.bf16.mxu0 0
        %3845 = vmatpush1.bf16.msra.mxu0 0
        %3846 = vmatprep.subr.bf16.mxu0 0
        %3847 = vmatpush1.bf16.msra.mxu0 0
        %3848 = vmatprep.subr.bf16.mxu0 0
        %3849 = vmatpush1.bf16.msra.mxu0 0
        %3850 = vmatprep.subr.bf16.mxu0 0
        %3851 = vmatpush1.bf16.msra.mxu0 0
        %3852 = vmatprep.subr.bf16.mxu0 0
        %3853 = vmatpush1.bf16.msra.mxu0 0
        %3854 = vmatprep.subr.bf16.mxu0 0
        %3855 = vmatpush1.bf16.msra.mxu0 0
        %3856 = vmatprep.subr.bf16.mxu0 0
        %3857 = vmatpush1.bf16.msra.mxu0 0
        %3858 = vmatprep.subr.bf16.mxu0 0
        %3859 = vmatpush1.bf16.msra.mxu0 0
        %3860 = vmatprep.subr.bf16.mxu0 0
        %3861 = vmatpush1.bf16.msra.mxu0 0
        %3862 = vmatprep.subr.bf16.mxu0 0
        %3863 = vmatpush1.bf16.msra.mxu0 0
        %3864 = vmatprep.subr.bf16.mxu0 0
        %3865 = vmatpush1.bf16.msra.mxu0 0
        %3866 = vmatprep.mubr.bf16.mxu0 0
        %3867 = vmatmul.mubr.bf16.gmra.mrb[0].mxu0 %v3826
        %v3868 = vpop.f32.mrb[0].mxu0
        %v3869 = vadd.f32 %v3814, %v3868
        %v3870 = vpop.f32.mrb[0].mxu0
        %v3871 = vadd.f32 %v3816, %v3870
        %v3872 = vpop.f32.mrb[0].mxu0
        %v3873 = vpop.f32.mrb[0].mxu0
        %3874 = vdwg.mxu0
        %v3875 = vadd.f32 %v3746, %v3869
        %v3876 = vadd.f32 %v3747, %v3871
        %v3877 = vmax.f32 %v3875, %v3876
        %3878 = vmatprep.subr.bf16.mxu0 %v3522
        %3879 = vmatpush1.bf16.msra.mxu0 %v3519
        %3880 = vmatprep.subr.bf16.mxu0 0
        %3881 = vmatpush1.bf16.msra.mxu0 0
        %3882 = vmatprep.subr.bf16.mxu0 0
        %3883 = vmatpush1.bf16.msra.mxu0 0
        %3884 = vmatprep.subr.bf16.mxu0 0
        %3885 = vmatpush1.bf16.msra.mxu0 0
        %3886 = vmatprep.subr.bf16.mxu0 0
        %3887 = vmatpush1.bf16.msra.mxu0 0
        %3888 = vmatprep.subr.bf16.mxu0 0
        %3889 = vmatpush1.bf16.msra.mxu0 0
        %3890 = vmatprep.subr.bf16.mxu0 0
        %3891 = vmatpush1.bf16.msra.mxu0 0
        %3892 = vmatprep.subr.bf16.mxu0 0
        %3893 = vmatpush1.bf16.msra.mxu0 0
        %3894 = vmatprep.subr.bf16.mxu0 0
        %3895 = vmatpush1.bf16.msra.mxu0 0
        %3896 = vmatprep.subr.bf16.mxu0 0
        %3897 = vmatpush1.bf16.msra.mxu0 0
        %3898 = vmatprep.subr.bf16.mxu0 0
        %3899 = vmatpush1.bf16.msra.mxu0 0
        %3900 = vmatprep.subr.bf16.mxu0 0
        %3901 = vmatpush1.bf16.msra.mxu0 0
        %3902 = vmatprep.subr.bf16.mxu0 0
        %3903 = vmatpush1.bf16.msra.mxu0 0
        %3904 = vmatprep.subr.bf16.mxu0 0
        %3905 = vmatpush1.bf16.msra.mxu0 0
        %3906 = vmatprep.subr.bf16.mxu0 0
        %3907 = vmatpush1.bf16.msra.mxu0 0
        %3908 = vmatprep.subr.bf16.mxu0 0
        %3909 = vmatpush1.bf16.msra.mxu0 0
        %3910 = vmatprep.mubr.bf16.mxu0 0
        %3911 = vmatmul.mubr.bf16.gmra.mrb[0].mxu0 %v3642
        %v3912 = vpop.f32.mrb[0].mxu0
        %v3913 = vadd.f32 0.0, %v3912
        %v3914 = vpop.f32.mrb[0].mxu0
        %v3915 = vadd.f32 0.0, %v3914
        %v3916 = vpop.f32.mrb[0].mxu0
        %v3917 = vpop.f32.mrb[0].mxu0
        %3918 = vdwg.mxu0
        %3919 = vmatprep.subr.bf16.mxu0 %v3577
        %3920 = vmatpush1.bf16.msra.mxu0 %v3574
        %3921 = vmatprep.subr.bf16.mxu0 0
        %3922 = vmatpush1.bf16.msra.mxu0 0
        %3923 = vmatprep.subr.bf16.mxu0 0
        %3924 = vmatpush1.bf16.msra.mxu0 0
        %3925 = vmatprep.subr.bf16.mxu0 0
        %3926 = vmatpush1.bf16.msra.mxu0 0
        %3927 = vmatprep.subr.bf16.mxu0 0
        %3928 = vmatpush1.bf16.msra.mxu0 0
        %3929 = vmatprep.subr.bf16.mxu0 0
        %3930 = vmatpush1.bf16.msra.mxu0 0
        %3931 = vmatprep.subr.bf16.mxu0 0
        %3932 = vmatpush1.bf16.msra.mxu0 0
        %3933 = vmatprep.subr.bf16.mxu0 0
        %3934 = vmatpush1.bf16.msra.mxu0 0
        %3935 = vmatprep.subr.bf16.mxu0 0
        %3936 = vmatpush1.bf16.msra.mxu0 0
        %3937 = vmatprep.subr.bf16.mxu0 0
        %3938 = vmatpush1.bf16.msra.mxu0 0
        %3939 = vmatprep.subr.bf16.mxu0 0
        %3940 = vmatpush1.bf16.msra.mxu0 0
        %3941 = vmatprep.subr.bf16.mxu0 0
        %3942 = vmatpush1.bf16.msra.mxu0 0
        %3943 = vmatprep.subr.bf16.mxu0 0
        %3944 = vmatpush1.bf16.msra.mxu0 0
        %3945 = vmatprep.subr.bf16.mxu0 0
        %3946 = vmatpush1.bf16.msra.mxu0 0
        %3947 = vmatprep.subr.bf16.mxu0 0
        %3948 = vmatpush1.bf16.msra.mxu0 0
        %3949 = vmatprep.subr.bf16.mxu0 0
        %3950 = vmatpush1.bf16.msra.mxu0 0
        %3951 = vmatprep.mubr.bf16.mxu0 0
        %3952 = vmatmul.mubr.bf16.gmra.mrb[0].mxu0 %v3697
        %v3953 = vpop.f32.mrb[0].mxu0
        %v3954 = vadd.f32 %v3913, %v3953
        %v3955 = vpop.f32.mrb[0].mxu0
        %v3956 = vadd.f32 %v3915, %v3955
        %v3957 = vpop.f32.mrb[0].mxu0
        %v3958 = vpop.f32.mrb[0].mxu0
        %3959 = vdwg.mxu0
        %3960 = vmatprep.subr.bf16.mxu0 %v3648
        %3961 = vmatpush1.bf16.msra.mxu0 %v3645
        %3962 = vmatprep.subr.bf16.mxu0 0
        %3963 = vmatpush1.bf16.msra.mxu0 0
        %3964 = vmatprep.subr.bf16.mxu0 0
        %3965 = vmatpush1.bf16.msra.mxu0 0
        %3966 = vmatprep.subr.bf16.mxu0 0
        %3967 = vmatpush1.bf16.msra.mxu0 0
        %3968 = vmatprep.subr.bf16.mxu0 0
        %3969 = vmatpush1.bf16.msra.mxu0 0
        %3970 = vmatprep.subr.bf16.mxu0 0
        %3971 = vmatpush1.bf16.msra.mxu0 0
        %3972 = vmatprep.subr.bf16.mxu0 0
        %3973 = vmatpush1.bf16.msra.mxu0 0
        %3974 = vmatprep.subr.bf16.mxu0 0
        %3975 = vmatpush1.bf16.msra.mxu0 0
        %3976 = vmatprep.subr.bf16.mxu0 0
        %3977 = vmatpush1.bf16.msra.mxu0 0
        %3978 = vmatprep.subr.bf16.mxu0 0
        %3979 = vmatpush1.bf16.msra.mxu0 0
        %3980 = vmatprep.subr.bf16.mxu0 0
        %3981 = vmatpush1.bf16.msra.mxu0 0
        %3982 = vmatprep.subr.bf16.mxu0 0
        %3983 = vmatpush1.bf16.msra.mxu0 0
        %3984 = vmatprep.subr.bf16.mxu0 0
        %3985 = vmatpush1.bf16.msra.mxu0 0
        %3986 = vmatprep.subr.bf16.mxu0 0
        %3987 = vmatpush1.bf16.msra.mxu0 0
        %3988 = vmatprep.subr.bf16.mxu0 0
        %3989 = vmatpush1.bf16.msra.mxu0 0
        %3990 = vmatprep.subr.bf16.mxu0 0
        %3991 = vmatpush1.bf16.msra.mxu0 0
        %3992 = vmatprep.mubr.bf16.mxu0 0
        %3993 = vmatmul.mubr.bf16.gmra.mrb[0].mxu0 %v3771
        %v3994 = vpop.f32.mrb[0].mxu0
        %v3995 = vadd.f32 0.0, %v3994
        %v3996 = vpop.f32.mrb[0].mxu0
        %v3997 = vadd.f32 0.0, %v3996
        %v3998 = vpop.f32.mrb[0].mxu0
        %v3999 = vpop.f32.mrb[0].mxu0
        %4000 = vdwg.mxu0
        %4001 = vmatprep.subr.bf16.mxu0 %v3703
        %4002 = vmatpush1.bf16.msra.mxu0 %v3700
        %4003 = vmatprep.subr.bf16.mxu0 0
        %4004 = vmatpush1.bf16.msra.mxu0 0
        %4005 = vmatprep.subr.bf16.mxu0 0
        %4006 = vmatpush1.bf16.msra.mxu0 0
        %4007 = vmatprep.subr.bf16.mxu0 0
        %4008 = vmatpush1.bf16.msra.mxu0 0
        %4009 = vmatprep.subr.bf16.mxu0 0
        %4010 = vmatpush1.bf16.msra.mxu0 0
        %4011 = vmatprep.subr.bf16.mxu0 0
        %4012 = vmatpush1.bf16.msra.mxu0 0
        %4013 = vmatprep.subr.bf16.mxu0 0
        %4014 = vmatpush1.bf16.msra.mxu0 0
        %4015 = vmatprep.subr.bf16.mxu0 0
        %4016 = vmatpush1.bf16.msra.mxu0 0
        %4017 = vmatprep.subr.bf16.mxu0 0
        %4018 = vmatpush1.bf16.msra.mxu0 0
        %4019 = vmatprep.subr.bf16.mxu0 0
        %4020 = vmatpush1.bf16.msra.mxu0 0
        %4021 = vmatprep.subr.bf16.mxu0 0
        %4022 = vmatpush1.bf16.msra.mxu0 0
        %4023 = vmatprep.subr.bf16.mxu0 0
        %4024 = vmatpush1.bf16.msra.mxu0 0
        %4025 = vmatprep.subr.bf16.mxu0 0
        %4026 = vmatpush1.bf16.msra.mxu0 0
        %4027 = vmatprep.subr.bf16.mxu0 0
        %4028 = vmatpush1.bf16.msra.mxu0 0
        %4029 = vmatprep.subr.bf16.mxu0 0
        %4030 = vmatpush1.bf16.msra.mxu0 0
        %4031 = vmatprep.subr.bf16.mxu0 0
        %4032 = vmatpush1.bf16.msra.mxu0 0
        %4033 = vmatprep.mubr.bf16.mxu0 0
        %4034 = vmatmul.mubr.bf16.gmra.mrb[0].mxu0 %v3826
        %v4035 = vpop.f32.mrb[0].mxu0
        %v4036 = vadd.f32 %v3995, %v4035
        %v4037 = vpop.f32.mrb[0].mxu0
        %v4038 = vadd.f32 %v3997, %v4037
        %v4039 = vpop.f32.mrb[0].mxu0
        %v4040 = vpop.f32.mrb[0].mxu0
        %4041 = vdwg.mxu0
        %v4042 = vadd.f32 %v3954, %v4036
        %v4043 = vadd.f32 %v3956, %v4038
        %s4044 = scalar_lea.vmem %s168, 104
        %v4045 = vld [vmem:[%s4044] sm:$0xf]
        %v4046 = vld [vmem:[%s4044 + $0x4] sm:$0x1]
        %v4049 = vunpack.c.l.b16 %v4045
        %v4050 = vunpack.c.l.b16 %v4046
        %v4051 = vpack.c.b16 %v4050, %v4049
        %v4053 = vshrl.u32 %v4051, 16
        %v4055 = vshll.u32 %v4051, 16
        %v4057 = vrot.slane %v4055, 1
        %v4058 = vor.u32 %v4053, %v4057
        %v4060 = vsel %vm199, %v4058, 0
        %4062 = vmatprep.subr.bf16.mxu0 %v3777
        %4063 = vmatpush1.bf16.msra.mxu0 %v3774
        %4064 = vmatprep.subr.bf16.mxu0 0
        %4065 = vmatpush1.bf16.msra.mxu0 0
        %4066 = vmatprep.subr.bf16.mxu0 0
        %4067 = vmatpush1.bf16.msra.mxu0 0
        %4068 = vmatprep.subr.bf16.mxu0 0
        %4069 = vmatpush1.bf16.msra.mxu0 0
        %4070 = vmatprep.subr.bf16.mxu0 0
        %4071 = vmatpush1.bf16.msra.mxu0 0
        %4072 = vmatprep.subr.bf16.mxu0 0
        %4073 = vmatpush1.bf16.msra.mxu0 0
        %4074 = vmatprep.subr.bf16.mxu0 0
        %4075 = vmatpush1.bf16.msra.mxu0 0
        %4076 = vmatprep.subr.bf16.mxu0 0
        %4077 = vmatpush1.bf16.msra.mxu0 0
        %4078 = vmatprep.subr.bf16.mxu0 0
        %4079 = vmatpush1.bf16.msra.mxu0 0
        %4080 = vmatprep.subr.bf16.mxu0 0
        %4081 = vmatpush1.bf16.msra.mxu0 0
        %4082 = vmatprep.subr.bf16.mxu0 0
        %4083 = vmatpush1.bf16.msra.mxu0 0
        %4084 = vmatprep.subr.bf16.mxu0 0
        %4085 = vmatpush1.bf16.msra.mxu0 0
        %4086 = vmatprep.subr.bf16.mxu0 0
        %4087 = vmatpush1.bf16.msra.mxu0 0
        %4088 = vmatprep.subr.bf16.mxu0 0
        %4089 = vmatpush1.bf16.msra.mxu0 0
        %4090 = vmatprep.subr.bf16.mxu0 0
        %4091 = vmatpush1.bf16.msra.mxu0 0
        %4092 = vmatprep.subr.bf16.mxu0 0
        %4093 = vmatpush1.bf16.msra.mxu0 0
        %4094 = vmatprep.mubr.bf16.mxu0 0
        %4095 = vmatmul.mubr.bf16.gmra.mrb[0].mxu0 %v4060
        %v4096 = vpop.f32.mrb[0].mxu0
        %v4097 = vadd.f32 0.0, %v4096
        %v4098 = vpop.f32.mrb[0].mxu0
        %v4099 = vadd.f32 0.0, %v4098
        %v4100 = vpop.f32.mrb[0].mxu0
        %v4101 = vpop.f32.mrb[0].mxu0
        %4102 = vdwg.mxu0
        %v4104 = vsel %vm199, %v4045, 0
        %4106 = vmatprep.subr.bf16.mxu0 %v3832
        %4107 = vmatpush1.bf16.msra.mxu0 %v3829
        %4108 = vmatprep.subr.bf16.mxu0 0
        %4109 = vmatpush1.bf16.msra.mxu0 0
        %4110 = vmatprep.subr.bf16.mxu0 0
        %4111 = vmatpush1.bf16.msra.mxu0 0
        %4112 = vmatprep.subr.bf16.mxu0 0
        %4113 = vmatpush1.bf16.msra.mxu0 0
        %4114 = vmatprep.subr.bf16.mxu0 0
        %4115 = vmatpush1.bf16.msra.mxu0 0
        %4116 = vmatprep.subr.bf16.mxu0 0
        %4117 = vmatpush1.bf16.msra.mxu0 0
        %4118 = vmatprep.subr.bf16.mxu0 0
        %4119 = vmatpush1.bf16.msra.mxu0 0
        %4120 = vmatprep.subr.bf16.mxu0 0
        %4121 = vmatpush1.bf16.msra.mxu0 0
        %4122 = vmatprep.subr.bf16.mxu0 0
        %4123 = vmatpush1.bf16.msra.mxu0 0
        %4124 = vmatprep.subr.bf16.mxu0 0
        %4125 = vmatpush1.bf16.msra.mxu0 0
        %4126 = vmatprep.subr.bf16.mxu0 0
        %4127 = vmatpush1.bf16.msra.mxu0 0
        %4128 = vmatprep.subr.bf16.mxu0 0
        %4129 = vmatpush1.bf16.msra.mxu0 0
        %4130 = vmatprep.subr.bf16.mxu0 0
        %4131 = vmatpush1.bf16.msra.mxu0 0
        %4132 = vmatprep.subr.bf16.mxu0 0
        %4133 = vmatpush1.bf16.msra.mxu0 0
        %4134 = vmatprep.subr.bf16.mxu0 0
        %4135 = vmatpush1.bf16.msra.mxu0 0
        %4136 = vmatprep.subr.bf16.mxu0 0
        %4137 = vmatpush1.bf16.msra.mxu0 0
        %4138 = vmatprep.mubr.bf16.mxu0 0
        %4139 = vmatmul.mubr.bf16.gmra.mrb[0].mxu0 %v4104
        %v4140 = vpop.f32.mrb[0].mxu0
        %v4141 = vadd.f32 %v4097, %v4140
        %v4142 = vpop.f32.mrb[0].mxu0
        %v4143 = vadd.f32 %v4099, %v4142
        %v4144 = vpop.f32.mrb[0].mxu0
        %v4145 = vpop.f32.mrb[0].mxu0
        %4146 = vdwg.mxu0
        %v4147 = vadd.f32 %v4042, %v4141
        %v4148 = vadd.f32 %v4043, %v4143
        %v4149 = vmax.f32 %v4147, %v4148
        %v4150 = vmax.f32 %v3877, %v4149
        %v4151 = vadd.f32 %v4150, %v175
        %v4152 = vmax.f32 %v4151, 0.0
        %v4153 = vpack.c.bf16 %v4152, %v4152
        %s4154 = scalar_lea.vmem %s163, 20 [#allocation2]
        %4155 = vst [vmem:[%s4154] sm:$0xf] %v4153
        %v4156 = vld [vmem:[%s3748] sm:$0xf]
        %v4157 = vld [vmem:[%s3748 + $0x4] sm:$0x1]
        %v4158 = vld [vmem:[%s1] sm:$0xff]
        %v4159 = vld [vmem:[%s180] sm:$0xff]
        %v4162 = vunpack.c.l.b16 %v4156
        %v4163 = vunpack.c.l.b16 %v4157
        %v4164 = vpack.c.b16 %v4163, %v4162
        %v4166 = vshrl.u32 %v4164, 16
        %v4168 = vshll.u32 %v4164, 16
        %v4170 = vrot.slane %v4168, 1
        %v4171 = vor.u32 %v4166, %v4170
        %v4173 = vunpack.c.l.b16 %v4159
        %v4174 = vunpack.c.h.b16 %v4159
        %v4175 = vpack.c.b16 %v4173, %v4173
        %v4176 = vpack.c.b16 %v4174, %v4174
        %v4178 = vsel %vm199, %v4171, 0
        %v4181 = vsel %vm203, %v4175, 0
        %v4184 = vsel %vm203, %v4176, 0
        %4186 = vmatprep.subr.bf16.mxu0 %v4184
        %4187 = vmatpush1.bf16.msra.mxu0 %v4181
        %4188 = vmatprep.subr.bf16.mxu0 0
        %4189 = vmatpush1.bf16.msra.mxu0 0
        %4190 = vmatprep.subr.bf16.mxu0 0
        %4191 = vmatpush1.bf16.msra.mxu0 0
        %4192 = vmatprep.subr.bf16.mxu0 0
        %4193 = vmatpush1.bf16.msra.mxu0 0
        %4194 = vmatprep.subr.bf16.mxu0 0
        %4195 = vmatpush1.bf16.msra.mxu0 0
        %4196 = vmatprep.subr.bf16.mxu0 0
        %4197 = vmatpush1.bf16.msra.mxu0 0
        %4198 = vmatprep.subr.bf16.mxu0 0
        %4199 = vmatpush1.bf16.msra.mxu0 0
        %4200 = vmatprep.subr.bf16.mxu0 0
        %4201 = vmatpush1.bf16.msra.mxu0 0
        %4202 = vmatprep.subr.bf16.mxu0 0
        %4203 = vmatpush1.bf16.msra.mxu0 0
        %4204 = vmatprep.subr.bf16.mxu0 0
        %4205 = vmatpush1.bf16.msra.mxu0 0
        %4206 = vmatprep.subr.bf16.mxu0 0
        %4207 = vmatpush1.bf16.msra.mxu0 0
        %4208 = vmatprep.subr.bf16.mxu0 0
        %4209 = vmatpush1.bf16.msra.mxu0 0
        %4210 = vmatprep.subr.bf16.mxu0 0
        %4211 = vmatpush1.bf16.msra.mxu0 0
        %4212 = vmatprep.subr.bf16.mxu0 0
        %4213 = vmatpush1.bf16.msra.mxu0 0
        %4214 = vmatprep.subr.bf16.mxu0 0
        %4215 = vmatpush1.bf16.msra.mxu0 0
        %4216 = vmatprep.subr.bf16.mxu0 0
        %4217 = vmatpush1.bf16.msra.mxu0 0
        %4218 = vmatprep.mubr.bf16.mxu0 0
        %4219 = vmatmul.mubr.bf16.gmra.mrb[0].mxu0 %v4178
        %v4220 = vpop.f32.mrb[0].mxu0
        %v4221 = vadd.f32 0.0, %v4220
        %v4222 = vpop.f32.mrb[0].mxu0
        %v4223 = vadd.f32 0.0, %v4222
        %v4224 = vpop.f32.mrb[0].mxu0
        %v4225 = vpop.f32.mrb[0].mxu0
        %4226 = vdwg.mxu0
        %v4228 = vunpack.c.l.b16 %v4158
        %v4229 = vunpack.c.h.b16 %v4158
        %v4230 = vpack.c.b16 %v4228, %v4228
        %v4231 = vpack.c.b16 %v4229, %v4229
        %v4233 = vsel %vm199, %v4156, 0
        %v4236 = vsel %vm203, %v4230, 0
        %v4239 = vsel %vm203, %v4231, 0
        %4241 = vmatprep.subr.bf16.mxu0 %v4239
        %4242 = vmatpush1.bf16.msra.mxu0 %v4236
        %4243 = vmatprep.subr.bf16.mxu0 0
        %4244 = vmatpush1.bf16.msra.mxu0 0
        %4245 = vmatprep.subr.bf16.mxu0 0
        %4246 = vmatpush1.bf16.msra.mxu0 0
        %4247 = vmatprep.subr.bf16.mxu0 0
        %4248 = vmatpush1.bf16.msra.mxu0 0
        %4249 = vmatprep.subr.bf16.mxu0 0
        %4250 = vmatpush1.bf16.msra.mxu0 0
        %4251 = vmatprep.subr.bf16.mxu0 0
        %4252 = vmatpush1.bf16.msra.mxu0 0
        %4253 = vmatprep.subr.bf16.mxu0 0
        %4254 = vmatpush1.bf16.msra.mxu0 0
        %4255 = vmatprep.subr.bf16.mxu0 0
        %4256 = vmatpush1.bf16.msra.mxu0 0
        %4257 = vmatprep.subr.bf16.mxu0 0
        %4258 = vmatpush1.bf16.msra.mxu0 0
        %4259 = vmatprep.subr.bf16.mxu0 0
        %4260 = vmatpush1.bf16.msra.mxu0 0
        %4261 = vmatprep.subr.bf16.mxu0 0
        %4262 = vmatpush1.bf16.msra.mxu0 0
        %4263 = vmatprep.subr.bf16.mxu0 0
        %4264 = vmatpush1.bf16.msra.mxu0 0
        %4265 = vmatprep.subr.bf16.mxu0 0
        %4266 = vmatpush1.bf16.msra.mxu0 0
        %4267 = vmatprep.subr.bf16.mxu0 0
        %4268 = vmatpush1.bf16.msra.mxu0 0
        %4269 = vmatprep.subr.bf16.mxu0 0
        %4270 = vmatpush1.bf16.msra.mxu0 0
        %4271 = vmatprep.subr.bf16.mxu0 0
        %4272 = vmatpush1.bf16.msra.mxu0 0
        %4273 = vmatprep.mubr.bf16.mxu0 0
        %4274 = vmatmul.mubr.bf16.gmra.mrb[0].mxu0 %v4233
        %v4275 = vpop.f32.mrb[0].mxu0
        %v4276 = vadd.f32 %v4221, %v4275
        %v4277 = vpop.f32.mrb[0].mxu0
        %v4278 = vadd.f32 %v4223, %v4277
        %v4279 = vpop.f32.mrb[0].mxu0
        %v4280 = vpop.f32.mrb[0].mxu0
        %4281 = vdwg.mxu0
        %v4282 = vld [vmem:[%s4044] sm:$0xf]
        %v4283 = vld [vmem:[%s4044 + $0x4] sm:$0x1]
        %v4284 = vld [vmem:[%s309] sm:$0xff]
        %v4285 = vld [vmem:[%s311] sm:$0xff]
        %v4288 = vunpack.c.l.b16 %v4282
        %v4289 = vunpack.c.l.b16 %v4283
        %v4290 = vpack.c.b16 %v4289, %v4288
        %v4292 = vshrl.u32 %v4290, 16
        %v4294 = vshll.u32 %v4290, 16
        %v4296 = vrot.slane %v4294, 1
        %v4297 = vor.u32 %v4292, %v4296
        %v4299 = vunpack.c.l.b16 %v4285
        %v4300 = vunpack.c.h.b16 %v4285
        %v4301 = vpack.c.b16 %v4299, %v4299
        %v4302 = vpack.c.b16 %v4300, %v4300
        %v4304 = vsel %vm199, %v4297, 0
        %v4307 = vsel %vm203, %v4301, 0
        %v4310 = vsel %vm203, %v4302, 0
        %4312 = vmatprep.subr.bf16.mxu0 %v4310
        %4313 = vmatpush1.bf16.msra.mxu0 %v4307
        %4314 = vmatprep.subr.bf16.mxu0 0
        %4315 = vmatpush1.bf16.msra.mxu0 0
        %4316 = vmatprep.subr.bf16.mxu0 0
        %4317 = vmatpush1.bf16.msra.mxu0 0
        %4318 = vmatprep.subr.bf16.mxu0 0
        %4319 = vmatpush1.bf16.msra.mxu0 0
        %4320 = vmatprep.subr.bf16.mxu0 0
        %4321 = vmatpush1.bf16.msra.mxu0 0
        %4322 = vmatprep.subr.bf16.mxu0 0
        %4323 = vmatpush1.bf16.msra.mxu0 0
        %4324 = vmatprep.subr.bf16.mxu0 0
        %4325 = vmatpush1.bf16.msra.mxu0 0
        %4326 = vmatprep.subr.bf16.mxu0 0
        %4327 = vmatpush1.bf16.msra.mxu0 0
        %4328 = vmatprep.subr.bf16.mxu0 0
        %4329 = vmatpush1.bf16.msra.mxu0 0
        %4330 = vmatprep.subr.bf16.mxu0 0
        %4331 = vmatpush1.bf16.msra.mxu0 0
        %4332 = vmatprep.subr.bf16.mxu0 0
        %4333 = vmatpush1.bf16.msra.mxu0 0
        %4334 = vmatprep.subr.bf16.mxu0 0
        %4335 = vmatpush1.bf16.msra.mxu0 0
        %4336 = vmatprep.subr.bf16.mxu0 0
        %4337 = vmatpush1.bf16.msra.mxu0 0
        %4338 = vmatprep.subr.bf16.mxu0 0
        %4339 = vmatpush1.bf16.msra.mxu0 0
        %4340 = vmatprep.subr.bf16.mxu0 0
        %4341 = vmatpush1.bf16.msra.mxu0 0
        %4342 = vmatprep.subr.bf16.mxu0 0
        %4343 = vmatpush1.bf16.msra.mxu0 0
        %4344 = vmatprep.mubr.bf16.mxu0 0
        %4345 = vmatmul.mubr.bf16.gmra.mrb[0].mxu0 %v4304
        %v4346 = vpop.f32.mrb[0].mxu0
        %v4347 = vadd.f32 0.0, %v4346
        %v4348 = vpop.f32.mrb[0].mxu0
        %v4349 = vadd.f32 0.0, %v4348
        %v4350 = vpop.f32.mrb[0].mxu0
        %v4351 = vpop.f32.mrb[0].mxu0
        %4352 = vdwg.mxu0
        %v4354 = vunpack.c.l.b16 %v4284
        %v4355 = vunpack.c.h.b16 %v4284
        %v4356 = vpack.c.b16 %v4354, %v4354
        %v4357 = vpack.c.b16 %v4355, %v4355
        %v4359 = vsel %vm199, %v4282, 0
        %v4362 = vsel %vm203, %v4356, 0
        %v4365 = vsel %vm203, %v4357, 0
        %4367 = vmatprep.subr.bf16.mxu0 %v4365
        %4368 = vmatpush1.bf16.msra.mxu0 %v4362
        %4369 = vmatprep.subr.bf16.mxu0 0
        %4370 = vmatpush1.bf16.msra.mxu0 0
        %4371 = vmatprep.subr.bf16.mxu0 0
        %4372 = vmatpush1.bf16.msra.mxu0 0
        %4373 = vmatprep.subr.bf16.mxu0 0
        %4374 = vmatpush1.bf16.msra.mxu0 0
        %4375 = vmatprep.subr.bf16.mxu0 0
        %4376 = vmatpush1.bf16.msra.mxu0 0
        %4377 = vmatprep.subr.bf16.mxu0 0
        %4378 = vmatpush1.bf16.msra.mxu0 0
        %4379 = vmatprep.subr.bf16.mxu0 0
        %4380 = vmatpush1.bf16.msra.mxu0 0
        %4381 = vmatprep.subr.bf16.mxu0 0
        %4382 = vmatpush1.bf16.msra.mxu0 0
        %4383 = vmatprep.subr.bf16.mxu0 0
        %4384 = vmatpush1.bf16.msra.mxu0 0
        %4385 = vmatprep.subr.bf16.mxu0 0
        %4386 = vmatpush1.bf16.msra.mxu0 0
        %4387 = vmatprep.subr.bf16.mxu0 0
        %4388 = vmatpush1.bf16.msra.mxu0 0
        %4389 = vmatprep.subr.bf16.mxu0 0
        %4390 = vmatpush1.bf16.msra.mxu0 0
        %4391 = vmatprep.subr.bf16.mxu0 0
        %4392 = vmatpush1.bf16.msra.mxu0 0
        %4393 = vmatprep.subr.bf16.mxu0 0
        %4394 = vmatpush1.bf16.msra.mxu0 0
        %4395 = vmatprep.subr.bf16.mxu0 0
        %4396 = vmatpush1.bf16.msra.mxu0 0
        %4397 = vmatprep.subr.bf16.mxu0 0
        %4398 = vmatpush1.bf16.msra.mxu0 0
        %4399 = vmatprep.mubr.bf16.mxu0 0
        %4400 = vmatmul.mubr.bf16.gmra.mrb[0].mxu0 %v4359
        %v4401 = vpop.f32.mrb[0].mxu0
        %v4402 = vadd.f32 %v4347, %v4401
        %v4403 = vpop.f32.mrb[0].mxu0
        %v4404 = vadd.f32 %v4349, %v4403
        %v4405 = vpop.f32.mrb[0].mxu0
        %v4406 = vpop.f32.mrb[0].mxu0
        %4407 = vdwg.mxu0
        %v4408 = vadd.f32 %v4276, %v4402
        %v4409 = vadd.f32 %v4278, %v4404
        %s4410 = scalar_lea.vmem %s168, 112
        %v4411 = vld [vmem:[%s4410] sm:$0xf]
        %v4412 = vld [vmem:[%s4410 + $0x4] sm:$0x1]
        %v4413 = vld [vmem:[%s440] sm:$0xff]
        %v4414 = vld [vmem:[%s442] sm:$0xff]
        %v4417 = vunpack.c.l.b16 %v4411
        %v4418 = vunpack.c.l.b16 %v4412
        %v4419 = vpack.c.b16 %v4418, %v4417
        %v4421 = vshrl.u32 %v4419, 16
        %v4423 = vshll.u32 %v4419, 16
        %v4425 = vrot.slane %v4423, 1
        %v4426 = vor.u32 %v4421, %v4425
        %v4428 = vunpack.c.l.b16 %v4414
        %v4429 = vunpack.c.h.b16 %v4414
        %v4430 = vpack.c.b16 %v4428, %v4428
        %v4431 = vpack.c.b16 %v4429, %v4429
        %v4433 = vsel %vm199, %v4426, 0
        %v4436 = vsel %vm203, %v4430, 0
        %v4439 = vsel %vm203, %v4431, 0
        %4441 = vmatprep.subr.bf16.mxu0 %v4439
        %4442 = vmatpush1.bf16.msra.mxu0 %v4436
        %4443 = vmatprep.subr.bf16.mxu0 0
        %4444 = vmatpush1.bf16.msra.mxu0 0
        %4445 = vmatprep.subr.bf16.mxu0 0
        %4446 = vmatpush1.bf16.msra.mxu0 0
        %4447 = vmatprep.subr.bf16.mxu0 0
        %4448 = vmatpush1.bf16.msra.mxu0 0
        %4449 = vmatprep.subr.bf16.mxu0 0
        %4450 = vmatpush1.bf16.msra.mxu0 0
        %4451 = vmatprep.subr.bf16.mxu0 0
        %4452 = vmatpush1.bf16.msra.mxu0 0
        %4453 = vmatprep.subr.bf16.mxu0 0
        %4454 = vmatpush1.bf16.msra.mxu0 0
        %4455 = vmatprep.subr.bf16.mxu0 0
        %4456 = vmatpush1.bf16.msra.mxu0 0
        %4457 = vmatprep.subr.bf16.mxu0 0
        %4458 = vmatpush1.bf16.msra.mxu0 0
        %4459 = vmatprep.subr.bf16.mxu0 0
        %4460 = vmatpush1.bf16.msra.mxu0 0
        %4461 = vmatprep.subr.bf16.mxu0 0
        %4462 = vmatpush1.bf16.msra.mxu0 0
        %4463 = vmatprep.subr.bf16.mxu0 0
        %4464 = vmatpush1.bf16.msra.mxu0 0
        %4465 = vmatprep.subr.bf16.mxu0 0
        %4466 = vmatpush1.bf16.msra.mxu0 0
        %4467 = vmatprep.subr.bf16.mxu0 0
        %4468 = vmatpush1.bf16.msra.mxu0 0
        %4469 = vmatprep.subr.bf16.mxu0 0
        %4470 = vmatpush1.bf16.msra.mxu0 0
        %4471 = vmatprep.subr.bf16.mxu0 0
        %4472 = vmatpush1.bf16.msra.mxu0 0
        %4473 = vmatprep.mubr.bf16.mxu0 0
        %4474 = vmatmul.mubr.bf16.gmra.mrb[0].mxu0 %v4433
        %v4475 = vpop.f32.mrb[0].mxu0
        %v4476 = vadd.f32 0.0, %v4475
        %v4477 = vpop.f32.mrb[0].mxu0
        %v4478 = vadd.f32 0.0, %v4477
        %v4479 = vpop.f32.mrb[0].mxu0
        %v4480 = vpop.f32.mrb[0].mxu0
        %4481 = vdwg.mxu0
        %v4483 = vunpack.c.l.b16 %v4413
        %v4484 = vunpack.c.h.b16 %v4413
        %v4485 = vpack.c.b16 %v4483, %v4483
        %v4486 = vpack.c.b16 %v4484, %v4484
        %v4488 = vsel %vm199, %v4411, 0
        %v4491 = vsel %vm203, %v4485, 0
        %v4494 = vsel %vm203, %v4486, 0
        %4496 = vmatprep.subr.bf16.mxu0 %v4494
        %4497 = vmatpush1.bf16.msra.mxu0 %v4491
        %4498 = vmatprep.subr.bf16.mxu0 0
        %4499 = vmatpush1.bf16.msra.mxu0 0
        %4500 = vmatprep.subr.bf16.mxu0 0
        %4501 = vmatpush1.bf16.msra.mxu0 0
        %4502 = vmatprep.subr.bf16.mxu0 0
        %4503 = vmatpush1.bf16.msra.mxu0 0
        %4504 = vmatprep.subr.bf16.mxu0 0
        %4505 = vmatpush1.bf16.msra.mxu0 0
        %4506 = vmatprep.subr.bf16.mxu0 0
        %4507 = vmatpush1.bf16.msra.mxu0 0
        %4508 = vmatprep.subr.bf16.mxu0 0
        %4509 = vmatpush1.bf16.msra.mxu0 0
        %4510 = vmatprep.subr.bf16.mxu0 0
        %4511 = vmatpush1.bf16.msra.mxu0 0
        %4512 = vmatprep.subr.bf16.mxu0 0
        %4513 = vmatpush1.bf16.msra.mxu0 0
        %4514 = vmatprep.subr.bf16.mxu0 0
        %4515 = vmatpush1.bf16.msra.mxu0 0
        %4516 = vmatprep.subr.bf16.mxu0 0
        %4517 = vmatpush1.bf16.msra.mxu0 0
        %4518 = vmatprep.subr.bf16.mxu0 0
        %4519 = vmatpush1.bf16.msra.mxu0 0
        %4520 = vmatprep.subr.bf16.mxu0 0
        %4521 = vmatpush1.bf16.msra.mxu0 0
        %4522 = vmatprep.subr.bf16.mxu0 0
        %4523 = vmatpush1.bf16.msra.mxu0 0
        %4524 = vmatprep.subr.bf16.mxu0 0
        %4525 = vmatpush1.bf16.msra.mxu0 0
        %4526 = vmatprep.subr.bf16.mxu0 0
        %4527 = vmatpush1.bf16.msra.mxu0 0
        %4528 = vmatprep.mubr.bf16.mxu0 0
        %4529 = vmatmul.mubr.bf16.gmra.mrb[0].mxu0 %v4488
        %v4530 = vpop.f32.mrb[0].mxu0
        %v4531 = vadd.f32 %v4476, %v4530
        %v4532 = vpop.f32.mrb[0].mxu0
        %v4533 = vadd.f32 %v4478, %v4532
        %v4534 = vpop.f32.mrb[0].mxu0
        %v4535 = vpop.f32.mrb[0].mxu0
        %4536 = vdwg.mxu0
        %v4537 = vadd.f32 %v4408, %v4531
        %v4538 = vadd.f32 %v4409, %v4533
        %v4539 = vmax.f32 %v4537, %v4538
        %4540 = vmatprep.subr.bf16.mxu0 %v4184
        %4541 = vmatpush1.bf16.msra.mxu0 %v4181
        %4542 = vmatprep.subr.bf16.mxu0 0
        %4543 = vmatpush1.bf16.msra.mxu0 0
        %4544 = vmatprep.subr.bf16.mxu0 0
        %4545 = vmatpush1.bf16.msra.mxu0 0
        %4546 = vmatprep.subr.bf16.mxu0 0
        %4547 = vmatpush1.bf16.msra.mxu0 0
        %4548 = vmatprep.subr.bf16.mxu0 0
        %4549 = vmatpush1.bf16.msra.mxu0 0
        %4550 = vmatprep.subr.bf16.mxu0 0
        %4551 = vmatpush1.bf16.msra.mxu0 0
        %4552 = vmatprep.subr.bf16.mxu0 0
        %4553 = vmatpush1.bf16.msra.mxu0 0
        %4554 = vmatprep.subr.bf16.mxu0 0
        %4555 = vmatpush1.bf16.msra.mxu0 0
        %4556 = vmatprep.subr.bf16.mxu0 0
        %4557 = vmatpush1.bf16.msra.mxu0 0
        %4558 = vmatprep.subr.bf16.mxu0 0
        %4559 = vmatpush1.bf16.msra.mxu0 0
        %4560 = vmatprep.subr.bf16.mxu0 0
        %4561 = vmatpush1.bf16.msra.mxu0 0
        %4562 = vmatprep.subr.bf16.mxu0 0
        %4563 = vmatpush1.bf16.msra.mxu0 0
        %4564 = vmatprep.subr.bf16.mxu0 0
        %4565 = vmatpush1.bf16.msra.mxu0 0
        %4566 = vmatprep.subr.bf16.mxu0 0
        %4567 = vmatpush1.bf16.msra.mxu0 0
        %4568 = vmatprep.subr.bf16.mxu0 0
        %4569 = vmatpush1.bf16.msra.mxu0 0
        %4570 = vmatprep.subr.bf16.mxu0 0
        %4571 = vmatpush1.bf16.msra.mxu0 0
        %4572 = vmatprep.mubr.bf16.mxu0 0
        %4573 = vmatmul.mubr.bf16.gmra.mrb[0].mxu0 %v4304
        %v4574 = vpop.f32.mrb[0].mxu0
        %v4575 = vadd.f32 0.0, %v4574
        %v4576 = vpop.f32.mrb[0].mxu0
        %v4577 = vadd.f32 0.0, %v4576
        %v4578 = vpop.f32.mrb[0].mxu0
        %v4579 = vpop.f32.mrb[0].mxu0
        %4580 = vdwg.mxu0
        %4581 = vmatprep.subr.bf16.mxu0 %v4239
        %4582 = vmatpush1.bf16.msra.mxu0 %v4236
        %4583 = vmatprep.subr.bf16.mxu0 0
        %4584 = vmatpush1.bf16.msra.mxu0 0
        %4585 = vmatprep.subr.bf16.mxu0 0
        %4586 = vmatpush1.bf16.msra.mxu0 0
        %4587 = vmatprep.subr.bf16.mxu0 0
        %4588 = vmatpush1.bf16.msra.mxu0 0
        %4589 = vmatprep.subr.bf16.mxu0 0
        %4590 = vmatpush1.bf16.msra.mxu0 0
        %4591 = vmatprep.subr.bf16.mxu0 0
        %4592 = vmatpush1.bf16.msra.mxu0 0
        %4593 = vmatprep.subr.bf16.mxu0 0
        %4594 = vmatpush1.bf16.msra.mxu0 0
        %4595 = vmatprep.subr.bf16.mxu0 0
        %4596 = vmatpush1.bf16.msra.mxu0 0
        %4597 = vmatprep.subr.bf16.mxu0 0
        %4598 = vmatpush1.bf16.msra.mxu0 0
        %4599 = vmatprep.subr.bf16.mxu0 0
        %4600 = vmatpush1.bf16.msra.mxu0 0
        %4601 = vmatprep.subr.bf16.mxu0 0
        %4602 = vmatpush1.bf16.msra.mxu0 0
        %4603 = vmatprep.subr.bf16.mxu0 0
        %4604 = vmatpush1.bf16.msra.mxu0 0
        %4605 = vmatprep.subr.bf16.mxu0 0
        %4606 = vmatpush1.bf16.msra.mxu0 0
        %4607 = vmatprep.subr.bf16.mxu0 0
        %4608 = vmatpush1.bf16.msra.mxu0 0
        %4609 = vmatprep.subr.bf16.mxu0 0
        %4610 = vmatpush1.bf16.msra.mxu0 0
        %4611 = vmatprep.subr.bf16.mxu0 0
        %4612 = vmatpush1.bf16.msra.mxu0 0
        %4613 = vmatprep.mubr.bf16.mxu0 0
        %4614 = vmatmul.mubr.bf16.gmra.mrb[0].mxu0 %v4359
        %v4615 = vpop.f32.mrb[0].mxu0
        %v4616 = vadd.f32 %v4575, %v4615
        %v4617 = vpop.f32.mrb[0].mxu0
        %v4618 = vadd.f32 %v4577, %v4617
        %v4619 = vpop.f32.mrb[0].mxu0
        %v4620 = vpop.f32.mrb[0].mxu0
        %4621 = vdwg.mxu0
        %4622 = vmatprep.subr.bf16.mxu0 %v4310
        %4623 = vmatpush1.bf16.msra.mxu0 %v4307
        %4624 = vmatprep.subr.bf16.mxu0 0
        %4625 = vmatpush1.bf16.msra.mxu0 0
        %4626 = vmatprep.subr.bf16.mxu0 0
        %4627 = vmatpush1.bf16.msra.mxu0 0
        %4628 = vmatprep.subr.bf16.mxu0 0
        %4629 = vmatpush1.bf16.msra.mxu0 0
        %4630 = vmatprep.subr.bf16.mxu0 0
        %4631 = vmatpush1.bf16.msra.mxu0 0
        %4632 = vmatprep.subr.bf16.mxu0 0
        %4633 = vmatpush1.bf16.msra.mxu0 0
        %4634 = vmatprep.subr.bf16.mxu0 0
        %4635 = vmatpush1.bf16.msra.mxu0 0
        %4636 = vmatprep.subr.bf16.mxu0 0
        %4637 = vmatpush1.bf16.msra.mxu0 0
        %4638 = vmatprep.subr.bf16.mxu0 0
        %4639 = vmatpush1.bf16.msra.mxu0 0
        %4640 = vmatprep.subr.bf16.mxu0 0
        %4641 = vmatpush1.bf16.msra.mxu0 0
        %4642 = vmatprep.subr.bf16.mxu0 0
        %4643 = vmatpush1.bf16.msra.mxu0 0
        %4644 = vmatprep.subr.bf16.mxu0 0
        %4645 = vmatpush1.bf16.msra.mxu0 0
        %4646 = vmatprep.subr.bf16.mxu0 0
        %4647 = vmatpush1.bf16.msra.mxu0 0
        %4648 = vmatprep.subr.bf16.mxu0 0
        %4649 = vmatpush1.bf16.msra.mxu0 0
        %4650 = vmatprep.subr.bf16.mxu0 0
        %4651 = vmatpush1.bf16.msra.mxu0 0
        %4652 = vmatprep.subr.bf16.mxu0 0
        %4653 = vmatpush1.bf16.msra.mxu0 0
        %4654 = vmatprep.mubr.bf16.mxu0 0
        %4655 = vmatmul.mubr.bf16.gmra.mrb[0].mxu0 %v4433
        %v4656 = vpop.f32.mrb[0].mxu0
        %v4657 = vadd.f32 0.0, %v4656
        %v4658 = vpop.f32.mrb[0].mxu0
        %v4659 = vadd.f32 0.0, %v4658
        %v4660 = vpop.f32.mrb[0].mxu0
        %v4661 = vpop.f32.mrb[0].mxu0
        %4662 = vdwg.mxu0
        %4663 = vmatprep.subr.bf16.mxu0 %v4365
        %4664 = vmatpush1.bf16.msra.mxu0 %v4362
        %4665 = vmatprep.subr.bf16.mxu0 0
        %4666 = vmatpush1.bf16.msra.mxu0 0
        %4667 = vmatprep.subr.bf16.mxu0 0
        %4668 = vmatpush1.bf16.msra.mxu0 0
        %4669 = vmatprep.subr.bf16.mxu0 0
        %4670 = vmatpush1.bf16.msra.mxu0 0
        %4671 = vmatprep.subr.bf16.mxu0 0
        %4672 = vmatpush1.bf16.msra.mxu0 0
        %4673 = vmatprep.subr.bf16.mxu0 0
        %4674 = vmatpush1.bf16.msra.mxu0 0
        %4675 = vmatprep.subr.bf16.mxu0 0
        %4676 = vmatpush1.bf16.msra.mxu0 0
        %4677 = vmatprep.subr.bf16.mxu0 0
        %4678 = vmatpush1.bf16.msra.mxu0 0
        %4679 = vmatprep.subr.bf16.mxu0 0
        %4680 = vmatpush1.bf16.msra.mxu0 0
        %4681 = vmatprep.subr.bf16.mxu0 0
        %4682 = vmatpush1.bf16.msra.mxu0 0
        %4683 = vmatprep.subr.bf16.mxu0 0
        %4684 = vmatpush1.bf16.msra.mxu0 0
        %4685 = vmatprep.subr.bf16.mxu0 0
        %4686 = vmatpush1.bf16.msra.mxu0 0
        %4687 = vmatprep.subr.bf16.mxu0 0
        %4688 = vmatpush1.bf16.msra.mxu0 0
        %4689 = vmatprep.subr.bf16.mxu0 0
        %4690 = vmatpush1.bf16.msra.mxu0 0
        %4691 = vmatprep.subr.bf16.mxu0 0
        %4692 = vmatpush1.bf16.msra.mxu0 0
        %4693 = vmatprep.subr.bf16.mxu0 0
        %4694 = vmatpush1.bf16.msra.mxu0 0
        %4695 = vmatprep.mubr.bf16.mxu0 0
        %4696 = vmatmul.mubr.bf16.gmra.mrb[0].mxu0 %v4488
        %v4697 = vpop.f32.mrb[0].mxu0
        %v4698 = vadd.f32 %v4657, %v4697
        %v4699 = vpop.f32.mrb[0].mxu0
        %v4700 = vadd.f32 %v4659, %v4699
        %v4701 = vpop.f32.mrb[0].mxu0
        %v4702 = vpop.f32.mrb[0].mxu0
        %4703 = vdwg.mxu0
        %v4704 = vadd.f32 %v4616, %v4698
        %v4705 = vadd.f32 %v4618, %v4700
        %s4706 = scalar_lea.vmem %s168, 120
        %v4707 = vld [vmem:[%s4706] sm:$0xf]
        %v4708 = vld [vmem:[%s4706 + $0x4] sm:$0x1]
        %v4711 = vunpack.c.l.b16 %v4707
        %v4712 = vunpack.c.l.b16 %v4708
        %v4713 = vpack.c.b16 %v4712, %v4711
        %v4715 = vshrl.u32 %v4713, 16
        %v4717 = vshll.u32 %v4713, 16
        %v4719 = vrot.slane %v4717, 1
        %v4720 = vor.u32 %v4715, %v4719
        %v4722 = vsel %vm199, %v4720, 0
        %4724 = vmatprep.subr.bf16.mxu0 %v4439
        %4725 = vmatpush1.bf16.msra.mxu0 %v4436
        %4726 = vmatprep.subr.bf16.mxu0 0
        %4727 = vmatpush1.bf16.msra.mxu0 0
        %4728 = vmatprep.subr.bf16.mxu0 0
        %4729 = vmatpush1.bf16.msra.mxu0 0
        %4730 = vmatprep.subr.bf16.mxu0 0
        %4731 = vmatpush1.bf16.msra.mxu0 0
        %4732 = vmatprep.subr.bf16.mxu0 0
        %4733 = vmatpush1.bf16.msra.mxu0 0
        %4734 = vmatprep.subr.bf16.mxu0 0
        %4735 = vmatpush1.bf16.msra.mxu0 0
        %4736 = vmatprep.subr.bf16.mxu0 0
        %4737 = vmatpush1.bf16.msra.mxu0 0
        %4738 = vmatprep.subr.bf16.mxu0 0
        %4739 = vmatpush1.bf16.msra.mxu0 0
        %4740 = vmatprep.subr.bf16.mxu0 0
        %4741 = vmatpush1.bf16.msra.mxu0 0
        %4742 = vmatprep.subr.bf16.mxu0 0
        %4743 = vmatpush1.bf16.msra.mxu0 0
        %4744 = vmatprep.subr.bf16.mxu0 0
        %4745 = vmatpush1.bf16.msra.mxu0 0
        %4746 = vmatprep.subr.bf16.mxu0 0
        %4747 = vmatpush1.bf16.msra.mxu0 0
        %4748 = vmatprep.subr.bf16.mxu0 0
        %4749 = vmatpush1.bf16.msra.mxu0 0
        %4750 = vmatprep.subr.bf16.mxu0 0
        %4751 = vmatpush1.bf16.msra.mxu0 0
        %4752 = vmatprep.subr.bf16.mxu0 0
        %4753 = vmatpush1.bf16.msra.mxu0 0
        %4754 = vmatprep.subr.bf16.mxu0 0
        %4755 = vmatpush1.bf16.msra.mxu0 0
        %4756 = vmatprep.mubr.bf16.mxu0 0
        %4757 = vmatmul.mubr.bf16.gmra.mrb[0].mxu0 %v4722
        %v4758 = vpop.f32.mrb[0].mxu0
        %v4759 = vadd.f32 0.0, %v4758
        %v4760 = vpop.f32.mrb[0].mxu0
        %v4761 = vadd.f32 0.0, %v4760
        %v4762 = vpop.f32.mrb[0].mxu0
        %v4763 = vpop.f32.mrb[0].mxu0
        %4764 = vdwg.mxu0
        %v4766 = vsel %vm199, %v4707, 0
        %4768 = vmatprep.subr.bf16.mxu0 %v4494
        %4769 = vmatpush1.bf16.msra.mxu0 %v4491
        %4770 = vmatprep.subr.bf16.mxu0 0
        %4771 = vmatpush1.bf16.msra.mxu0 0
        %4772 = vmatprep.subr.bf16.mxu0 0
        %4773 = vmatpush1.bf16.msra.mxu0 0
        %4774 = vmatprep.subr.bf16.mxu0 0
        %4775 = vmatpush1.bf16.msra.mxu0 0
        %4776 = vmatprep.subr.bf16.mxu0 0
        %4777 = vmatpush1.bf16.msra.mxu0 0
        %4778 = vmatprep.subr.bf16.mxu0 0
        %4779 = vmatpush1.bf16.msra.mxu0 0
        %4780 = vmatprep.subr.bf16.mxu0 0
        %4781 = vmatpush1.bf16.msra.mxu0 0
        %4782 = vmatprep.subr.bf16.mxu0 0
        %4783 = vmatpush1.bf16.msra.mxu0 0
        %4784 = vmatprep.subr.bf16.mxu0 0
        %4785 = vmatpush1.bf16.msra.mxu0 0
        %4786 = vmatprep.subr.bf16.mxu0 0
        %4787 = vmatpush1.bf16.msra.mxu0 0
        %4788 = vmatprep.subr.bf16.mxu0 0
        %4789 = vmatpush1.bf16.msra.mxu0 0
        %4790 = vmatprep.subr.bf16.mxu0 0
        %4791 = vmatpush1.bf16.msra.mxu0 0
        %4792 = vmatprep.subr.bf16.mxu0 0
        %4793 = vmatpush1.bf16.msra.mxu0 0
        %4794 = vmatprep.subr.bf16.mxu0 0
        %4795 = vmatpush1.bf16.msra.mxu0 0
        %4796 = vmatprep.subr.bf16.mxu0 0
        %4797 = vmatpush1.bf16.msra.mxu0 0
        %4798 = vmatprep.subr.bf16.mxu0 0
        %4799 = vmatpush1.bf16.msra.mxu0 0
        %4800 = vmatprep.mubr.bf16.mxu0 0
        %4801 = vmatmul.mubr.bf16.gmra.mrb[0].mxu0 %v4766
        %v4802 = vpop.f32.mrb[0].mxu0
        %v4803 = vadd.f32 %v4759, %v4802
        %v4804 = vpop.f32.mrb[0].mxu0
        %v4805 = vadd.f32 %v4761, %v4804
        %v4806 = vpop.f32.mrb[0].mxu0
        %v4807 = vpop.f32.mrb[0].mxu0
        %4808 = vdwg.mxu0
        %v4809 = vadd.f32 %v4704, %v4803
        %v4810 = vadd.f32 %v4705, %v4805
        %v4811 = vmax.f32 %v4809, %v4810
        %v4812 = vmax.f32 %v4539, %v4811
        %v4813 = vadd.f32 %v4812, %v175
        %v4814 = vmax.f32 %v4813, 0.0
        %v4815 = vpack.c.bf16 %v4814, %v4814
        %s4816 = scalar_lea.vmem %s163, 24 [#allocation2]
        %4817 = vst [vmem:[%s4816] sm:$0xf] %v4815
        %v4818 = vld [vmem:[%s4410] sm:$0xf]
        %v4819 = vld [vmem:[%s4410 + $0x4] sm:$0x1]
        %v4820 = vld [vmem:[%s1] sm:$0xff]
        %v4821 = vld [vmem:[%s180] sm:$0xff]
        %v4824 = vunpack.c.l.b16 %v4818
        %v4825 = vunpack.c.l.b16 %v4819
        %v4826 = vpack.c.b16 %v4825, %v4824
        %v4828 = vshrl.u32 %v4826, 16
        %v4830 = vshll.u32 %v4826, 16
        %v4832 = vrot.slane %v4830, 1
        %v4833 = vor.u32 %v4828, %v4832
        %v4835 = vunpack.c.l.b16 %v4821
        %v4836 = vunpack.c.h.b16 %v4821
        %v4837 = vpack.c.b16 %v4835, %v4835
        %v4838 = vpack.c.b16 %v4836, %v4836
        %v4840 = vsel %vm199, %v4833, 0
        %v4843 = vsel %vm203, %v4837, 0
        %v4846 = vsel %vm203, %v4838, 0
        %4848 = vmatprep.subr.bf16.mxu0 %v4846
        %4849 = vmatpush1.bf16.msra.mxu0 %v4843
        %4850 = vmatprep.subr.bf16.mxu0 0
        %4851 = vmatpush1.bf16.msra.mxu0 0
        %4852 = vmatprep.subr.bf16.mxu0 0
        %4853 = vmatpush1.bf16.msra.mxu0 0
        %4854 = vmatprep.subr.bf16.mxu0 0
        %4855 = vmatpush1.bf16.msra.mxu0 0
        %4856 = vmatprep.subr.bf16.mxu0 0
        %4857 = vmatpush1.bf16.msra.mxu0 0
        %4858 = vmatprep.subr.bf16.mxu0 0
        %4859 = vmatpush1.bf16.msra.mxu0 0
        %4860 = vmatprep.subr.bf16.mxu0 0
        %4861 = vmatpush1.bf16.msra.mxu0 0
        %4862 = vmatprep.subr.bf16.mxu0 0
        %4863 = vmatpush1.bf16.msra.mxu0 0
        %4864 = vmatprep.subr.bf16.mxu0 0
        %4865 = vmatpush1.bf16.msra.mxu0 0
        %4866 = vmatprep.subr.bf16.mxu0 0
        %4867 = vmatpush1.bf16.msra.mxu0 0
        %4868 = vmatprep.subr.bf16.mxu0 0
        %4869 = vmatpush1.bf16.msra.mxu0 0
        %4870 = vmatprep.subr.bf16.mxu0 0
        %4871 = vmatpush1.bf16.msra.mxu0 0
        %4872 = vmatprep.subr.bf16.mxu0 0
        %4873 = vmatpush1.bf16.msra.mxu0 0
        %4874 = vmatprep.subr.bf16.mxu0 0
        %4875 = vmatpush1.bf16.msra.mxu0 0
        %4876 = vmatprep.subr.bf16.mxu0 0
        %4877 = vmatpush1.bf16.msra.mxu0 0
        %4878 = vmatprep.subr.bf16.mxu0 0
        %4879 = vmatpush1.bf16.msra.mxu0 0
        %4880 = vmatprep.mubr.bf16.mxu0 0
        %4881 = vmatmul.mubr.bf16.gmra.mrb[0].mxu0 %v4840
        %v4882 = vpop.f32.mrb[0].mxu0
        %v4883 = vadd.f32 0.0, %v4882
        %v4884 = vpop.f32.mrb[0].mxu0
        %v4885 = vadd.f32 0.0, %v4884
        %v4886 = vpop.f32.mrb[0].mxu0
        %v4887 = vpop.f32.mrb[0].mxu0
        %4888 = vdwg.mxu0
        %v4890 = vunpack.c.l.b16 %v4820
        %v4891 = vunpack.c.h.b16 %v4820
        %v4892 = vpack.c.b16 %v4890, %v4890
        %v4893 = vpack.c.b16 %v4891, %v4891
        %v4895 = vsel %vm199, %v4818, 0
        %v4898 = vsel %vm203, %v4892, 0
        %v4901 = vsel %vm203, %v4893, 0
        %4903 = vmatprep.subr.bf16.mxu0 %v4901
        %4904 = vmatpush1.bf16.msra.mxu0 %v4898
        %4905 = vmatprep.subr.bf16.mxu0 0
        %4906 = vmatpush1.bf16.msra.mxu0 0
        %4907 = vmatprep.subr.bf16.mxu0 0
        %4908 = vmatpush1.bf16.msra.mxu0 0
        %4909 = vmatprep.subr.bf16.mxu0 0
        %4910 = vmatpush1.bf16.msra.mxu0 0
        %4911 = vmatprep.subr.bf16.mxu0 0
        %4912 = vmatpush1.bf16.msra.mxu0 0
        %4913 = vmatprep.subr.bf16.mxu0 0
        %4914 = vmatpush1.bf16.msra.mxu0 0
        %4915 = vmatprep.subr.bf16.mxu0 0
        %4916 = vmatpush1.bf16.msra.mxu0 0
        %4917 = vmatprep.subr.bf16.mxu0 0
        %4918 = vmatpush1.bf16.msra.mxu0 0
        %4919 = vmatprep.subr.bf16.mxu0 0
        %4920 = vmatpush1.bf16.msra.mxu0 0
        %4921 = vmatprep.subr.bf16.mxu0 0
        %4922 = vmatpush1.bf16.msra.mxu0 0
        %4923 = vmatprep.subr.bf16.mxu0 0
        %4924 = vmatpush1.bf16.msra.mxu0 0
        %4925 = vmatprep.subr.bf16.mxu0 0
        %4926 = vmatpush1.bf16.msra.mxu0 0
        %4927 = vmatprep.subr.bf16.mxu0 0
        %4928 = vmatpush1.bf16.msra.mxu0 0
        %4929 = vmatprep.subr.bf16.mxu0 0
        %4930 = vmatpush1.bf16.msra.mxu0 0
        %4931 = vmatprep.subr.bf16.mxu0 0
        %4932 = vmatpush1.bf16.msra.mxu0 0
        %4933 = vmatprep.subr.bf16.mxu0 0
        %4934 = vmatpush1.bf16.msra.mxu0 0
        %4935 = vmatprep.mubr.bf16.mxu0 0
        %4936 = vmatmul.mubr.bf16.gmra.mrb[0].mxu0 %v4895
        %v4937 = vpop.f32.mrb[0].mxu0
        %v4938 = vadd.f32 %v4883, %v4937
        %v4939 = vpop.f32.mrb[0].mxu0
        %v4940 = vadd.f32 %v4885, %v4939
        %v4941 = vpop.f32.mrb[0].mxu0
        %v4942 = vpop.f32.mrb[0].mxu0
        %4943 = vdwg.mxu0
        %v4944 = vld [vmem:[%s4706] sm:$0xf]
        %v4945 = vld [vmem:[%s4706 + $0x4] sm:$0x1]
        %v4946 = vld [vmem:[%s309] sm:$0xff]
        %v4947 = vld [vmem:[%s311] sm:$0xff]
        %v4950 = vunpack.c.l.b16 %v4944
        %v4951 = vunpack.c.l.b16 %v4945
        %v4952 = vpack.c.b16 %v4951, %v4950
        %v4954 = vshrl.u32 %v4952, 16
        %v4956 = vshll.u32 %v4952, 16
        %v4958 = vrot.slane %v4956, 1
        %v4959 = vor.u32 %v4954, %v4958
        %v4961 = vunpack.c.l.b16 %v4947
        %v4962 = vunpack.c.h.b16 %v4947
        %v4963 = vpack.c.b16 %v4961, %v4961
        %v4964 = vpack.c.b16 %v4962, %v4962
        %v4966 = vsel %vm199, %v4959, 0
        %v4969 = vsel %vm203, %v4963, 0
        %v4972 = vsel %vm203, %v4964, 0
        %4974 = vmatprep.subr.bf16.mxu0 %v4972
        %4975 = vmatpush1.bf16.msra.mxu0 %v4969
        %4976 = vmatprep.subr.bf16.mxu0 0
        %4977 = vmatpush1.bf16.msra.mxu0 0
        %4978 = vmatprep.subr.bf16.mxu0 0
        %4979 = vmatpush1.bf16.msra.mxu0 0
        %4980 = vmatprep.subr.bf16.mxu0 0
        %4981 = vmatpush1.bf16.msra.mxu0 0
        %4982 = vmatprep.subr.bf16.mxu0 0
        %4983 = vmatpush1.bf16.msra.mxu0 0
        %4984 = vmatprep.subr.bf16.mxu0 0
        %4985 = vmatpush1.bf16.msra.mxu0 0
        %4986 = vmatprep.subr.bf16.mxu0 0
        %4987 = vmatpush1.bf16.msra.mxu0 0
        %4988 = vmatprep.subr.bf16.mxu0 0
        %4989 = vmatpush1.bf16.msra.mxu0 0
        %4990 = vmatprep.subr.bf16.mxu0 0
        %4991 = vmatpush1.bf16.msra.mxu0 0
        %4992 = vmatprep.subr.bf16.mxu0 0
        %4993 = vmatpush1.bf16.msra.mxu0 0
        %4994 = vmatprep.subr.bf16.mxu0 0
        %4995 = vmatpush1.bf16.msra.mxu0 0
        %4996 = vmatprep.subr.bf16.mxu0 0
        %4997 = vmatpush1.bf16.msra.mxu0 0
        %4998 = vmatprep.subr.bf16.mxu0 0
        %4999 = vmatpush1.bf16.msra.mxu0 0
        %5000 = vmatprep.subr.bf16.mxu0 0
        %5001 = vmatpush1.bf16.msra.mxu0 0
        %5002 = vmatprep.subr.bf16.mxu0 0
        %5003 = vmatpush1.bf16.msra.mxu0 0
        %5004 = vmatprep.subr.bf16.mxu0 0
        %5005 = vmatpush1.bf16.msra.mxu0 0
        %5006 = vmatprep.mubr.bf16.mxu0 0
        %5007 = vmatmul.mubr.bf16.gmra.mrb[0].mxu0 %v4966
        %v5008 = vpop.f32.mrb[0].mxu0
        %v5009 = vadd.f32 0.0, %v5008
        %v5010 = vpop.f32.mrb[0].mxu0
        %v5011 = vadd.f32 0.0, %v5010
        %v5012 = vpop.f32.mrb[0].mxu0
        %v5013 = vpop.f32.mrb[0].mxu0
        %5014 = vdwg.mxu0
        %v5016 = vunpack.c.l.b16 %v4946
        %v5017 = vunpack.c.h.b16 %v4946
        %v5018 = vpack.c.b16 %v5016, %v5016
        %v5019 = vpack.c.b16 %v5017, %v5017
        %v5021 = vsel %vm199, %v4944, 0
        %v5024 = vsel %vm203, %v5018, 0
        %v5027 = vsel %vm203, %v5019, 0
        %5029 = vmatprep.subr.bf16.mxu0 %v5027
        %5030 = vmatpush1.bf16.msra.mxu0 %v5024
        %5031 = vmatprep.subr.bf16.mxu0 0
        %5032 = vmatpush1.bf16.msra.mxu0 0
        %5033 = vmatprep.subr.bf16.mxu0 0
        %5034 = vmatpush1.bf16.msra.mxu0 0
        %5035 = vmatprep.subr.bf16.mxu0 0
        %5036 = vmatpush1.bf16.msra.mxu0 0
        %5037 = vmatprep.subr.bf16.mxu0 0
        %5038 = vmatpush1.bf16.msra.mxu0 0
        %5039 = vmatprep.subr.bf16.mxu0 0
        %5040 = vmatpush1.bf16.msra.mxu0 0
        %5041 = vmatprep.subr.bf16.mxu0 0
        %5042 = vmatpush1.bf16.msra.mxu0 0
        %5043 = vmatprep.subr.bf16.mxu0 0
        %5044 = vmatpush1.bf16.msra.mxu0 0
        %5045 = vmatprep.subr.bf16.mxu0 0
        %5046 = vmatpush1.bf16.msra.mxu0 0
        %5047 = vmatprep.subr.bf16.mxu0 0
        %5048 = vmatpush1.bf16.msra.mxu0 0
        %5049 = vmatprep.subr.bf16.mxu0 0
        %5050 = vmatpush1.bf16.msra.mxu0 0
        %5051 = vmatprep.subr.bf16.mxu0 0
        %5052 = vmatpush1.bf16.msra.mxu0 0
        %5053 = vmatprep.subr.bf16.mxu0 0
        %5054 = vmatpush1.bf16.msra.mxu0 0
        %5055 = vmatprep.subr.bf16.mxu0 0
        %5056 = vmatpush1.bf16.msra.mxu0 0
        %5057 = vmatprep.subr.bf16.mxu0 0
        %5058 = vmatpush1.bf16.msra.mxu0 0
        %5059 = vmatprep.subr.bf16.mxu0 0
        %5060 = vmatpush1.bf16.msra.mxu0 0
        %5061 = vmatprep.mubr.bf16.mxu0 0
        %5062 = vmatmul.mubr.bf16.gmra.mrb[0].mxu0 %v5021
        %v5063 = vpop.f32.mrb[0].mxu0
        %v5064 = vadd.f32 %v5009, %v5063
        %v5065 = vpop.f32.mrb[0].mxu0
        %v5066 = vadd.f32 %v5011, %v5065
        %v5067 = vpop.f32.mrb[0].mxu0
        %v5068 = vpop.f32.mrb[0].mxu0
        %5069 = vdwg.mxu0
        %v5070 = vadd.f32 %v4938, %v5064
        %v5071 = vadd.f32 %v4940, %v5066
        %s5072 = scalar_lea.vmem %s168, 128
        %v5073 = vld [vmem:[%s5072] sm:$0xf]
        %v5074 = vld [vmem:[%s5072 + $0x4] sm:$0x1]
        %v5075 = vld [vmem:[%s440] sm:$0xff]
        %v5076 = vld [vmem:[%s442] sm:$0xff]
        %v5079 = vunpack.c.l.b16 %v5073
        %v5080 = vunpack.c.l.b16 %v5074
        %v5081 = vpack.c.b16 %v5080, %v5079
        %v5083 = vshrl.u32 %v5081, 16
        %v5085 = vshll.u32 %v5081, 16
        %v5087 = vrot.slane %v5085, 1
        %v5088 = vor.u32 %v5083, %v5087
        %v5090 = vunpack.c.l.b16 %v5076
        %v5091 = vunpack.c.h.b16 %v5076
        %v5092 = vpack.c.b16 %v5090, %v5090
        %v5093 = vpack.c.b16 %v5091, %v5091
        %v5095 = vsel %vm199, %v5088, 0
        %v5098 = vsel %vm203, %v5092, 0
        %v5101 = vsel %vm203, %v5093, 0
        %5103 = vmatprep.subr.bf16.mxu0 %v5101
        %5104 = vmatpush1.bf16.msra.mxu0 %v5098
        %5105 = vmatprep.subr.bf16.mxu0 0
        %5106 = vmatpush1.bf16.msra.mxu0 0
        %5107 = vmatprep.subr.bf16.mxu0 0
        %5108 = vmatpush1.bf16.msra.mxu0 0
        %5109 = vmatprep.subr.bf16.mxu0 0
        %5110 = vmatpush1.bf16.msra.mxu0 0
        %5111 = vmatprep.subr.bf16.mxu0 0
        %5112 = vmatpush1.bf16.msra.mxu0 0
        %5113 = vmatprep.subr.bf16.mxu0 0
        %5114 = vmatpush1.bf16.msra.mxu0 0
        %5115 = vmatprep.subr.bf16.mxu0 0
        %5116 = vmatpush1.bf16.msra.mxu0 0
        %5117 = vmatprep.subr.bf16.mxu0 0
        %5118 = vmatpush1.bf16.msra.mxu0 0
        %5119 = vmatprep.subr.bf16.mxu0 0
        %5120 = vmatpush1.bf16.msra.mxu0 0
        %5121 = vmatprep.subr.bf16.mxu0 0
        %5122 = vmatpush1.bf16.msra.mxu0 0
        %5123 = vmatprep.subr.bf16.mxu0 0
        %5124 = vmatpush1.bf16.msra.mxu0 0
        %5125 = vmatprep.subr.bf16.mxu0 0
        %5126 = vmatpush1.bf16.msra.mxu0 0
        %5127 = vmatprep.subr.bf16.mxu0 0
        %5128 = vmatpush1.bf16.msra.mxu0 0
        %5129 = vmatprep.subr.bf16.mxu0 0
        %5130 = vmatpush1.bf16.msra.mxu0 0
        %5131 = vmatprep.subr.bf16.mxu0 0
        %5132 = vmatpush1.bf16.msra.mxu0 0
        %5133 = vmatprep.subr.bf16.mxu0 0
        %5134 = vmatpush1.bf16.msra.mxu0 0
        %5135 = vmatprep.mubr.bf16.mxu0 0
        %5136 = vmatmul.mubr.bf16.gmra.mrb[0].mxu0 %v5095
        %v5137 = vpop.f32.mrb[0].mxu0
        %v5138 = vadd.f32 0.0, %v5137
        %v5139 = vpop.f32.mrb[0].mxu0
        %v5140 = vadd.f32 0.0, %v5139
        %v5141 = vpop.f32.mrb[0].mxu0
        %v5142 = vpop.f32.mrb[0].mxu0
        %5143 = vdwg.mxu0
        %v5145 = vunpack.c.l.b16 %v5075
        %v5146 = vunpack.c.h.b16 %v5075
        %v5147 = vpack.c.b16 %v5145, %v5145
        %v5148 = vpack.c.b16 %v5146, %v5146
        %v5150 = vsel %vm199, %v5073, 0
        %v5153 = vsel %vm203, %v5147, 0
        %v5156 = vsel %vm203, %v5148, 0
        %5158 = vmatprep.subr.bf16.mxu0 %v5156
        %5159 = vmatpush1.bf16.msra.mxu0 %v5153
        %5160 = vmatprep.subr.bf16.mxu0 0
        %5161 = vmatpush1.bf16.msra.mxu0 0
        %5162 = vmatprep.subr.bf16.mxu0 0
        %5163 = vmatpush1.bf16.msra.mxu0 0
        %5164 = vmatprep.subr.bf16.mxu0 0
        %5165 = vmatpush1.bf16.msra.mxu0 0
        %5166 = vmatprep.subr.bf16.mxu0 0
        %5167 = vmatpush1.bf16.msra.mxu0 0
        %5168 = vmatprep.subr.bf16.mxu0 0
        %5169 = vmatpush1.bf16.msra.mxu0 0
        %5170 = vmatprep.subr.bf16.mxu0 0
        %5171 = vmatpush1.bf16.msra.mxu0 0
        %5172 = vmatprep.subr.bf16.mxu0 0
        %5173 = vmatpush1.bf16.msra.mxu0 0
        %5174 = vmatprep.subr.bf16.mxu0 0
        %5175 = vmatpush1.bf16.msra.mxu0 0
        %5176 = vmatprep.subr.bf16.mxu0 0
        %5177 = vmatpush1.bf16.msra.mxu0 0
        %5178 = vmatprep.subr.bf16.mxu0 0
        %5179 = vmatpush1.bf16.msra.mxu0 0
        %5180 = vmatprep.subr.bf16.mxu0 0
        %5181 = vmatpush1.bf16.msra.mxu0 0
        %5182 = vmatprep.subr.bf16.mxu0 0
        %5183 = vmatpush1.bf16.msra.mxu0 0
        %5184 = vmatprep.subr.bf16.mxu0 0
        %5185 = vmatpush1.bf16.msra.mxu0 0
        %5186 = vmatprep.subr.bf16.mxu0 0
        %5187 = vmatpush1.bf16.msra.mxu0 0
        %5188 = vmatprep.subr.bf16.mxu0 0
        %5189 = vmatpush1.bf16.msra.mxu0 0
        %5190 = vmatprep.mubr.bf16.mxu0 0
        %5191 = vmatmul.mubr.bf16.gmra.mrb[0].mxu0 %v5150
        %v5192 = vpop.f32.mrb[0].mxu0
        %v5193 = vadd.f32 %v5138, %v5192
        %v5194 = vpop.f32.mrb[0].mxu0
        %v5195 = vadd.f32 %v5140, %v5194
        %v5196 = vpop.f32.mrb[0].mxu0
        %v5197 = vpop.f32.mrb[0].mxu0
        %5198 = vdwg.mxu0
        %v5199 = vadd.f32 %v5070, %v5193
        %v5200 = vadd.f32 %v5071, %v5195
        %v5201 = vmax.f32 %v5199, %v5200
        %5202 = vmatprep.subr.bf16.mxu0 %v4846
        %5203 = vmatpush1.bf16.msra.mxu0 %v4843
        %5204 = vmatprep.subr.bf16.mxu0 0
        %5205 = vmatpush1.bf16.msra.mxu0 0
        %5206 = vmatprep.subr.bf16.mxu0 0
        %5207 = vmatpush1.bf16.msra.mxu0 0
        %5208 = vmatprep.subr.bf16.mxu0 0
        %5209 = vmatpush1.bf16.msra.mxu0 0
        %5210 = vmatprep.subr.bf16.mxu0 0
        %5211 = vmatpush1.bf16.msra.mxu0 0
        %5212 = vmatprep.subr.bf16.mxu0 0
        %5213 = vmatpush1.bf16.msra.mxu0 0
        %5214 = vmatprep.subr.bf16.mxu0 0
        %5215 = vmatpush1.bf16.msra.mxu0 0
        %5216 = vmatprep.subr.bf16.mxu0 0
        %5217 = vmatpush1.bf16.msra.mxu0 0
        %5218 = vmatprep.subr.bf16.mxu0 0
        %5219 = vmatpush1.bf16.msra.mxu0 0
        %5220 = vmatprep.subr.bf16.mxu0 0
        %5221 = vmatpush1.bf16.msra.mxu0 0
        %5222 = vmatprep.subr.bf16.mxu0 0
        %5223 = vmatpush1.bf16.msra.mxu0 0
        %5224 = vmatprep.subr.bf16.mxu0 0
        %5225 = vmatpush1.bf16.msra.mxu0 0
        %5226 = vmatprep.subr.bf16.mxu0 0
        %5227 = vmatpush1.bf16.msra.mxu0 0
        %5228 = vmatprep.subr.bf16.mxu0 0
        %5229 = vmatpush1.bf16.msra.mxu0 0
        %5230 = vmatprep.subr.bf16.mxu0 0
        %5231 = vmatpush1.bf16.msra.mxu0 0
        %5232 = vmatprep.subr.bf16.mxu0 0
        %5233 = vmatpush1.bf16.msra.mxu0 0
        %5234 = vmatprep.mubr.bf16.mxu0 0
        %5235 = vmatmul.mubr.bf16.gmra.mrb[0].mxu0 %v4966
        %v5236 = vpop.f32.mrb[0].mxu0
        %v5237 = vadd.f32 0.0, %v5236
        %v5238 = vpop.f32.mrb[0].mxu0
        %v5239 = vadd.f32 0.0, %v5238
        %v5240 = vpop.f32.mrb[0].mxu0
        %v5241 = vpop.f32.mrb[0].mxu0
        %5242 = vdwg.mxu0
        %5243 = vmatprep.subr.bf16.mxu0 %v4901
        %5244 = vmatpush1.bf16.msra.mxu0 %v4898
        %5245 = vmatprep.subr.bf16.mxu0 0
        %5246 = vmatpush1.bf16.msra.mxu0 0
        %5247 = vmatprep.subr.bf16.mxu0 0
        %5248 = vmatpush1.bf16.msra.mxu0 0
        %5249 = vmatprep.subr.bf16.mxu0 0
        %5250 = vmatpush1.bf16.msra.mxu0 0
        %5251 = vmatprep.subr.bf16.mxu0 0
        %5252 = vmatpush1.bf16.msra.mxu0 0
        %5253 = vmatprep.subr.bf16.mxu0 0
        %5254 = vmatpush1.bf16.msra.mxu0 0
        %5255 = vmatprep.subr.bf16.mxu0 0
        %5256 = vmatpush1.bf16.msra.mxu0 0
        %5257 = vmatprep.subr.bf16.mxu0 0
        %5258 = vmatpush1.bf16.msra.mxu0 0
        %5259 = vmatprep.subr.bf16.mxu0 0
        %5260 = vmatpush1.bf16.msra.mxu0 0
        %5261 = vmatprep.subr.bf16.mxu0 0
        %5262 = vmatpush1.bf16.msra.mxu0 0
        %5263 = vmatprep.subr.bf16.mxu0 0
        %5264 = vmatpush1.bf16.msra.mxu0 0
        %5265 = vmatprep.subr.bf16.mxu0 0
        %5266 = vmatpush1.bf16.msra.mxu0 0
        %5267 = vmatprep.subr.bf16.mxu0 0
        %5268 = vmatpush1.bf16.msra.mxu0 0
        %5269 = vmatprep.subr.bf16.mxu0 0
        %5270 = vmatpush1.bf16.msra.mxu0 0
        %5271 = vmatprep.subr.bf16.mxu0 0
        %5272 = vmatpush1.bf16.msra.mxu0 0
        %5273 = vmatprep.subr.bf16.mxu0 0
        %5274 = vmatpush1.bf16.msra.mxu0 0
        %5275 = vmatprep.mubr.bf16.mxu0 0
        %5276 = vmatmul.mubr.bf16.gmra.mrb[0].mxu0 %v5021
        %v5277 = vpop.f32.mrb[0].mxu0
        %v5278 = vadd.f32 %v5237, %v5277
        %v5279 = vpop.f32.mrb[0].mxu0
        %v5280 = vadd.f32 %v5239, %v5279
        %v5281 = vpop.f32.mrb[0].mxu0
        %v5282 = vpop.f32.mrb[0].mxu0
        %5283 = vdwg.mxu0
        %5284 = vmatprep.subr.bf16.mxu0 %v4972
        %5285 = vmatpush1.bf16.msra.mxu0 %v4969
        %5286 = vmatprep.subr.bf16.mxu0 0
        %5287 = vmatpush1.bf16.msra.mxu0 0
        %5288 = vmatprep.subr.bf16.mxu0 0
        %5289 = vmatpush1.bf16.msra.mxu0 0
        %5290 = vmatprep.subr.bf16.mxu0 0
        %5291 = vmatpush1.bf16.msra.mxu0 0
        %5292 = vmatprep.subr.bf16.mxu0 0
        %5293 = vmatpush1.bf16.msra.mxu0 0
        %5294 = vmatprep.subr.bf16.mxu0 0
        %5295 = vmatpush1.bf16.msra.mxu0 0
        %5296 = vmatprep.subr.bf16.mxu0 0
        %5297 = vmatpush1.bf16.msra.mxu0 0
        %5298 = vmatprep.subr.bf16.mxu0 0
        %5299 = vmatpush1.bf16.msra.mxu0 0
        %5300 = vmatprep.subr.bf16.mxu0 0
        %5301 = vmatpush1.bf16.msra.mxu0 0
        %5302 = vmatprep.subr.bf16.mxu0 0
        %5303 = vmatpush1.bf16.msra.mxu0 0
        %5304 = vmatprep.subr.bf16.mxu0 0
        %5305 = vmatpush1.bf16.msra.mxu0 0
        %5306 = vmatprep.subr.bf16.mxu0 0
        %5307 = vmatpush1.bf16.msra.mxu0 0
        %5308 = vmatprep.subr.bf16.mxu0 0
        %5309 = vmatpush1.bf16.msra.mxu0 0
        %5310 = vmatprep.subr.bf16.mxu0 0
        %5311 = vmatpush1.bf16.msra.mxu0 0
        %5312 = vmatprep.subr.bf16.mxu0 0
        %5313 = vmatpush1.bf16.msra.mxu0 0
        %5314 = vmatprep.subr.bf16.mxu0 0
        %5315 = vmatpush1.bf16.msra.mxu0 0
        %5316 = vmatprep.mubr.bf16.mxu0 0
        %5317 = vmatmul.mubr.bf16.gmra.mrb[0].mxu0 %v5095
        %v5318 = vpop.f32.mrb[0].mxu0
        %v5319 = vadd.f32 0.0, %v5318
        %v5320 = vpop.f32.mrb[0].mxu0
        %v5321 = vadd.f32 0.0, %v5320
        %v5322 = vpop.f32.mrb[0].mxu0
        %v5323 = vpop.f32.mrb[0].mxu0
        %5324 = vdwg.mxu0
        %5325 = vmatprep.subr.bf16.mxu0 %v5027
        %5326 = vmatpush1.bf16.msra.mxu0 %v5024
        %5327 = vmatprep.subr.bf16.mxu0 0
        %5328 = vmatpush1.bf16.msra.mxu0 0
        %5329 = vmatprep.subr.bf16.mxu0 0
        %5330 = vmatpush1.bf16.msra.mxu0 0
        %5331 = vmatprep.subr.bf16.mxu0 0
        %5332 = vmatpush1.bf16.msra.mxu0 0
        %5333 = vmatprep.subr.bf16.mxu0 0
        %5334 = vmatpush1.bf16.msra.mxu0 0
        %5335 = vmatprep.subr.bf16.mxu0 0
        %5336 = vmatpush1.bf16.msra.mxu0 0
        %5337 = vmatprep.subr.bf16.mxu0 0
        %5338 = vmatpush1.bf16.msra.mxu0 0
        %5339 = vmatprep.subr.bf16.mxu0 0
        %5340 = vmatpush1.bf16.msra.mxu0 0
        %5341 = vmatprep.subr.bf16.mxu0 0
        %5342 = vmatpush1.bf16.msra.mxu0 0
        %5343 = vmatprep.subr.bf16.mxu0 0
        %5344 = vmatpush1.bf16.msra.mxu0 0
        %5345 = vmatprep.subr.bf16.mxu0 0
        %5346 = vmatpush1.bf16.msra.mxu0 0
        %5347 = vmatprep.subr.bf16.mxu0 0
        %5348 = vmatpush1.bf16.msra.mxu0 0
        %5349 = vmatprep.subr.bf16.mxu0 0
        %5350 = vmatpush1.bf16.msra.mxu0 0
        %5351 = vmatprep.subr.bf16.mxu0 0
        %5352 = vmatpush1.bf16.msra.mxu0 0
        %5353 = vmatprep.subr.bf16.mxu0 0
        %5354 = vmatpush1.bf16.msra.mxu0 0
        %5355 = vmatprep.subr.bf16.mxu0 0
        %5356 = vmatpush1.bf16.msra.mxu0 0
        %5357 = vmatprep.mubr.bf16.mxu0 0
        %5358 = vmatmul.mubr.bf16.gmra.mrb[0].mxu0 %v5150
        %v5359 = vpop.f32.mrb[0].mxu0
        %v5360 = vadd.f32 %v5319, %v5359
        %v5361 = vpop.f32.mrb[0].mxu0
        %v5362 = vadd.f32 %v5321, %v5361
        %v5363 = vpop.f32.mrb[0].mxu0
        %v5364 = vpop.f32.mrb[0].mxu0
        %5365 = vdwg.mxu0
        %v5366 = vadd.f32 %v5278, %v5360
        %v5367 = vadd.f32 %v5280, %v5362
        %s5368 = scalar_lea.vmem %s168, 136
        %v5369 = vld [vmem:[%s5368] sm:$0xf]
        %v5370 = vld [vmem:[%s5368 + $0x4] sm:$0x1]
        %v5373 = vunpack.c.l.b16 %v5369
        %v5374 = vunpack.c.l.b16 %v5370
        %v5375 = vpack.c.b16 %v5374, %v5373
        %v5377 = vshrl.u32 %v5375, 16
        %v5379 = vshll.u32 %v5375, 16
        %v5381 = vrot.slane %v5379, 1
        %v5382 = vor.u32 %v5377, %v5381
        %v5384 = vsel %vm199, %v5382, 0
        %5386 = vmatprep.subr.bf16.mxu0 %v5101
        %5387 = vmatpush1.bf16.msra.mxu0 %v5098
        %5388 = vmatprep.subr.bf16.mxu0 0
        %5389 = vmatpush1.bf16.msra.mxu0 0
        %5390 = vmatprep.subr.bf16.mxu0 0
        %5391 = vmatpush1.bf16.msra.mxu0 0
        %5392 = vmatprep.subr.bf16.mxu0 0
        %5393 = vmatpush1.bf16.msra.mxu0 0
        %5394 = vmatprep.subr.bf16.mxu0 0
        %5395 = vmatpush1.bf16.msra.mxu0 0
        %5396 = vmatprep.subr.bf16.mxu0 0
        %5397 = vmatpush1.bf16.msra.mxu0 0
        %5398 = vmatprep.subr.bf16.mxu0 0
        %5399 = vmatpush1.bf16.msra.mxu0 0
        %5400 = vmatprep.subr.bf16.mxu0 0
        %5401 = vmatpush1.bf16.msra.mxu0 0
        %5402 = vmatprep.subr.bf16.mxu0 0
        %5403 = vmatpush1.bf16.msra.mxu0 0
        %5404 = vmatprep.subr.bf16.mxu0 0
        %5405 = vmatpush1.bf16.msra.mxu0 0
        %5406 = vmatprep.subr.bf16.mxu0 0
        %5407 = vmatpush1.bf16.msra.mxu0 0
        %5408 = vmatprep.subr.bf16.mxu0 0
        %5409 = vmatpush1.bf16.msra.mxu0 0
        %5410 = vmatprep.subr.bf16.mxu0 0
        %5411 = vmatpush1.bf16.msra.mxu0 0
        %5412 = vmatprep.subr.bf16.mxu0 0
        %5413 = vmatpush1.bf16.msra.mxu0 0
        %5414 = vmatprep.subr.bf16.mxu0 0
        %5415 = vmatpush1.bf16.msra.mxu0 0
        %5416 = vmatprep.subr.bf16.mxu0 0
        %5417 = vmatpush1.bf16.msra.mxu0 0
        %5418 = vmatprep.mubr.bf16.mxu0 0
        %5419 = vmatmul.mubr.bf16.gmra.mrb[0].mxu0 %v5384
        %v5420 = vpop.f32.mrb[0].mxu0
        %v5421 = vadd.f32 0.0, %v5420
        %v5422 = vpop.f32.mrb[0].mxu0
        %v5423 = vadd.f32 0.0, %v5422
        %v5424 = vpop.f32.mrb[0].mxu0
        %v5425 = vpop.f32.mrb[0].mxu0
        %5426 = vdwg.mxu0
        %v5428 = vsel %vm199, %v5369, 0
        %5430 = vmatprep.subr.bf16.mxu0 %v5156
        %5431 = vmatpush1.bf16.msra.mxu0 %v5153
        %5432 = vmatprep.subr.bf16.mxu0 0
        %5433 = vmatpush1.bf16.msra.mxu0 0
        %5434 = vmatprep.subr.bf16.mxu0 0
        %5435 = vmatpush1.bf16.msra.mxu0 0
        %5436 = vmatprep.subr.bf16.mxu0 0
        %5437 = vmatpush1.bf16.msra.mxu0 0
        %5438 = vmatprep.subr.bf16.mxu0 0
        %5439 = vmatpush1.bf16.msra.mxu0 0
        %5440 = vmatprep.subr.bf16.mxu0 0
        %5441 = vmatpush1.bf16.msra.mxu0 0
        %5442 = vmatprep.subr.bf16.mxu0 0
        %5443 = vmatpush1.bf16.msra.mxu0 0
        %5444 = vmatprep.subr.bf16.mxu0 0
        %5445 = vmatpush1.bf16.msra.mxu0 0
        %5446 = vmatprep.subr.bf16.mxu0 0
        %5447 = vmatpush1.bf16.msra.mxu0 0
        %5448 = vmatprep.subr.bf16.mxu0 0
        %5449 = vmatpush1.bf16.msra.mxu0 0
        %5450 = vmatprep.subr.bf16.mxu0 0
        %5451 = vmatpush1.bf16.msra.mxu0 0
        %5452 = vmatprep.subr.bf16.mxu0 0
        %5453 = vmatpush1.bf16.msra.mxu0 0
        %5454 = vmatprep.subr.bf16.mxu0 0
        %5455 = vmatpush1.bf16.msra.mxu0 0
        %5456 = vmatprep.subr.bf16.mxu0 0
        %5457 = vmatpush1.bf16.msra.mxu0 0
        %5458 = vmatprep.subr.bf16.mxu0 0
        %5459 = vmatpush1.bf16.msra.mxu0 0
        %5460 = vmatprep.subr.bf16.mxu0 0
        %5461 = vmatpush1.bf16.msra.mxu0 0
        %5462 = vmatprep.mubr.bf16.mxu0 0
        %5463 = vmatmul.mubr.bf16.gmra.mrb[0].mxu0 %v5428
        %v5464 = vpop.f32.mrb[0].mxu0
        %v5465 = vadd.f32 %v5421, %v5464
        %v5466 = vpop.f32.mrb[0].mxu0
        %v5467 = vadd.f32 %v5423, %v5466
        %v5468 = vpop.f32.mrb[0].mxu0
        %v5469 = vpop.f32.mrb[0].mxu0
        %5470 = vdwg.mxu0
        %v5471 = vadd.f32 %v5366, %v5465
        %v5472 = vadd.f32 %v5367, %v5467
        %v5473 = vmax.f32 %v5471, %v5472
        %v5474 = vmax.f32 %v5201, %v5473
        %v5475 = vadd.f32 %v5474, %v175
        %v5476 = vmax.f32 %v5475, 0.0
        %v5477 = vpack.c.bf16 %v5476, %v5476
        %s5478 = scalar_lea.vmem %s163, 28 [#allocation2]
        %5479 = vst [vmem:[%s5478] sm:$0xf] %v5477
        %s5480 = sand.u32 %s93, 1
        %s5481 = scalar_lea.sflag [#allocation3], %s5480
        %s5482 = sand.u32 %s93, 1
        %s5483 = smul.addr %s5482, 32
        %s5484 = scalar_lea.vmem [#allocation2], %s5483
        // Predicated region
        $region33: #{tpu_custom_call.1} parent=31 // pred_check
          %p5485 = pneg %p103
        $region34: #{tpu_custom_call.1} parent=31 // pred_check_branch
          %5487 = sbr.rel (%p5485) target = $region36
        $region35: #{tpu_custom_call.1} parent=31 // pred_region
          %s5489 = ssub.s32 512, 512
          %5490 = vsyncadd %s5481, %s5489
          %s5491 = smul.addr %s17, 8
          %s5492 = smul.addr %s5491, 64
          %s5493 = scalar_lea.hbm %s3, %s5492
          %s5494 = sshll.u32 %s5484, 4
          %s5495 = int_to_ptr.vmem [resolvable:$true] %s5494
          %5500 = dma.vmem_to_hbm [thread:$0]  %s5495, 512, %s5493, %s5481, 64, 64, 4
        $region36: #{tpu_custom_call.1} parent=31 // pred_fallthru
          _
      $region32: #{tpu_custom_call.1} parent=5 // pred_fallthru
        _
      %p5501 = scmp.le.s32.totalorder 2, %s12
      // Predicated region
      $region37: #{tpu_custom_call.1} parent=5 // pred_check
        %p5502 = pneg %p5501
      $region38: #{tpu_custom_call.1} parent=5 // pred_check_branch
        %5504 = sbr.rel (%p5502) target = $region40
      $region39: #{tpu_custom_call.1} parent=5 // pred_region
        %s5505 = ssub.s32 %s12, 2
        // Predicated region
        $region41: #{tpu_custom_call.1} parent=39 // pred_check
          %p5506 = pneg %p109
        $region42: #{tpu_custom_call.1} parent=39 // pred_check_branch
          %5508 = sbr.rel (%p5506) target = $region44
        $region43: #{tpu_custom_call.1} parent=39 // pred_region
          %s5509 = sand.u32 %s94, 1
          %s5510 = scalar_lea.sflag [#allocation3], %s5509
          %s5511 = sand.u32 %s94, 1
          %s5512 = smul.addr %s5511, 32
          %s5513 = scalar_lea.vmem [#allocation2], %s5512
          %5514 = dma.done %s5510, 512
        $region44: #{tpu_custom_call.1} parent=39 // pred_fallthru
          _
      $region40: #{tpu_custom_call.1} parent=5 // pred_fallthru
        _
    $region6: #{tpu_custom_call.1} parent=1 // loop_footer
      %s16 = sadd.s32 1, %s12
    $region7: #{tpu_custom_call.1} parent=1 // loop_footer_branch
      %11 = sbr.rel target = $region3
    $region8: #{tpu_custom_call.1} parent=1 // loop_exit
      _
    %5515 = vsyncpa [#allocation3], 1
    %s5516 = scalar_lea.sflag [#allocation3], 1
    %5517 = vsyncpa %s5516, 1

</llo_original>
